<compile_context>
chip_gen: v6e
topology: v6e:2x2x1
jax: 0.10.0
libtpu: 0.0.40
codegen_flags: <defaults>
</compile_context>

<pallas_src>
import jax
import jax.numpy as jnp
from jax.experimental import pallas as pl
from jax.experimental.pallas import tpu as pltpu

C_IN = 2208   # densenet161 feature channels (AlternativeNet input)
C_OUT = 2048  # AlternativeNet output channels
BN_EPS = 1e-5


def _conv1x1_bn_relu_kernel(x_ref, w_ref, scale_ref, bias_ref, o_ref):
    # x_ref:     (tm, C_in)  f32   activation tile (cast to bf16 here, under the MXU)
    # w_ref:     (C_in, tn)  bf16  transposed conv weight (resident across the i sweep)
    # scale_ref: (1,  tn)    f32   BN scale  (f32 epilogue -> no bf16 quant amplification)
    # bias_ref:  (1,  tn)    f32   BN bias   (beta - mean * scale)
    # o_ref:     (tm, tn)    bf16
    x = x_ref[...].astype(jnp.bfloat16)
    acc = jnp.dot(x, w_ref[...], preferred_element_type=jnp.float32)
    y = acc * scale_ref[...] + bias_ref[...]
    o_ref[...] = jnp.maximum(y, 0.0).astype(o_ref.dtype)


def _choose_tm(M):
    """Sublane-aligned row tile; prefer large tiles that divide M."""
    for cand in (512, 256, 128):
        if M % cand == 0:
            return cand
    if M >= 128:
        return 128                       # ragged last tile handled by masked edge block
    return max(8, ((M + 7) // 8) * 8)    # tiny M: one sublane-aligned block


def _choose_tn(M):
    """C_out tile.

    Small/medium M: weight HBM reads dominate -> split C_out in two so the grid
    keeps >=2 parallel steps and the two v7x TensorCores stream disjoint weight
    halves.  Large M: activation reads dominate -> keep the full 9 MB weight
    VMEM-resident (single C_out tile) so x streams from HBM exactly once.
    """
    act_bytes = M * C_IN * 4
    weight_bytes = C_IN * C_OUT * 2
    return 1024 if act_bytes <= weight_bytes else 2048


def conv1x1_bn_relu_nhwc(x_nhwc, w_t_bf16, scale_f32, bias_f32):
    """Fused 1x1 conv + BN(eval) + ReLU on an NHWC tensor.

    x_nhwc:    (N, H, W, C_in)  f32 (or bf16) activations
    w_t_bf16:  (C_in, C_out)    bf16 transposed conv weight (un-scaled)
    scale_f32: (1, C_out)       f32  BN scale = gamma / sqrt(var + eps)
    bias_f32:  (1, C_out)       f32  BN bias  = beta - mean * scale
    returns:   (N, H, W, C_out) bf16
    """
    N, H, W, C = x_nhwc.shape
    assert C == C_IN

    M = N * H * W
    tm = _choose_tm(M)
    tn = _choose_tn(M)
    num_i = pl.cdiv(M, tm)
    num_j = C_OUT // tn

    x2d = x_nhwc.reshape(M, C)           # stays f32 — no wrapper-side cast / pad copy

    out2d = pl.pallas_call(
        _conv1x1_bn_relu_kernel,
        out_shape=jax.ShapeDtypeStruct((M, C_OUT), jnp.bfloat16),
        grid_spec=pl.GridSpec(
            # j (C_out) is the OUTER axis -> each weight slab is DMA'd once and
            # stays VMEM-resident across the whole inner i (row) sweep.
            grid=(num_j, num_i),
            in_specs=[
                pl.BlockSpec((tm, C), lambda j, i: (i, 0)),   # activations (f32)
                pl.BlockSpec((C, tn), lambda j, i: (0, j)),   # weight (bf16, resident per j)
                pl.BlockSpec((1, tn), lambda j, i: (0, j)),   # BN scale (f32)
                pl.BlockSpec((1, tn), lambda j, i: (0, j)),   # BN bias  (f32)
            ],
            out_specs=pl.BlockSpec((tm, tn), lambda j, i: (i, j)),
        ),
        compiler_params=pltpu.CompilerParams(
            dimension_semantics=("parallel", "parallel"),
            vmem_limit_bytes=40 * 1024 * 1024),
    )(x2d, w_t_bf16, scale_f32, bias_f32)

    return out2d.reshape(N, H, W, C_OUT)


def conv1x1_bn_relu_nchw(x_nchw, w_t_bf16, scale_f32, bias_f32):
    """NCHW wrapper (PyTorch layout boundary): transpose in/out once.

    Output stays bf16 so the NHWC->NCHW relayout reads half the bytes; the
    downstream consumer (EAGFM, not implemented) would take bf16 directly.
    """
    x_nhwc = jnp.transpose(x_nchw, (0, 2, 3, 1))
    y_nhwc = conv1x1_bn_relu_nhwc(x_nhwc, w_t_bf16, scale_f32, bias_f32)
    return jnp.transpose(y_nhwc, (0, 3, 1, 2))


class TOpNetPallas:
    """Pallas-backed TOpNet. Only the AlternativeNet branch (x4 path) is
    implemented; the external backbone / attention blocks are unavailable."""

    def __init__(self, key):
        k_w, k_g, k_b, k_m, k_v = jax.random.split(key, 5)
        # Deterministic synthetic parameters (shapes match nn.Conv2d / BatchNorm2d).
        self.conv_weight = (jax.random.normal(k_w, (C_OUT, C_IN, 1, 1), jnp.float32)
                            * (1.0 / jnp.sqrt(C_IN)))
        self.bn_gamma = 1.0 + 0.1 * jax.random.normal(k_g, (C_OUT,), jnp.float32)
        self.bn_beta = 0.1 * jax.random.normal(k_b, (C_OUT,), jnp.float32)
        self.bn_mean = 0.1 * jax.random.normal(k_m, (C_OUT,), jnp.float32)
        self.bn_var = jnp.abs(jax.random.normal(k_v, (C_OUT,), jnp.float32)) + 0.5

        # --- one-time parameter prep (hoisted out of the per-call path) ---
        # Weight stays un-scaled in bf16; the BN scale is applied in f32 inside
        # the kernel epilogue (hides under the MXU, preserves f32 parity).
        self.w_t = self.conv_weight.reshape(C_OUT, C_IN).T.astype(jnp.bfloat16)
        scale = self.bn_gamma * jax.lax.rsqrt(self.bn_var + BN_EPS)          # (C_out,)
        self.scale = scale.reshape(1, C_OUT).astype(jnp.float32)
        self.bias = (self.bn_beta - self.bn_mean * scale
                     ).reshape(1, C_OUT).astype(jnp.float32)

    def alternative_net(self, x4_nchw):
        return conv1x1_bn_relu_nchw(x4_nchw, self.w_t, self.scale, self.bias)

    def forward(self, x4_nchw):
        # TODO(synk): x = prex(x); IEL; FSASDFFN; DRAMiT; MASAG; DTAB; conv
        #             (resnet layers); SSA/MSCA/layer4; EAGFM fuse; SHViT_Block —
        #             external sources not provided, so only the x4 branch runs.
        return self.alternative_net(x4_nchw)


def _reference_f32(x4, w, gamma, beta, mean, var):
    """Pure-JAX f32 reference (mirrors PyTorch Conv2d(1x1,bias=False)+BN(eval)+ReLU)."""
    N, C, H, W = x4.shape
    x2d = jnp.transpose(x4, (0, 2, 3, 1)).reshape(-1, C)
    y = x2d @ w.reshape(C_OUT, C_IN).T
    scale = gamma / jnp.sqrt(var + BN_EPS)
    y = y * scale + (beta - mean * scale)
    y = jnp.maximum(y, 0.0)
    return jnp.transpose(y.reshape(N, H, W, C_OUT), (0, 3, 1, 2))


def _reference_matched(x4, w_t_bf16, scale_f32, bias_f32):
    """Reference at the kernel's precision (bf16 inputs, f32 accumulation/epilogue)."""
    N, C, H, W = x4.shape
    x2d = jnp.transpose(x4, (0, 2, 3, 1)).reshape(-1, C).astype(jnp.bfloat16)
    y = jnp.dot(x2d, w_t_bf16, preferred_element_type=jnp.float32)
    y = jnp.maximum(y * scale_f32 + bias_f32, 0.0)
    return jnp.transpose(y.reshape(N, H, W, C_OUT), (0, 3, 1, 2))


if __name__ == "__main__":
    key = jax.random.PRNGKey(0)
    k_param, k_x = jax.random.split(key)

    model = TOpNetPallas(k_param)

    # Small, densenet161-feature-shaped input for the AlternativeNet branch:
    # batch=2, channels=2208 (fixed by the module), spatial=8x8.
    x4 = jax.random.normal(k_x, (2, C_IN, 8, 8), jnp.float32)

    fwd = jax.jit(lambda x: model.forward(x))
    out = jax.block_until_ready(fwd(x4))
    assert out.shape == (2, C_OUT, 8, 8), out.shape
    assert out.dtype == jnp.bfloat16, out.dtype
    out_f32 = out.astype(jnp.float32)

    # Tight check vs. a reference that uses the same precision as the kernel
    # (only the final bf16 store differs).
    ref_matched = _reference_matched(x4, model.w_t, model.scale, model.bias)
    assert jnp.allclose(out_f32, ref_matched, atol=1e-2, rtol=1e-2), \
        "mismatch vs bf16-matched JAX reference"

    # Looser sanity check vs. the full-f32 PyTorch-equivalent math (bf16
    # activation/weight/output quantization introduces ~1e-2-scale differences).
    ref_f32 = _reference_f32(x4, model.conv_weight, model.bn_gamma,
                             model.bn_beta, model.bn_mean, model.bn_var)
    assert jnp.allclose(out_f32, ref_f32, atol=1e-1, rtol=1e-1), \
        "mismatch vs f32 JAX reference"

    print("KERNEL_OK")
</pallas_src>

<mosaic_0001>
module attributes {stable_mosaic.version = 11 : i64} {
  func.func @_conv1x1_bn_relu_kernel(%arg0: i32, %arg1: i32, %arg2: memref<128x2208xf32, #tpu.memory_space<vmem>>, %arg3: memref<2208x1024xbf16, #tpu.memory_space<vmem>>, %arg4: memref<1x1024xf32, #tpu.memory_space<vmem>>, %arg5: memref<1x1024xf32, #tpu.memory_space<vmem>>, %arg6: memref<128x1024xbf16, #tpu.memory_space<vmem>>) attributes {dimension_semantics = [#tpu.dimension_semantics<parallel>, #tpu.dimension_semantics<parallel>], iteration_bounds = array<i64: 2, 1>, scalar_prefetch = 0 : i64, scratch_operands = 0 : i64, tpu.core_type = #tpu.core_type<tc>, window_params = [{transform_indices = @transform_0, window_bounds = array<i64: 128, 2208>}, {transform_indices = @transform_1, window_bounds = array<i64: 2208, 1024>}, {transform_indices = @transform_2, window_bounds = array<i64: 1, 1024>}, {transform_indices = @transform_3, window_bounds = array<i64: 1, 1024>}, {transform_indices = @transform_4, window_bounds = array<i64: 128, 1024>}]} {
    %c0 = arith.constant 0 : index
    %c0_0 = arith.constant 0 : index
    %0 = vector.load %arg2[%c0, %c0_0] : memref<128x2208xf32, #tpu.memory_space<vmem>>, vector<128x2208xf32>
    %1 = arith.truncf %0 : vector<128x2208xf32> to vector<128x2208xbf16>
    %c0_1 = arith.constant 0 : index
    %c0_2 = arith.constant 0 : index
    %2 = vector.load %arg3[%c0_1, %c0_2] : memref<2208x1024xbf16, #tpu.memory_space<vmem>>, vector<2208x1024xbf16>
    %cst = arith.constant dense<0.000000e+00> : vector<128x1024xf32>
    %3 = tpu.matmul %1, %2, %cst {dimension_numbers = #tpu.dot_dimension_numbers<[1], [0], [0], [1], [0, 0, 1, 1], [], []>} : vector<128x2208xbf16>, vector<2208x1024xbf16>, vector<128x1024xf32> -> vector<128x1024xf32>
    %c0_3 = arith.constant 0 : index
    %c0_4 = arith.constant 0 : index
    %4 = vector.load %arg4[%c0_3, %c0_4] : memref<1x1024xf32, #tpu.memory_space<vmem>>, vector<1x1024xf32>
    %5 = vector.broadcast %4 : vector<1x1024xf32> to vector<128x1024xf32>
    %6 = arith.mulf %3, %5 : vector<128x1024xf32>
    %c0_5 = arith.constant 0 : index
    %c0_6 = arith.constant 0 : index
    %7 = vector.load %arg5[%c0_5, %c0_6] : memref<1x1024xf32, #tpu.memory_space<vmem>>, vector<1x1024xf32>
    %8 = vector.broadcast %7 : vector<1x1024xf32> to vector<128x1024xf32>
    %9 = arith.addf %6, %8 : vector<128x1024xf32>
    %cst_7 = arith.constant 0.000000e+00 : f32
    %10 = vector.broadcast %cst_7 : f32 to vector<128x1024xf32>
    %11 = arith.maximumf %9, %10 : vector<128x1024xf32>
    %12 = arith.truncf %11 : vector<128x1024xf32> to vector<128x1024xbf16>
    %c0_8 = arith.constant 0 : index
    %c0_9 = arith.constant 0 : index
    %13 = vector.load %arg6[%c0_8, %c0_9] : memref<128x1024xbf16, #tpu.memory_space<vmem>>, vector<128x1024xbf16>
    tpu.vector_store %arg6[%c0_8, %c0_9], %12 {strides = array<i32>} : memref<128x1024xbf16, #tpu.memory_space<vmem>>, vector<128x1024xbf16>,
    return
  }
  func.func @transform_0(%arg0: i32, %arg1: i32) -> (i32, i32) {
    %c0_i32 = arith.constant 0 : i32
    %c0_i32_0 = arith.constant 0 : i32
    return %arg1, %c0_i32 : i32, i32
  }
  func.func @transform_1(%arg0: i32, %arg1: i32) -> (i32, i32) {
    %c0_i32 = arith.constant 0 : i32
    %c0_i32_0 = arith.constant 0 : i32
    return %c0_i32, %arg0 : i32, i32
  }
  func.func @transform_2(%arg0: i32, %arg1: i32) -> (i32, i32) {
    %c0_i32 = arith.constant 0 : i32
    %c0_i32_0 = arith.constant 0 : i32
    return %c0_i32, %arg0 : i32, i32
  }
  func.func @transform_3(%arg0: i32, %arg1: i32) -> (i32, i32) {
    %c0_i32 = arith.constant 0 : i32
    %c0_i32_0 = arith.constant 0 : i32
    return %c0_i32, %arg0 : i32, i32
  }
  func.func @transform_4(%arg0: i32, %arg1: i32) -> (i32, i32) {
    %c0_i32 = arith.constant 0 : i32
    return %arg1, %arg0 : i32, i32
  }
}

</mosaic_0001>

<llo_original>
// kernel: _lambda_.1
$region0: #{_lambda_.1}
  #allocation0 [shape = 'u32[]', space=smem, size = 0x4, offset = 0x4, fixed_abs, tag = 'smem constant byte address 0x4 - core index']
  #allocation1 [shape = 'u32[144,128]{1,0:T(1,128)}', space=vmem, size = 0x12000, scoped, tag = 'internal scratch']
  %s0 = inlined_call_operand.hbm [shape: f32[128,2208], index: 0, kind: input, shape index: {}]
  %s1 = inlined_call_operand.hbm [shape: bf16[2208,2048], index: 1, kind: input, shape index: {}]
  %s2 = inlined_call_operand.hbm [shape: f32[1,2048], index: 2, kind: input, shape index: {}]
  %s3 = inlined_call_operand.hbm [shape: f32[1,2048], index: 3, kind: input, shape index: {}]
  %s4 = inlined_call_operand.hbm [shape: bf16[128,2048], index: 4, kind: output, shape index: {}]
  %s5 = sld [smem:[#allocation0]]
  $region65: #{_lambda_.1} parent=0
    _
  %s7 = ssub.s32 1, %s5
  %s8 = scalar_select 0, %s7, %s5
  $region1: #{_lambda_.1} parent=0
    #allocation2 [shape = 'u8[1179648]{0}', space=vmem, size = 0x120000, scoped, tag = 'input window, operand 0, single buffered']
    #allocation3 [shape = 's32[2]{0}', space=sflag, size = 0x8, scoped, tag = 'scoped memory for _lambda_.1']
    #allocation4 [shape = 's32[2]{0}', space=sflag, size = 0x8, scoped, tag = 'scoped memory for _lambda_.1']
    #allocation5 [shape = 'u8[9043968]{0}', space=vmem, size = 0x8a0000, scoped, tag = 'input window, operand 1']
    #allocation6 [shape = 's32[2]{0}', space=sflag, size = 0x8, scoped, tag = 'scoped memory for _lambda_.1']
    #allocation7 [shape = 'u8[8192]{0}', space=vmem, size = 0x2000, scoped, tag = 'input window, operand 2']
    #allocation8 [shape = 'u8[8192]{0}', space=vmem, size = 0x2000, scoped, tag = 'input window, operand 3']
    #allocation9 [shape = 's32[2]{0}', space=sflag, size = 0x8, scoped, tag = 'scoped memory for _lambda_.1']
    #allocation10 [shape = 'u8[524288]{0}', space=vmem, size = 0x80000, scoped, tag = 'output window, operand 0']
    %9 = vsyncpa [#allocation3], 0
    %10 = vsyncpa [#allocation6], 0
    %s11 = scalar_lea.sflag [#allocation6], 1
    %12 = vsyncpa %s11, 0
    %13 = vsyncpa [#allocation9], 0
    %s14 = scalar_lea.sflag [#allocation9], 1
    %15 = vsyncpa %s14, 0
    %16 = vsyncpa [#allocation4], 0
    %s17 = scalar_lea.sflag [#allocation4], 1
    %18 = vsyncpa %s17, 0
    loop: start=0, step=1, limit=4
    $region2: #{_lambda_.1} parent=1 // loop_pre_header
      _
    $region3: #{_lambda_.1} parent=1 // loop_header
      %s20 = sphi 0, %s24
      %p21 = scmp.ge.s32.totalorder %s20, 4
      %s27 = sphi 0, %s39
      %s28 = sphi 0, %s35
      %s29 = sphi 0, %s27
      %s30 = sphi 0, %s28
      %s31 = sphi 0, %s29
      %s32 = sphi 0, %s30
      %s42 = sphi 0, %s44
      %s45 = sphi 0, %s42
      %s46 = sphi 0, %s45
      %s62 = sphi 0, %s46
      %s68 = sphi 0, %s70
      %s71 = sphi 0, %s68
      %s72 = sphi 0, %s71
      %s88 = sphi 0, %s72
      %s94 = sphi 0, %s96
      %s97 = sphi 0, %s94
      %s98 = sphi 0, %s97
      %s114 = sphi 0, %s98
      %s120 = sphi 0, %s122
      %s123 = sphi 0, %s120
      %s124 = sphi 0, %s123
      %s140 = sphi 0, %s124
      %s148 = sphi 0, %s150
      %s151 = sphi 0, %s148
      %s152 = sphi 0, %s151
      %s168 = sphi 0, %s152
    $region4: #{_lambda_.1} parent=1 // loop_header_branch
      %23 = sbr.rel (%p21) target = $region8
    $region5: #{_lambda_.1} parent=1 // loop_body
      %s25 = ssub.s32 %s20, 1
      %s26 = ssub.s32 %s20, 2
      %s33 = sadd.s32 1, %s28
      %p34 = scmp.ge.s32.totalorder %s33, 1
      %s35 = scalar_select %p34, 0, %s33
      %s36 = sadd.s32 1, %s27
      %s37 = scalar_select %p34, %s36, %s27
      %p38 = scmp.ge.s32.totalorder %s37, 2
      %s39 = scalar_select %p38, 0, %s37
      %s40 = ssub.s32 %s28, %s35
      %p41 = scmp.eq.s32.totalorder %s40, 0
      %s43 = sadd.s32 %s42, 1
      %s44 = scalar_select %p41, %s42, %s43
      %p47 = pneg %p41
      %p48 = scmp.eq.s32.totalorder %s20, 1
      %p49 = por %p47, %p48
      %p50 = scmp.ne.s32.totalorder %s42, %s45
      %p51 = scmp.eq.s32.totalorder %s20, 0
      %p52 = por %p50, %p51
      %p53 = scmp.ne.s32.totalorder %s42, %s45
      %p54 = scmp.eq.s32.totalorder %s25, 1
      %p55 = por %p53, %p54
      %p56 = scmp.ne.s32.totalorder %s45, %s46
      %p57 = scmp.eq.s32.totalorder %s25, 0
      %p58 = por %p56, %p57
      %p59 = scmp.ne.s32.totalorder %s45, %s46
      %p60 = scmp.eq.s32.totalorder %s26, 1
      %p61 = por %p59, %p60
      %p63 = scmp.ne.s32.totalorder %s46, %s62
      %p64 = scmp.eq.s32.totalorder %s26, 0
      %p65 = por %p63, %p64
      %s66 = ssub.s32 %s27, %s39
      %p67 = scmp.eq.s32.totalorder %s66, 0
      %s69 = sadd.s32 %s68, 1
      %s70 = scalar_select %p67, %s68, %s69
      %p73 = pneg %p67
      %p74 = scmp.eq.s32.totalorder %s20, 1
      %p75 = por %p73, %p74
      %p76 = scmp.ne.s32.totalorder %s68, %s71
      %p77 = scmp.eq.s32.totalorder %s20, 0
      %p78 = por %p76, %p77
      %p79 = scmp.ne.s32.totalorder %s68, %s71
      %p80 = scmp.eq.s32.totalorder %s25, 1
      %p81 = por %p79, %p80
      %p82 = scmp.ne.s32.totalorder %s71, %s72
      %p83 = scmp.eq.s32.totalorder %s25, 0
      %p84 = por %p82, %p83
      %p85 = scmp.ne.s32.totalorder %s71, %s72
      %p86 = scmp.eq.s32.totalorder %s26, 1
      %p87 = por %p85, %p86
      %p89 = scmp.ne.s32.totalorder %s72, %s88
      %p90 = scmp.eq.s32.totalorder %s26, 0
      %p91 = por %p89, %p90
      %s92 = ssub.s32 %s27, %s39
      %p93 = scmp.eq.s32.totalorder %s92, 0
      %s95 = sadd.s32 %s94, 1
      %s96 = scalar_select %p93, %s94, %s95
      %p99 = pneg %p93
      %p100 = scmp.eq.s32.totalorder %s20, 1
      %p101 = por %p99, %p100
      %p102 = scmp.ne.s32.totalorder %s94, %s97
      %p103 = scmp.eq.s32.totalorder %s20, 0
      %p104 = por %p102, %p103
      %p105 = scmp.ne.s32.totalorder %s94, %s97
      %p106 = scmp.eq.s32.totalorder %s25, 1
      %p107 = por %p105, %p106
      %p108 = scmp.ne.s32.totalorder %s97, %s98
      %p109 = scmp.eq.s32.totalorder %s25, 0
      %p110 = por %p108, %p109
      %p111 = scmp.ne.s32.totalorder %s97, %s98
      %p112 = scmp.eq.s32.totalorder %s26, 1
      %p113 = por %p111, %p112
      %p115 = scmp.ne.s32.totalorder %s98, %s114
      %p116 = scmp.eq.s32.totalorder %s26, 0
      %p117 = por %p115, %p116
      %s118 = ssub.s32 %s27, %s39
      %p119 = scmp.eq.s32.totalorder %s118, 0
      %s121 = sadd.s32 %s120, 1
      %s122 = scalar_select %p119, %s120, %s121
      %p125 = pneg %p119
      %p126 = scmp.eq.s32.totalorder %s20, 1
      %p127 = por %p125, %p126
      %p128 = scmp.ne.s32.totalorder %s120, %s123
      %p129 = scmp.eq.s32.totalorder %s20, 0
      %p130 = por %p128, %p129
      %p131 = scmp.ne.s32.totalorder %s120, %s123
      %p132 = scmp.eq.s32.totalorder %s25, 1
      %p133 = por %p131, %p132
      %p134 = scmp.ne.s32.totalorder %s123, %s124
      %p135 = scmp.eq.s32.totalorder %s25, 0
      %p136 = por %p134, %p135
      %p137 = scmp.ne.s32.totalorder %s123, %s124
      %p138 = scmp.eq.s32.totalorder %s26, 1
      %p139 = por %p137, %p138
      %p141 = scmp.ne.s32.totalorder %s124, %s140
      %p142 = scmp.eq.s32.totalorder %s26, 0
      %p143 = por %p141, %p142
      %s144 = ssub.s32 %s28, %s35
      %s145 = ssub.s32 %s27, %s39
      %s146 = sor.u32 %s144, %s145
      %p147 = scmp.eq.s32.totalorder %s146, 0
      %s149 = sadd.s32 %s148, 1
      %s150 = scalar_select %p147, %s148, %s149
      %p153 = pneg %p147
      %p154 = scmp.eq.s32.totalorder %s20, 1
      %p155 = por %p153, %p154
      %p156 = scmp.ne.s32.totalorder %s148, %s151
      %p157 = scmp.eq.s32.totalorder %s20, 0
      %p158 = por %p156, %p157
      %p159 = scmp.ne.s32.totalorder %s148, %s151
      %p160 = scmp.eq.s32.totalorder %s25, 1
      %p161 = por %p159, %p160
      %p162 = scmp.ne.s32.totalorder %s151, %s152
      %p163 = scmp.eq.s32.totalorder %s25, 0
      %p164 = por %p162, %p163
      %p165 = scmp.ne.s32.totalorder %s151, %s152
      %p166 = scmp.eq.s32.totalorder %s26, 1
      %p167 = por %p165, %p166
      %p169 = scmp.ne.s32.totalorder %s152, %s168
      %p170 = scmp.eq.s32.totalorder %s26, 0
      %p171 = por %p169, %p170
      %p172 = scmp.le.s32.totalorder 1, %s20
      %p173 = scmp.lt.s32.totalorder %s20, 3
      %p174 = pnand %p172, %p173
      %p175 = pneg %p174
      // Predicated region
      $region9: #{_lambda_.1} parent=5 // pred_check
        _
      $region10: #{_lambda_.1} parent=5 // pred_check_branch
        %177 = sbr.rel (%p174) target = $region12
      $region11: #{_lambda_.1} parent=5 // pred_region
        %s178 = ssub.s32 %s20, 1
        // Predicated region
        $region13: #{_lambda_.1} parent=11 // pred_check
          %p179 = pneg %p58
        $region14: #{_lambda_.1} parent=11 // pred_check_branch
          %181 = sbr.rel (%p179) target = $region16
        $region15: #{_lambda_.1} parent=11 // pred_region
          %s182 = smul.u32 16, %s30
          %s184 = ssub.s32 36864, 36864
          %185 = vsyncadd [#allocation3], %s184
          %s186 = smul.addr %s182, 18
          %s187 = smul.addr %s186, 128
          %s188 = scalar_lea.hbm %s0, %s187
          %s189 = sshll.u32 [#allocation2], 4
          %s190 = int_to_ptr.vmem [resolvable:$true] %s189
          %195 = dma.hbm_to_vmem [thread:$0]  %s188, 36864, %s190, [#allocation3], 2304, 2304, 144
        $region16: #{_lambda_.1} parent=11 // pred_fallthru
          _
      $region12: #{_lambda_.1} parent=5 // pred_fallthru
        _
      %p196 = scmp.lt.s32.totalorder %s20, 2
      // Predicated region
      $region17: #{_lambda_.1} parent=5 // pred_check
        %p197 = pneg %p196
      $region18: #{_lambda_.1} parent=5 // pred_check_branch
        %199 = sbr.rel (%p197) target = $region20
      $region19: #{_lambda_.1} parent=5 // pred_region
        // Predicated region
        $region21: #{_lambda_.1} parent=19 // pred_check
          %p200 = pneg %p78
        $region22: #{_lambda_.1} parent=19 // pred_check_branch
          %202 = sbr.rel (%p200) target = $region24
        $region23: #{_lambda_.1} parent=19 // pred_region
          %s203 = sand.u32 %s20, 1
          %s204 = scalar_lea.sflag [#allocation6], %s203
          %s205 = sand.u32 %s68, 1
          %s206 = smul.addr %s205, 8832
          %s207 = scalar_lea.vmem [#allocation5], %s206
          %s208 = smul.u32 8, %s27
          %s210 = ssub.s32 141312, 141312
          %211 = vsyncadd %s204, %s210
          %s212 = smul.addr %s208, 64
          %s213 = scalar_lea.hbm %s1, %s212
          %s214 = sshll.u32 %s207, 4
          %s215 = int_to_ptr.vmem [resolvable:$true] %s214
          %220 = dma.hbm_to_vmem [thread:$0]  %s213, 141312, %s215, %s204, 1024, 512, 32
        $region24: #{_lambda_.1} parent=19 // pred_fallthru
          _
        // Predicated region
        $region25: #{_lambda_.1} parent=19 // pred_check
          %p221 = pneg %p104
        $region26: #{_lambda_.1} parent=19 // pred_check_branch
          %223 = sbr.rel (%p221) target = $region28
        $region27: #{_lambda_.1} parent=19 // pred_region
          %s224 = sand.u32 %s20, 1
          %s225 = scalar_lea.sflag [#allocation6], %s224
          %s226 = sand.u32 %s94, 1
          %s227 = smul.addr %s226, 8
          %s228 = scalar_lea.vmem [#allocation7], %s227
          %s229 = smul.u32 8, %s27
          %s231 = ssub.s32 128, 128
          %232 = vsyncadd %s225, %s231
          %s233 = smul.addr %s229, 16
          %s234 = scalar_lea.hbm %s2, %s233
          %s236 = sshll.u32 %s228, 4
          %s237 = int_to_ptr.vmem [resolvable:$true] %s236
          %239 = dma.hbm_to_vmem [thread:$0]  %s234, 128, %s237, %s225
        $region28: #{_lambda_.1} parent=19 // pred_fallthru
          _
        // Predicated region
        $region29: #{_lambda_.1} parent=19 // pred_check
          %p240 = pneg %p130
        $region30: #{_lambda_.1} parent=19 // pred_check_branch
          %242 = sbr.rel (%p240) target = $region32
        $region31: #{_lambda_.1} parent=19 // pred_region
          %s243 = sand.u32 %s120, 1
          %s244 = scalar_lea.sflag [#allocation9], %s243
          %s245 = sand.u32 %s120, 1
          %s246 = smul.addr %s245, 8
          %s247 = scalar_lea.vmem [#allocation8], %s246
          %s248 = smul.u32 8, %s27
          %s250 = ssub.s32 128, 128
          %251 = vsyncadd %s244, %s250
          %s252 = smul.addr %s248, 16
          %s253 = scalar_lea.hbm %s3, %s252
          %s255 = sshll.u32 %s247, 4
          %s256 = int_to_ptr.vmem [resolvable:$true] %s255
          %258 = dma.hbm_to_vmem [thread:$0]  %s253, 128, %s256, %s244
        $region32: #{_lambda_.1} parent=19 // pred_fallthru
          _
      $region20: #{_lambda_.1} parent=5 // pred_fallthru
        _
      %p259 = scmp.le.s32.totalorder 1, %s20
      %p260 = scmp.lt.s32.totalorder %s20, 3
      %p261 = pnand %p259, %p260
      %p262 = pneg %p261
      // Predicated region
      $region33: #{_lambda_.1} parent=5 // pred_check
        _
      $region34: #{_lambda_.1} parent=5 // pred_check_branch
        %264 = sbr.rel (%p261) target = $region36
      $region35: #{_lambda_.1} parent=5 // pred_region
        %s265 = ssub.s32 %s20, 1
        // Predicated region
        $region37: #{_lambda_.1} parent=35 // pred_check
          %p266 = pneg %p58
        $region38: #{_lambda_.1} parent=35 // pred_check_branch
          %268 = sbr.rel (%p266) target = $region40
        $region39: #{_lambda_.1} parent=35 // pred_region
          %269 = dma.done [#allocation3], 36864
        $region40: #{_lambda_.1} parent=35 // pred_fallthru
          _
        %s270 = sand.u32 %s25, 1
        %s271 = scalar_lea.sflag [#allocation6], %s270
        %s272 = sand.u32 %s71, 1
        %s273 = smul.addr %s272, 8832
        %s274 = scalar_lea.vmem [#allocation5], %s273
        // Predicated region
        $region41: #{_lambda_.1} parent=35 // pred_check
          %p275 = pneg %p84
        $region42: #{_lambda_.1} parent=35 // pred_check_branch
          %277 = sbr.rel (%p275) target = $region44
        $region43: #{_lambda_.1} parent=35 // pred_region
          %278 = dma.done %s271, 141312
        $region44: #{_lambda_.1} parent=35 // pred_fallthru
          _
        %s279 = sand.u32 %s25, 1
        %s280 = scalar_lea.sflag [#allocation6], %s279
        %s281 = sand.u32 %s97, 1
        %s282 = smul.addr %s281, 8
        %s283 = scalar_lea.vmem [#allocation7], %s282
        // Predicated region
        $region45: #{_lambda_.1} parent=35 // pred_check
          %p284 = pneg %p110
        $region46: #{_lambda_.1} parent=35 // pred_check_branch
          %286 = sbr.rel (%p284) target = $region48
        $region47: #{_lambda_.1} parent=35 // pred_region
          %287 = dma.done %s280, 128
        $region48: #{_lambda_.1} parent=35 // pred_fallthru
          _
        %s288 = sand.u32 %s123, 1
        %s289 = scalar_lea.sflag [#allocation9], %s288
        %s290 = sand.u32 %s123, 1
        %s291 = smul.addr %s290, 8
        %s292 = scalar_lea.vmem [#allocation8], %s291
        // Predicated region
        $region49: #{_lambda_.1} parent=35 // pred_check
          %p293 = pneg %p136
        $region50: #{_lambda_.1} parent=35 // pred_check_branch
          %295 = sbr.rel (%p293) target = $region52
        $region51: #{_lambda_.1} parent=35 // pred_region
          %296 = dma.done %s289, 128
        $region52: #{_lambda_.1} parent=35 // pred_fallthru
          _
        %p297 = pneg %p58
        %p298 = pneg %p55
        %s299 = sand.u32 %s25, 1
        %s300 = scalar_lea.sflag [#allocation6], %s299
        %s301 = sand.u32 %s71, 1
        %s302 = smul.addr %s301, 8832
        %s303 = scalar_lea.vmem [#allocation5], %s302
        %p304 = pneg %p84
        %p305 = pneg %p81
        %s306 = sand.u32 %s25, 1
        %s307 = scalar_lea.sflag [#allocation6], %s306
        %s308 = sand.u32 %s97, 1
        %s309 = smul.addr %s308, 8
        %s310 = scalar_lea.vmem [#allocation7], %s309
        %p311 = pneg %p110
        %p312 = pneg %p107
        %s313 = sand.u32 %s123, 1
        %s314 = scalar_lea.sflag [#allocation9], %s313
        %s315 = sand.u32 %s123, 1
        %s316 = smul.addr %s315, 8
        %s317 = scalar_lea.vmem [#allocation8], %s316
        %p318 = pneg %p136
        %p319 = pneg %p133
        %p320 = pneg %p164
        %p321 = pneg %p161
        %s322 = sand.u32 %s151, 1
        %s323 = scalar_lea.sflag [#allocation4], %s322
        %s324 = sand.u32 %s151, 1
        %s325 = smul.addr %s324, 512
        %s326 = scalar_lea.vmem [#allocation10], %s325
        %s327 = smul.u32 16, %s30
        %s328 = smul.u32 8, %s29
        %s329 = smul.u32 8, %s29
        %s330 = smul.u32 8, %s29
        %s331 = smul.u32 16, %s30
        %s332 = smul.u32 8, %s29
        %v334 = vld [vmem:[#allocation2] sm:$0xff]
        %v335 = vld [vmem:[#allocation2 + $0x8] sm:$0xff]
        %v336 = vld [vmem:[#allocation2 + $0x10] sm:$0xff]
        %v337 = vld [vmem:[#allocation2 + $0x18] sm:$0xff]
        %v338 = vld [vmem:[#allocation2 + $0x20] sm:$0xff]
        %v339 = vld [vmem:[#allocation2 + $0x28] sm:$0xff]
        %v340 = vld [vmem:[#allocation2 + $0x30] sm:$0xff]
        %v341 = vld [vmem:[#allocation2 + $0x38] sm:$0xff]
        %v342 = vld [vmem:[#allocation2 + $0x40] sm:$0xff]
        %v343 = vld [vmem:[#allocation2 + $0x48] sm:$0xff]
        %v344 = vld [vmem:[#allocation2 + $0x50] sm:$0xff]
        %v345 = vld [vmem:[#allocation2 + $0x58] sm:$0xff]
        %v346 = vld [vmem:[#allocation2 + $0x60] sm:$0xff]
        %v347 = vld [vmem:[#allocation2 + $0x68] sm:$0xff]
        %v348 = vld [vmem:[#allocation2 + $0x70] sm:$0xff]
        %v349 = vld [vmem:[#allocation2 + $0x78] sm:$0xff]
        %v350 = vld [vmem:[#allocation2 + $0x80] sm:$0xff]
        %v351 = vld [vmem:[#allocation2 + $0x88] sm:$0xff]
        %v352 = vld [vmem:[#allocation2 + $0x90] sm:$0xff]
        %v353 = vld [vmem:[#allocation2 + $0x98] sm:$0xff]
        %v354 = vld [vmem:[#allocation2 + $0xa0] sm:$0xff]
        %v355 = vld [vmem:[#allocation2 + $0xa8] sm:$0xff]
        %v356 = vld [vmem:[#allocation2 + $0xb0] sm:$0xff]
        %v357 = vld [vmem:[#allocation2 + $0xb8] sm:$0xff]
        %v358 = vld [vmem:[#allocation2 + $0xc0] sm:$0xff]
        %v359 = vld [vmem:[#allocation2 + $0xc8] sm:$0xff]
        %v360 = vld [vmem:[#allocation2 + $0xd0] sm:$0xff]
        %v361 = vld [vmem:[#allocation2 + $0xd8] sm:$0xff]
        %v362 = vld [vmem:[#allocation2 + $0xe0] sm:$0xff]
        %v363 = vld [vmem:[#allocation2 + $0xe8] sm:$0xff]
        %v364 = vld [vmem:[#allocation2 + $0xf0] sm:$0xff]
        %v365 = vld [vmem:[#allocation2 + $0xf8] sm:$0xff]
        %v366 = vld [vmem:[#allocation2 + $0x100] sm:$0xff]
        %v367 = vld [vmem:[#allocation2 + $0x108] sm:$0xff]
        %v368 = vld [vmem:[#allocation2 + $0x110] sm:$0xff]
        %v369 = vld [vmem:[#allocation2 + $0x118] sm:$0xff]
        %v370 = vld [vmem:[#allocation2 + $0x120] sm:$0xff]
        %v371 = vld [vmem:[#allocation2 + $0x128] sm:$0xff]
        %v372 = vld [vmem:[#allocation2 + $0x130] sm:$0xff]
        %v373 = vld [vmem:[#allocation2 + $0x138] sm:$0xff]
        %v374 = vld [vmem:[#allocation2 + $0x140] sm:$0xff]
        %v375 = vld [vmem:[#allocation2 + $0x148] sm:$0xff]
        %v376 = vld [vmem:[#allocation2 + $0x150] sm:$0xff]
        %v377 = vld [vmem:[#allocation2 + $0x158] sm:$0xff]
        %v378 = vld [vmem:[#allocation2 + $0x160] sm:$0xff]
        %v379 = vld [vmem:[#allocation2 + $0x168] sm:$0xff]
        %v380 = vld [vmem:[#allocation2 + $0x170] sm:$0xff]
        %v381 = vld [vmem:[#allocation2 + $0x178] sm:$0xff]
        %v382 = vld [vmem:[#allocation2 + $0x180] sm:$0xff]
        %v383 = vld [vmem:[#allocation2 + $0x188] sm:$0xff]
        %v384 = vld [vmem:[#allocation2 + $0x190] sm:$0xff]
        %v385 = vld [vmem:[#allocation2 + $0x198] sm:$0xff]
        %v386 = vld [vmem:[#allocation2 + $0x1a0] sm:$0xff]
        %v387 = vld [vmem:[#allocation2 + $0x1a8] sm:$0xff]
        %v388 = vld [vmem:[#allocation2 + $0x1b0] sm:$0xff]
        %v389 = vld [vmem:[#allocation2 + $0x1b8] sm:$0xff]
        %v390 = vld [vmem:[#allocation2 + $0x1c0] sm:$0xff]
        %v391 = vld [vmem:[#allocation2 + $0x1c8] sm:$0xff]
        %v392 = vld [vmem:[#allocation2 + $0x1d0] sm:$0xff]
        %v393 = vld [vmem:[#allocation2 + $0x1d8] sm:$0xff]
        %v394 = vld [vmem:[#allocation2 + $0x1e0] sm:$0xff]
        %v395 = vld [vmem:[#allocation2 + $0x1e8] sm:$0xff]
        %v396 = vld [vmem:[#allocation2 + $0x1f0] sm:$0xff]
        %v397 = vld [vmem:[#allocation2 + $0x1f8] sm:$0xff]
        %v398 = vld [vmem:[#allocation2 + $0x200] sm:$0xff]
        %v399 = vld [vmem:[#allocation2 + $0x208] sm:$0xff]
        %v400 = vld [vmem:[#allocation2 + $0x210] sm:$0xff]
        %v401 = vld [vmem:[#allocation2 + $0x218] sm:$0xff]
        %v402 = vld [vmem:[#allocation2 + $0x220] sm:$0xff]
        %v403 = vld [vmem:[#allocation2 + $0x228] sm:$0xff]
        %v404 = vld [vmem:[#allocation2 + $0x230] sm:$0xff]
        %v405 = vld [vmem:[#allocation2 + $0x238] sm:$0xff]
        %v406 = vld [vmem:[#allocation2 + $0x240] sm:$0xff]
        %v407 = vld [vmem:[#allocation2 + $0x248] sm:$0xff]
        %v408 = vld [vmem:[#allocation2 + $0x250] sm:$0xff]
        %v409 = vld [vmem:[#allocation2 + $0x258] sm:$0xff]
        %v410 = vld [vmem:[#allocation2 + $0x260] sm:$0xff]
        %v411 = vld [vmem:[#allocation2 + $0x268] sm:$0xff]
        %v412 = vld [vmem:[#allocation2 + $0x270] sm:$0xff]
        %v413 = vld [vmem:[#allocation2 + $0x278] sm:$0xff]
        %v414 = vld [vmem:[#allocation2 + $0x280] sm:$0xff]
        %v415 = vld [vmem:[#allocation2 + $0x288] sm:$0xff]
        %v416 = vld [vmem:[#allocation2 + $0x290] sm:$0xff]
        %v417 = vld [vmem:[#allocation2 + $0x298] sm:$0xff]
        %v418 = vld [vmem:[#allocation2 + $0x2a0] sm:$0xff]
        %v419 = vld [vmem:[#allocation2 + $0x2a8] sm:$0xff]
        %v420 = vld [vmem:[#allocation2 + $0x2b0] sm:$0xff]
        %v421 = vld [vmem:[#allocation2 + $0x2b8] sm:$0xff]
        %v422 = vld [vmem:[#allocation2 + $0x2c0] sm:$0xff]
        %v423 = vld [vmem:[#allocation2 + $0x2c8] sm:$0xff]
        %v424 = vld [vmem:[#allocation2 + $0x2d0] sm:$0xff]
        %v425 = vld [vmem:[#allocation2 + $0x2d8] sm:$0xff]
        %v426 = vld [vmem:[#allocation2 + $0x2e0] sm:$0xff]
        %v427 = vld [vmem:[#allocation2 + $0x2e8] sm:$0xff]
        %v428 = vld [vmem:[#allocation2 + $0x2f0] sm:$0xff]
        %v429 = vld [vmem:[#allocation2 + $0x2f8] sm:$0xff]
        %v430 = vld [vmem:[#allocation2 + $0x300] sm:$0xff]
        %v431 = vld [vmem:[#allocation2 + $0x308] sm:$0xff]
        %v432 = vld [vmem:[#allocation2 + $0x310] sm:$0xff]
        %v433 = vld [vmem:[#allocation2 + $0x318] sm:$0xff]
        %v434 = vld [vmem:[#allocation2 + $0x320] sm:$0xff]
        %v435 = vld [vmem:[#allocation2 + $0x328] sm:$0xff]
        %v436 = vld [vmem:[#allocation2 + $0x330] sm:$0xff]
        %v437 = vld [vmem:[#allocation2 + $0x338] sm:$0xff]
        %v438 = vld [vmem:[#allocation2 + $0x340] sm:$0xff]
        %v439 = vld [vmem:[#allocation2 + $0x348] sm:$0xff]
        %v440 = vld [vmem:[#allocation2 + $0x350] sm:$0xff]
        %v441 = vld [vmem:[#allocation2 + $0x358] sm:$0xff]
        %v442 = vld [vmem:[#allocation2 + $0x360] sm:$0xff]
        %v443 = vld [vmem:[#allocation2 + $0x368] sm:$0xff]
        %v444 = vld [vmem:[#allocation2 + $0x370] sm:$0xff]
        %v445 = vld [vmem:[#allocation2 + $0x378] sm:$0xff]
        %v446 = vld [vmem:[#allocation2 + $0x380] sm:$0xff]
        %v447 = vld [vmem:[#allocation2 + $0x388] sm:$0xff]
        %v448 = vld [vmem:[#allocation2 + $0x390] sm:$0xff]
        %v449 = vld [vmem:[#allocation2 + $0x398] sm:$0xff]
        %v450 = vld [vmem:[#allocation2 + $0x3a0] sm:$0xff]
        %v451 = vld [vmem:[#allocation2 + $0x3a8] sm:$0xff]
        %v452 = vld [vmem:[#allocation2 + $0x3b0] sm:$0xff]
        %v453 = vld [vmem:[#allocation2 + $0x3b8] sm:$0xff]
        %v454 = vld [vmem:[#allocation2 + $0x3c0] sm:$0xff]
        %v455 = vld [vmem:[#allocation2 + $0x3c8] sm:$0xff]
        %v456 = vld [vmem:[#allocation2 + $0x3d0] sm:$0xff]
        %v457 = vld [vmem:[#allocation2 + $0x3d8] sm:$0xff]
        %v458 = vld [vmem:[#allocation2 + $0x3e0] sm:$0xff]
        %v459 = vld [vmem:[#allocation2 + $0x3e8] sm:$0xff]
        %v460 = vld [vmem:[#allocation2 + $0x3f0] sm:$0xff]
        %v461 = vld [vmem:[#allocation2 + $0x3f8] sm:$0xff]
        %v462 = vld [vmem:[#allocation2 + $0x400] sm:$0xff]
        %v463 = vld [vmem:[#allocation2 + $0x408] sm:$0xff]
        %v464 = vld [vmem:[#allocation2 + $0x410] sm:$0xff]
        %v465 = vld [vmem:[#allocation2 + $0x418] sm:$0xff]
        %v466 = vld [vmem:[#allocation2 + $0x420] sm:$0xff]
        %v467 = vld [vmem:[#allocation2 + $0x428] sm:$0xff]
        %v468 = vld [vmem:[#allocation2 + $0x430] sm:$0xff]
        %v469 = vld [vmem:[#allocation2 + $0x438] sm:$0xff]
        %v470 = vld [vmem:[#allocation2 + $0x440] sm:$0xff]
        %v471 = vld [vmem:[#allocation2 + $0x448] sm:$0xff]
        %v472 = vld [vmem:[#allocation2 + $0x450] sm:$0xff]
        %v473 = vld [vmem:[#allocation2 + $0x458] sm:$0xff]
        %v474 = vld [vmem:[#allocation2 + $0x460] sm:$0xff]
        %v475 = vld [vmem:[#allocation2 + $0x468] sm:$0xff]
        %v476 = vld [vmem:[#allocation2 + $0x470] sm:$0xff]
        %v477 = vld [vmem:[#allocation2 + $0x478] sm:$0xff]
        %v478 = vld [vmem:[#allocation2 + $0x480] sm:$0xff]
        %v479 = vld [vmem:[#allocation2 + $0x488] sm:$0xff]
        %v480 = vld [vmem:[#allocation2 + $0x490] sm:$0xff]
        %v481 = vld [vmem:[#allocation2 + $0x498] sm:$0xff]
        %v482 = vld [vmem:[#allocation2 + $0x4a0] sm:$0xff]
        %v483 = vld [vmem:[#allocation2 + $0x4a8] sm:$0xff]
        %v484 = vld [vmem:[#allocation2 + $0x4b0] sm:$0xff]
        %v485 = vld [vmem:[#allocation2 + $0x4b8] sm:$0xff]
        %v486 = vld [vmem:[#allocation2 + $0x4c0] sm:$0xff]
        %v487 = vld [vmem:[#allocation2 + $0x4c8] sm:$0xff]
        %v488 = vld [vmem:[#allocation2 + $0x4d0] sm:$0xff]
        %v489 = vld [vmem:[#allocation2 + $0x4d8] sm:$0xff]
        %v490 = vld [vmem:[#allocation2 + $0x4e0] sm:$0xff]
        %v491 = vld [vmem:[#allocation2 + $0x4e8] sm:$0xff]
        %v492 = vld [vmem:[#allocation2 + $0x4f0] sm:$0xff]
        %v493 = vld [vmem:[#allocation2 + $0x4f8] sm:$0xff]
        %v494 = vld [vmem:[#allocation2 + $0x500] sm:$0xff]
        %v495 = vld [vmem:[#allocation2 + $0x508] sm:$0xff]
        %v496 = vld [vmem:[#allocation2 + $0x510] sm:$0xff]
        %v497 = vld [vmem:[#allocation2 + $0x518] sm:$0xff]
        %v498 = vld [vmem:[#allocation2 + $0x520] sm:$0xff]
        %v499 = vld [vmem:[#allocation2 + $0x528] sm:$0xff]
        %v500 = vld [vmem:[#allocation2 + $0x530] sm:$0xff]
        %v501 = vld [vmem:[#allocation2 + $0x538] sm:$0xff]
        %v502 = vld [vmem:[#allocation2 + $0x540] sm:$0xff]
        %v503 = vld [vmem:[#allocation2 + $0x548] sm:$0xff]
        %v504 = vld [vmem:[#allocation2 + $0x550] sm:$0xff]
        %v505 = vld [vmem:[#allocation2 + $0x558] sm:$0xff]
        %v506 = vld [vmem:[#allocation2 + $0x560] sm:$0xff]
        %v507 = vld [vmem:[#allocation2 + $0x568] sm:$0xff]
        %v508 = vld [vmem:[#allocation2 + $0x570] sm:$0xff]
        %v509 = vld [vmem:[#allocation2 + $0x578] sm:$0xff]
        %v510 = vld [vmem:[#allocation2 + $0x580] sm:$0xff]
        %v511 = vld [vmem:[#allocation2 + $0x588] sm:$0xff]
        %v512 = vld [vmem:[#allocation2 + $0x590] sm:$0xff]
        %v513 = vld [vmem:[#allocation2 + $0x598] sm:$0xff]
        %v514 = vld [vmem:[#allocation2 + $0x5a0] sm:$0xff]
        %v515 = vld [vmem:[#allocation2 + $0x5a8] sm:$0xff]
        %v516 = vld [vmem:[#allocation2 + $0x5b0] sm:$0xff]
        %v517 = vld [vmem:[#allocation2 + $0x5b8] sm:$0xff]
        %v518 = vld [vmem:[#allocation2 + $0x5c0] sm:$0xff]
        %v519 = vld [vmem:[#allocation2 + $0x5c8] sm:$0xff]
        %v520 = vld [vmem:[#allocation2 + $0x5d0] sm:$0xff]
        %v521 = vld [vmem:[#allocation2 + $0x5d8] sm:$0xff]
        %v522 = vld [vmem:[#allocation2 + $0x5e0] sm:$0xff]
        %v523 = vld [vmem:[#allocation2 + $0x5e8] sm:$0xff]
        %v524 = vld [vmem:[#allocation2 + $0x5f0] sm:$0xff]
        %v525 = vld [vmem:[#allocation2 + $0x5f8] sm:$0xff]
        %v526 = vld [vmem:[#allocation2 + $0x600] sm:$0xff]
        %v527 = vld [vmem:[#allocation2 + $0x608] sm:$0xff]
        %v528 = vld [vmem:[#allocation2 + $0x610] sm:$0xff]
        %v529 = vld [vmem:[#allocation2 + $0x618] sm:$0xff]
        %v530 = vld [vmem:[#allocation2 + $0x620] sm:$0xff]
        %v531 = vld [vmem:[#allocation2 + $0x628] sm:$0xff]
        %v532 = vld [vmem:[#allocation2 + $0x630] sm:$0xff]
        %v533 = vld [vmem:[#allocation2 + $0x638] sm:$0xff]
        %v534 = vld [vmem:[#allocation2 + $0x640] sm:$0xff]
        %v535 = vld [vmem:[#allocation2 + $0x648] sm:$0xff]
        %v536 = vld [vmem:[#allocation2 + $0x650] sm:$0xff]
        %v537 = vld [vmem:[#allocation2 + $0x658] sm:$0xff]
        %v538 = vld [vmem:[#allocation2 + $0x660] sm:$0xff]
        %v539 = vld [vmem:[#allocation2 + $0x668] sm:$0xff]
        %v540 = vld [vmem:[#allocation2 + $0x670] sm:$0xff]
        %v541 = vld [vmem:[#allocation2 + $0x678] sm:$0xff]
        %v542 = vld [vmem:[#allocation2 + $0x680] sm:$0xff]
        %v543 = vld [vmem:[#allocation2 + $0x688] sm:$0xff]
        %v544 = vld [vmem:[#allocation2 + $0x690] sm:$0xff]
        %v545 = vld [vmem:[#allocation2 + $0x698] sm:$0xff]
        %v546 = vld [vmem:[#allocation2 + $0x6a0] sm:$0xff]
        %v547 = vld [vmem:[#allocation2 + $0x6a8] sm:$0xff]
        %v548 = vld [vmem:[#allocation2 + $0x6b0] sm:$0xff]
        %v549 = vld [vmem:[#allocation2 + $0x6b8] sm:$0xff]
        %v550 = vld [vmem:[#allocation2 + $0x6c0] sm:$0xff]
        %v551 = vld [vmem:[#allocation2 + $0x6c8] sm:$0xff]
        %v552 = vld [vmem:[#allocation2 + $0x6d0] sm:$0xff]
        %v553 = vld [vmem:[#allocation2 + $0x6d8] sm:$0xff]
        %v554 = vld [vmem:[#allocation2 + $0x6e0] sm:$0xff]
        %v555 = vld [vmem:[#allocation2 + $0x6e8] sm:$0xff]
        %v556 = vld [vmem:[#allocation2 + $0x6f0] sm:$0xff]
        %v557 = vld [vmem:[#allocation2 + $0x6f8] sm:$0xff]
        %v558 = vld [vmem:[#allocation2 + $0x700] sm:$0xff]
        %v559 = vld [vmem:[#allocation2 + $0x708] sm:$0xff]
        %v560 = vld [vmem:[#allocation2 + $0x710] sm:$0xff]
        %v561 = vld [vmem:[#allocation2 + $0x718] sm:$0xff]
        %v562 = vld [vmem:[#allocation2 + $0x720] sm:$0xff]
        %v563 = vld [vmem:[#allocation2 + $0x728] sm:$0xff]
        %v564 = vld [vmem:[#allocation2 + $0x730] sm:$0xff]
        %v565 = vld [vmem:[#allocation2 + $0x738] sm:$0xff]
        %v566 = vld [vmem:[#allocation2 + $0x740] sm:$0xff]
        %v567 = vld [vmem:[#allocation2 + $0x748] sm:$0xff]
        %v568 = vld [vmem:[#allocation2 + $0x750] sm:$0xff]
        %v569 = vld [vmem:[#allocation2 + $0x758] sm:$0xff]
        %v570 = vld [vmem:[#allocation2 + $0x760] sm:$0xff]
        %v571 = vld [vmem:[#allocation2 + $0x768] sm:$0xff]
        %v572 = vld [vmem:[#allocation2 + $0x770] sm:$0xff]
        %v573 = vld [vmem:[#allocation2 + $0x778] sm:$0xff]
        %v574 = vld [vmem:[#allocation2 + $0x780] sm:$0xff]
        %v575 = vld [vmem:[#allocation2 + $0x788] sm:$0xff]
        %v576 = vld [vmem:[#allocation2 + $0x790] sm:$0xff]
        %v577 = vld [vmem:[#allocation2 + $0x798] sm:$0xff]
        %v578 = vld [vmem:[#allocation2 + $0x7a0] sm:$0xff]
        %v579 = vld [vmem:[#allocation2 + $0x7a8] sm:$0xff]
        %v580 = vld [vmem:[#allocation2 + $0x7b0] sm:$0xff]
        %v581 = vld [vmem:[#allocation2 + $0x7b8] sm:$0xff]
        %v582 = vld [vmem:[#allocation2 + $0x7c0] sm:$0xff]
        %v583 = vld [vmem:[#allocation2 + $0x7c8] sm:$0xff]
        %v584 = vld [vmem:[#allocation2 + $0x7d0] sm:$0xff]
        %v585 = vld [vmem:[#allocation2 + $0x7d8] sm:$0xff]
        %v586 = vld [vmem:[#allocation2 + $0x7e0] sm:$0xff]
        %v587 = vld [vmem:[#allocation2 + $0x7e8] sm:$0xff]
        %v588 = vld [vmem:[#allocation2 + $0x7f0] sm:$0xff]
        %v589 = vld [vmem:[#allocation2 + $0x7f8] sm:$0xff]
        %v590 = vld [vmem:[#allocation2 + $0x800] sm:$0xff]
        %v591 = vld [vmem:[#allocation2 + $0x808] sm:$0xff]
        %v592 = vld [vmem:[#allocation2 + $0x810] sm:$0xff]
        %v593 = vld [vmem:[#allocation2 + $0x818] sm:$0xff]
        %v594 = vld [vmem:[#allocation2 + $0x820] sm:$0xff]
        %v595 = vld [vmem:[#allocation2 + $0x828] sm:$0xff]
        %v596 = vld [vmem:[#allocation2 + $0x830] sm:$0xff]
        %v597 = vld [vmem:[#allocation2 + $0x838] sm:$0xff]
        %v598 = vld [vmem:[#allocation2 + $0x840] sm:$0xff]
        %v599 = vld [vmem:[#allocation2 + $0x848] sm:$0xff]
        %v600 = vld [vmem:[#allocation2 + $0x850] sm:$0xff]
        %v601 = vld [vmem:[#allocation2 + $0x858] sm:$0xff]
        %v602 = vld [vmem:[#allocation2 + $0x860] sm:$0xff]
        %v603 = vld [vmem:[#allocation2 + $0x868] sm:$0xff]
        %v604 = vld [vmem:[#allocation2 + $0x870] sm:$0xff]
        %v605 = vld [vmem:[#allocation2 + $0x878] sm:$0xff]
        %v606 = vld [vmem:[#allocation2 + $0x880] sm:$0xff]
        %v607 = vld [vmem:[#allocation2 + $0x888] sm:$0xff]
        %v608 = vld [vmem:[#allocation2 + $0x890] sm:$0xff]
        %v609 = vld [vmem:[#allocation2 + $0x898] sm:$0xff]
        %v610 = vld [vmem:[#allocation2 + $0x8a0] sm:$0xff]
        %v611 = vld [vmem:[#allocation2 + $0x8a8] sm:$0xff]
        %v612 = vld [vmem:[#allocation2 + $0x8b0] sm:$0xff]
        %v613 = vld [vmem:[#allocation2 + $0x8b8] sm:$0xff]
        %v614 = vld [vmem:[#allocation2 + $0x8c0] sm:$0xff]
        %v615 = vld [vmem:[#allocation2 + $0x8c8] sm:$0xff]
        %v616 = vld [vmem:[#allocation2 + $0x8d0] sm:$0xff]
        %v617 = vld [vmem:[#allocation2 + $0x8d8] sm:$0xff]
        %v618 = vld [vmem:[#allocation2 + $0x8e0] sm:$0xff]
        %v619 = vld [vmem:[#allocation2 + $0x8e8] sm:$0xff]
        %v620 = vld [vmem:[#allocation2 + $0x8f0] sm:$0xff]
        %v621 = vld [vmem:[#allocation2 + $0x8f8] sm:$0xff]
        %v622 = vpack.c.bf16 %v352, %v334
        %v623 = vpack.c.bf16 %v353, %v335
        %v624 = vpack.c.bf16 %v354, %v336
        %v625 = vpack.c.bf16 %v355, %v337
        %v626 = vpack.c.bf16 %v356, %v338
        %v627 = vpack.c.bf16 %v357, %v339
        %v628 = vpack.c.bf16 %v358, %v340
        %v629 = vpack.c.bf16 %v359, %v341
        %v630 = vpack.c.bf16 %v360, %v342
        %v631 = vpack.c.bf16 %v361, %v343
        %v632 = vpack.c.bf16 %v362, %v344
        %v633 = vpack.c.bf16 %v363, %v345
        %v634 = vpack.c.bf16 %v364, %v346
        %v635 = vpack.c.bf16 %v365, %v347
        %v636 = vpack.c.bf16 %v366, %v348
        %v637 = vpack.c.bf16 %v367, %v349
        %v638 = vpack.c.bf16 %v368, %v350
        %v639 = vpack.c.bf16 %v369, %v351
        %v640 = vpack.c.bf16 %v388, %v370
        %v641 = vpack.c.bf16 %v389, %v371
        %v642 = vpack.c.bf16 %v390, %v372
        %v643 = vpack.c.bf16 %v391, %v373
        %v644 = vpack.c.bf16 %v392, %v374
        %v645 = vpack.c.bf16 %v393, %v375
        %v646 = vpack.c.bf16 %v394, %v376
        %v647 = vpack.c.bf16 %v395, %v377
        %v648 = vpack.c.bf16 %v396, %v378
        %v649 = vpack.c.bf16 %v397, %v379
        %v650 = vpack.c.bf16 %v398, %v380
        %v651 = vpack.c.bf16 %v399, %v381
        %v652 = vpack.c.bf16 %v400, %v382
        %v653 = vpack.c.bf16 %v401, %v383
        %v654 = vpack.c.bf16 %v402, %v384
        %v655 = vpack.c.bf16 %v403, %v385
        %v656 = vpack.c.bf16 %v404, %v386
        %v657 = vpack.c.bf16 %v405, %v387
        %v658 = vpack.c.bf16 %v424, %v406
        %v659 = vpack.c.bf16 %v425, %v407
        %v660 = vpack.c.bf16 %v426, %v408
        %v661 = vpack.c.bf16 %v427, %v409
        %v662 = vpack.c.bf16 %v428, %v410
        %v663 = vpack.c.bf16 %v429, %v411
        %v664 = vpack.c.bf16 %v430, %v412
        %v665 = vpack.c.bf16 %v431, %v413
        %v666 = vpack.c.bf16 %v432, %v414
        %v667 = vpack.c.bf16 %v433, %v415
        %v668 = vpack.c.bf16 %v434, %v416
        %v669 = vpack.c.bf16 %v435, %v417
        %v670 = vpack.c.bf16 %v436, %v418
        %v671 = vpack.c.bf16 %v437, %v419
        %v672 = vpack.c.bf16 %v438, %v420
        %v673 = vpack.c.bf16 %v439, %v421
        %v674 = vpack.c.bf16 %v440, %v422
        %v675 = vpack.c.bf16 %v441, %v423
        %v676 = vpack.c.bf16 %v460, %v442
        %v677 = vpack.c.bf16 %v461, %v443
        %v678 = vpack.c.bf16 %v462, %v444
        %v679 = vpack.c.bf16 %v463, %v445
        %v680 = vpack.c.bf16 %v464, %v446
        %v681 = vpack.c.bf16 %v465, %v447
        %v682 = vpack.c.bf16 %v466, %v448
        %v683 = vpack.c.bf16 %v467, %v449
        %v684 = vpack.c.bf16 %v468, %v450
        %v685 = vpack.c.bf16 %v469, %v451
        %v686 = vpack.c.bf16 %v470, %v452
        %v687 = vpack.c.bf16 %v471, %v453
        %v688 = vpack.c.bf16 %v472, %v454
        %v689 = vpack.c.bf16 %v473, %v455
        %v690 = vpack.c.bf16 %v474, %v456
        %v691 = vpack.c.bf16 %v475, %v457
        %v692 = vpack.c.bf16 %v476, %v458
        %v693 = vpack.c.bf16 %v477, %v459
        %v694 = vpack.c.bf16 %v496, %v478
        %v695 = vpack.c.bf16 %v497, %v479
        %v696 = vpack.c.bf16 %v498, %v480
        %v697 = vpack.c.bf16 %v499, %v481
        %v698 = vpack.c.bf16 %v500, %v482
        %v699 = vpack.c.bf16 %v501, %v483
        %v700 = vpack.c.bf16 %v502, %v484
        %v701 = vpack.c.bf16 %v503, %v485
        %v702 = vpack.c.bf16 %v504, %v486
        %v703 = vpack.c.bf16 %v505, %v487
        %v704 = vpack.c.bf16 %v506, %v488
        %v705 = vpack.c.bf16 %v507, %v489
        %v706 = vpack.c.bf16 %v508, %v490
        %v707 = vpack.c.bf16 %v509, %v491
        %v708 = vpack.c.bf16 %v510, %v492
        %v709 = vpack.c.bf16 %v511, %v493
        %v710 = vpack.c.bf16 %v512, %v494
        %v711 = vpack.c.bf16 %v513, %v495
        %v712 = vpack.c.bf16 %v532, %v514
        %v713 = vpack.c.bf16 %v533, %v515
        %v714 = vpack.c.bf16 %v534, %v516
        %v715 = vpack.c.bf16 %v535, %v517
        %v716 = vpack.c.bf16 %v536, %v518
        %v717 = vpack.c.bf16 %v537, %v519
        %v718 = vpack.c.bf16 %v538, %v520
        %v719 = vpack.c.bf16 %v539, %v521
        %v720 = vpack.c.bf16 %v540, %v522
        %v721 = vpack.c.bf16 %v541, %v523
        %v722 = vpack.c.bf16 %v542, %v524
        %v723 = vpack.c.bf16 %v543, %v525
        %v724 = vpack.c.bf16 %v544, %v526
        %v725 = vpack.c.bf16 %v545, %v527
        %v726 = vpack.c.bf16 %v546, %v528
        %v727 = vpack.c.bf16 %v547, %v529
        %v728 = vpack.c.bf16 %v548, %v530
        %v729 = vpack.c.bf16 %v549, %v531
        %v730 = vpack.c.bf16 %v568, %v550
        %v731 = vpack.c.bf16 %v569, %v551
        %v732 = vpack.c.bf16 %v570, %v552
        %v733 = vpack.c.bf16 %v571, %v553
        %v734 = vpack.c.bf16 %v572, %v554
        %v735 = vpack.c.bf16 %v573, %v555
        %v736 = vpack.c.bf16 %v574, %v556
        %v737 = vpack.c.bf16 %v575, %v557
        %v738 = vpack.c.bf16 %v576, %v558
        %v739 = vpack.c.bf16 %v577, %v559
        %v740 = vpack.c.bf16 %v578, %v560
        %v741 = vpack.c.bf16 %v579, %v561
        %v742 = vpack.c.bf16 %v580, %v562
        %v743 = vpack.c.bf16 %v581, %v563
        %v744 = vpack.c.bf16 %v582, %v564
        %v745 = vpack.c.bf16 %v583, %v565
        %v746 = vpack.c.bf16 %v584, %v566
        %v747 = vpack.c.bf16 %v585, %v567
        %v748 = vpack.c.bf16 %v604, %v586
        %v749 = vpack.c.bf16 %v605, %v587
        %v750 = vpack.c.bf16 %v606, %v588
        %v751 = vpack.c.bf16 %v607, %v589
        %v752 = vpack.c.bf16 %v608, %v590
        %v753 = vpack.c.bf16 %v609, %v591
        %v754 = vpack.c.bf16 %v610, %v592
        %v755 = vpack.c.bf16 %v611, %v593
        %v756 = vpack.c.bf16 %v612, %v594
        %v757 = vpack.c.bf16 %v613, %v595
        %v758 = vpack.c.bf16 %v614, %v596
        %v759 = vpack.c.bf16 %v615, %v597
        %v760 = vpack.c.bf16 %v616, %v598
        %v761 = vpack.c.bf16 %v617, %v599
        %v762 = vpack.c.bf16 %v618, %v600
        %v763 = vpack.c.bf16 %v619, %v601
        %v764 = vpack.c.bf16 %v620, %v602
        %v765 = vpack.c.bf16 %v621, %v603
        %v766 = vld [vmem:[%s274] sm:$0xff]
        %v767 = vld [vmem:[%s274 + $0x8] sm:$0xff]
        %v768 = vld [vmem:[%s274 + $0x10] sm:$0xff]
        %v769 = vld [vmem:[%s274 + $0x18] sm:$0xff]
        %v770 = vld [vmem:[%s274 + $0x20] sm:$0xff]
        %v771 = vld [vmem:[%s274 + $0x28] sm:$0xff]
        %v772 = vld [vmem:[%s274 + $0x30] sm:$0xff]
        %v773 = vld [vmem:[%s274 + $0x38] sm:$0xff]
        %v774 = vld [vmem:[%s274 + $0x40] sm:$0xff]
        %v775 = vld [vmem:[%s274 + $0x48] sm:$0xff]
        %v776 = vld [vmem:[%s274 + $0x50] sm:$0xff]
        %v777 = vld [vmem:[%s274 + $0x58] sm:$0xff]
        %v778 = vld [vmem:[%s274 + $0x60] sm:$0xff]
        %v779 = vld [vmem:[%s274 + $0x68] sm:$0xff]
        %v780 = vld [vmem:[%s274 + $0x70] sm:$0xff]
        %v781 = vld [vmem:[%s274 + $0x78] sm:$0xff]
        %v782 = vld [vmem:[%s274 + $0x80] sm:$0xff]
        %v783 = vld [vmem:[%s274 + $0x88] sm:$0xff]
        %v784 = vld [vmem:[%s274 + $0x90] sm:$0xff]
        %v785 = vld [vmem:[%s274 + $0x98] sm:$0xff]
        %v786 = vld [vmem:[%s274 + $0xa0] sm:$0xff]
        %v787 = vld [vmem:[%s274 + $0xa8] sm:$0xff]
        %v788 = vld [vmem:[%s274 + $0xb0] sm:$0xff]
        %v789 = vld [vmem:[%s274 + $0xb8] sm:$0xff]
        %v790 = vld [vmem:[%s274 + $0xc0] sm:$0xff]
        %v791 = vld [vmem:[%s274 + $0xc8] sm:$0xff]
        %v792 = vld [vmem:[%s274 + $0xd0] sm:$0xff]
        %v793 = vld [vmem:[%s274 + $0xd8] sm:$0xff]
        %v794 = vld [vmem:[%s274 + $0xe0] sm:$0xff]
        %v795 = vld [vmem:[%s274 + $0xe8] sm:$0xff]
        %v796 = vld [vmem:[%s274 + $0xf0] sm:$0xff]
        %v797 = vld [vmem:[%s274 + $0xf8] sm:$0xff]
        %v798 = vld [vmem:[%s274 + $0x100] sm:$0xff]
        %v799 = vld [vmem:[%s274 + $0x108] sm:$0xff]
        %v800 = vld [vmem:[%s274 + $0x110] sm:$0xff]
        %v801 = vld [vmem:[%s274 + $0x118] sm:$0xff]
        %v802 = vld [vmem:[%s274 + $0x120] sm:$0xff]
        %v803 = vld [vmem:[%s274 + $0x128] sm:$0xff]
        %v804 = vld [vmem:[%s274 + $0x130] sm:$0xff]
        %v805 = vld [vmem:[%s274 + $0x138] sm:$0xff]
        %v806 = vld [vmem:[%s274 + $0x140] sm:$0xff]
        %v807 = vld [vmem:[%s274 + $0x148] sm:$0xff]
        %v808 = vld [vmem:[%s274 + $0x150] sm:$0xff]
        %v809 = vld [vmem:[%s274 + $0x158] sm:$0xff]
        %v810 = vld [vmem:[%s274 + $0x160] sm:$0xff]
        %v811 = vld [vmem:[%s274 + $0x168] sm:$0xff]
        %v812 = vld [vmem:[%s274 + $0x170] sm:$0xff]
        %v813 = vld [vmem:[%s274 + $0x178] sm:$0xff]
        %v814 = vld [vmem:[%s274 + $0x180] sm:$0xff]
        %v815 = vld [vmem:[%s274 + $0x188] sm:$0xff]
        %v816 = vld [vmem:[%s274 + $0x190] sm:$0xff]
        %v817 = vld [vmem:[%s274 + $0x198] sm:$0xff]
        %v818 = vld [vmem:[%s274 + $0x1a0] sm:$0xff]
        %v819 = vld [vmem:[%s274 + $0x1a8] sm:$0xff]
        %v820 = vld [vmem:[%s274 + $0x1b0] sm:$0xff]
        %v821 = vld [vmem:[%s274 + $0x1b8] sm:$0xff]
        %v822 = vld [vmem:[%s274 + $0x1c0] sm:$0xff]
        %v823 = vld [vmem:[%s274 + $0x1c8] sm:$0xff]
        %v824 = vld [vmem:[%s274 + $0x1d0] sm:$0xff]
        %v825 = vld [vmem:[%s274 + $0x1d8] sm:$0xff]
        %v826 = vld [vmem:[%s274 + $0x1e0] sm:$0xff]
        %v827 = vld [vmem:[%s274 + $0x1e8] sm:$0xff]
        %v828 = vld [vmem:[%s274 + $0x1f0] sm:$0xff]
        %v829 = vld [vmem:[%s274 + $0x1f8] sm:$0xff]
        %v830 = vld [vmem:[%s274 + $0x200] sm:$0xff]
        %v831 = vld [vmem:[%s274 + $0x208] sm:$0xff]
        %v832 = vld [vmem:[%s274 + $0x210] sm:$0xff]
        %v833 = vld [vmem:[%s274 + $0x218] sm:$0xff]
        %v834 = vld [vmem:[%s274 + $0x220] sm:$0xff]
        %v835 = vld [vmem:[%s274 + $0x228] sm:$0xff]
        %v836 = vld [vmem:[%s274 + $0x230] sm:$0xff]
        %v837 = vld [vmem:[%s274 + $0x238] sm:$0xff]
        %v838 = vld [vmem:[%s274 + $0x240] sm:$0xff]
        %v839 = vld [vmem:[%s274 + $0x248] sm:$0xff]
        %v840 = vld [vmem:[%s274 + $0x250] sm:$0xff]
        %v841 = vld [vmem:[%s274 + $0x258] sm:$0xff]
        %v842 = vld [vmem:[%s274 + $0x260] sm:$0xff]
        %v843 = vld [vmem:[%s274 + $0x268] sm:$0xff]
        %v844 = vld [vmem:[%s274 + $0x270] sm:$0xff]
        %v845 = vld [vmem:[%s274 + $0x278] sm:$0xff]
        %v846 = vld [vmem:[%s274 + $0x280] sm:$0xff]
        %v847 = vld [vmem:[%s274 + $0x288] sm:$0xff]
        %v848 = vld [vmem:[%s274 + $0x290] sm:$0xff]
        %v849 = vld [vmem:[%s274 + $0x298] sm:$0xff]
        %v850 = vld [vmem:[%s274 + $0x2a0] sm:$0xff]
        %v851 = vld [vmem:[%s274 + $0x2a8] sm:$0xff]
        %v852 = vld [vmem:[%s274 + $0x2b0] sm:$0xff]
        %v853 = vld [vmem:[%s274 + $0x2b8] sm:$0xff]
        %v854 = vld [vmem:[%s274 + $0x2c0] sm:$0xff]
        %v855 = vld [vmem:[%s274 + $0x2c8] sm:$0xff]
        %v856 = vld [vmem:[%s274 + $0x2d0] sm:$0xff]
        %v857 = vld [vmem:[%s274 + $0x2d8] sm:$0xff]
        %v858 = vld [vmem:[%s274 + $0x2e0] sm:$0xff]
        %v859 = vld [vmem:[%s274 + $0x2e8] sm:$0xff]
        %v860 = vld [vmem:[%s274 + $0x2f0] sm:$0xff]
        %v861 = vld [vmem:[%s274 + $0x2f8] sm:$0xff]
        %v862 = vld [vmem:[%s274 + $0x300] sm:$0xff]
        %v863 = vld [vmem:[%s274 + $0x308] sm:$0xff]
        %v864 = vld [vmem:[%s274 + $0x310] sm:$0xff]
        %v865 = vld [vmem:[%s274 + $0x318] sm:$0xff]
        %v866 = vld [vmem:[%s274 + $0x320] sm:$0xff]
        %v867 = vld [vmem:[%s274 + $0x328] sm:$0xff]
        %v868 = vld [vmem:[%s274 + $0x330] sm:$0xff]
        %v869 = vld [vmem:[%s274 + $0x338] sm:$0xff]
        %v870 = vld [vmem:[%s274 + $0x340] sm:$0xff]
        %v871 = vld [vmem:[%s274 + $0x348] sm:$0xff]
        %v872 = vld [vmem:[%s274 + $0x350] sm:$0xff]
        %v873 = vld [vmem:[%s274 + $0x358] sm:$0xff]
        %v874 = vld [vmem:[%s274 + $0x360] sm:$0xff]
        %v875 = vld [vmem:[%s274 + $0x368] sm:$0xff]
        %v876 = vld [vmem:[%s274 + $0x370] sm:$0xff]
        %v877 = vld [vmem:[%s274 + $0x378] sm:$0xff]
        %v878 = vld [vmem:[%s274 + $0x380] sm:$0xff]
        %v879 = vld [vmem:[%s274 + $0x388] sm:$0xff]
        %v880 = vld [vmem:[%s274 + $0x390] sm:$0xff]
        %v881 = vld [vmem:[%s274 + $0x398] sm:$0xff]
        %v882 = vld [vmem:[%s274 + $0x3a0] sm:$0xff]
        %v883 = vld [vmem:[%s274 + $0x3a8] sm:$0xff]
        %v884 = vld [vmem:[%s274 + $0x3b0] sm:$0xff]
        %v885 = vld [vmem:[%s274 + $0x3b8] sm:$0xff]
        %v886 = vld [vmem:[%s274 + $0x3c0] sm:$0xff]
        %v887 = vld [vmem:[%s274 + $0x3c8] sm:$0xff]
        %v888 = vld [vmem:[%s274 + $0x3d0] sm:$0xff]
        %v889 = vld [vmem:[%s274 + $0x3d8] sm:$0xff]
        %v890 = vld [vmem:[%s274 + $0x3e0] sm:$0xff]
        %v891 = vld [vmem:[%s274 + $0x3e8] sm:$0xff]
        %v892 = vld [vmem:[%s274 + $0x3f0] sm:$0xff]
        %v893 = vld [vmem:[%s274 + $0x3f8] sm:$0xff]
        %v894 = vld [vmem:[%s274 + $0x400] sm:$0xff]
        %v895 = vld [vmem:[%s274 + $0x408] sm:$0xff]
        %v896 = vld [vmem:[%s274 + $0x410] sm:$0xff]
        %v897 = vld [vmem:[%s274 + $0x418] sm:$0xff]
        %v898 = vld [vmem:[%s274 + $0x420] sm:$0xff]
        %v899 = vld [vmem:[%s274 + $0x428] sm:$0xff]
        %v900 = vld [vmem:[%s274 + $0x430] sm:$0xff]
        %v901 = vld [vmem:[%s274 + $0x438] sm:$0xff]
        %v902 = vld [vmem:[%s274 + $0x440] sm:$0xff]
        %v903 = vld [vmem:[%s274 + $0x448] sm:$0xff]
        %v904 = vld [vmem:[%s274 + $0x450] sm:$0xff]
        %v905 = vld [vmem:[%s274 + $0x458] sm:$0xff]
        %v906 = vld [vmem:[%s274 + $0x460] sm:$0xff]
        %v907 = vld [vmem:[%s274 + $0x468] sm:$0xff]
        %v908 = vld [vmem:[%s274 + $0x470] sm:$0xff]
        %v909 = vld [vmem:[%s274 + $0x478] sm:$0xff]
        %v910 = vld [vmem:[%s274 + $0x480] sm:$0xff]
        %v911 = vld [vmem:[%s274 + $0x488] sm:$0xff]
        %v912 = vld [vmem:[%s274 + $0x490] sm:$0xff]
        %v913 = vld [vmem:[%s274 + $0x498] sm:$0xff]
        %v914 = vld [vmem:[%s274 + $0x4a0] sm:$0xff]
        %v915 = vld [vmem:[%s274 + $0x4a8] sm:$0xff]
        %v916 = vld [vmem:[%s274 + $0x4b0] sm:$0xff]
        %v917 = vld [vmem:[%s274 + $0x4b8] sm:$0xff]
        %v918 = vld [vmem:[%s274 + $0x4c0] sm:$0xff]
        %v919 = vld [vmem:[%s274 + $0x4c8] sm:$0xff]
        %v920 = vld [vmem:[%s274 + $0x4d0] sm:$0xff]
        %v921 = vld [vmem:[%s274 + $0x4d8] sm:$0xff]
        %v922 = vld [vmem:[%s274 + $0x4e0] sm:$0xff]
        %v923 = vld [vmem:[%s274 + $0x4e8] sm:$0xff]
        %v924 = vld [vmem:[%s274 + $0x4f0] sm:$0xff]
        %v925 = vld [vmem:[%s274 + $0x4f8] sm:$0xff]
        %v926 = vld [vmem:[%s274 + $0x500] sm:$0xff]
        %v927 = vld [vmem:[%s274 + $0x508] sm:$0xff]
        %v928 = vld [vmem:[%s274 + $0x510] sm:$0xff]
        %v929 = vld [vmem:[%s274 + $0x518] sm:$0xff]
        %v930 = vld [vmem:[%s274 + $0x520] sm:$0xff]
        %v931 = vld [vmem:[%s274 + $0x528] sm:$0xff]
        %v932 = vld [vmem:[%s274 + $0x530] sm:$0xff]
        %v933 = vld [vmem:[%s274 + $0x538] sm:$0xff]
        %v934 = vld [vmem:[%s274 + $0x540] sm:$0xff]
        %v935 = vld [vmem:[%s274 + $0x548] sm:$0xff]
        %v936 = vld [vmem:[%s274 + $0x550] sm:$0xff]
        %v937 = vld [vmem:[%s274 + $0x558] sm:$0xff]
        %v938 = vld [vmem:[%s274 + $0x560] sm:$0xff]
        %v939 = vld [vmem:[%s274 + $0x568] sm:$0xff]
        %v940 = vld [vmem:[%s274 + $0x570] sm:$0xff]
        %v941 = vld [vmem:[%s274 + $0x578] sm:$0xff]
        %v942 = vld [vmem:[%s274 + $0x580] sm:$0xff]
        %v943 = vld [vmem:[%s274 + $0x588] sm:$0xff]
        %v944 = vld [vmem:[%s274 + $0x590] sm:$0xff]
        %v945 = vld [vmem:[%s274 + $0x598] sm:$0xff]
        %v946 = vld [vmem:[%s274 + $0x5a0] sm:$0xff]
        %v947 = vld [vmem:[%s274 + $0x5a8] sm:$0xff]
        %v948 = vld [vmem:[%s274 + $0x5b0] sm:$0xff]
        %v949 = vld [vmem:[%s274 + $0x5b8] sm:$0xff]
        %v950 = vld [vmem:[%s274 + $0x5c0] sm:$0xff]
        %v951 = vld [vmem:[%s274 + $0x5c8] sm:$0xff]
        %v952 = vld [vmem:[%s274 + $0x5d0] sm:$0xff]
        %v953 = vld [vmem:[%s274 + $0x5d8] sm:$0xff]
        %v954 = vld [vmem:[%s274 + $0x5e0] sm:$0xff]
        %v955 = vld [vmem:[%s274 + $0x5e8] sm:$0xff]
        %v956 = vld [vmem:[%s274 + $0x5f0] sm:$0xff]
        %v957 = vld [vmem:[%s274 + $0x5f8] sm:$0xff]
        %v958 = vld [vmem:[%s274 + $0x600] sm:$0xff]
        %v959 = vld [vmem:[%s274 + $0x608] sm:$0xff]
        %v960 = vld [vmem:[%s274 + $0x610] sm:$0xff]
        %v961 = vld [vmem:[%s274 + $0x618] sm:$0xff]
        %v962 = vld [vmem:[%s274 + $0x620] sm:$0xff]
        %v963 = vld [vmem:[%s274 + $0x628] sm:$0xff]
        %v964 = vld [vmem:[%s274 + $0x630] sm:$0xff]
        %v965 = vld [vmem:[%s274 + $0x638] sm:$0xff]
        %v966 = vld [vmem:[%s274 + $0x640] sm:$0xff]
        %v967 = vld [vmem:[%s274 + $0x648] sm:$0xff]
        %v968 = vld [vmem:[%s274 + $0x650] sm:$0xff]
        %v969 = vld [vmem:[%s274 + $0x658] sm:$0xff]
        %v970 = vld [vmem:[%s274 + $0x660] sm:$0xff]
        %v971 = vld [vmem:[%s274 + $0x668] sm:$0xff]
        %v972 = vld [vmem:[%s274 + $0x670] sm:$0xff]
        %v973 = vld [vmem:[%s274 + $0x678] sm:$0xff]
        %v974 = vld [vmem:[%s274 + $0x680] sm:$0xff]
        %v975 = vld [vmem:[%s274 + $0x688] sm:$0xff]
        %v976 = vld [vmem:[%s274 + $0x690] sm:$0xff]
        %v977 = vld [vmem:[%s274 + $0x698] sm:$0xff]
        %v978 = vld [vmem:[%s274 + $0x6a0] sm:$0xff]
        %v979 = vld [vmem:[%s274 + $0x6a8] sm:$0xff]
        %v980 = vld [vmem:[%s274 + $0x6b0] sm:$0xff]
        %v981 = vld [vmem:[%s274 + $0x6b8] sm:$0xff]
        %v982 = vld [vmem:[%s274 + $0x6c0] sm:$0xff]
        %v983 = vld [vmem:[%s274 + $0x6c8] sm:$0xff]
        %v984 = vld [vmem:[%s274 + $0x6d0] sm:$0xff]
        %v985 = vld [vmem:[%s274 + $0x6d8] sm:$0xff]
        %v986 = vld [vmem:[%s274 + $0x6e0] sm:$0xff]
        %v987 = vld [vmem:[%s274 + $0x6e8] sm:$0xff]
        %v988 = vld [vmem:[%s274 + $0x6f0] sm:$0xff]
        %v989 = vld [vmem:[%s274 + $0x6f8] sm:$0xff]
        %v990 = vld [vmem:[%s274 + $0x700] sm:$0xff]
        %v991 = vld [vmem:[%s274 + $0x708] sm:$0xff]
        %v992 = vld [vmem:[%s274 + $0x710] sm:$0xff]
        %v993 = vld [vmem:[%s274 + $0x718] sm:$0xff]
        %v994 = vld [vmem:[%s274 + $0x720] sm:$0xff]
        %v995 = vld [vmem:[%s274 + $0x728] sm:$0xff]
        %v996 = vld [vmem:[%s274 + $0x730] sm:$0xff]
        %v997 = vld [vmem:[%s274 + $0x738] sm:$0xff]
        %v998 = vld [vmem:[%s274 + $0x740] sm:$0xff]
        %v999 = vld [vmem:[%s274 + $0x748] sm:$0xff]
        %v1000 = vld [vmem:[%s274 + $0x750] sm:$0xff]
        %v1001 = vld [vmem:[%s274 + $0x758] sm:$0xff]
        %v1002 = vld [vmem:[%s274 + $0x760] sm:$0xff]
        %v1003 = vld [vmem:[%s274 + $0x768] sm:$0xff]
        %v1004 = vld [vmem:[%s274 + $0x770] sm:$0xff]
        %v1005 = vld [vmem:[%s274 + $0x778] sm:$0xff]
        %v1006 = vld [vmem:[%s274 + $0x780] sm:$0xff]
        %v1007 = vld [vmem:[%s274 + $0x788] sm:$0xff]
        %v1008 = vld [vmem:[%s274 + $0x790] sm:$0xff]
        %v1009 = vld [vmem:[%s274 + $0x798] sm:$0xff]
        %v1010 = vld [vmem:[%s274 + $0x7a0] sm:$0xff]
        %v1011 = vld [vmem:[%s274 + $0x7a8] sm:$0xff]
        %v1012 = vld [vmem:[%s274 + $0x7b0] sm:$0xff]
        %v1013 = vld [vmem:[%s274 + $0x7b8] sm:$0xff]
        %v1014 = vld [vmem:[%s274 + $0x7c0] sm:$0xff]
        %v1015 = vld [vmem:[%s274 + $0x7c8] sm:$0xff]
        %v1016 = vld [vmem:[%s274 + $0x7d0] sm:$0xff]
        %v1017 = vld [vmem:[%s274 + $0x7d8] sm:$0xff]
        %v1018 = vld [vmem:[%s274 + $0x7e0] sm:$0xff]
        %v1019 = vld [vmem:[%s274 + $0x7e8] sm:$0xff]
        %v1020 = vld [vmem:[%s274 + $0x7f0] sm:$0xff]
        %v1021 = vld [vmem:[%s274 + $0x7f8] sm:$0xff]
        %v1022 = vld [vmem:[%s274 + $0x800] sm:$0xff]
        %v1023 = vld [vmem:[%s274 + $0x808] sm:$0xff]
        %v1024 = vld [vmem:[%s274 + $0x810] sm:$0xff]
        %v1025 = vld [vmem:[%s274 + $0x818] sm:$0xff]
        %v1026 = vld [vmem:[%s274 + $0x820] sm:$0xff]
        %v1027 = vld [vmem:[%s274 + $0x828] sm:$0xff]
        %v1028 = vld [vmem:[%s274 + $0x830] sm:$0xff]
        %v1029 = vld [vmem:[%s274 + $0x838] sm:$0xff]
        %v1030 = vld [vmem:[%s274 + $0x840] sm:$0xff]
        %v1031 = vld [vmem:[%s274 + $0x848] sm:$0xff]
        %v1032 = vld [vmem:[%s274 + $0x850] sm:$0xff]
        %v1033 = vld [vmem:[%s274 + $0x858] sm:$0xff]
        %v1034 = vld [vmem:[%s274 + $0x860] sm:$0xff]
        %v1035 = vld [vmem:[%s274 + $0x868] sm:$0xff]
        %v1036 = vld [vmem:[%s274 + $0x870] sm:$0xff]
        %v1037 = vld [vmem:[%s274 + $0x878] sm:$0xff]
        %v1038 = vld [vmem:[%s274 + $0x880] sm:$0xff]
        %v1039 = vld [vmem:[%s274 + $0x888] sm:$0xff]
        %v1040 = vld [vmem:[%s274 + $0x890] sm:$0xff]
        %v1041 = vld [vmem:[%s274 + $0x898] sm:$0xff]
        %v1042 = vld [vmem:[%s274 + $0x8a0] sm:$0xff]
        %v1043 = vld [vmem:[%s274 + $0x8a8] sm:$0xff]
        %v1044 = vld [vmem:[%s274 + $0x8b0] sm:$0xff]
        %v1045 = vld [vmem:[%s274 + $0x8b8] sm:$0xff]
        %v1046 = vld [vmem:[%s274 + $0x8c0] sm:$0xff]
        %v1047 = vld [vmem:[%s274 + $0x8c8] sm:$0xff]
        %v1048 = vld [vmem:[%s274 + $0x8d0] sm:$0xff]
        %v1049 = vld [vmem:[%s274 + $0x8d8] sm:$0xff]
        %v1050 = vld [vmem:[%s274 + $0x8e0] sm:$0xff]
        %v1051 = vld [vmem:[%s274 + $0x8e8] sm:$0xff]
        %v1052 = vld [vmem:[%s274 + $0x8f0] sm:$0xff]
        %v1053 = vld [vmem:[%s274 + $0x8f8] sm:$0xff]
        %v1054 = vld [vmem:[%s274 + $0x900] sm:$0xff]
        %v1055 = vld [vmem:[%s274 + $0x908] sm:$0xff]
        %v1056 = vld [vmem:[%s274 + $0x910] sm:$0xff]
        %v1057 = vld [vmem:[%s274 + $0x918] sm:$0xff]
        %v1058 = vld [vmem:[%s274 + $0x920] sm:$0xff]
        %v1059 = vld [vmem:[%s274 + $0x928] sm:$0xff]
        %v1060 = vld [vmem:[%s274 + $0x930] sm:$0xff]
        %v1061 = vld [vmem:[%s274 + $0x938] sm:$0xff]
        %v1062 = vld [vmem:[%s274 + $0x940] sm:$0xff]
        %v1063 = vld [vmem:[%s274 + $0x948] sm:$0xff]
        %v1064 = vld [vmem:[%s274 + $0x950] sm:$0xff]
        %v1065 = vld [vmem:[%s274 + $0x958] sm:$0xff]
        %v1066 = vld [vmem:[%s274 + $0x960] sm:$0xff]
        %v1067 = vld [vmem:[%s274 + $0x968] sm:$0xff]
        %v1068 = vld [vmem:[%s274 + $0x970] sm:$0xff]
        %v1069 = vld [vmem:[%s274 + $0x978] sm:$0xff]
        %v1070 = vld [vmem:[%s274 + $0x980] sm:$0xff]
        %v1071 = vld [vmem:[%s274 + $0x988] sm:$0xff]
        %v1072 = vld [vmem:[%s274 + $0x990] sm:$0xff]
        %v1073 = vld [vmem:[%s274 + $0x998] sm:$0xff]
        %v1074 = vld [vmem:[%s274 + $0x9a0] sm:$0xff]
        %v1075 = vld [vmem:[%s274 + $0x9a8] sm:$0xff]
        %v1076 = vld [vmem:[%s274 + $0x9b0] sm:$0xff]
        %v1077 = vld [vmem:[%s274 + $0x9b8] sm:$0xff]
        %v1078 = vld [vmem:[%s274 + $0x9c0] sm:$0xff]
        %v1079 = vld [vmem:[%s274 + $0x9c8] sm:$0xff]
        %v1080 = vld [vmem:[%s274 + $0x9d0] sm:$0xff]
        %v1081 = vld [vmem:[%s274 + $0x9d8] sm:$0xff]
        %v1082 = vld [vmem:[%s274 + $0x9e0] sm:$0xff]
        %v1083 = vld [vmem:[%s274 + $0x9e8] sm:$0xff]
        %v1084 = vld [vmem:[%s274 + $0x9f0] sm:$0xff]
        %v1085 = vld [vmem:[%s274 + $0x9f8] sm:$0xff]
        %v1086 = vld [vmem:[%s274 + $0xa00] sm:$0xff]
        %v1087 = vld [vmem:[%s274 + $0xa08] sm:$0xff]
        %v1088 = vld [vmem:[%s274 + $0xa10] sm:$0xff]
        %v1089 = vld [vmem:[%s274 + $0xa18] sm:$0xff]
        %v1090 = vld [vmem:[%s274 + $0xa20] sm:$0xff]
        %v1091 = vld [vmem:[%s274 + $0xa28] sm:$0xff]
        %v1092 = vld [vmem:[%s274 + $0xa30] sm:$0xff]
        %v1093 = vld [vmem:[%s274 + $0xa38] sm:$0xff]
        %v1094 = vld [vmem:[%s274 + $0xa40] sm:$0xff]
        %v1095 = vld [vmem:[%s274 + $0xa48] sm:$0xff]
        %v1096 = vld [vmem:[%s274 + $0xa50] sm:$0xff]
        %v1097 = vld [vmem:[%s274 + $0xa58] sm:$0xff]
        %v1098 = vld [vmem:[%s274 + $0xa60] sm:$0xff]
        %v1099 = vld [vmem:[%s274 + $0xa68] sm:$0xff]
        %v1100 = vld [vmem:[%s274 + $0xa70] sm:$0xff]
        %v1101 = vld [vmem:[%s274 + $0xa78] sm:$0xff]
        %v1102 = vld [vmem:[%s274 + $0xa80] sm:$0xff]
        %v1103 = vld [vmem:[%s274 + $0xa88] sm:$0xff]
        %v1104 = vld [vmem:[%s274 + $0xa90] sm:$0xff]
        %v1105 = vld [vmem:[%s274 + $0xa98] sm:$0xff]
        %v1106 = vld [vmem:[%s274 + $0xaa0] sm:$0xff]
        %v1107 = vld [vmem:[%s274 + $0xaa8] sm:$0xff]
        %v1108 = vld [vmem:[%s274 + $0xab0] sm:$0xff]
        %v1109 = vld [vmem:[%s274 + $0xab8] sm:$0xff]
        %v1110 = vld [vmem:[%s274 + $0xac0] sm:$0xff]
        %v1111 = vld [vmem:[%s274 + $0xac8] sm:$0xff]
        %v1112 = vld [vmem:[%s274 + $0xad0] sm:$0xff]
        %v1113 = vld [vmem:[%s274 + $0xad8] sm:$0xff]
        %v1114 = vld [vmem:[%s274 + $0xae0] sm:$0xff]
        %v1115 = vld [vmem:[%s274 + $0xae8] sm:$0xff]
        %v1116 = vld [vmem:[%s274 + $0xaf0] sm:$0xff]
        %v1117 = vld [vmem:[%s274 + $0xaf8] sm:$0xff]
        %v1118 = vld [vmem:[%s274 + $0xb00] sm:$0xff]
        %v1119 = vld [vmem:[%s274 + $0xb08] sm:$0xff]
        %v1120 = vld [vmem:[%s274 + $0xb10] sm:$0xff]
        %v1121 = vld [vmem:[%s274 + $0xb18] sm:$0xff]
        %v1122 = vld [vmem:[%s274 + $0xb20] sm:$0xff]
        %v1123 = vld [vmem:[%s274 + $0xb28] sm:$0xff]
        %v1124 = vld [vmem:[%s274 + $0xb30] sm:$0xff]
        %v1125 = vld [vmem:[%s274 + $0xb38] sm:$0xff]
        %v1126 = vld [vmem:[%s274 + $0xb40] sm:$0xff]
        %v1127 = vld [vmem:[%s274 + $0xb48] sm:$0xff]
        %v1128 = vld [vmem:[%s274 + $0xb50] sm:$0xff]
        %v1129 = vld [vmem:[%s274 + $0xb58] sm:$0xff]
        %v1130 = vld [vmem:[%s274 + $0xb60] sm:$0xff]
        %v1131 = vld [vmem:[%s274 + $0xb68] sm:$0xff]
        %v1132 = vld [vmem:[%s274 + $0xb70] sm:$0xff]
        %v1133 = vld [vmem:[%s274 + $0xb78] sm:$0xff]
        %v1134 = vld [vmem:[%s274 + $0xb80] sm:$0xff]
        %v1135 = vld [vmem:[%s274 + $0xb88] sm:$0xff]
        %v1136 = vld [vmem:[%s274 + $0xb90] sm:$0xff]
        %v1137 = vld [vmem:[%s274 + $0xb98] sm:$0xff]
        %v1138 = vld [vmem:[%s274 + $0xba0] sm:$0xff]
        %v1139 = vld [vmem:[%s274 + $0xba8] sm:$0xff]
        %v1140 = vld [vmem:[%s274 + $0xbb0] sm:$0xff]
        %v1141 = vld [vmem:[%s274 + $0xbb8] sm:$0xff]
        %v1142 = vld [vmem:[%s274 + $0xbc0] sm:$0xff]
        %v1143 = vld [vmem:[%s274 + $0xbc8] sm:$0xff]
        %v1144 = vld [vmem:[%s274 + $0xbd0] sm:$0xff]
        %v1145 = vld [vmem:[%s274 + $0xbd8] sm:$0xff]
        %v1146 = vld [vmem:[%s274 + $0xbe0] sm:$0xff]
        %v1147 = vld [vmem:[%s274 + $0xbe8] sm:$0xff]
        %v1148 = vld [vmem:[%s274 + $0xbf0] sm:$0xff]
        %v1149 = vld [vmem:[%s274 + $0xbf8] sm:$0xff]
        %v1150 = vld [vmem:[%s274 + $0xc00] sm:$0xff]
        %v1151 = vld [vmem:[%s274 + $0xc08] sm:$0xff]
        %v1152 = vld [vmem:[%s274 + $0xc10] sm:$0xff]
        %v1153 = vld [vmem:[%s274 + $0xc18] sm:$0xff]
        %v1154 = vld [vmem:[%s274 + $0xc20] sm:$0xff]
        %v1155 = vld [vmem:[%s274 + $0xc28] sm:$0xff]
        %v1156 = vld [vmem:[%s274 + $0xc30] sm:$0xff]
        %v1157 = vld [vmem:[%s274 + $0xc38] sm:$0xff]
        %v1158 = vld [vmem:[%s274 + $0xc40] sm:$0xff]
        %v1159 = vld [vmem:[%s274 + $0xc48] sm:$0xff]
        %v1160 = vld [vmem:[%s274 + $0xc50] sm:$0xff]
        %v1161 = vld [vmem:[%s274 + $0xc58] sm:$0xff]
        %v1162 = vld [vmem:[%s274 + $0xc60] sm:$0xff]
        %v1163 = vld [vmem:[%s274 + $0xc68] sm:$0xff]
        %v1164 = vld [vmem:[%s274 + $0xc70] sm:$0xff]
        %v1165 = vld [vmem:[%s274 + $0xc78] sm:$0xff]
        %v1166 = vld [vmem:[%s274 + $0xc80] sm:$0xff]
        %v1167 = vld [vmem:[%s274 + $0xc88] sm:$0xff]
        %v1168 = vld [vmem:[%s274 + $0xc90] sm:$0xff]
        %v1169 = vld [vmem:[%s274 + $0xc98] sm:$0xff]
        %v1170 = vld [vmem:[%s274 + $0xca0] sm:$0xff]
        %v1171 = vld [vmem:[%s274 + $0xca8] sm:$0xff]
        %v1172 = vld [vmem:[%s274 + $0xcb0] sm:$0xff]
        %v1173 = vld [vmem:[%s274 + $0xcb8] sm:$0xff]
        %v1174 = vld [vmem:[%s274 + $0xcc0] sm:$0xff]
        %v1175 = vld [vmem:[%s274 + $0xcc8] sm:$0xff]
        %v1176 = vld [vmem:[%s274 + $0xcd0] sm:$0xff]
        %v1177 = vld [vmem:[%s274 + $0xcd8] sm:$0xff]
        %v1178 = vld [vmem:[%s274 + $0xce0] sm:$0xff]
        %v1179 = vld [vmem:[%s274 + $0xce8] sm:$0xff]
        %v1180 = vld [vmem:[%s274 + $0xcf0] sm:$0xff]
        %v1181 = vld [vmem:[%s274 + $0xcf8] sm:$0xff]
        %v1182 = vld [vmem:[%s274 + $0xd00] sm:$0xff]
        %v1183 = vld [vmem:[%s274 + $0xd08] sm:$0xff]
        %v1184 = vld [vmem:[%s274 + $0xd10] sm:$0xff]
        %v1185 = vld [vmem:[%s274 + $0xd18] sm:$0xff]
        %v1186 = vld [vmem:[%s274 + $0xd20] sm:$0xff]
        %v1187 = vld [vmem:[%s274 + $0xd28] sm:$0xff]
        %v1188 = vld [vmem:[%s274 + $0xd30] sm:$0xff]
        %v1189 = vld [vmem:[%s274 + $0xd38] sm:$0xff]
        %v1190 = vld [vmem:[%s274 + $0xd40] sm:$0xff]
        %v1191 = vld [vmem:[%s274 + $0xd48] sm:$0xff]
        %v1192 = vld [vmem:[%s274 + $0xd50] sm:$0xff]
        %v1193 = vld [vmem:[%s274 + $0xd58] sm:$0xff]
        %v1194 = vld [vmem:[%s274 + $0xd60] sm:$0xff]
        %v1195 = vld [vmem:[%s274 + $0xd68] sm:$0xff]
        %v1196 = vld [vmem:[%s274 + $0xd70] sm:$0xff]
        %v1197 = vld [vmem:[%s274 + $0xd78] sm:$0xff]
        %v1198 = vld [vmem:[%s274 + $0xd80] sm:$0xff]
        %v1199 = vld [vmem:[%s274 + $0xd88] sm:$0xff]
        %v1200 = vld [vmem:[%s274 + $0xd90] sm:$0xff]
        %v1201 = vld [vmem:[%s274 + $0xd98] sm:$0xff]
        %v1202 = vld [vmem:[%s274 + $0xda0] sm:$0xff]
        %v1203 = vld [vmem:[%s274 + $0xda8] sm:$0xff]
        %v1204 = vld [vmem:[%s274 + $0xdb0] sm:$0xff]
        %v1205 = vld [vmem:[%s274 + $0xdb8] sm:$0xff]
        %v1206 = vld [vmem:[%s274 + $0xdc0] sm:$0xff]
        %v1207 = vld [vmem:[%s274 + $0xdc8] sm:$0xff]
        %v1208 = vld [vmem:[%s274 + $0xdd0] sm:$0xff]
        %v1209 = vld [vmem:[%s274 + $0xdd8] sm:$0xff]
        %v1210 = vld [vmem:[%s274 + $0xde0] sm:$0xff]
        %v1211 = vld [vmem:[%s274 + $0xde8] sm:$0xff]
        %v1212 = vld [vmem:[%s274 + $0xdf0] sm:$0xff]
        %v1213 = vld [vmem:[%s274 + $0xdf8] sm:$0xff]
        %v1214 = vld [vmem:[%s274 + $0xe00] sm:$0xff]
        %v1215 = vld [vmem:[%s274 + $0xe08] sm:$0xff]
        %v1216 = vld [vmem:[%s274 + $0xe10] sm:$0xff]
        %v1217 = vld [vmem:[%s274 + $0xe18] sm:$0xff]
        %v1218 = vld [vmem:[%s274 + $0xe20] sm:$0xff]
        %v1219 = vld [vmem:[%s274 + $0xe28] sm:$0xff]
        %v1220 = vld [vmem:[%s274 + $0xe30] sm:$0xff]
        %v1221 = vld [vmem:[%s274 + $0xe38] sm:$0xff]
        %v1222 = vld [vmem:[%s274 + $0xe40] sm:$0xff]
        %v1223 = vld [vmem:[%s274 + $0xe48] sm:$0xff]
        %v1224 = vld [vmem:[%s274 + $0xe50] sm:$0xff]
        %v1225 = vld [vmem:[%s274 + $0xe58] sm:$0xff]
        %v1226 = vld [vmem:[%s274 + $0xe60] sm:$0xff]
        %v1227 = vld [vmem:[%s274 + $0xe68] sm:$0xff]
        %v1228 = vld [vmem:[%s274 + $0xe70] sm:$0xff]
        %v1229 = vld [vmem:[%s274 + $0xe78] sm:$0xff]
        %v1230 = vld [vmem:[%s274 + $0xe80] sm:$0xff]
        %v1231 = vld [vmem:[%s274 + $0xe88] sm:$0xff]
        %v1232 = vld [vmem:[%s274 + $0xe90] sm:$0xff]
        %v1233 = vld [vmem:[%s274 + $0xe98] sm:$0xff]
        %v1234 = vld [vmem:[%s274 + $0xea0] sm:$0xff]
        %v1235 = vld [vmem:[%s274 + $0xea8] sm:$0xff]
        %v1236 = vld [vmem:[%s274 + $0xeb0] sm:$0xff]
        %v1237 = vld [vmem:[%s274 + $0xeb8] sm:$0xff]
        %v1238 = vld [vmem:[%s274 + $0xec0] sm:$0xff]
        %v1239 = vld [vmem:[%s274 + $0xec8] sm:$0xff]
        %v1240 = vld [vmem:[%s274 + $0xed0] sm:$0xff]
        %v1241 = vld [vmem:[%s274 + $0xed8] sm:$0xff]
        %v1242 = vld [vmem:[%s274 + $0xee0] sm:$0xff]
        %v1243 = vld [vmem:[%s274 + $0xee8] sm:$0xff]
        %v1244 = vld [vmem:[%s274 + $0xef0] sm:$0xff]
        %v1245 = vld [vmem:[%s274 + $0xef8] sm:$0xff]
        %v1246 = vld [vmem:[%s274 + $0xf00] sm:$0xff]
        %v1247 = vld [vmem:[%s274 + $0xf08] sm:$0xff]
        %v1248 = vld [vmem:[%s274 + $0xf10] sm:$0xff]
        %v1249 = vld [vmem:[%s274 + $0xf18] sm:$0xff]
        %v1250 = vld [vmem:[%s274 + $0xf20] sm:$0xff]
        %v1251 = vld [vmem:[%s274 + $0xf28] sm:$0xff]
        %v1252 = vld [vmem:[%s274 + $0xf30] sm:$0xff]
        %v1253 = vld [vmem:[%s274 + $0xf38] sm:$0xff]
        %v1254 = vld [vmem:[%s274 + $0xf40] sm:$0xff]
        %v1255 = vld [vmem:[%s274 + $0xf48] sm:$0xff]
        %v1256 = vld [vmem:[%s274 + $0xf50] sm:$0xff]
        %v1257 = vld [vmem:[%s274 + $0xf58] sm:$0xff]
        %v1258 = vld [vmem:[%s274 + $0xf60] sm:$0xff]
        %v1259 = vld [vmem:[%s274 + $0xf68] sm:$0xff]
        %v1260 = vld [vmem:[%s274 + $0xf70] sm:$0xff]
        %v1261 = vld [vmem:[%s274 + $0xf78] sm:$0xff]
        %v1262 = vld [vmem:[%s274 + $0xf80] sm:$0xff]
        %v1263 = vld [vmem:[%s274 + $0xf88] sm:$0xff]
        %v1264 = vld [vmem:[%s274 + $0xf90] sm:$0xff]
        %v1265 = vld [vmem:[%s274 + $0xf98] sm:$0xff]
        %v1266 = vld [vmem:[%s274 + $0xfa0] sm:$0xff]
        %v1267 = vld [vmem:[%s274 + $0xfa8] sm:$0xff]
        %v1268 = vld [vmem:[%s274 + $0xfb0] sm:$0xff]
        %v1269 = vld [vmem:[%s274 + $0xfb8] sm:$0xff]
        %v1270 = vld [vmem:[%s274 + $0xfc0] sm:$0xff]
        %v1271 = vld [vmem:[%s274 + $0xfc8] sm:$0xff]
        %v1272 = vld [vmem:[%s274 + $0xfd0] sm:$0xff]
        %v1273 = vld [vmem:[%s274 + $0xfd8] sm:$0xff]
        %v1274 = vld [vmem:[%s274 + $0xfe0] sm:$0xff]
        %v1275 = vld [vmem:[%s274 + $0xfe8] sm:$0xff]
        %v1276 = vld [vmem:[%s274 + $0xff0] sm:$0xff]
        %v1277 = vld [vmem:[%s274 + $0xff8] sm:$0xff]
        %v1278 = vld [vmem:[%s274 + $0x1000] sm:$0xff]
        %v1279 = vld [vmem:[%s274 + $0x1008] sm:$0xff]
        %v1280 = vld [vmem:[%s274 + $0x1010] sm:$0xff]
        %v1281 = vld [vmem:[%s274 + $0x1018] sm:$0xff]
        %v1282 = vld [vmem:[%s274 + $0x1020] sm:$0xff]
        %v1283 = vld [vmem:[%s274 + $0x1028] sm:$0xff]
        %v1284 = vld [vmem:[%s274 + $0x1030] sm:$0xff]
        %v1285 = vld [vmem:[%s274 + $0x1038] sm:$0xff]
        %v1286 = vld [vmem:[%s274 + $0x1040] sm:$0xff]
        %v1287 = vld [vmem:[%s274 + $0x1048] sm:$0xff]
        %v1288 = vld [vmem:[%s274 + $0x1050] sm:$0xff]
        %v1289 = vld [vmem:[%s274 + $0x1058] sm:$0xff]
        %v1290 = vld [vmem:[%s274 + $0x1060] sm:$0xff]
        %v1291 = vld [vmem:[%s274 + $0x1068] sm:$0xff]
        %v1292 = vld [vmem:[%s274 + $0x1070] sm:$0xff]
        %v1293 = vld [vmem:[%s274 + $0x1078] sm:$0xff]
        %v1294 = vld [vmem:[%s274 + $0x1080] sm:$0xff]
        %v1295 = vld [vmem:[%s274 + $0x1088] sm:$0xff]
        %v1296 = vld [vmem:[%s274 + $0x1090] sm:$0xff]
        %v1297 = vld [vmem:[%s274 + $0x1098] sm:$0xff]
        %v1298 = vld [vmem:[%s274 + $0x10a0] sm:$0xff]
        %v1299 = vld [vmem:[%s274 + $0x10a8] sm:$0xff]
        %v1300 = vld [vmem:[%s274 + $0x10b0] sm:$0xff]
        %v1301 = vld [vmem:[%s274 + $0x10b8] sm:$0xff]
        %v1302 = vld [vmem:[%s274 + $0x10c0] sm:$0xff]
        %v1303 = vld [vmem:[%s274 + $0x10c8] sm:$0xff]
        %v1304 = vld [vmem:[%s274 + $0x10d0] sm:$0xff]
        %v1305 = vld [vmem:[%s274 + $0x10d8] sm:$0xff]
        %v1306 = vld [vmem:[%s274 + $0x10e0] sm:$0xff]
        %v1307 = vld [vmem:[%s274 + $0x10e8] sm:$0xff]
        %v1308 = vld [vmem:[%s274 + $0x10f0] sm:$0xff]
        %v1309 = vld [vmem:[%s274 + $0x10f8] sm:$0xff]
        %v1310 = vld [vmem:[%s274 + $0x1100] sm:$0xff]
        %v1311 = vld [vmem:[%s274 + $0x1108] sm:$0xff]
        %v1312 = vld [vmem:[%s274 + $0x1110] sm:$0xff]
        %v1313 = vld [vmem:[%s274 + $0x1118] sm:$0xff]
        %v1314 = vld [vmem:[%s274 + $0x1120] sm:$0xff]
        %v1315 = vld [vmem:[%s274 + $0x1128] sm:$0xff]
        %v1316 = vld [vmem:[%s274 + $0x1130] sm:$0xff]
        %v1317 = vld [vmem:[%s274 + $0x1138] sm:$0xff]
        %v1318 = vld [vmem:[%s274 + $0x1140] sm:$0xff]
        %v1319 = vld [vmem:[%s274 + $0x1148] sm:$0xff]
        %v1320 = vld [vmem:[%s274 + $0x1150] sm:$0xff]
        %v1321 = vld [vmem:[%s274 + $0x1158] sm:$0xff]
        %v1322 = vld [vmem:[%s274 + $0x1160] sm:$0xff]
        %v1323 = vld [vmem:[%s274 + $0x1168] sm:$0xff]
        %v1324 = vld [vmem:[%s274 + $0x1170] sm:$0xff]
        %v1325 = vld [vmem:[%s274 + $0x1178] sm:$0xff]
        %v1326 = vld [vmem:[%s274 + $0x1180] sm:$0xff]
        %v1327 = vld [vmem:[%s274 + $0x1188] sm:$0xff]
        %v1328 = vld [vmem:[%s274 + $0x1190] sm:$0xff]
        %v1329 = vld [vmem:[%s274 + $0x1198] sm:$0xff]
        %v1330 = vld [vmem:[%s274 + $0x11a0] sm:$0xff]
        %v1331 = vld [vmem:[%s274 + $0x11a8] sm:$0xff]
        %v1332 = vld [vmem:[%s274 + $0x11b0] sm:$0xff]
        %v1333 = vld [vmem:[%s274 + $0x11b8] sm:$0xff]
        %v1334 = vld [vmem:[%s274 + $0x11c0] sm:$0xff]
        %v1335 = vld [vmem:[%s274 + $0x11c8] sm:$0xff]
        %v1336 = vld [vmem:[%s274 + $0x11d0] sm:$0xff]
        %v1337 = vld [vmem:[%s274 + $0x11d8] sm:$0xff]
        %v1338 = vld [vmem:[%s274 + $0x11e0] sm:$0xff]
        %v1339 = vld [vmem:[%s274 + $0x11e8] sm:$0xff]
        %v1340 = vld [vmem:[%s274 + $0x11f0] sm:$0xff]
        %v1341 = vld [vmem:[%s274 + $0x11f8] sm:$0xff]
        %v1342 = vld [vmem:[%s274 + $0x1200] sm:$0xff]
        %v1343 = vld [vmem:[%s274 + $0x1208] sm:$0xff]
        %v1344 = vld [vmem:[%s274 + $0x1210] sm:$0xff]
        %v1345 = vld [vmem:[%s274 + $0x1218] sm:$0xff]
        %v1346 = vld [vmem:[%s274 + $0x1220] sm:$0xff]
        %v1347 = vld [vmem:[%s274 + $0x1228] sm:$0xff]
        %v1348 = vld [vmem:[%s274 + $0x1230] sm:$0xff]
        %v1349 = vld [vmem:[%s274 + $0x1238] sm:$0xff]
        %v1350 = vld [vmem:[%s274 + $0x1240] sm:$0xff]
        %v1351 = vld [vmem:[%s274 + $0x1248] sm:$0xff]
        %v1352 = vld [vmem:[%s274 + $0x1250] sm:$0xff]
        %v1353 = vld [vmem:[%s274 + $0x1258] sm:$0xff]
        %v1354 = vld [vmem:[%s274 + $0x1260] sm:$0xff]
        %v1355 = vld [vmem:[%s274 + $0x1268] sm:$0xff]
        %v1356 = vld [vmem:[%s274 + $0x1270] sm:$0xff]
        %v1357 = vld [vmem:[%s274 + $0x1278] sm:$0xff]
        %v1358 = vld [vmem:[%s274 + $0x1280] sm:$0xff]
        %v1359 = vld [vmem:[%s274 + $0x1288] sm:$0xff]
        %v1360 = vld [vmem:[%s274 + $0x1290] sm:$0xff]
        %v1361 = vld [vmem:[%s274 + $0x1298] sm:$0xff]
        %v1362 = vld [vmem:[%s274 + $0x12a0] sm:$0xff]
        %v1363 = vld [vmem:[%s274 + $0x12a8] sm:$0xff]
        %v1364 = vld [vmem:[%s274 + $0x12b0] sm:$0xff]
        %v1365 = vld [vmem:[%s274 + $0x12b8] sm:$0xff]
        %v1366 = vld [vmem:[%s274 + $0x12c0] sm:$0xff]
        %v1367 = vld [vmem:[%s274 + $0x12c8] sm:$0xff]
        %v1368 = vld [vmem:[%s274 + $0x12d0] sm:$0xff]
        %v1369 = vld [vmem:[%s274 + $0x12d8] sm:$0xff]
        %v1370 = vld [vmem:[%s274 + $0x12e0] sm:$0xff]
        %v1371 = vld [vmem:[%s274 + $0x12e8] sm:$0xff]
        %v1372 = vld [vmem:[%s274 + $0x12f0] sm:$0xff]
        %v1373 = vld [vmem:[%s274 + $0x12f8] sm:$0xff]
        %v1374 = vld [vmem:[%s274 + $0x1300] sm:$0xff]
        %v1375 = vld [vmem:[%s274 + $0x1308] sm:$0xff]
        %v1376 = vld [vmem:[%s274 + $0x1310] sm:$0xff]
        %v1377 = vld [vmem:[%s274 + $0x1318] sm:$0xff]
        %v1378 = vld [vmem:[%s274 + $0x1320] sm:$0xff]
        %v1379 = vld [vmem:[%s274 + $0x1328] sm:$0xff]
        %v1380 = vld [vmem:[%s274 + $0x1330] sm:$0xff]
        %v1381 = vld [vmem:[%s274 + $0x1338] sm:$0xff]
        %v1382 = vld [vmem:[%s274 + $0x1340] sm:$0xff]
        %v1383 = vld [vmem:[%s274 + $0x1348] sm:$0xff]
        %v1384 = vld [vmem:[%s274 + $0x1350] sm:$0xff]
        %v1385 = vld [vmem:[%s274 + $0x1358] sm:$0xff]
        %v1386 = vld [vmem:[%s274 + $0x1360] sm:$0xff]
        %v1387 = vld [vmem:[%s274 + $0x1368] sm:$0xff]
        %v1388 = vld [vmem:[%s274 + $0x1370] sm:$0xff]
        %v1389 = vld [vmem:[%s274 + $0x1378] sm:$0xff]
        %v1390 = vld [vmem:[%s274 + $0x1380] sm:$0xff]
        %v1391 = vld [vmem:[%s274 + $0x1388] sm:$0xff]
        %v1392 = vld [vmem:[%s274 + $0x1390] sm:$0xff]
        %v1393 = vld [vmem:[%s274 + $0x1398] sm:$0xff]
        %v1394 = vld [vmem:[%s274 + $0x13a0] sm:$0xff]
        %v1395 = vld [vmem:[%s274 + $0x13a8] sm:$0xff]
        %v1396 = vld [vmem:[%s274 + $0x13b0] sm:$0xff]
        %v1397 = vld [vmem:[%s274 + $0x13b8] sm:$0xff]
        %v1398 = vld [vmem:[%s274 + $0x13c0] sm:$0xff]
        %v1399 = vld [vmem:[%s274 + $0x13c8] sm:$0xff]
        %v1400 = vld [vmem:[%s274 + $0x13d0] sm:$0xff]
        %v1401 = vld [vmem:[%s274 + $0x13d8] sm:$0xff]
        %v1402 = vld [vmem:[%s274 + $0x13e0] sm:$0xff]
        %v1403 = vld [vmem:[%s274 + $0x13e8] sm:$0xff]
        %v1404 = vld [vmem:[%s274 + $0x13f0] sm:$0xff]
        %v1405 = vld [vmem:[%s274 + $0x13f8] sm:$0xff]
        %v1406 = vld [vmem:[%s274 + $0x1400] sm:$0xff]
        %v1407 = vld [vmem:[%s274 + $0x1408] sm:$0xff]
        %v1408 = vld [vmem:[%s274 + $0x1410] sm:$0xff]
        %v1409 = vld [vmem:[%s274 + $0x1418] sm:$0xff]
        %v1410 = vld [vmem:[%s274 + $0x1420] sm:$0xff]
        %v1411 = vld [vmem:[%s274 + $0x1428] sm:$0xff]
        %v1412 = vld [vmem:[%s274 + $0x1430] sm:$0xff]
        %v1413 = vld [vmem:[%s274 + $0x1438] sm:$0xff]
        %v1414 = vld [vmem:[%s274 + $0x1440] sm:$0xff]
        %v1415 = vld [vmem:[%s274 + $0x1448] sm:$0xff]
        %v1416 = vld [vmem:[%s274 + $0x1450] sm:$0xff]
        %v1417 = vld [vmem:[%s274 + $0x1458] sm:$0xff]
        %v1418 = vld [vmem:[%s274 + $0x1460] sm:$0xff]
        %v1419 = vld [vmem:[%s274 + $0x1468] sm:$0xff]
        %v1420 = vld [vmem:[%s274 + $0x1470] sm:$0xff]
        %v1421 = vld [vmem:[%s274 + $0x1478] sm:$0xff]
        %v1422 = vld [vmem:[%s274 + $0x1480] sm:$0xff]
        %v1423 = vld [vmem:[%s274 + $0x1488] sm:$0xff]
        %v1424 = vld [vmem:[%s274 + $0x1490] sm:$0xff]
        %v1425 = vld [vmem:[%s274 + $0x1498] sm:$0xff]
        %v1426 = vld [vmem:[%s274 + $0x14a0] sm:$0xff]
        %v1427 = vld [vmem:[%s274 + $0x14a8] sm:$0xff]
        %v1428 = vld [vmem:[%s274 + $0x14b0] sm:$0xff]
        %v1429 = vld [vmem:[%s274 + $0x14b8] sm:$0xff]
        %v1430 = vld [vmem:[%s274 + $0x14c0] sm:$0xff]
        %v1431 = vld [vmem:[%s274 + $0x14c8] sm:$0xff]
        %v1432 = vld [vmem:[%s274 + $0x14d0] sm:$0xff]
        %v1433 = vld [vmem:[%s274 + $0x14d8] sm:$0xff]
        %v1434 = vld [vmem:[%s274 + $0x14e0] sm:$0xff]
        %v1435 = vld [vmem:[%s274 + $0x14e8] sm:$0xff]
        %v1436 = vld [vmem:[%s274 + $0x14f0] sm:$0xff]
        %v1437 = vld [vmem:[%s274 + $0x14f8] sm:$0xff]
        %v1438 = vld [vmem:[%s274 + $0x1500] sm:$0xff]
        %v1439 = vld [vmem:[%s274 + $0x1508] sm:$0xff]
        %v1440 = vld [vmem:[%s274 + $0x1510] sm:$0xff]
        %v1441 = vld [vmem:[%s274 + $0x1518] sm:$0xff]
        %v1442 = vld [vmem:[%s274 + $0x1520] sm:$0xff]
        %v1443 = vld [vmem:[%s274 + $0x1528] sm:$0xff]
        %v1444 = vld [vmem:[%s274 + $0x1530] sm:$0xff]
        %v1445 = vld [vmem:[%s274 + $0x1538] sm:$0xff]
        %v1446 = vld [vmem:[%s274 + $0x1540] sm:$0xff]
        %v1447 = vld [vmem:[%s274 + $0x1548] sm:$0xff]
        %v1448 = vld [vmem:[%s274 + $0x1550] sm:$0xff]
        %v1449 = vld [vmem:[%s274 + $0x1558] sm:$0xff]
        %v1450 = vld [vmem:[%s274 + $0x1560] sm:$0xff]
        %v1451 = vld [vmem:[%s274 + $0x1568] sm:$0xff]
        %v1452 = vld [vmem:[%s274 + $0x1570] sm:$0xff]
        %v1453 = vld [vmem:[%s274 + $0x1578] sm:$0xff]
        %v1454 = vld [vmem:[%s274 + $0x1580] sm:$0xff]
        %v1455 = vld [vmem:[%s274 + $0x1588] sm:$0xff]
        %v1456 = vld [vmem:[%s274 + $0x1590] sm:$0xff]
        %v1457 = vld [vmem:[%s274 + $0x1598] sm:$0xff]
        %v1458 = vld [vmem:[%s274 + $0x15a0] sm:$0xff]
        %v1459 = vld [vmem:[%s274 + $0x15a8] sm:$0xff]
        %v1460 = vld [vmem:[%s274 + $0x15b0] sm:$0xff]
        %v1461 = vld [vmem:[%s274 + $0x15b8] sm:$0xff]
        %v1462 = vld [vmem:[%s274 + $0x15c0] sm:$0xff]
        %v1463 = vld [vmem:[%s274 + $0x15c8] sm:$0xff]
        %v1464 = vld [vmem:[%s274 + $0x15d0] sm:$0xff]
        %v1465 = vld [vmem:[%s274 + $0x15d8] sm:$0xff]
        %v1466 = vld [vmem:[%s274 + $0x15e0] sm:$0xff]
        %v1467 = vld [vmem:[%s274 + $0x15e8] sm:$0xff]
        %v1468 = vld [vmem:[%s274 + $0x15f0] sm:$0xff]
        %v1469 = vld [vmem:[%s274 + $0x15f8] sm:$0xff]
        %v1470 = vld [vmem:[%s274 + $0x1600] sm:$0xff]
        %v1471 = vld [vmem:[%s274 + $0x1608] sm:$0xff]
        %v1472 = vld [vmem:[%s274 + $0x1610] sm:$0xff]
        %v1473 = vld [vmem:[%s274 + $0x1618] sm:$0xff]
        %v1474 = vld [vmem:[%s274 + $0x1620] sm:$0xff]
        %v1475 = vld [vmem:[%s274 + $0x1628] sm:$0xff]
        %v1476 = vld [vmem:[%s274 + $0x1630] sm:$0xff]
        %v1477 = vld [vmem:[%s274 + $0x1638] sm:$0xff]
        %v1478 = vld [vmem:[%s274 + $0x1640] sm:$0xff]
        %v1479 = vld [vmem:[%s274 + $0x1648] sm:$0xff]
        %v1480 = vld [vmem:[%s274 + $0x1650] sm:$0xff]
        %v1481 = vld [vmem:[%s274 + $0x1658] sm:$0xff]
        %v1482 = vld [vmem:[%s274 + $0x1660] sm:$0xff]
        %v1483 = vld [vmem:[%s274 + $0x1668] sm:$0xff]
        %v1484 = vld [vmem:[%s274 + $0x1670] sm:$0xff]
        %v1485 = vld [vmem:[%s274 + $0x1678] sm:$0xff]
        %v1486 = vld [vmem:[%s274 + $0x1680] sm:$0xff]
        %v1487 = vld [vmem:[%s274 + $0x1688] sm:$0xff]
        %v1488 = vld [vmem:[%s274 + $0x1690] sm:$0xff]
        %v1489 = vld [vmem:[%s274 + $0x1698] sm:$0xff]
        %v1490 = vld [vmem:[%s274 + $0x16a0] sm:$0xff]
        %v1491 = vld [vmem:[%s274 + $0x16a8] sm:$0xff]
        %v1492 = vld [vmem:[%s274 + $0x16b0] sm:$0xff]
        %v1493 = vld [vmem:[%s274 + $0x16b8] sm:$0xff]
        %v1494 = vld [vmem:[%s274 + $0x16c0] sm:$0xff]
        %v1495 = vld [vmem:[%s274 + $0x16c8] sm:$0xff]
        %v1496 = vld [vmem:[%s274 + $0x16d0] sm:$0xff]
        %v1497 = vld [vmem:[%s274 + $0x16d8] sm:$0xff]
        %v1498 = vld [vmem:[%s274 + $0x16e0] sm:$0xff]
        %v1499 = vld [vmem:[%s274 + $0x16e8] sm:$0xff]
        %v1500 = vld [vmem:[%s274 + $0x16f0] sm:$0xff]
        %v1501 = vld [vmem:[%s274 + $0x16f8] sm:$0xff]
        %v1502 = vld [vmem:[%s274 + $0x1700] sm:$0xff]
        %v1503 = vld [vmem:[%s274 + $0x1708] sm:$0xff]
        %v1504 = vld [vmem:[%s274 + $0x1710] sm:$0xff]
        %v1505 = vld [vmem:[%s274 + $0x1718] sm:$0xff]
        %v1506 = vld [vmem:[%s274 + $0x1720] sm:$0xff]
        %v1507 = vld [vmem:[%s274 + $0x1728] sm:$0xff]
        %v1508 = vld [vmem:[%s274 + $0x1730] sm:$0xff]
        %v1509 = vld [vmem:[%s274 + $0x1738] sm:$0xff]
        %v1510 = vld [vmem:[%s274 + $0x1740] sm:$0xff]
        %v1511 = vld [vmem:[%s274 + $0x1748] sm:$0xff]
        %v1512 = vld [vmem:[%s274 + $0x1750] sm:$0xff]
        %v1513 = vld [vmem:[%s274 + $0x1758] sm:$0xff]
        %v1514 = vld [vmem:[%s274 + $0x1760] sm:$0xff]
        %v1515 = vld [vmem:[%s274 + $0x1768] sm:$0xff]
        %v1516 = vld [vmem:[%s274 + $0x1770] sm:$0xff]
        %v1517 = vld [vmem:[%s274 + $0x1778] sm:$0xff]
        %v1518 = vld [vmem:[%s274 + $0x1780] sm:$0xff]
        %v1519 = vld [vmem:[%s274 + $0x1788] sm:$0xff]
        %v1520 = vld [vmem:[%s274 + $0x1790] sm:$0xff]
        %v1521 = vld [vmem:[%s274 + $0x1798] sm:$0xff]
        %v1522 = vld [vmem:[%s274 + $0x17a0] sm:$0xff]
        %v1523 = vld [vmem:[%s274 + $0x17a8] sm:$0xff]
        %v1524 = vld [vmem:[%s274 + $0x17b0] sm:$0xff]
        %v1525 = vld [vmem:[%s274 + $0x17b8] sm:$0xff]
        %v1526 = vld [vmem:[%s274 + $0x17c0] sm:$0xff]
        %v1527 = vld [vmem:[%s274 + $0x17c8] sm:$0xff]
        %v1528 = vld [vmem:[%s274 + $0x17d0] sm:$0xff]
        %v1529 = vld [vmem:[%s274 + $0x17d8] sm:$0xff]
        %v1530 = vld [vmem:[%s274 + $0x17e0] sm:$0xff]
        %v1531 = vld [vmem:[%s274 + $0x17e8] sm:$0xff]
        %v1532 = vld [vmem:[%s274 + $0x17f0] sm:$0xff]
        %v1533 = vld [vmem:[%s274 + $0x17f8] sm:$0xff]
        %v1534 = vld [vmem:[%s274 + $0x1800] sm:$0xff]
        %v1535 = vld [vmem:[%s274 + $0x1808] sm:$0xff]
        %v1536 = vld [vmem:[%s274 + $0x1810] sm:$0xff]
        %v1537 = vld [vmem:[%s274 + $0x1818] sm:$0xff]
        %v1538 = vld [vmem:[%s274 + $0x1820] sm:$0xff]
        %v1539 = vld [vmem:[%s274 + $0x1828] sm:$0xff]
        %v1540 = vld [vmem:[%s274 + $0x1830] sm:$0xff]
        %v1541 = vld [vmem:[%s274 + $0x1838] sm:$0xff]
        %v1542 = vld [vmem:[%s274 + $0x1840] sm:$0xff]
        %v1543 = vld [vmem:[%s274 + $0x1848] sm:$0xff]
        %v1544 = vld [vmem:[%s274 + $0x1850] sm:$0xff]
        %v1545 = vld [vmem:[%s274 + $0x1858] sm:$0xff]
        %v1546 = vld [vmem:[%s274 + $0x1860] sm:$0xff]
        %v1547 = vld [vmem:[%s274 + $0x1868] sm:$0xff]
        %v1548 = vld [vmem:[%s274 + $0x1870] sm:$0xff]
        %v1549 = vld [vmem:[%s274 + $0x1878] sm:$0xff]
        %v1550 = vld [vmem:[%s274 + $0x1880] sm:$0xff]
        %v1551 = vld [vmem:[%s274 + $0x1888] sm:$0xff]
        %v1552 = vld [vmem:[%s274 + $0x1890] sm:$0xff]
        %v1553 = vld [vmem:[%s274 + $0x1898] sm:$0xff]
        %v1554 = vld [vmem:[%s274 + $0x18a0] sm:$0xff]
        %v1555 = vld [vmem:[%s274 + $0x18a8] sm:$0xff]
        %v1556 = vld [vmem:[%s274 + $0x18b0] sm:$0xff]
        %v1557 = vld [vmem:[%s274 + $0x18b8] sm:$0xff]
        %v1558 = vld [vmem:[%s274 + $0x18c0] sm:$0xff]
        %v1559 = vld [vmem:[%s274 + $0x18c8] sm:$0xff]
        %v1560 = vld [vmem:[%s274 + $0x18d0] sm:$0xff]
        %v1561 = vld [vmem:[%s274 + $0x18d8] sm:$0xff]
        %v1562 = vld [vmem:[%s274 + $0x18e0] sm:$0xff]
        %v1563 = vld [vmem:[%s274 + $0x18e8] sm:$0xff]
        %v1564 = vld [vmem:[%s274 + $0x18f0] sm:$0xff]
        %v1565 = vld [vmem:[%s274 + $0x18f8] sm:$0xff]
        %v1566 = vld [vmem:[%s274 + $0x1900] sm:$0xff]
        %v1567 = vld [vmem:[%s274 + $0x1908] sm:$0xff]
        %v1568 = vld [vmem:[%s274 + $0x1910] sm:$0xff]
        %v1569 = vld [vmem:[%s274 + $0x1918] sm:$0xff]
        %v1570 = vld [vmem:[%s274 + $0x1920] sm:$0xff]
        %v1571 = vld [vmem:[%s274 + $0x1928] sm:$0xff]
        %v1572 = vld [vmem:[%s274 + $0x1930] sm:$0xff]
        %v1573 = vld [vmem:[%s274 + $0x1938] sm:$0xff]
        %v1574 = vld [vmem:[%s274 + $0x1940] sm:$0xff]
        %v1575 = vld [vmem:[%s274 + $0x1948] sm:$0xff]
        %v1576 = vld [vmem:[%s274 + $0x1950] sm:$0xff]
        %v1577 = vld [vmem:[%s274 + $0x1958] sm:$0xff]
        %v1578 = vld [vmem:[%s274 + $0x1960] sm:$0xff]
        %v1579 = vld [vmem:[%s274 + $0x1968] sm:$0xff]
        %v1580 = vld [vmem:[%s274 + $0x1970] sm:$0xff]
        %v1581 = vld [vmem:[%s274 + $0x1978] sm:$0xff]
        %v1582 = vld [vmem:[%s274 + $0x1980] sm:$0xff]
        %v1583 = vld [vmem:[%s274 + $0x1988] sm:$0xff]
        %v1584 = vld [vmem:[%s274 + $0x1990] sm:$0xff]
        %v1585 = vld [vmem:[%s274 + $0x1998] sm:$0xff]
        %v1586 = vld [vmem:[%s274 + $0x19a0] sm:$0xff]
        %v1587 = vld [vmem:[%s274 + $0x19a8] sm:$0xff]
        %v1588 = vld [vmem:[%s274 + $0x19b0] sm:$0xff]
        %v1589 = vld [vmem:[%s274 + $0x19b8] sm:$0xff]
        %v1590 = vld [vmem:[%s274 + $0x19c0] sm:$0xff]
        %v1591 = vld [vmem:[%s274 + $0x19c8] sm:$0xff]
        %v1592 = vld [vmem:[%s274 + $0x19d0] sm:$0xff]
        %v1593 = vld [vmem:[%s274 + $0x19d8] sm:$0xff]
        %v1594 = vld [vmem:[%s274 + $0x19e0] sm:$0xff]
        %v1595 = vld [vmem:[%s274 + $0x19e8] sm:$0xff]
        %v1596 = vld [vmem:[%s274 + $0x19f0] sm:$0xff]
        %v1597 = vld [vmem:[%s274 + $0x19f8] sm:$0xff]
        %v1598 = vld [vmem:[%s274 + $0x1a00] sm:$0xff]
        %v1599 = vld [vmem:[%s274 + $0x1a08] sm:$0xff]
        %v1600 = vld [vmem:[%s274 + $0x1a10] sm:$0xff]
        %v1601 = vld [vmem:[%s274 + $0x1a18] sm:$0xff]
        %v1602 = vld [vmem:[%s274 + $0x1a20] sm:$0xff]
        %v1603 = vld [vmem:[%s274 + $0x1a28] sm:$0xff]
        %v1604 = vld [vmem:[%s274 + $0x1a30] sm:$0xff]
        %v1605 = vld [vmem:[%s274 + $0x1a38] sm:$0xff]
        %v1606 = vld [vmem:[%s274 + $0x1a40] sm:$0xff]
        %v1607 = vld [vmem:[%s274 + $0x1a48] sm:$0xff]
        %v1608 = vld [vmem:[%s274 + $0x1a50] sm:$0xff]
        %v1609 = vld [vmem:[%s274 + $0x1a58] sm:$0xff]
        %v1610 = vld [vmem:[%s274 + $0x1a60] sm:$0xff]
        %v1611 = vld [vmem:[%s274 + $0x1a68] sm:$0xff]
        %v1612 = vld [vmem:[%s274 + $0x1a70] sm:$0xff]
        %v1613 = vld [vmem:[%s274 + $0x1a78] sm:$0xff]
        %v1614 = vld [vmem:[%s274 + $0x1a80] sm:$0xff]
        %v1615 = vld [vmem:[%s274 + $0x1a88] sm:$0xff]
        %v1616 = vld [vmem:[%s274 + $0x1a90] sm:$0xff]
        %v1617 = vld [vmem:[%s274 + $0x1a98] sm:$0xff]
        %v1618 = vld [vmem:[%s274 + $0x1aa0] sm:$0xff]
        %v1619 = vld [vmem:[%s274 + $0x1aa8] sm:$0xff]
        %v1620 = vld [vmem:[%s274 + $0x1ab0] sm:$0xff]
        %v1621 = vld [vmem:[%s274 + $0x1ab8] sm:$0xff]
        %v1622 = vld [vmem:[%s274 + $0x1ac0] sm:$0xff]
        %v1623 = vld [vmem:[%s274 + $0x1ac8] sm:$0xff]
        %v1624 = vld [vmem:[%s274 + $0x1ad0] sm:$0xff]
        %v1625 = vld [vmem:[%s274 + $0x1ad8] sm:$0xff]
        %v1626 = vld [vmem:[%s274 + $0x1ae0] sm:$0xff]
        %v1627 = vld [vmem:[%s274 + $0x1ae8] sm:$0xff]
        %v1628 = vld [vmem:[%s274 + $0x1af0] sm:$0xff]
        %v1629 = vld [vmem:[%s274 + $0x1af8] sm:$0xff]
        %v1630 = vld [vmem:[%s274 + $0x1b00] sm:$0xff]
        %v1631 = vld [vmem:[%s274 + $0x1b08] sm:$0xff]
        %v1632 = vld [vmem:[%s274 + $0x1b10] sm:$0xff]
        %v1633 = vld [vmem:[%s274 + $0x1b18] sm:$0xff]
        %v1634 = vld [vmem:[%s274 + $0x1b20] sm:$0xff]
        %v1635 = vld [vmem:[%s274 + $0x1b28] sm:$0xff]
        %v1636 = vld [vmem:[%s274 + $0x1b30] sm:$0xff]
        %v1637 = vld [vmem:[%s274 + $0x1b38] sm:$0xff]
        %v1638 = vld [vmem:[%s274 + $0x1b40] sm:$0xff]
        %v1639 = vld [vmem:[%s274 + $0x1b48] sm:$0xff]
        %v1640 = vld [vmem:[%s274 + $0x1b50] sm:$0xff]
        %v1641 = vld [vmem:[%s274 + $0x1b58] sm:$0xff]
        %v1642 = vld [vmem:[%s274 + $0x1b60] sm:$0xff]
        %v1643 = vld [vmem:[%s274 + $0x1b68] sm:$0xff]
        %v1644 = vld [vmem:[%s274 + $0x1b70] sm:$0xff]
        %v1645 = vld [vmem:[%s274 + $0x1b78] sm:$0xff]
        %v1646 = vld [vmem:[%s274 + $0x1b80] sm:$0xff]
        %v1647 = vld [vmem:[%s274 + $0x1b88] sm:$0xff]
        %v1648 = vld [vmem:[%s274 + $0x1b90] sm:$0xff]
        %v1649 = vld [vmem:[%s274 + $0x1b98] sm:$0xff]
        %v1650 = vld [vmem:[%s274 + $0x1ba0] sm:$0xff]
        %v1651 = vld [vmem:[%s274 + $0x1ba8] sm:$0xff]
        %v1652 = vld [vmem:[%s274 + $0x1bb0] sm:$0xff]
        %v1653 = vld [vmem:[%s274 + $0x1bb8] sm:$0xff]
        %v1654 = vld [vmem:[%s274 + $0x1bc0] sm:$0xff]
        %v1655 = vld [vmem:[%s274 + $0x1bc8] sm:$0xff]
        %v1656 = vld [vmem:[%s274 + $0x1bd0] sm:$0xff]
        %v1657 = vld [vmem:[%s274 + $0x1bd8] sm:$0xff]
        %v1658 = vld [vmem:[%s274 + $0x1be0] sm:$0xff]
        %v1659 = vld [vmem:[%s274 + $0x1be8] sm:$0xff]
        %v1660 = vld [vmem:[%s274 + $0x1bf0] sm:$0xff]
        %v1661 = vld [vmem:[%s274 + $0x1bf8] sm:$0xff]
        %v1662 = vld [vmem:[%s274 + $0x1c00] sm:$0xff]
        %v1663 = vld [vmem:[%s274 + $0x1c08] sm:$0xff]
        %v1664 = vld [vmem:[%s274 + $0x1c10] sm:$0xff]
        %v1665 = vld [vmem:[%s274 + $0x1c18] sm:$0xff]
        %v1666 = vld [vmem:[%s274 + $0x1c20] sm:$0xff]
        %v1667 = vld [vmem:[%s274 + $0x1c28] sm:$0xff]
        %v1668 = vld [vmem:[%s274 + $0x1c30] sm:$0xff]
        %v1669 = vld [vmem:[%s274 + $0x1c38] sm:$0xff]
        %v1670 = vld [vmem:[%s274 + $0x1c40] sm:$0xff]
        %v1671 = vld [vmem:[%s274 + $0x1c48] sm:$0xff]
        %v1672 = vld [vmem:[%s274 + $0x1c50] sm:$0xff]
        %v1673 = vld [vmem:[%s274 + $0x1c58] sm:$0xff]
        %v1674 = vld [vmem:[%s274 + $0x1c60] sm:$0xff]
        %v1675 = vld [vmem:[%s274 + $0x1c68] sm:$0xff]
        %v1676 = vld [vmem:[%s274 + $0x1c70] sm:$0xff]
        %v1677 = vld [vmem:[%s274 + $0x1c78] sm:$0xff]
        %v1678 = vld [vmem:[%s274 + $0x1c80] sm:$0xff]
        %v1679 = vld [vmem:[%s274 + $0x1c88] sm:$0xff]
        %v1680 = vld [vmem:[%s274 + $0x1c90] sm:$0xff]
        %v1681 = vld [vmem:[%s274 + $0x1c98] sm:$0xff]
        %v1682 = vld [vmem:[%s274 + $0x1ca0] sm:$0xff]
        %v1683 = vld [vmem:[%s274 + $0x1ca8] sm:$0xff]
        %v1684 = vld [vmem:[%s274 + $0x1cb0] sm:$0xff]
        %v1685 = vld [vmem:[%s274 + $0x1cb8] sm:$0xff]
        %v1686 = vld [vmem:[%s274 + $0x1cc0] sm:$0xff]
        %v1687 = vld [vmem:[%s274 + $0x1cc8] sm:$0xff]
        %v1688 = vld [vmem:[%s274 + $0x1cd0] sm:$0xff]
        %v1689 = vld [vmem:[%s274 + $0x1cd8] sm:$0xff]
        %v1690 = vld [vmem:[%s274 + $0x1ce0] sm:$0xff]
        %v1691 = vld [vmem:[%s274 + $0x1ce8] sm:$0xff]
        %v1692 = vld [vmem:[%s274 + $0x1cf0] sm:$0xff]
        %v1693 = vld [vmem:[%s274 + $0x1cf8] sm:$0xff]
        %v1694 = vld [vmem:[%s274 + $0x1d00] sm:$0xff]
        %v1695 = vld [vmem:[%s274 + $0x1d08] sm:$0xff]
        %v1696 = vld [vmem:[%s274 + $0x1d10] sm:$0xff]
        %v1697 = vld [vmem:[%s274 + $0x1d18] sm:$0xff]
        %v1698 = vld [vmem:[%s274 + $0x1d20] sm:$0xff]
        %v1699 = vld [vmem:[%s274 + $0x1d28] sm:$0xff]
        %v1700 = vld [vmem:[%s274 + $0x1d30] sm:$0xff]
        %v1701 = vld [vmem:[%s274 + $0x1d38] sm:$0xff]
        %v1702 = vld [vmem:[%s274 + $0x1d40] sm:$0xff]
        %v1703 = vld [vmem:[%s274 + $0x1d48] sm:$0xff]
        %v1704 = vld [vmem:[%s274 + $0x1d50] sm:$0xff]
        %v1705 = vld [vmem:[%s274 + $0x1d58] sm:$0xff]
        %v1706 = vld [vmem:[%s274 + $0x1d60] sm:$0xff]
        %v1707 = vld [vmem:[%s274 + $0x1d68] sm:$0xff]
        %v1708 = vld [vmem:[%s274 + $0x1d70] sm:$0xff]
        %v1709 = vld [vmem:[%s274 + $0x1d78] sm:$0xff]
        %v1710 = vld [vmem:[%s274 + $0x1d80] sm:$0xff]
        %v1711 = vld [vmem:[%s274 + $0x1d88] sm:$0xff]
        %v1712 = vld [vmem:[%s274 + $0x1d90] sm:$0xff]
        %v1713 = vld [vmem:[%s274 + $0x1d98] sm:$0xff]
        %v1714 = vld [vmem:[%s274 + $0x1da0] sm:$0xff]
        %v1715 = vld [vmem:[%s274 + $0x1da8] sm:$0xff]
        %v1716 = vld [vmem:[%s274 + $0x1db0] sm:$0xff]
        %v1717 = vld [vmem:[%s274 + $0x1db8] sm:$0xff]
        %v1718 = vld [vmem:[%s274 + $0x1dc0] sm:$0xff]
        %v1719 = vld [vmem:[%s274 + $0x1dc8] sm:$0xff]
        %v1720 = vld [vmem:[%s274 + $0x1dd0] sm:$0xff]
        %v1721 = vld [vmem:[%s274 + $0x1dd8] sm:$0xff]
        %v1722 = vld [vmem:[%s274 + $0x1de0] sm:$0xff]
        %v1723 = vld [vmem:[%s274 + $0x1de8] sm:$0xff]
        %v1724 = vld [vmem:[%s274 + $0x1df0] sm:$0xff]
        %v1725 = vld [vmem:[%s274 + $0x1df8] sm:$0xff]
        %v1726 = vld [vmem:[%s274 + $0x1e00] sm:$0xff]
        %v1727 = vld [vmem:[%s274 + $0x1e08] sm:$0xff]
        %v1728 = vld [vmem:[%s274 + $0x1e10] sm:$0xff]
        %v1729 = vld [vmem:[%s274 + $0x1e18] sm:$0xff]
        %v1730 = vld [vmem:[%s274 + $0x1e20] sm:$0xff]
        %v1731 = vld [vmem:[%s274 + $0x1e28] sm:$0xff]
        %v1732 = vld [vmem:[%s274 + $0x1e30] sm:$0xff]
        %v1733 = vld [vmem:[%s274 + $0x1e38] sm:$0xff]
        %v1734 = vld [vmem:[%s274 + $0x1e40] sm:$0xff]
        %v1735 = vld [vmem:[%s274 + $0x1e48] sm:$0xff]
        %v1736 = vld [vmem:[%s274 + $0x1e50] sm:$0xff]
        %v1737 = vld [vmem:[%s274 + $0x1e58] sm:$0xff]
        %v1738 = vld [vmem:[%s274 + $0x1e60] sm:$0xff]
        %v1739 = vld [vmem:[%s274 + $0x1e68] sm:$0xff]
        %v1740 = vld [vmem:[%s274 + $0x1e70] sm:$0xff]
        %v1741 = vld [vmem:[%s274 + $0x1e78] sm:$0xff]
        %v1742 = vld [vmem:[%s274 + $0x1e80] sm:$0xff]
        %v1743 = vld [vmem:[%s274 + $0x1e88] sm:$0xff]
        %v1744 = vld [vmem:[%s274 + $0x1e90] sm:$0xff]
        %v1745 = vld [vmem:[%s274 + $0x1e98] sm:$0xff]
        %v1746 = vld [vmem:[%s274 + $0x1ea0] sm:$0xff]
        %v1747 = vld [vmem:[%s274 + $0x1ea8] sm:$0xff]
        %v1748 = vld [vmem:[%s274 + $0x1eb0] sm:$0xff]
        %v1749 = vld [vmem:[%s274 + $0x1eb8] sm:$0xff]
        %v1750 = vld [vmem:[%s274 + $0x1ec0] sm:$0xff]
        %v1751 = vld [vmem:[%s274 + $0x1ec8] sm:$0xff]
        %v1752 = vld [vmem:[%s274 + $0x1ed0] sm:$0xff]
        %v1753 = vld [vmem:[%s274 + $0x1ed8] sm:$0xff]
        %v1754 = vld [vmem:[%s274 + $0x1ee0] sm:$0xff]
        %v1755 = vld [vmem:[%s274 + $0x1ee8] sm:$0xff]
        %v1756 = vld [vmem:[%s274 + $0x1ef0] sm:$0xff]
        %v1757 = vld [vmem:[%s274 + $0x1ef8] sm:$0xff]
        %v1758 = vld [vmem:[%s274 + $0x1f00] sm:$0xff]
        %v1759 = vld [vmem:[%s274 + $0x1f08] sm:$0xff]
        %v1760 = vld [vmem:[%s274 + $0x1f10] sm:$0xff]
        %v1761 = vld [vmem:[%s274 + $0x1f18] sm:$0xff]
        %v1762 = vld [vmem:[%s274 + $0x1f20] sm:$0xff]
        %v1763 = vld [vmem:[%s274 + $0x1f28] sm:$0xff]
        %v1764 = vld [vmem:[%s274 + $0x1f30] sm:$0xff]
        %v1765 = vld [vmem:[%s274 + $0x1f38] sm:$0xff]
        %v1766 = vld [vmem:[%s274 + $0x1f40] sm:$0xff]
        %v1767 = vld [vmem:[%s274 + $0x1f48] sm:$0xff]
        %v1768 = vld [vmem:[%s274 + $0x1f50] sm:$0xff]
        %v1769 = vld [vmem:[%s274 + $0x1f58] sm:$0xff]
        %v1770 = vld [vmem:[%s274 + $0x1f60] sm:$0xff]
        %v1771 = vld [vmem:[%s274 + $0x1f68] sm:$0xff]
        %v1772 = vld [vmem:[%s274 + $0x1f70] sm:$0xff]
        %v1773 = vld [vmem:[%s274 + $0x1f78] sm:$0xff]
        %v1774 = vld [vmem:[%s274 + $0x1f80] sm:$0xff]
        %v1775 = vld [vmem:[%s274 + $0x1f88] sm:$0xff]
        %v1776 = vld [vmem:[%s274 + $0x1f90] sm:$0xff]
        %v1777 = vld [vmem:[%s274 + $0x1f98] sm:$0xff]
        %v1778 = vld [vmem:[%s274 + $0x1fa0] sm:$0xff]
        %v1779 = vld [vmem:[%s274 + $0x1fa8] sm:$0xff]
        %v1780 = vld [vmem:[%s274 + $0x1fb0] sm:$0xff]
        %v1781 = vld [vmem:[%s274 + $0x1fb8] sm:$0xff]
        %v1782 = vld [vmem:[%s274 + $0x1fc0] sm:$0xff]
        %v1783 = vld [vmem:[%s274 + $0x1fc8] sm:$0xff]
        %v1784 = vld [vmem:[%s274 + $0x1fd0] sm:$0xff]
        %v1785 = vld [vmem:[%s274 + $0x1fd8] sm:$0xff]
        %v1786 = vld [vmem:[%s274 + $0x1fe0] sm:$0xff]
        %v1787 = vld [vmem:[%s274 + $0x1fe8] sm:$0xff]
        %v1788 = vld [vmem:[%s274 + $0x1ff0] sm:$0xff]
        %v1789 = vld [vmem:[%s274 + $0x1ff8] sm:$0xff]
        %v1790 = vld [vmem:[%s274 + $0x2000] sm:$0xff]
        %v1791 = vld [vmem:[%s274 + $0x2008] sm:$0xff]
        %v1792 = vld [vmem:[%s274 + $0x2010] sm:$0xff]
        %v1793 = vld [vmem:[%s274 + $0x2018] sm:$0xff]
        %v1794 = vld [vmem:[%s274 + $0x2020] sm:$0xff]
        %v1795 = vld [vmem:[%s274 + $0x2028] sm:$0xff]
        %v1796 = vld [vmem:[%s274 + $0x2030] sm:$0xff]
        %v1797 = vld [vmem:[%s274 + $0x2038] sm:$0xff]
        %v1798 = vld [vmem:[%s274 + $0x2040] sm:$0xff]
        %v1799 = vld [vmem:[%s274 + $0x2048] sm:$0xff]
        %v1800 = vld [vmem:[%s274 + $0x2050] sm:$0xff]
        %v1801 = vld [vmem:[%s274 + $0x2058] sm:$0xff]
        %v1802 = vld [vmem:[%s274 + $0x2060] sm:$0xff]
        %v1803 = vld [vmem:[%s274 + $0x2068] sm:$0xff]
        %v1804 = vld [vmem:[%s274 + $0x2070] sm:$0xff]
        %v1805 = vld [vmem:[%s274 + $0x2078] sm:$0xff]
        %v1806 = vld [vmem:[%s274 + $0x2080] sm:$0xff]
        %v1807 = vld [vmem:[%s274 + $0x2088] sm:$0xff]
        %v1808 = vld [vmem:[%s274 + $0x2090] sm:$0xff]
        %v1809 = vld [vmem:[%s274 + $0x2098] sm:$0xff]
        %v1810 = vld [vmem:[%s274 + $0x20a0] sm:$0xff]
        %v1811 = vld [vmem:[%s274 + $0x20a8] sm:$0xff]
        %v1812 = vld [vmem:[%s274 + $0x20b0] sm:$0xff]
        %v1813 = vld [vmem:[%s274 + $0x20b8] sm:$0xff]
        %v1814 = vld [vmem:[%s274 + $0x20c0] sm:$0xff]
        %v1815 = vld [vmem:[%s274 + $0x20c8] sm:$0xff]
        %v1816 = vld [vmem:[%s274 + $0x20d0] sm:$0xff]
        %v1817 = vld [vmem:[%s274 + $0x20d8] sm:$0xff]
        %v1818 = vld [vmem:[%s274 + $0x20e0] sm:$0xff]
        %v1819 = vld [vmem:[%s274 + $0x20e8] sm:$0xff]
        %v1820 = vld [vmem:[%s274 + $0x20f0] sm:$0xff]
        %v1821 = vld [vmem:[%s274 + $0x20f8] sm:$0xff]
        %v1822 = vld [vmem:[%s274 + $0x2100] sm:$0xff]
        %v1823 = vld [vmem:[%s274 + $0x2108] sm:$0xff]
        %v1824 = vld [vmem:[%s274 + $0x2110] sm:$0xff]
        %v1825 = vld [vmem:[%s274 + $0x2118] sm:$0xff]
        %v1826 = vld [vmem:[%s274 + $0x2120] sm:$0xff]
        %v1827 = vld [vmem:[%s274 + $0x2128] sm:$0xff]
        %v1828 = vld [vmem:[%s274 + $0x2130] sm:$0xff]
        %v1829 = vld [vmem:[%s274 + $0x2138] sm:$0xff]
        %v1830 = vld [vmem:[%s274 + $0x2140] sm:$0xff]
        %v1831 = vld [vmem:[%s274 + $0x2148] sm:$0xff]
        %v1832 = vld [vmem:[%s274 + $0x2150] sm:$0xff]
        %v1833 = vld [vmem:[%s274 + $0x2158] sm:$0xff]
        %v1834 = vld [vmem:[%s274 + $0x2160] sm:$0xff]
        %v1835 = vld [vmem:[%s274 + $0x2168] sm:$0xff]
        %v1836 = vld [vmem:[%s274 + $0x2170] sm:$0xff]
        %v1837 = vld [vmem:[%s274 + $0x2178] sm:$0xff]
        %v1838 = vld [vmem:[%s274 + $0x2180] sm:$0xff]
        %v1839 = vld [vmem:[%s274 + $0x2188] sm:$0xff]
        %v1840 = vld [vmem:[%s274 + $0x2190] sm:$0xff]
        %v1841 = vld [vmem:[%s274 + $0x2198] sm:$0xff]
        %v1842 = vld [vmem:[%s274 + $0x21a0] sm:$0xff]
        %v1843 = vld [vmem:[%s274 + $0x21a8] sm:$0xff]
        %v1844 = vld [vmem:[%s274 + $0x21b0] sm:$0xff]
        %v1845 = vld [vmem:[%s274 + $0x21b8] sm:$0xff]
        %v1846 = vld [vmem:[%s274 + $0x21c0] sm:$0xff]
        %v1847 = vld [vmem:[%s274 + $0x21c8] sm:$0xff]
        %v1848 = vld [vmem:[%s274 + $0x21d0] sm:$0xff]
        %v1849 = vld [vmem:[%s274 + $0x21d8] sm:$0xff]
        %v1850 = vld [vmem:[%s274 + $0x21e0] sm:$0xff]
        %v1851 = vld [vmem:[%s274 + $0x21e8] sm:$0xff]
        %v1852 = vld [vmem:[%s274 + $0x21f0] sm:$0xff]
        %v1853 = vld [vmem:[%s274 + $0x21f8] sm:$0xff]
        %v1854 = vld [vmem:[%s274 + $0x2200] sm:$0xff]
        %v1855 = vld [vmem:[%s274 + $0x2208] sm:$0xff]
        %v1856 = vld [vmem:[%s274 + $0x2210] sm:$0xff]
        %v1857 = vld [vmem:[%s274 + $0x2218] sm:$0xff]
        %v1858 = vld [vmem:[%s274 + $0x2220] sm:$0xff]
        %v1859 = vld [vmem:[%s274 + $0x2228] sm:$0xff]
        %v1860 = vld [vmem:[%s274 + $0x2230] sm:$0xff]
        %v1861 = vld [vmem:[%s274 + $0x2238] sm:$0xff]
        %v1862 = vld [vmem:[%s274 + $0x2240] sm:$0xff]
        %v1863 = vld [vmem:[%s274 + $0x2248] sm:$0xff]
        %v1864 = vld [vmem:[%s274 + $0x2250] sm:$0xff]
        %v1865 = vld [vmem:[%s274 + $0x2258] sm:$0xff]
        %v1866 = vld [vmem:[%s274 + $0x2260] sm:$0xff]
        %v1867 = vld [vmem:[%s274 + $0x2268] sm:$0xff]
        %v1868 = vld [vmem:[%s274 + $0x2270] sm:$0xff]
        %v1869 = vld [vmem:[%s274 + $0x2278] sm:$0xff]
        %v2974 = vunpack.c.l.b16 %v766
        %v2975 = vunpack.c.h.b16 %v766
        %v2976 = vunpack.c.l.b16 %v767
        %v2977 = vunpack.c.h.b16 %v767
        %v2978 = vunpack.c.l.b16 %v768
        %v2979 = vunpack.c.h.b16 %v768
        %v2980 = vunpack.c.l.b16 %v769
        %v2981 = vunpack.c.h.b16 %v769
        %v2982 = vunpack.c.l.b16 %v770
        %v2983 = vunpack.c.h.b16 %v770
        %v2984 = vunpack.c.l.b16 %v771
        %v2985 = vunpack.c.h.b16 %v771
        %v2986 = vunpack.c.l.b16 %v772
        %v2987 = vunpack.c.h.b16 %v772
        %v2988 = vunpack.c.l.b16 %v773
        %v2989 = vunpack.c.h.b16 %v773
        %v2990 = vunpack.c.l.b16 %v774
        %v2991 = vunpack.c.h.b16 %v774
        %v2992 = vunpack.c.l.b16 %v775
        %v2993 = vunpack.c.h.b16 %v775
        %v2994 = vunpack.c.l.b16 %v776
        %v2995 = vunpack.c.h.b16 %v776
        %v2996 = vunpack.c.l.b16 %v777
        %v2997 = vunpack.c.h.b16 %v777
        %v2998 = vunpack.c.l.b16 %v778
        %v2999 = vunpack.c.h.b16 %v778
        %v3000 = vunpack.c.l.b16 %v779
        %v3001 = vunpack.c.h.b16 %v779
        %v3002 = vunpack.c.l.b16 %v780
        %v3003 = vunpack.c.h.b16 %v780
        %v3004 = vunpack.c.l.b16 %v781
        %v3005 = vunpack.c.h.b16 %v781
        %v3006 = vunpack.c.l.b16 %v782
        %v3007 = vunpack.c.h.b16 %v782
        %v3008 = vunpack.c.l.b16 %v783
        %v3009 = vunpack.c.h.b16 %v783
        %v3010 = vunpack.c.l.b16 %v784
        %v3011 = vunpack.c.h.b16 %v784
        %v3012 = vunpack.c.l.b16 %v785
        %v3013 = vunpack.c.h.b16 %v785
        %v3014 = vunpack.c.l.b16 %v786
        %v3015 = vunpack.c.h.b16 %v786
        %v3016 = vunpack.c.l.b16 %v787
        %v3017 = vunpack.c.h.b16 %v787
        %v3018 = vunpack.c.l.b16 %v788
        %v3019 = vunpack.c.h.b16 %v788
        %v3020 = vunpack.c.l.b16 %v789
        %v3021 = vunpack.c.h.b16 %v789
        %v3022 = vunpack.c.l.b16 %v790
        %v3023 = vunpack.c.h.b16 %v790
        %v3024 = vunpack.c.l.b16 %v791
        %v3025 = vunpack.c.h.b16 %v791
        %v3026 = vunpack.c.l.b16 %v792
        %v3027 = vunpack.c.h.b16 %v792
        %v3028 = vunpack.c.l.b16 %v793
        %v3029 = vunpack.c.h.b16 %v793
        %v3030 = vunpack.c.l.b16 %v794
        %v3031 = vunpack.c.h.b16 %v794
        %v3032 = vunpack.c.l.b16 %v795
        %v3033 = vunpack.c.h.b16 %v795
        %v3034 = vunpack.c.l.b16 %v796
        %v3035 = vunpack.c.h.b16 %v796
        %v3036 = vunpack.c.l.b16 %v797
        %v3037 = vunpack.c.h.b16 %v797
        %v3038 = vunpack.c.l.b16 %v798
        %v3039 = vunpack.c.h.b16 %v798
        %v3040 = vunpack.c.l.b16 %v799
        %v3041 = vunpack.c.h.b16 %v799
        %v3042 = vunpack.c.l.b16 %v800
        %v3043 = vunpack.c.h.b16 %v800
        %v3044 = vunpack.c.l.b16 %v801
        %v3045 = vunpack.c.h.b16 %v801
        %v3046 = vunpack.c.l.b16 %v802
        %v3047 = vunpack.c.h.b16 %v802
        %v3048 = vunpack.c.l.b16 %v803
        %v3049 = vunpack.c.h.b16 %v803
        %v3050 = vunpack.c.l.b16 %v804
        %v3051 = vunpack.c.h.b16 %v804
        %v3052 = vunpack.c.l.b16 %v805
        %v3053 = vunpack.c.h.b16 %v805
        %v3054 = vunpack.c.l.b16 %v806
        %v3055 = vunpack.c.h.b16 %v806
        %v3056 = vunpack.c.l.b16 %v807
        %v3057 = vunpack.c.h.b16 %v807
        %v3058 = vunpack.c.l.b16 %v808
        %v3059 = vunpack.c.h.b16 %v808
        %v3060 = vunpack.c.l.b16 %v809
        %v3061 = vunpack.c.h.b16 %v809
        %v3062 = vunpack.c.l.b16 %v810
        %v3063 = vunpack.c.h.b16 %v810
        %v3064 = vunpack.c.l.b16 %v811
        %v3065 = vunpack.c.h.b16 %v811
        %v3066 = vunpack.c.l.b16 %v812
        %v3067 = vunpack.c.h.b16 %v812
        %v3068 = vunpack.c.l.b16 %v813
        %v3069 = vunpack.c.h.b16 %v813
        %v3070 = vunpack.c.l.b16 %v814
        %v3071 = vunpack.c.h.b16 %v814
        %v3072 = vunpack.c.l.b16 %v815
        %v3073 = vunpack.c.h.b16 %v815
        %v3074 = vunpack.c.l.b16 %v816
        %v3075 = vunpack.c.h.b16 %v816
        %v3076 = vunpack.c.l.b16 %v817
        %v3077 = vunpack.c.h.b16 %v817
        %v3078 = vunpack.c.l.b16 %v818
        %v3079 = vunpack.c.h.b16 %v818
        %v3080 = vunpack.c.l.b16 %v819
        %v3081 = vunpack.c.h.b16 %v819
        %v3082 = vunpack.c.l.b16 %v820
        %v3083 = vunpack.c.h.b16 %v820
        %v3084 = vunpack.c.l.b16 %v821
        %v3085 = vunpack.c.h.b16 %v821
        %v3086 = vunpack.c.l.b16 %v822
        %v3087 = vunpack.c.h.b16 %v822
        %v3088 = vunpack.c.l.b16 %v823
        %v3089 = vunpack.c.h.b16 %v823
        %v3090 = vunpack.c.l.b16 %v824
        %v3091 = vunpack.c.h.b16 %v824
        %v3092 = vunpack.c.l.b16 %v825
        %v3093 = vunpack.c.h.b16 %v825
        %v3094 = vunpack.c.l.b16 %v826
        %v3095 = vunpack.c.h.b16 %v826
        %v3096 = vunpack.c.l.b16 %v827
        %v3097 = vunpack.c.h.b16 %v827
        %v3098 = vunpack.c.l.b16 %v828
        %v3099 = vunpack.c.h.b16 %v828
        %v3100 = vunpack.c.l.b16 %v829
        %v3101 = vunpack.c.h.b16 %v829
        %v3102 = vunpack.c.l.b16 %v830
        %v3103 = vunpack.c.h.b16 %v830
        %v3104 = vunpack.c.l.b16 %v831
        %v3105 = vunpack.c.h.b16 %v831
        %v3106 = vunpack.c.l.b16 %v832
        %v3107 = vunpack.c.h.b16 %v832
        %v3108 = vunpack.c.l.b16 %v833
        %v3109 = vunpack.c.h.b16 %v833
        %v3110 = vunpack.c.l.b16 %v834
        %v3111 = vunpack.c.h.b16 %v834
        %v3112 = vunpack.c.l.b16 %v835
        %v3113 = vunpack.c.h.b16 %v835
        %v3114 = vunpack.c.l.b16 %v836
        %v3115 = vunpack.c.h.b16 %v836
        %v3116 = vunpack.c.l.b16 %v837
        %v3117 = vunpack.c.h.b16 %v837
        %v3118 = vunpack.c.l.b16 %v838
        %v3119 = vunpack.c.h.b16 %v838
        %v3120 = vunpack.c.l.b16 %v839
        %v3121 = vunpack.c.h.b16 %v839
        %v3122 = vunpack.c.l.b16 %v840
        %v3123 = vunpack.c.h.b16 %v840
        %v3124 = vunpack.c.l.b16 %v841
        %v3125 = vunpack.c.h.b16 %v841
        %v3126 = vunpack.c.l.b16 %v842
        %v3127 = vunpack.c.h.b16 %v842
        %v3128 = vunpack.c.l.b16 %v843
        %v3129 = vunpack.c.h.b16 %v843
        %v3130 = vunpack.c.l.b16 %v844
        %v3131 = vunpack.c.h.b16 %v844
        %v3132 = vunpack.c.l.b16 %v845
        %v3133 = vunpack.c.h.b16 %v845
        %v3134 = vunpack.c.l.b16 %v846
        %v3135 = vunpack.c.h.b16 %v846
        %v3136 = vunpack.c.l.b16 %v847
        %v3137 = vunpack.c.h.b16 %v847
        %v3138 = vunpack.c.l.b16 %v848
        %v3139 = vunpack.c.h.b16 %v848
        %v3140 = vunpack.c.l.b16 %v849
        %v3141 = vunpack.c.h.b16 %v849
        %v3142 = vunpack.c.l.b16 %v850
        %v3143 = vunpack.c.h.b16 %v850
        %v3144 = vunpack.c.l.b16 %v851
        %v3145 = vunpack.c.h.b16 %v851
        %v3146 = vunpack.c.l.b16 %v852
        %v3147 = vunpack.c.h.b16 %v852
        %v3148 = vunpack.c.l.b16 %v853
        %v3149 = vunpack.c.h.b16 %v853
        %v3150 = vunpack.c.l.b16 %v854
        %v3151 = vunpack.c.h.b16 %v854
        %v3152 = vunpack.c.l.b16 %v855
        %v3153 = vunpack.c.h.b16 %v855
        %v3154 = vunpack.c.l.b16 %v856
        %v3155 = vunpack.c.h.b16 %v856
        %v3156 = vunpack.c.l.b16 %v857
        %v3157 = vunpack.c.h.b16 %v857
        %v3158 = vunpack.c.l.b16 %v858
        %v3159 = vunpack.c.h.b16 %v858
        %v3160 = vunpack.c.l.b16 %v859
        %v3161 = vunpack.c.h.b16 %v859
        %v3162 = vunpack.c.l.b16 %v860
        %v3163 = vunpack.c.h.b16 %v860
        %v3164 = vunpack.c.l.b16 %v861
        %v3165 = vunpack.c.h.b16 %v861
        %v3166 = vunpack.c.l.b16 %v862
        %v3167 = vunpack.c.h.b16 %v862
        %v3168 = vunpack.c.l.b16 %v863
        %v3169 = vunpack.c.h.b16 %v863
        %v3170 = vunpack.c.l.b16 %v864
        %v3171 = vunpack.c.h.b16 %v864
        %v3172 = vunpack.c.l.b16 %v865
        %v3173 = vunpack.c.h.b16 %v865
        %v3174 = vunpack.c.l.b16 %v866
        %v3175 = vunpack.c.h.b16 %v866
        %v3176 = vunpack.c.l.b16 %v867
        %v3177 = vunpack.c.h.b16 %v867
        %v3178 = vunpack.c.l.b16 %v868
        %v3179 = vunpack.c.h.b16 %v868
        %v3180 = vunpack.c.l.b16 %v869
        %v3181 = vunpack.c.h.b16 %v869
        %v3182 = vunpack.c.l.b16 %v870
        %v3183 = vunpack.c.h.b16 %v870
        %v3184 = vunpack.c.l.b16 %v871
        %v3185 = vunpack.c.h.b16 %v871
        %v3186 = vunpack.c.l.b16 %v872
        %v3187 = vunpack.c.h.b16 %v872
        %v3188 = vunpack.c.l.b16 %v873
        %v3189 = vunpack.c.h.b16 %v873
        %v3190 = vunpack.c.l.b16 %v874
        %v3191 = vunpack.c.h.b16 %v874
        %v3192 = vunpack.c.l.b16 %v875
        %v3193 = vunpack.c.h.b16 %v875
        %v3194 = vunpack.c.l.b16 %v876
        %v3195 = vunpack.c.h.b16 %v876
        %v3196 = vunpack.c.l.b16 %v877
        %v3197 = vunpack.c.h.b16 %v877
        %v3198 = vunpack.c.l.b16 %v878
        %v3199 = vunpack.c.h.b16 %v878
        %v3200 = vunpack.c.l.b16 %v879
        %v3201 = vunpack.c.h.b16 %v879
        %v3202 = vunpack.c.l.b16 %v880
        %v3203 = vunpack.c.h.b16 %v880
        %v3204 = vunpack.c.l.b16 %v881
        %v3205 = vunpack.c.h.b16 %v881
        %v3206 = vunpack.c.l.b16 %v882
        %v3207 = vunpack.c.h.b16 %v882
        %v3208 = vunpack.c.l.b16 %v883
        %v3209 = vunpack.c.h.b16 %v883
        %v3210 = vunpack.c.l.b16 %v884
        %v3211 = vunpack.c.h.b16 %v884
        %v3212 = vunpack.c.l.b16 %v885
        %v3213 = vunpack.c.h.b16 %v885
        %v3214 = vunpack.c.l.b16 %v886
        %v3215 = vunpack.c.h.b16 %v886
        %v3216 = vunpack.c.l.b16 %v887
        %v3217 = vunpack.c.h.b16 %v887
        %v3218 = vunpack.c.l.b16 %v888
        %v3219 = vunpack.c.h.b16 %v888
        %v3220 = vunpack.c.l.b16 %v889
        %v3221 = vunpack.c.h.b16 %v889
        %v3222 = vunpack.c.l.b16 %v890
        %v3223 = vunpack.c.h.b16 %v890
        %v3224 = vunpack.c.l.b16 %v891
        %v3225 = vunpack.c.h.b16 %v891
        %v3226 = vunpack.c.l.b16 %v892
        %v3227 = vunpack.c.h.b16 %v892
        %v3228 = vunpack.c.l.b16 %v893
        %v3229 = vunpack.c.h.b16 %v893
        %v3230 = vunpack.c.l.b16 %v894
        %v3231 = vunpack.c.h.b16 %v894
        %v3232 = vunpack.c.l.b16 %v895
        %v3233 = vunpack.c.h.b16 %v895
        %v3234 = vunpack.c.l.b16 %v896
        %v3235 = vunpack.c.h.b16 %v896
        %v3236 = vunpack.c.l.b16 %v897
        %v3237 = vunpack.c.h.b16 %v897
        %v3238 = vunpack.c.l.b16 %v898
        %v3239 = vunpack.c.h.b16 %v898
        %v3240 = vunpack.c.l.b16 %v899
        %v3241 = vunpack.c.h.b16 %v899
        %v3242 = vunpack.c.l.b16 %v900
        %v3243 = vunpack.c.h.b16 %v900
        %v3244 = vunpack.c.l.b16 %v901
        %v3245 = vunpack.c.h.b16 %v901
        %v3246 = vunpack.c.l.b16 %v902
        %v3247 = vunpack.c.h.b16 %v902
        %v3248 = vunpack.c.l.b16 %v903
        %v3249 = vunpack.c.h.b16 %v903
        %v3250 = vunpack.c.l.b16 %v904
        %v3251 = vunpack.c.h.b16 %v904
        %v3252 = vunpack.c.l.b16 %v905
        %v3253 = vunpack.c.h.b16 %v905
        %v3254 = vunpack.c.l.b16 %v906
        %v3255 = vunpack.c.h.b16 %v906
        %v3256 = vunpack.c.l.b16 %v907
        %v3257 = vunpack.c.h.b16 %v907
        %v3258 = vunpack.c.l.b16 %v908
        %v3259 = vunpack.c.h.b16 %v908
        %v3260 = vunpack.c.l.b16 %v909
        %v3261 = vunpack.c.h.b16 %v909
        %v3262 = vunpack.c.l.b16 %v910
        %v3263 = vunpack.c.h.b16 %v910
        %v3264 = vunpack.c.l.b16 %v911
        %v3265 = vunpack.c.h.b16 %v911
        %v3266 = vunpack.c.l.b16 %v912
        %v3267 = vunpack.c.h.b16 %v912
        %v3268 = vunpack.c.l.b16 %v913
        %v3269 = vunpack.c.h.b16 %v913
        %v3270 = vunpack.c.l.b16 %v914
        %v3271 = vunpack.c.h.b16 %v914
        %v3272 = vunpack.c.l.b16 %v915
        %v3273 = vunpack.c.h.b16 %v915
        %v3274 = vunpack.c.l.b16 %v916
        %v3275 = vunpack.c.h.b16 %v916
        %v3276 = vunpack.c.l.b16 %v917
        %v3277 = vunpack.c.h.b16 %v917
        %v3278 = vunpack.c.l.b16 %v918
        %v3279 = vunpack.c.h.b16 %v918
        %v3280 = vunpack.c.l.b16 %v919
        %v3281 = vunpack.c.h.b16 %v919
        %v3282 = vunpack.c.l.b16 %v920
        %v3283 = vunpack.c.h.b16 %v920
        %v3284 = vunpack.c.l.b16 %v921
        %v3285 = vunpack.c.h.b16 %v921
        %v3286 = vunpack.c.l.b16 %v922
        %v3287 = vunpack.c.h.b16 %v922
        %v3288 = vunpack.c.l.b16 %v923
        %v3289 = vunpack.c.h.b16 %v923
        %v3290 = vunpack.c.l.b16 %v924
        %v3291 = vunpack.c.h.b16 %v924
        %v3292 = vunpack.c.l.b16 %v925
        %v3293 = vunpack.c.h.b16 %v925
        %v3294 = vunpack.c.l.b16 %v926
        %v3295 = vunpack.c.h.b16 %v926
        %v3296 = vunpack.c.l.b16 %v927
        %v3297 = vunpack.c.h.b16 %v927
        %v3298 = vunpack.c.l.b16 %v928
        %v3299 = vunpack.c.h.b16 %v928
        %v3300 = vunpack.c.l.b16 %v929
        %v3301 = vunpack.c.h.b16 %v929
        %v3302 = vunpack.c.l.b16 %v930
        %v3303 = vunpack.c.h.b16 %v930
        %v3304 = vunpack.c.l.b16 %v931
        %v3305 = vunpack.c.h.b16 %v931
        %v3306 = vunpack.c.l.b16 %v932
        %v3307 = vunpack.c.h.b16 %v932
        %v3308 = vunpack.c.l.b16 %v933
        %v3309 = vunpack.c.h.b16 %v933
        %v3310 = vunpack.c.l.b16 %v934
        %v3311 = vunpack.c.h.b16 %v934
        %v3312 = vunpack.c.l.b16 %v935
        %v3313 = vunpack.c.h.b16 %v935
        %v3314 = vunpack.c.l.b16 %v936
        %v3315 = vunpack.c.h.b16 %v936
        %v3316 = vunpack.c.l.b16 %v937
        %v3317 = vunpack.c.h.b16 %v937
        %v3318 = vunpack.c.l.b16 %v938
        %v3319 = vunpack.c.h.b16 %v938
        %v3320 = vunpack.c.l.b16 %v939
        %v3321 = vunpack.c.h.b16 %v939
        %v3322 = vunpack.c.l.b16 %v940
        %v3323 = vunpack.c.h.b16 %v940
        %v3324 = vunpack.c.l.b16 %v941
        %v3325 = vunpack.c.h.b16 %v941
        %v3326 = vunpack.c.l.b16 %v942
        %v3327 = vunpack.c.h.b16 %v942
        %v3328 = vunpack.c.l.b16 %v943
        %v3329 = vunpack.c.h.b16 %v943
        %v3330 = vunpack.c.l.b16 %v944
        %v3331 = vunpack.c.h.b16 %v944
        %v3332 = vunpack.c.l.b16 %v945
        %v3333 = vunpack.c.h.b16 %v945
        %v3334 = vunpack.c.l.b16 %v946
        %v3335 = vunpack.c.h.b16 %v946
        %v3336 = vunpack.c.l.b16 %v947
        %v3337 = vunpack.c.h.b16 %v947
        %v3338 = vunpack.c.l.b16 %v948
        %v3339 = vunpack.c.h.b16 %v948
        %v3340 = vunpack.c.l.b16 %v949
        %v3341 = vunpack.c.h.b16 %v949
        %v3342 = vunpack.c.l.b16 %v950
        %v3343 = vunpack.c.h.b16 %v950
        %v3344 = vunpack.c.l.b16 %v951
        %v3345 = vunpack.c.h.b16 %v951
        %v3346 = vunpack.c.l.b16 %v952
        %v3347 = vunpack.c.h.b16 %v952
        %v3348 = vunpack.c.l.b16 %v953
        %v3349 = vunpack.c.h.b16 %v953
        %v3350 = vunpack.c.l.b16 %v954
        %v3351 = vunpack.c.h.b16 %v954
        %v3352 = vunpack.c.l.b16 %v955
        %v3353 = vunpack.c.h.b16 %v955
        %v3354 = vunpack.c.l.b16 %v956
        %v3355 = vunpack.c.h.b16 %v956
        %v3356 = vunpack.c.l.b16 %v957
        %v3357 = vunpack.c.h.b16 %v957
        %v3358 = vunpack.c.l.b16 %v958
        %v3359 = vunpack.c.h.b16 %v958
        %v3360 = vunpack.c.l.b16 %v959
        %v3361 = vunpack.c.h.b16 %v959
        %v3362 = vunpack.c.l.b16 %v960
        %v3363 = vunpack.c.h.b16 %v960
        %v3364 = vunpack.c.l.b16 %v961
        %v3365 = vunpack.c.h.b16 %v961
        %v3366 = vunpack.c.l.b16 %v962
        %v3367 = vunpack.c.h.b16 %v962
        %v3368 = vunpack.c.l.b16 %v963
        %v3369 = vunpack.c.h.b16 %v963
        %v3370 = vunpack.c.l.b16 %v964
        %v3371 = vunpack.c.h.b16 %v964
        %v3372 = vunpack.c.l.b16 %v965
        %v3373 = vunpack.c.h.b16 %v965
        %v3374 = vunpack.c.l.b16 %v966
        %v3375 = vunpack.c.h.b16 %v966
        %v3376 = vunpack.c.l.b16 %v967
        %v3377 = vunpack.c.h.b16 %v967
        %v3378 = vunpack.c.l.b16 %v968
        %v3379 = vunpack.c.h.b16 %v968
        %v3380 = vunpack.c.l.b16 %v969
        %v3381 = vunpack.c.h.b16 %v969
        %v3382 = vunpack.c.l.b16 %v970
        %v3383 = vunpack.c.h.b16 %v970
        %v3384 = vunpack.c.l.b16 %v971
        %v3385 = vunpack.c.h.b16 %v971
        %v3386 = vunpack.c.l.b16 %v972
        %v3387 = vunpack.c.h.b16 %v972
        %v3388 = vunpack.c.l.b16 %v973
        %v3389 = vunpack.c.h.b16 %v973
        %v3390 = vunpack.c.l.b16 %v974
        %v3391 = vunpack.c.h.b16 %v974
        %v3392 = vunpack.c.l.b16 %v975
        %v3393 = vunpack.c.h.b16 %v975
        %v3394 = vunpack.c.l.b16 %v976
        %v3395 = vunpack.c.h.b16 %v976
        %v3396 = vunpack.c.l.b16 %v977
        %v3397 = vunpack.c.h.b16 %v977
        %v3398 = vunpack.c.l.b16 %v978
        %v3399 = vunpack.c.h.b16 %v978
        %v3400 = vunpack.c.l.b16 %v979
        %v3401 = vunpack.c.h.b16 %v979
        %v3402 = vunpack.c.l.b16 %v980
        %v3403 = vunpack.c.h.b16 %v980
        %v3404 = vunpack.c.l.b16 %v981
        %v3405 = vunpack.c.h.b16 %v981
        %v3406 = vunpack.c.l.b16 %v982
        %v3407 = vunpack.c.h.b16 %v982
        %v3408 = vunpack.c.l.b16 %v983
        %v3409 = vunpack.c.h.b16 %v983
        %v3410 = vunpack.c.l.b16 %v984
        %v3411 = vunpack.c.h.b16 %v984
        %v3412 = vunpack.c.l.b16 %v985
        %v3413 = vunpack.c.h.b16 %v985
        %v3414 = vunpack.c.l.b16 %v986
        %v3415 = vunpack.c.h.b16 %v986
        %v3416 = vunpack.c.l.b16 %v987
        %v3417 = vunpack.c.h.b16 %v987
        %v3418 = vunpack.c.l.b16 %v988
        %v3419 = vunpack.c.h.b16 %v988
        %v3420 = vunpack.c.l.b16 %v989
        %v3421 = vunpack.c.h.b16 %v989
        %v3422 = vunpack.c.l.b16 %v990
        %v3423 = vunpack.c.h.b16 %v990
        %v3424 = vunpack.c.l.b16 %v991
        %v3425 = vunpack.c.h.b16 %v991
        %v3426 = vunpack.c.l.b16 %v992
        %v3427 = vunpack.c.h.b16 %v992
        %v3428 = vunpack.c.l.b16 %v993
        %v3429 = vunpack.c.h.b16 %v993
        %v3430 = vunpack.c.l.b16 %v994
        %v3431 = vunpack.c.h.b16 %v994
        %v3432 = vunpack.c.l.b16 %v995
        %v3433 = vunpack.c.h.b16 %v995
        %v3434 = vunpack.c.l.b16 %v996
        %v3435 = vunpack.c.h.b16 %v996
        %v3436 = vunpack.c.l.b16 %v997
        %v3437 = vunpack.c.h.b16 %v997
        %v3438 = vunpack.c.l.b16 %v998
        %v3439 = vunpack.c.h.b16 %v998
        %v3440 = vunpack.c.l.b16 %v999
        %v3441 = vunpack.c.h.b16 %v999
        %v3442 = vunpack.c.l.b16 %v1000
        %v3443 = vunpack.c.h.b16 %v1000
        %v3444 = vunpack.c.l.b16 %v1001
        %v3445 = vunpack.c.h.b16 %v1001
        %v3446 = vunpack.c.l.b16 %v1002
        %v3447 = vunpack.c.h.b16 %v1002
        %v3448 = vunpack.c.l.b16 %v1003
        %v3449 = vunpack.c.h.b16 %v1003
        %v3450 = vunpack.c.l.b16 %v1004
        %v3451 = vunpack.c.h.b16 %v1004
        %v3452 = vunpack.c.l.b16 %v1005
        %v3453 = vunpack.c.h.b16 %v1005
        %v3454 = vunpack.c.l.b16 %v1006
        %v3455 = vunpack.c.h.b16 %v1006
        %v3456 = vunpack.c.l.b16 %v1007
        %v3457 = vunpack.c.h.b16 %v1007
        %v3458 = vunpack.c.l.b16 %v1008
        %v3459 = vunpack.c.h.b16 %v1008
        %v3460 = vunpack.c.l.b16 %v1009
        %v3461 = vunpack.c.h.b16 %v1009
        %v3462 = vunpack.c.l.b16 %v1010
        %v3463 = vunpack.c.h.b16 %v1010
        %v3464 = vunpack.c.l.b16 %v1011
        %v3465 = vunpack.c.h.b16 %v1011
        %v3466 = vunpack.c.l.b16 %v1012
        %v3467 = vunpack.c.h.b16 %v1012
        %v3468 = vunpack.c.l.b16 %v1013
        %v3469 = vunpack.c.h.b16 %v1013
        %v3470 = vunpack.c.l.b16 %v1014
        %v3471 = vunpack.c.h.b16 %v1014
        %v3472 = vunpack.c.l.b16 %v1015
        %v3473 = vunpack.c.h.b16 %v1015
        %v3474 = vunpack.c.l.b16 %v1016
        %v3475 = vunpack.c.h.b16 %v1016
        %v3476 = vunpack.c.l.b16 %v1017
        %v3477 = vunpack.c.h.b16 %v1017
        %v3478 = vunpack.c.l.b16 %v1018
        %v3479 = vunpack.c.h.b16 %v1018
        %v3480 = vunpack.c.l.b16 %v1019
        %v3481 = vunpack.c.h.b16 %v1019
        %v3482 = vunpack.c.l.b16 %v1020
        %v3483 = vunpack.c.h.b16 %v1020
        %v3484 = vunpack.c.l.b16 %v1021
        %v3485 = vunpack.c.h.b16 %v1021
        %v3486 = vunpack.c.l.b16 %v1022
        %v3487 = vunpack.c.h.b16 %v1022
        %v3488 = vunpack.c.l.b16 %v1023
        %v3489 = vunpack.c.h.b16 %v1023
        %v3490 = vunpack.c.l.b16 %v1024
        %v3491 = vunpack.c.h.b16 %v1024
        %v3492 = vunpack.c.l.b16 %v1025
        %v3493 = vunpack.c.h.b16 %v1025
        %v3494 = vunpack.c.l.b16 %v1026
        %v3495 = vunpack.c.h.b16 %v1026
        %v3496 = vunpack.c.l.b16 %v1027
        %v3497 = vunpack.c.h.b16 %v1027
        %v3498 = vunpack.c.l.b16 %v1028
        %v3499 = vunpack.c.h.b16 %v1028
        %v3500 = vunpack.c.l.b16 %v1029
        %v3501 = vunpack.c.h.b16 %v1029
        %v3502 = vunpack.c.l.b16 %v1030
        %v3503 = vunpack.c.h.b16 %v1030
        %v3504 = vunpack.c.l.b16 %v1031
        %v3505 = vunpack.c.h.b16 %v1031
        %v3506 = vunpack.c.l.b16 %v1032
        %v3507 = vunpack.c.h.b16 %v1032
        %v3508 = vunpack.c.l.b16 %v1033
        %v3509 = vunpack.c.h.b16 %v1033
        %v3510 = vunpack.c.l.b16 %v1034
        %v3511 = vunpack.c.h.b16 %v1034
        %v3512 = vunpack.c.l.b16 %v1035
        %v3513 = vunpack.c.h.b16 %v1035
        %v3514 = vunpack.c.l.b16 %v1036
        %v3515 = vunpack.c.h.b16 %v1036
        %v3516 = vunpack.c.l.b16 %v1037
        %v3517 = vunpack.c.h.b16 %v1037
        %v3518 = vunpack.c.l.b16 %v1038
        %v3519 = vunpack.c.h.b16 %v1038
        %v3520 = vunpack.c.l.b16 %v1039
        %v3521 = vunpack.c.h.b16 %v1039
        %v3522 = vunpack.c.l.b16 %v1040
        %v3523 = vunpack.c.h.b16 %v1040
        %v3524 = vunpack.c.l.b16 %v1041
        %v3525 = vunpack.c.h.b16 %v1041
        %v3526 = vunpack.c.l.b16 %v1042
        %v3527 = vunpack.c.h.b16 %v1042
        %v3528 = vunpack.c.l.b16 %v1043
        %v3529 = vunpack.c.h.b16 %v1043
        %v3530 = vunpack.c.l.b16 %v1044
        %v3531 = vunpack.c.h.b16 %v1044
        %v3532 = vunpack.c.l.b16 %v1045
        %v3533 = vunpack.c.h.b16 %v1045
        %v3534 = vunpack.c.l.b16 %v1046
        %v3535 = vunpack.c.h.b16 %v1046
        %v3536 = vunpack.c.l.b16 %v1047
        %v3537 = vunpack.c.h.b16 %v1047
        %v3538 = vunpack.c.l.b16 %v1048
        %v3539 = vunpack.c.h.b16 %v1048
        %v3540 = vunpack.c.l.b16 %v1049
        %v3541 = vunpack.c.h.b16 %v1049
        %v3542 = vunpack.c.l.b16 %v1050
        %v3543 = vunpack.c.h.b16 %v1050
        %v3544 = vunpack.c.l.b16 %v1051
        %v3545 = vunpack.c.h.b16 %v1051
        %v3546 = vunpack.c.l.b16 %v1052
        %v3547 = vunpack.c.h.b16 %v1052
        %v3548 = vunpack.c.l.b16 %v1053
        %v3549 = vunpack.c.h.b16 %v1053
        %v3550 = vunpack.c.l.b16 %v1054
        %v3551 = vunpack.c.h.b16 %v1054
        %v3552 = vunpack.c.l.b16 %v1055
        %v3553 = vunpack.c.h.b16 %v1055
        %v3554 = vunpack.c.l.b16 %v1056
        %v3555 = vunpack.c.h.b16 %v1056
        %v3556 = vunpack.c.l.b16 %v1057
        %v3557 = vunpack.c.h.b16 %v1057
        %v3558 = vunpack.c.l.b16 %v1058
        %v3559 = vunpack.c.h.b16 %v1058
        %v3560 = vunpack.c.l.b16 %v1059
        %v3561 = vunpack.c.h.b16 %v1059
        %v3562 = vunpack.c.l.b16 %v1060
        %v3563 = vunpack.c.h.b16 %v1060
        %v3564 = vunpack.c.l.b16 %v1061
        %v3565 = vunpack.c.h.b16 %v1061
        %v3566 = vunpack.c.l.b16 %v1062
        %v3567 = vunpack.c.h.b16 %v1062
        %v3568 = vunpack.c.l.b16 %v1063
        %v3569 = vunpack.c.h.b16 %v1063
        %v3570 = vunpack.c.l.b16 %v1064
        %v3571 = vunpack.c.h.b16 %v1064
        %v3572 = vunpack.c.l.b16 %v1065
        %v3573 = vunpack.c.h.b16 %v1065
        %v3574 = vunpack.c.l.b16 %v1066
        %v3575 = vunpack.c.h.b16 %v1066
        %v3576 = vunpack.c.l.b16 %v1067
        %v3577 = vunpack.c.h.b16 %v1067
        %v3578 = vunpack.c.l.b16 %v1068
        %v3579 = vunpack.c.h.b16 %v1068
        %v3580 = vunpack.c.l.b16 %v1069
        %v3581 = vunpack.c.h.b16 %v1069
        %v3582 = vunpack.c.l.b16 %v1070
        %v3583 = vunpack.c.h.b16 %v1070
        %v3584 = vunpack.c.l.b16 %v1071
        %v3585 = vunpack.c.h.b16 %v1071
        %v3586 = vunpack.c.l.b16 %v1072
        %v3587 = vunpack.c.h.b16 %v1072
        %v3588 = vunpack.c.l.b16 %v1073
        %v3589 = vunpack.c.h.b16 %v1073
        %v3590 = vunpack.c.l.b16 %v1074
        %v3591 = vunpack.c.h.b16 %v1074
        %v3592 = vunpack.c.l.b16 %v1075
        %v3593 = vunpack.c.h.b16 %v1075
        %v3594 = vunpack.c.l.b16 %v1076
        %v3595 = vunpack.c.h.b16 %v1076
        %v3596 = vunpack.c.l.b16 %v1077
        %v3597 = vunpack.c.h.b16 %v1077
        %v3598 = vunpack.c.l.b16 %v1078
        %v3599 = vunpack.c.h.b16 %v1078
        %v3600 = vunpack.c.l.b16 %v1079
        %v3601 = vunpack.c.h.b16 %v1079
        %v3602 = vunpack.c.l.b16 %v1080
        %v3603 = vunpack.c.h.b16 %v1080
        %v3604 = vunpack.c.l.b16 %v1081
        %v3605 = vunpack.c.h.b16 %v1081
        %v3606 = vunpack.c.l.b16 %v1082
        %v3607 = vunpack.c.h.b16 %v1082
        %v3608 = vunpack.c.l.b16 %v1083
        %v3609 = vunpack.c.h.b16 %v1083
        %v3610 = vunpack.c.l.b16 %v1084
        %v3611 = vunpack.c.h.b16 %v1084
        %v3612 = vunpack.c.l.b16 %v1085
        %v3613 = vunpack.c.h.b16 %v1085
        %v3614 = vunpack.c.l.b16 %v1086
        %v3615 = vunpack.c.h.b16 %v1086
        %v3616 = vunpack.c.l.b16 %v1087
        %v3617 = vunpack.c.h.b16 %v1087
        %v3618 = vunpack.c.l.b16 %v1088
        %v3619 = vunpack.c.h.b16 %v1088
        %v3620 = vunpack.c.l.b16 %v1089
        %v3621 = vunpack.c.h.b16 %v1089
        %v3622 = vunpack.c.l.b16 %v1090
        %v3623 = vunpack.c.h.b16 %v1090
        %v3624 = vunpack.c.l.b16 %v1091
        %v3625 = vunpack.c.h.b16 %v1091
        %v3626 = vunpack.c.l.b16 %v1092
        %v3627 = vunpack.c.h.b16 %v1092
        %v3628 = vunpack.c.l.b16 %v1093
        %v3629 = vunpack.c.h.b16 %v1093
        %v3630 = vunpack.c.l.b16 %v1094
        %v3631 = vunpack.c.h.b16 %v1094
        %v3632 = vunpack.c.l.b16 %v1095
        %v3633 = vunpack.c.h.b16 %v1095
        %v3634 = vunpack.c.l.b16 %v1096
        %v3635 = vunpack.c.h.b16 %v1096
        %v3636 = vunpack.c.l.b16 %v1097
        %v3637 = vunpack.c.h.b16 %v1097
        %v3638 = vunpack.c.l.b16 %v1098
        %v3639 = vunpack.c.h.b16 %v1098
        %v3640 = vunpack.c.l.b16 %v1099
        %v3641 = vunpack.c.h.b16 %v1099
        %v3642 = vunpack.c.l.b16 %v1100
        %v3643 = vunpack.c.h.b16 %v1100
        %v3644 = vunpack.c.l.b16 %v1101
        %v3645 = vunpack.c.h.b16 %v1101
        %v3646 = vunpack.c.l.b16 %v1102
        %v3647 = vunpack.c.h.b16 %v1102
        %v3648 = vunpack.c.l.b16 %v1103
        %v3649 = vunpack.c.h.b16 %v1103
        %v3650 = vunpack.c.l.b16 %v1104
        %v3651 = vunpack.c.h.b16 %v1104
        %v3652 = vunpack.c.l.b16 %v1105
        %v3653 = vunpack.c.h.b16 %v1105
        %v3654 = vunpack.c.l.b16 %v1106
        %v3655 = vunpack.c.h.b16 %v1106
        %v3656 = vunpack.c.l.b16 %v1107
        %v3657 = vunpack.c.h.b16 %v1107
        %v3658 = vunpack.c.l.b16 %v1108
        %v3659 = vunpack.c.h.b16 %v1108
        %v3660 = vunpack.c.l.b16 %v1109
        %v3661 = vunpack.c.h.b16 %v1109
        %v3662 = vunpack.c.l.b16 %v1110
        %v3663 = vunpack.c.h.b16 %v1110
        %v3664 = vunpack.c.l.b16 %v1111
        %v3665 = vunpack.c.h.b16 %v1111
        %v3666 = vunpack.c.l.b16 %v1112
        %v3667 = vunpack.c.h.b16 %v1112
        %v3668 = vunpack.c.l.b16 %v1113
        %v3669 = vunpack.c.h.b16 %v1113
        %v3670 = vunpack.c.l.b16 %v1114
        %v3671 = vunpack.c.h.b16 %v1114
        %v3672 = vunpack.c.l.b16 %v1115
        %v3673 = vunpack.c.h.b16 %v1115
        %v3674 = vunpack.c.l.b16 %v1116
        %v3675 = vunpack.c.h.b16 %v1116
        %v3676 = vunpack.c.l.b16 %v1117
        %v3677 = vunpack.c.h.b16 %v1117
        %v3678 = vunpack.c.l.b16 %v1118
        %v3679 = vunpack.c.h.b16 %v1118
        %v3680 = vunpack.c.l.b16 %v1119
        %v3681 = vunpack.c.h.b16 %v1119
        %v3682 = vunpack.c.l.b16 %v1120
        %v3683 = vunpack.c.h.b16 %v1120
        %v3684 = vunpack.c.l.b16 %v1121
        %v3685 = vunpack.c.h.b16 %v1121
        %v3686 = vunpack.c.l.b16 %v1122
        %v3687 = vunpack.c.h.b16 %v1122
        %v3688 = vunpack.c.l.b16 %v1123
        %v3689 = vunpack.c.h.b16 %v1123
        %v3690 = vunpack.c.l.b16 %v1124
        %v3691 = vunpack.c.h.b16 %v1124
        %v3692 = vunpack.c.l.b16 %v1125
        %v3693 = vunpack.c.h.b16 %v1125
        %v3694 = vunpack.c.l.b16 %v1126
        %v3695 = vunpack.c.h.b16 %v1126
        %v3696 = vunpack.c.l.b16 %v1127
        %v3697 = vunpack.c.h.b16 %v1127
        %v3698 = vunpack.c.l.b16 %v1128
        %v3699 = vunpack.c.h.b16 %v1128
        %v3700 = vunpack.c.l.b16 %v1129
        %v3701 = vunpack.c.h.b16 %v1129
        %v3702 = vunpack.c.l.b16 %v1130
        %v3703 = vunpack.c.h.b16 %v1130
        %v3704 = vunpack.c.l.b16 %v1131
        %v3705 = vunpack.c.h.b16 %v1131
        %v3706 = vunpack.c.l.b16 %v1132
        %v3707 = vunpack.c.h.b16 %v1132
        %v3708 = vunpack.c.l.b16 %v1133
        %v3709 = vunpack.c.h.b16 %v1133
        %v3710 = vunpack.c.l.b16 %v1134
        %v3711 = vunpack.c.h.b16 %v1134
        %v3712 = vunpack.c.l.b16 %v1135
        %v3713 = vunpack.c.h.b16 %v1135
        %v3714 = vunpack.c.l.b16 %v1136
        %v3715 = vunpack.c.h.b16 %v1136
        %v3716 = vunpack.c.l.b16 %v1137
        %v3717 = vunpack.c.h.b16 %v1137
        %v3718 = vunpack.c.l.b16 %v1138
        %v3719 = vunpack.c.h.b16 %v1138
        %v3720 = vunpack.c.l.b16 %v1139
        %v3721 = vunpack.c.h.b16 %v1139
        %v3722 = vunpack.c.l.b16 %v1140
        %v3723 = vunpack.c.h.b16 %v1140
        %v3724 = vunpack.c.l.b16 %v1141
        %v3725 = vunpack.c.h.b16 %v1141
        %v3726 = vunpack.c.l.b16 %v1142
        %v3727 = vunpack.c.h.b16 %v1142
        %v3728 = vunpack.c.l.b16 %v1143
        %v3729 = vunpack.c.h.b16 %v1143
        %v3730 = vunpack.c.l.b16 %v1144
        %v3731 = vunpack.c.h.b16 %v1144
        %v3732 = vunpack.c.l.b16 %v1145
        %v3733 = vunpack.c.h.b16 %v1145
        %v3734 = vunpack.c.l.b16 %v1146
        %v3735 = vunpack.c.h.b16 %v1146
        %v3736 = vunpack.c.l.b16 %v1147
        %v3737 = vunpack.c.h.b16 %v1147
        %v3738 = vunpack.c.l.b16 %v1148
        %v3739 = vunpack.c.h.b16 %v1148
        %v3740 = vunpack.c.l.b16 %v1149
        %v3741 = vunpack.c.h.b16 %v1149
        %v3742 = vunpack.c.l.b16 %v1150
        %v3743 = vunpack.c.h.b16 %v1150
        %v3744 = vunpack.c.l.b16 %v1151
        %v3745 = vunpack.c.h.b16 %v1151
        %v3746 = vunpack.c.l.b16 %v1152
        %v3747 = vunpack.c.h.b16 %v1152
        %v3748 = vunpack.c.l.b16 %v1153
        %v3749 = vunpack.c.h.b16 %v1153
        %v3750 = vunpack.c.l.b16 %v1154
        %v3751 = vunpack.c.h.b16 %v1154
        %v3752 = vunpack.c.l.b16 %v1155
        %v3753 = vunpack.c.h.b16 %v1155
        %v3754 = vunpack.c.l.b16 %v1156
        %v3755 = vunpack.c.h.b16 %v1156
        %v3756 = vunpack.c.l.b16 %v1157
        %v3757 = vunpack.c.h.b16 %v1157
        %v3758 = vunpack.c.l.b16 %v1158
        %v3759 = vunpack.c.h.b16 %v1158
        %v3760 = vunpack.c.l.b16 %v1159
        %v3761 = vunpack.c.h.b16 %v1159
        %v3762 = vunpack.c.l.b16 %v1160
        %v3763 = vunpack.c.h.b16 %v1160
        %v3764 = vunpack.c.l.b16 %v1161
        %v3765 = vunpack.c.h.b16 %v1161
        %v3766 = vunpack.c.l.b16 %v1162
        %v3767 = vunpack.c.h.b16 %v1162
        %v3768 = vunpack.c.l.b16 %v1163
        %v3769 = vunpack.c.h.b16 %v1163
        %v3770 = vunpack.c.l.b16 %v1164
        %v3771 = vunpack.c.h.b16 %v1164
        %v3772 = vunpack.c.l.b16 %v1165
        %v3773 = vunpack.c.h.b16 %v1165
        %v3774 = vunpack.c.l.b16 %v1166
        %v3775 = vunpack.c.h.b16 %v1166
        %v3776 = vunpack.c.l.b16 %v1167
        %v3777 = vunpack.c.h.b16 %v1167
        %v3778 = vunpack.c.l.b16 %v1168
        %v3779 = vunpack.c.h.b16 %v1168
        %v3780 = vunpack.c.l.b16 %v1169
        %v3781 = vunpack.c.h.b16 %v1169
        %v3782 = vunpack.c.l.b16 %v1170
        %v3783 = vunpack.c.h.b16 %v1170
        %v3784 = vunpack.c.l.b16 %v1171
        %v3785 = vunpack.c.h.b16 %v1171
        %v3786 = vunpack.c.l.b16 %v1172
        %v3787 = vunpack.c.h.b16 %v1172
        %v3788 = vunpack.c.l.b16 %v1173
        %v3789 = vunpack.c.h.b16 %v1173
        %v3790 = vunpack.c.l.b16 %v1174
        %v3791 = vunpack.c.h.b16 %v1174
        %v3792 = vunpack.c.l.b16 %v1175
        %v3793 = vunpack.c.h.b16 %v1175
        %v3794 = vunpack.c.l.b16 %v1176
        %v3795 = vunpack.c.h.b16 %v1176
        %v3796 = vunpack.c.l.b16 %v1177
        %v3797 = vunpack.c.h.b16 %v1177
        %v3798 = vunpack.c.l.b16 %v1178
        %v3799 = vunpack.c.h.b16 %v1178
        %v3800 = vunpack.c.l.b16 %v1179
        %v3801 = vunpack.c.h.b16 %v1179
        %v3802 = vunpack.c.l.b16 %v1180
        %v3803 = vunpack.c.h.b16 %v1180
        %v3804 = vunpack.c.l.b16 %v1181
        %v3805 = vunpack.c.h.b16 %v1181
        %v3806 = vunpack.c.l.b16 %v1182
        %v3807 = vunpack.c.h.b16 %v1182
        %v3808 = vunpack.c.l.b16 %v1183
        %v3809 = vunpack.c.h.b16 %v1183
        %v3810 = vunpack.c.l.b16 %v1184
        %v3811 = vunpack.c.h.b16 %v1184
        %v3812 = vunpack.c.l.b16 %v1185
        %v3813 = vunpack.c.h.b16 %v1185
        %v3814 = vunpack.c.l.b16 %v1186
        %v3815 = vunpack.c.h.b16 %v1186
        %v3816 = vunpack.c.l.b16 %v1187
        %v3817 = vunpack.c.h.b16 %v1187
        %v3818 = vunpack.c.l.b16 %v1188
        %v3819 = vunpack.c.h.b16 %v1188
        %v3820 = vunpack.c.l.b16 %v1189
        %v3821 = vunpack.c.h.b16 %v1189
        %v3822 = vunpack.c.l.b16 %v1190
        %v3823 = vunpack.c.h.b16 %v1190
        %v3824 = vunpack.c.l.b16 %v1191
        %v3825 = vunpack.c.h.b16 %v1191
        %v3826 = vunpack.c.l.b16 %v1192
        %v3827 = vunpack.c.h.b16 %v1192
        %v3828 = vunpack.c.l.b16 %v1193
        %v3829 = vunpack.c.h.b16 %v1193
        %v3830 = vunpack.c.l.b16 %v1194
        %v3831 = vunpack.c.h.b16 %v1194
        %v3832 = vunpack.c.l.b16 %v1195
        %v3833 = vunpack.c.h.b16 %v1195
        %v3834 = vunpack.c.l.b16 %v1196
        %v3835 = vunpack.c.h.b16 %v1196
        %v3836 = vunpack.c.l.b16 %v1197
        %v3837 = vunpack.c.h.b16 %v1197
        %v3838 = vunpack.c.l.b16 %v1198
        %v3839 = vunpack.c.h.b16 %v1198
        %v3840 = vunpack.c.l.b16 %v1199
        %v3841 = vunpack.c.h.b16 %v1199
        %v3842 = vunpack.c.l.b16 %v1200
        %v3843 = vunpack.c.h.b16 %v1200
        %v3844 = vunpack.c.l.b16 %v1201
        %v3845 = vunpack.c.h.b16 %v1201
        %v3846 = vunpack.c.l.b16 %v1202
        %v3847 = vunpack.c.h.b16 %v1202
        %v3848 = vunpack.c.l.b16 %v1203
        %v3849 = vunpack.c.h.b16 %v1203
        %v3850 = vunpack.c.l.b16 %v1204
        %v3851 = vunpack.c.h.b16 %v1204
        %v3852 = vunpack.c.l.b16 %v1205
        %v3853 = vunpack.c.h.b16 %v1205
        %v3854 = vunpack.c.l.b16 %v1206
        %v3855 = vunpack.c.h.b16 %v1206
        %v3856 = vunpack.c.l.b16 %v1207
        %v3857 = vunpack.c.h.b16 %v1207
        %v3858 = vunpack.c.l.b16 %v1208
        %v3859 = vunpack.c.h.b16 %v1208
        %v3860 = vunpack.c.l.b16 %v1209
        %v3861 = vunpack.c.h.b16 %v1209
        %v3862 = vunpack.c.l.b16 %v1210
        %v3863 = vunpack.c.h.b16 %v1210
        %v3864 = vunpack.c.l.b16 %v1211
        %v3865 = vunpack.c.h.b16 %v1211
        %v3866 = vunpack.c.l.b16 %v1212
        %v3867 = vunpack.c.h.b16 %v1212
        %v3868 = vunpack.c.l.b16 %v1213
        %v3869 = vunpack.c.h.b16 %v1213
        %v3870 = vunpack.c.l.b16 %v1214
        %v3871 = vunpack.c.h.b16 %v1214
        %v3872 = vunpack.c.l.b16 %v1215
        %v3873 = vunpack.c.h.b16 %v1215
        %v3874 = vunpack.c.l.b16 %v1216
        %v3875 = vunpack.c.h.b16 %v1216
        %v3876 = vunpack.c.l.b16 %v1217
        %v3877 = vunpack.c.h.b16 %v1217
        %v3878 = vunpack.c.l.b16 %v1218
        %v3879 = vunpack.c.h.b16 %v1218
        %v3880 = vunpack.c.l.b16 %v1219
        %v3881 = vunpack.c.h.b16 %v1219
        %v3882 = vunpack.c.l.b16 %v1220
        %v3883 = vunpack.c.h.b16 %v1220
        %v3884 = vunpack.c.l.b16 %v1221
        %v3885 = vunpack.c.h.b16 %v1221
        %v3886 = vunpack.c.l.b16 %v1222
        %v3887 = vunpack.c.h.b16 %v1222
        %v3888 = vunpack.c.l.b16 %v1223
        %v3889 = vunpack.c.h.b16 %v1223
        %v3890 = vunpack.c.l.b16 %v1224
        %v3891 = vunpack.c.h.b16 %v1224
        %v3892 = vunpack.c.l.b16 %v1225
        %v3893 = vunpack.c.h.b16 %v1225
        %v3894 = vunpack.c.l.b16 %v1226
        %v3895 = vunpack.c.h.b16 %v1226
        %v3896 = vunpack.c.l.b16 %v1227
        %v3897 = vunpack.c.h.b16 %v1227
        %v3898 = vunpack.c.l.b16 %v1228
        %v3899 = vunpack.c.h.b16 %v1228
        %v3900 = vunpack.c.l.b16 %v1229
        %v3901 = vunpack.c.h.b16 %v1229
        %v3902 = vunpack.c.l.b16 %v1230
        %v3903 = vunpack.c.h.b16 %v1230
        %v3904 = vunpack.c.l.b16 %v1231
        %v3905 = vunpack.c.h.b16 %v1231
        %v3906 = vunpack.c.l.b16 %v1232
        %v3907 = vunpack.c.h.b16 %v1232
        %v3908 = vunpack.c.l.b16 %v1233
        %v3909 = vunpack.c.h.b16 %v1233
        %v3910 = vunpack.c.l.b16 %v1234
        %v3911 = vunpack.c.h.b16 %v1234
        %v3912 = vunpack.c.l.b16 %v1235
        %v3913 = vunpack.c.h.b16 %v1235
        %v3914 = vunpack.c.l.b16 %v1236
        %v3915 = vunpack.c.h.b16 %v1236
        %v3916 = vunpack.c.l.b16 %v1237
        %v3917 = vunpack.c.h.b16 %v1237
        %v3918 = vunpack.c.l.b16 %v1238
        %v3919 = vunpack.c.h.b16 %v1238
        %v3920 = vunpack.c.l.b16 %v1239
        %v3921 = vunpack.c.h.b16 %v1239
        %v3922 = vunpack.c.l.b16 %v1240
        %v3923 = vunpack.c.h.b16 %v1240
        %v3924 = vunpack.c.l.b16 %v1241
        %v3925 = vunpack.c.h.b16 %v1241
        %v3926 = vunpack.c.l.b16 %v1242
        %v3927 = vunpack.c.h.b16 %v1242
        %v3928 = vunpack.c.l.b16 %v1243
        %v3929 = vunpack.c.h.b16 %v1243
        %v3930 = vunpack.c.l.b16 %v1244
        %v3931 = vunpack.c.h.b16 %v1244
        %v3932 = vunpack.c.l.b16 %v1245
        %v3933 = vunpack.c.h.b16 %v1245
        %v3934 = vunpack.c.l.b16 %v1246
        %v3935 = vunpack.c.h.b16 %v1246
        %v3936 = vunpack.c.l.b16 %v1247
        %v3937 = vunpack.c.h.b16 %v1247
        %v3938 = vunpack.c.l.b16 %v1248
        %v3939 = vunpack.c.h.b16 %v1248
        %v3940 = vunpack.c.l.b16 %v1249
        %v3941 = vunpack.c.h.b16 %v1249
        %v3942 = vunpack.c.l.b16 %v1250
        %v3943 = vunpack.c.h.b16 %v1250
        %v3944 = vunpack.c.l.b16 %v1251
        %v3945 = vunpack.c.h.b16 %v1251
        %v3946 = vunpack.c.l.b16 %v1252
        %v3947 = vunpack.c.h.b16 %v1252
        %v3948 = vunpack.c.l.b16 %v1253
        %v3949 = vunpack.c.h.b16 %v1253
        %v3950 = vunpack.c.l.b16 %v1254
        %v3951 = vunpack.c.h.b16 %v1254
        %v3952 = vunpack.c.l.b16 %v1255
        %v3953 = vunpack.c.h.b16 %v1255
        %v3954 = vunpack.c.l.b16 %v1256
        %v3955 = vunpack.c.h.b16 %v1256
        %v3956 = vunpack.c.l.b16 %v1257
        %v3957 = vunpack.c.h.b16 %v1257
        %v3958 = vunpack.c.l.b16 %v1258
        %v3959 = vunpack.c.h.b16 %v1258
        %v3960 = vunpack.c.l.b16 %v1259
        %v3961 = vunpack.c.h.b16 %v1259
        %v3962 = vunpack.c.l.b16 %v1260
        %v3963 = vunpack.c.h.b16 %v1260
        %v3964 = vunpack.c.l.b16 %v1261
        %v3965 = vunpack.c.h.b16 %v1261
        %v3966 = vunpack.c.l.b16 %v1262
        %v3967 = vunpack.c.h.b16 %v1262
        %v3968 = vunpack.c.l.b16 %v1263
        %v3969 = vunpack.c.h.b16 %v1263
        %v3970 = vunpack.c.l.b16 %v1264
        %v3971 = vunpack.c.h.b16 %v1264
        %v3972 = vunpack.c.l.b16 %v1265
        %v3973 = vunpack.c.h.b16 %v1265
        %v3974 = vunpack.c.l.b16 %v1266
        %v3975 = vunpack.c.h.b16 %v1266
        %v3976 = vunpack.c.l.b16 %v1267
        %v3977 = vunpack.c.h.b16 %v1267
        %v3978 = vunpack.c.l.b16 %v1268
        %v3979 = vunpack.c.h.b16 %v1268
        %v3980 = vunpack.c.l.b16 %v1269
        %v3981 = vunpack.c.h.b16 %v1269
        %v3982 = vunpack.c.l.b16 %v1270
        %v3983 = vunpack.c.h.b16 %v1270
        %v3984 = vunpack.c.l.b16 %v1271
        %v3985 = vunpack.c.h.b16 %v1271
        %v3986 = vunpack.c.l.b16 %v1272
        %v3987 = vunpack.c.h.b16 %v1272
        %v3988 = vunpack.c.l.b16 %v1273
        %v3989 = vunpack.c.h.b16 %v1273
        %v3990 = vunpack.c.l.b16 %v1274
        %v3991 = vunpack.c.h.b16 %v1274
        %v3992 = vunpack.c.l.b16 %v1275
        %v3993 = vunpack.c.h.b16 %v1275
        %v3994 = vunpack.c.l.b16 %v1276
        %v3995 = vunpack.c.h.b16 %v1276
        %v3996 = vunpack.c.l.b16 %v1277
        %v3997 = vunpack.c.h.b16 %v1277
        %v3998 = vunpack.c.l.b16 %v1278
        %v3999 = vunpack.c.h.b16 %v1278
        %v4000 = vunpack.c.l.b16 %v1279
        %v4001 = vunpack.c.h.b16 %v1279
        %v4002 = vunpack.c.l.b16 %v1280
        %v4003 = vunpack.c.h.b16 %v1280
        %v4004 = vunpack.c.l.b16 %v1281
        %v4005 = vunpack.c.h.b16 %v1281
        %v4006 = vunpack.c.l.b16 %v1282
        %v4007 = vunpack.c.h.b16 %v1282
        %v4008 = vunpack.c.l.b16 %v1283
        %v4009 = vunpack.c.h.b16 %v1283
        %v4010 = vunpack.c.l.b16 %v1284
        %v4011 = vunpack.c.h.b16 %v1284
        %v4012 = vunpack.c.l.b16 %v1285
        %v4013 = vunpack.c.h.b16 %v1285
        %v4014 = vunpack.c.l.b16 %v1286
        %v4015 = vunpack.c.h.b16 %v1286
        %v4016 = vunpack.c.l.b16 %v1287
        %v4017 = vunpack.c.h.b16 %v1287
        %v4018 = vunpack.c.l.b16 %v1288
        %v4019 = vunpack.c.h.b16 %v1288
        %v4020 = vunpack.c.l.b16 %v1289
        %v4021 = vunpack.c.h.b16 %v1289
        %v4022 = vunpack.c.l.b16 %v1290
        %v4023 = vunpack.c.h.b16 %v1290
        %v4024 = vunpack.c.l.b16 %v1291
        %v4025 = vunpack.c.h.b16 %v1291
        %v4026 = vunpack.c.l.b16 %v1292
        %v4027 = vunpack.c.h.b16 %v1292
        %v4028 = vunpack.c.l.b16 %v1293
        %v4029 = vunpack.c.h.b16 %v1293
        %v4030 = vunpack.c.l.b16 %v1294
        %v4031 = vunpack.c.h.b16 %v1294
        %v4032 = vunpack.c.l.b16 %v1295
        %v4033 = vunpack.c.h.b16 %v1295
        %v4034 = vunpack.c.l.b16 %v1296
        %v4035 = vunpack.c.h.b16 %v1296
        %v4036 = vunpack.c.l.b16 %v1297
        %v4037 = vunpack.c.h.b16 %v1297
        %v4038 = vunpack.c.l.b16 %v1298
        %v4039 = vunpack.c.h.b16 %v1298
        %v4040 = vunpack.c.l.b16 %v1299
        %v4041 = vunpack.c.h.b16 %v1299
        %v4042 = vunpack.c.l.b16 %v1300
        %v4043 = vunpack.c.h.b16 %v1300
        %v4044 = vunpack.c.l.b16 %v1301
        %v4045 = vunpack.c.h.b16 %v1301
        %v4046 = vunpack.c.l.b16 %v1302
        %v4047 = vunpack.c.h.b16 %v1302
        %v4048 = vunpack.c.l.b16 %v1303
        %v4049 = vunpack.c.h.b16 %v1303
        %v4050 = vunpack.c.l.b16 %v1304
        %v4051 = vunpack.c.h.b16 %v1304
        %v4052 = vunpack.c.l.b16 %v1305
        %v4053 = vunpack.c.h.b16 %v1305
        %v4054 = vunpack.c.l.b16 %v1306
        %v4055 = vunpack.c.h.b16 %v1306
        %v4056 = vunpack.c.l.b16 %v1307
        %v4057 = vunpack.c.h.b16 %v1307
        %v4058 = vunpack.c.l.b16 %v1308
        %v4059 = vunpack.c.h.b16 %v1308
        %v4060 = vunpack.c.l.b16 %v1309
        %v4061 = vunpack.c.h.b16 %v1309
        %v4062 = vunpack.c.l.b16 %v1310
        %v4063 = vunpack.c.h.b16 %v1310
        %v4064 = vunpack.c.l.b16 %v1311
        %v4065 = vunpack.c.h.b16 %v1311
        %v4066 = vunpack.c.l.b16 %v1312
        %v4067 = vunpack.c.h.b16 %v1312
        %v4068 = vunpack.c.l.b16 %v1313
        %v4069 = vunpack.c.h.b16 %v1313
        %v4070 = vunpack.c.l.b16 %v1314
        %v4071 = vunpack.c.h.b16 %v1314
        %v4072 = vunpack.c.l.b16 %v1315
        %v4073 = vunpack.c.h.b16 %v1315
        %v4074 = vunpack.c.l.b16 %v1316
        %v4075 = vunpack.c.h.b16 %v1316
        %v4076 = vunpack.c.l.b16 %v1317
        %v4077 = vunpack.c.h.b16 %v1317
        %v4078 = vunpack.c.l.b16 %v1318
        %v4079 = vunpack.c.h.b16 %v1318
        %v4080 = vunpack.c.l.b16 %v1319
        %v4081 = vunpack.c.h.b16 %v1319
        %v4082 = vunpack.c.l.b16 %v1320
        %v4083 = vunpack.c.h.b16 %v1320
        %v4084 = vunpack.c.l.b16 %v1321
        %v4085 = vunpack.c.h.b16 %v1321
        %v4086 = vunpack.c.l.b16 %v1322
        %v4087 = vunpack.c.h.b16 %v1322
        %v4088 = vunpack.c.l.b16 %v1323
        %v4089 = vunpack.c.h.b16 %v1323
        %v4090 = vunpack.c.l.b16 %v1324
        %v4091 = vunpack.c.h.b16 %v1324
        %v4092 = vunpack.c.l.b16 %v1325
        %v4093 = vunpack.c.h.b16 %v1325
        %v4094 = vunpack.c.l.b16 %v1326
        %v4095 = vunpack.c.h.b16 %v1326
        %v4096 = vunpack.c.l.b16 %v1327
        %v4097 = vunpack.c.h.b16 %v1327
        %v4098 = vunpack.c.l.b16 %v1328
        %v4099 = vunpack.c.h.b16 %v1328
        %v4100 = vunpack.c.l.b16 %v1329
        %v4101 = vunpack.c.h.b16 %v1329
        %v4102 = vunpack.c.l.b16 %v1330
        %v4103 = vunpack.c.h.b16 %v1330
        %v4104 = vunpack.c.l.b16 %v1331
        %v4105 = vunpack.c.h.b16 %v1331
        %v4106 = vunpack.c.l.b16 %v1332
        %v4107 = vunpack.c.h.b16 %v1332
        %v4108 = vunpack.c.l.b16 %v1333
        %v4109 = vunpack.c.h.b16 %v1333
        %v4110 = vunpack.c.l.b16 %v1334
        %v4111 = vunpack.c.h.b16 %v1334
        %v4112 = vunpack.c.l.b16 %v1335
        %v4113 = vunpack.c.h.b16 %v1335
        %v4114 = vunpack.c.l.b16 %v1336
        %v4115 = vunpack.c.h.b16 %v1336
        %v4116 = vunpack.c.l.b16 %v1337
        %v4117 = vunpack.c.h.b16 %v1337
        %v4118 = vunpack.c.l.b16 %v1338
        %v4119 = vunpack.c.h.b16 %v1338
        %v4120 = vunpack.c.l.b16 %v1339
        %v4121 = vunpack.c.h.b16 %v1339
        %v4122 = vunpack.c.l.b16 %v1340
        %v4123 = vunpack.c.h.b16 %v1340
        %v4124 = vunpack.c.l.b16 %v1341
        %v4125 = vunpack.c.h.b16 %v1341
        %v4126 = vunpack.c.l.b16 %v1342
        %v4127 = vunpack.c.h.b16 %v1342
        %v4128 = vunpack.c.l.b16 %v1343
        %v4129 = vunpack.c.h.b16 %v1343
        %v4130 = vunpack.c.l.b16 %v1344
        %v4131 = vunpack.c.h.b16 %v1344
        %v4132 = vunpack.c.l.b16 %v1345
        %v4133 = vunpack.c.h.b16 %v1345
        %v4134 = vunpack.c.l.b16 %v1346
        %v4135 = vunpack.c.h.b16 %v1346
        %v4136 = vunpack.c.l.b16 %v1347
        %v4137 = vunpack.c.h.b16 %v1347
        %v4138 = vunpack.c.l.b16 %v1348
        %v4139 = vunpack.c.h.b16 %v1348
        %v4140 = vunpack.c.l.b16 %v1349
        %v4141 = vunpack.c.h.b16 %v1349
        %v4142 = vunpack.c.l.b16 %v1350
        %v4143 = vunpack.c.h.b16 %v1350
        %v4144 = vunpack.c.l.b16 %v1351
        %v4145 = vunpack.c.h.b16 %v1351
        %v4146 = vunpack.c.l.b16 %v1352
        %v4147 = vunpack.c.h.b16 %v1352
        %v4148 = vunpack.c.l.b16 %v1353
        %v4149 = vunpack.c.h.b16 %v1353
        %v4150 = vunpack.c.l.b16 %v1354
        %v4151 = vunpack.c.h.b16 %v1354
        %v4152 = vunpack.c.l.b16 %v1355
        %v4153 = vunpack.c.h.b16 %v1355
        %v4154 = vunpack.c.l.b16 %v1356
        %v4155 = vunpack.c.h.b16 %v1356
        %v4156 = vunpack.c.l.b16 %v1357
        %v4157 = vunpack.c.h.b16 %v1357
        %v4158 = vunpack.c.l.b16 %v1358
        %v4159 = vunpack.c.h.b16 %v1358
        %v4160 = vunpack.c.l.b16 %v1359
        %v4161 = vunpack.c.h.b16 %v1359
        %v4162 = vunpack.c.l.b16 %v1360
        %v4163 = vunpack.c.h.b16 %v1360
        %v4164 = vunpack.c.l.b16 %v1361
        %v4165 = vunpack.c.h.b16 %v1361
        %v4166 = vunpack.c.l.b16 %v1362
        %v4167 = vunpack.c.h.b16 %v1362
        %v4168 = vunpack.c.l.b16 %v1363
        %v4169 = vunpack.c.h.b16 %v1363
        %v4170 = vunpack.c.l.b16 %v1364
        %v4171 = vunpack.c.h.b16 %v1364
        %v4172 = vunpack.c.l.b16 %v1365
        %v4173 = vunpack.c.h.b16 %v1365
        %v4174 = vunpack.c.l.b16 %v1366
        %v4175 = vunpack.c.h.b16 %v1366
        %v4176 = vunpack.c.l.b16 %v1367
        %v4177 = vunpack.c.h.b16 %v1367
        %v4178 = vunpack.c.l.b16 %v1368
        %v4179 = vunpack.c.h.b16 %v1368
        %v4180 = vunpack.c.l.b16 %v1369
        %v4181 = vunpack.c.h.b16 %v1369
        %v4182 = vunpack.c.l.b16 %v1370
        %v4183 = vunpack.c.h.b16 %v1370
        %v4184 = vunpack.c.l.b16 %v1371
        %v4185 = vunpack.c.h.b16 %v1371
        %v4186 = vunpack.c.l.b16 %v1372
        %v4187 = vunpack.c.h.b16 %v1372
        %v4188 = vunpack.c.l.b16 %v1373
        %v4189 = vunpack.c.h.b16 %v1373
        %v4190 = vunpack.c.l.b16 %v1374
        %v4191 = vunpack.c.h.b16 %v1374
        %v4192 = vunpack.c.l.b16 %v1375
        %v4193 = vunpack.c.h.b16 %v1375
        %v4194 = vunpack.c.l.b16 %v1376
        %v4195 = vunpack.c.h.b16 %v1376
        %v4196 = vunpack.c.l.b16 %v1377
        %v4197 = vunpack.c.h.b16 %v1377
        %v4198 = vunpack.c.l.b16 %v1378
        %v4199 = vunpack.c.h.b16 %v1378
        %v4200 = vunpack.c.l.b16 %v1379
        %v4201 = vunpack.c.h.b16 %v1379
        %v4202 = vunpack.c.l.b16 %v1380
        %v4203 = vunpack.c.h.b16 %v1380
        %v4204 = vunpack.c.l.b16 %v1381
        %v4205 = vunpack.c.h.b16 %v1381
        %v4206 = vunpack.c.l.b16 %v1382
        %v4207 = vunpack.c.h.b16 %v1382
        %v4208 = vunpack.c.l.b16 %v1383
        %v4209 = vunpack.c.h.b16 %v1383
        %v4210 = vunpack.c.l.b16 %v1384
        %v4211 = vunpack.c.h.b16 %v1384
        %v4212 = vunpack.c.l.b16 %v1385
        %v4213 = vunpack.c.h.b16 %v1385
        %v4214 = vunpack.c.l.b16 %v1386
        %v4215 = vunpack.c.h.b16 %v1386
        %v4216 = vunpack.c.l.b16 %v1387
        %v4217 = vunpack.c.h.b16 %v1387
        %v4218 = vunpack.c.l.b16 %v1388
        %v4219 = vunpack.c.h.b16 %v1388
        %v4220 = vunpack.c.l.b16 %v1389
        %v4221 = vunpack.c.h.b16 %v1389
        %v4222 = vunpack.c.l.b16 %v1390
        %v4223 = vunpack.c.h.b16 %v1390
        %v4224 = vunpack.c.l.b16 %v1391
        %v4225 = vunpack.c.h.b16 %v1391
        %v4226 = vunpack.c.l.b16 %v1392
        %v4227 = vunpack.c.h.b16 %v1392
        %v4228 = vunpack.c.l.b16 %v1393
        %v4229 = vunpack.c.h.b16 %v1393
        %v4230 = vunpack.c.l.b16 %v1394
        %v4231 = vunpack.c.h.b16 %v1394
        %v4232 = vunpack.c.l.b16 %v1395
        %v4233 = vunpack.c.h.b16 %v1395
        %v4234 = vunpack.c.l.b16 %v1396
        %v4235 = vunpack.c.h.b16 %v1396
        %v4236 = vunpack.c.l.b16 %v1397
        %v4237 = vunpack.c.h.b16 %v1397
        %v4238 = vunpack.c.l.b16 %v1398
        %v4239 = vunpack.c.h.b16 %v1398
        %v4240 = vunpack.c.l.b16 %v1399
        %v4241 = vunpack.c.h.b16 %v1399
        %v4242 = vunpack.c.l.b16 %v1400
        %v4243 = vunpack.c.h.b16 %v1400
        %v4244 = vunpack.c.l.b16 %v1401
        %v4245 = vunpack.c.h.b16 %v1401
        %v4246 = vunpack.c.l.b16 %v1402
        %v4247 = vunpack.c.h.b16 %v1402
        %v4248 = vunpack.c.l.b16 %v1403
        %v4249 = vunpack.c.h.b16 %v1403
        %v4250 = vunpack.c.l.b16 %v1404
        %v4251 = vunpack.c.h.b16 %v1404
        %v4252 = vunpack.c.l.b16 %v1405
        %v4253 = vunpack.c.h.b16 %v1405
        %v4254 = vunpack.c.l.b16 %v1406
        %v4255 = vunpack.c.h.b16 %v1406
        %v4256 = vunpack.c.l.b16 %v1407
        %v4257 = vunpack.c.h.b16 %v1407
        %v4258 = vunpack.c.l.b16 %v1408
        %v4259 = vunpack.c.h.b16 %v1408
        %v4260 = vunpack.c.l.b16 %v1409
        %v4261 = vunpack.c.h.b16 %v1409
        %v4262 = vunpack.c.l.b16 %v1410
        %v4263 = vunpack.c.h.b16 %v1410
        %v4264 = vunpack.c.l.b16 %v1411
        %v4265 = vunpack.c.h.b16 %v1411
        %v4266 = vunpack.c.l.b16 %v1412
        %v4267 = vunpack.c.h.b16 %v1412
        %v4268 = vunpack.c.l.b16 %v1413
        %v4269 = vunpack.c.h.b16 %v1413
        %v4270 = vunpack.c.l.b16 %v1414
        %v4271 = vunpack.c.h.b16 %v1414
        %v4272 = vunpack.c.l.b16 %v1415
        %v4273 = vunpack.c.h.b16 %v1415
        %v4274 = vunpack.c.l.b16 %v1416
        %v4275 = vunpack.c.h.b16 %v1416
        %v4276 = vunpack.c.l.b16 %v1417
        %v4277 = vunpack.c.h.b16 %v1417
        %v4278 = vunpack.c.l.b16 %v1418
        %v4279 = vunpack.c.h.b16 %v1418
        %v4280 = vunpack.c.l.b16 %v1419
        %v4281 = vunpack.c.h.b16 %v1419
        %v4282 = vunpack.c.l.b16 %v1420
        %v4283 = vunpack.c.h.b16 %v1420
        %v4284 = vunpack.c.l.b16 %v1421
        %v4285 = vunpack.c.h.b16 %v1421
        %v4286 = vunpack.c.l.b16 %v1422
        %v4287 = vunpack.c.h.b16 %v1422
        %v4288 = vunpack.c.l.b16 %v1423
        %v4289 = vunpack.c.h.b16 %v1423
        %v4290 = vunpack.c.l.b16 %v1424
        %v4291 = vunpack.c.h.b16 %v1424
        %v4292 = vunpack.c.l.b16 %v1425
        %v4293 = vunpack.c.h.b16 %v1425
        %v4294 = vunpack.c.l.b16 %v1426
        %v4295 = vunpack.c.h.b16 %v1426
        %v4296 = vunpack.c.l.b16 %v1427
        %v4297 = vunpack.c.h.b16 %v1427
        %v4298 = vunpack.c.l.b16 %v1428
        %v4299 = vunpack.c.h.b16 %v1428
        %v4300 = vunpack.c.l.b16 %v1429
        %v4301 = vunpack.c.h.b16 %v1429
        %v4302 = vunpack.c.l.b16 %v1430
        %v4303 = vunpack.c.h.b16 %v1430
        %v4304 = vunpack.c.l.b16 %v1431
        %v4305 = vunpack.c.h.b16 %v1431
        %v4306 = vunpack.c.l.b16 %v1432
        %v4307 = vunpack.c.h.b16 %v1432
        %v4308 = vunpack.c.l.b16 %v1433
        %v4309 = vunpack.c.h.b16 %v1433
        %v4310 = vunpack.c.l.b16 %v1434
        %v4311 = vunpack.c.h.b16 %v1434
        %v4312 = vunpack.c.l.b16 %v1435
        %v4313 = vunpack.c.h.b16 %v1435
        %v4314 = vunpack.c.l.b16 %v1436
        %v4315 = vunpack.c.h.b16 %v1436
        %v4316 = vunpack.c.l.b16 %v1437
        %v4317 = vunpack.c.h.b16 %v1437
        %v4318 = vunpack.c.l.b16 %v1438
        %v4319 = vunpack.c.h.b16 %v1438
        %v4320 = vunpack.c.l.b16 %v1439
        %v4321 = vunpack.c.h.b16 %v1439
        %v4322 = vunpack.c.l.b16 %v1440
        %v4323 = vunpack.c.h.b16 %v1440
        %v4324 = vunpack.c.l.b16 %v1441
        %v4325 = vunpack.c.h.b16 %v1441
        %v4326 = vunpack.c.l.b16 %v1442
        %v4327 = vunpack.c.h.b16 %v1442
        %v4328 = vunpack.c.l.b16 %v1443
        %v4329 = vunpack.c.h.b16 %v1443
        %v4330 = vunpack.c.l.b16 %v1444
        %v4331 = vunpack.c.h.b16 %v1444
        %v4332 = vunpack.c.l.b16 %v1445
        %v4333 = vunpack.c.h.b16 %v1445
        %v4334 = vunpack.c.l.b16 %v1446
        %v4335 = vunpack.c.h.b16 %v1446
        %v4336 = vunpack.c.l.b16 %v1447
        %v4337 = vunpack.c.h.b16 %v1447
        %v4338 = vunpack.c.l.b16 %v1448
        %v4339 = vunpack.c.h.b16 %v1448
        %v4340 = vunpack.c.l.b16 %v1449
        %v4341 = vunpack.c.h.b16 %v1449
        %v4342 = vunpack.c.l.b16 %v1450
        %v4343 = vunpack.c.h.b16 %v1450
        %v4344 = vunpack.c.l.b16 %v1451
        %v4345 = vunpack.c.h.b16 %v1451
        %v4346 = vunpack.c.l.b16 %v1452
        %v4347 = vunpack.c.h.b16 %v1452
        %v4348 = vunpack.c.l.b16 %v1453
        %v4349 = vunpack.c.h.b16 %v1453
        %v4350 = vunpack.c.l.b16 %v1454
        %v4351 = vunpack.c.h.b16 %v1454
        %v4352 = vunpack.c.l.b16 %v1455
        %v4353 = vunpack.c.h.b16 %v1455
        %v4354 = vunpack.c.l.b16 %v1456
        %v4355 = vunpack.c.h.b16 %v1456
        %v4356 = vunpack.c.l.b16 %v1457
        %v4357 = vunpack.c.h.b16 %v1457
        %v4358 = vunpack.c.l.b16 %v1458
        %v4359 = vunpack.c.h.b16 %v1458
        %v4360 = vunpack.c.l.b16 %v1459
        %v4361 = vunpack.c.h.b16 %v1459
        %v4362 = vunpack.c.l.b16 %v1460
        %v4363 = vunpack.c.h.b16 %v1460
        %v4364 = vunpack.c.l.b16 %v1461
        %v4365 = vunpack.c.h.b16 %v1461
        %v4366 = vunpack.c.l.b16 %v1462
        %v4367 = vunpack.c.h.b16 %v1462
        %v4368 = vunpack.c.l.b16 %v1463
        %v4369 = vunpack.c.h.b16 %v1463
        %v4370 = vunpack.c.l.b16 %v1464
        %v4371 = vunpack.c.h.b16 %v1464
        %v4372 = vunpack.c.l.b16 %v1465
        %v4373 = vunpack.c.h.b16 %v1465
        %v4374 = vunpack.c.l.b16 %v1466
        %v4375 = vunpack.c.h.b16 %v1466
        %v4376 = vunpack.c.l.b16 %v1467
        %v4377 = vunpack.c.h.b16 %v1467
        %v4378 = vunpack.c.l.b16 %v1468
        %v4379 = vunpack.c.h.b16 %v1468
        %v4380 = vunpack.c.l.b16 %v1469
        %v4381 = vunpack.c.h.b16 %v1469
        %v4382 = vunpack.c.l.b16 %v1470
        %v4383 = vunpack.c.h.b16 %v1470
        %v4384 = vunpack.c.l.b16 %v1471
        %v4385 = vunpack.c.h.b16 %v1471
        %v4386 = vunpack.c.l.b16 %v1472
        %v4387 = vunpack.c.h.b16 %v1472
        %v4388 = vunpack.c.l.b16 %v1473
        %v4389 = vunpack.c.h.b16 %v1473
        %v4390 = vunpack.c.l.b16 %v1474
        %v4391 = vunpack.c.h.b16 %v1474
        %v4392 = vunpack.c.l.b16 %v1475
        %v4393 = vunpack.c.h.b16 %v1475
        %v4394 = vunpack.c.l.b16 %v1476
        %v4395 = vunpack.c.h.b16 %v1476
        %v4396 = vunpack.c.l.b16 %v1477
        %v4397 = vunpack.c.h.b16 %v1477
        %v4398 = vunpack.c.l.b16 %v1478
        %v4399 = vunpack.c.h.b16 %v1478
        %v4400 = vunpack.c.l.b16 %v1479
        %v4401 = vunpack.c.h.b16 %v1479
        %v4402 = vunpack.c.l.b16 %v1480
        %v4403 = vunpack.c.h.b16 %v1480
        %v4404 = vunpack.c.l.b16 %v1481
        %v4405 = vunpack.c.h.b16 %v1481
        %v4406 = vunpack.c.l.b16 %v1482
        %v4407 = vunpack.c.h.b16 %v1482
        %v4408 = vunpack.c.l.b16 %v1483
        %v4409 = vunpack.c.h.b16 %v1483
        %v4410 = vunpack.c.l.b16 %v1484
        %v4411 = vunpack.c.h.b16 %v1484
        %v4412 = vunpack.c.l.b16 %v1485
        %v4413 = vunpack.c.h.b16 %v1485
        %v4414 = vunpack.c.l.b16 %v1486
        %v4415 = vunpack.c.h.b16 %v1486
        %v4416 = vunpack.c.l.b16 %v1487
        %v4417 = vunpack.c.h.b16 %v1487
        %v4418 = vunpack.c.l.b16 %v1488
        %v4419 = vunpack.c.h.b16 %v1488
        %v4420 = vunpack.c.l.b16 %v1489
        %v4421 = vunpack.c.h.b16 %v1489
        %v4422 = vunpack.c.l.b16 %v1490
        %v4423 = vunpack.c.h.b16 %v1490
        %v4424 = vunpack.c.l.b16 %v1491
        %v4425 = vunpack.c.h.b16 %v1491
        %v4426 = vunpack.c.l.b16 %v1492
        %v4427 = vunpack.c.h.b16 %v1492
        %v4428 = vunpack.c.l.b16 %v1493
        %v4429 = vunpack.c.h.b16 %v1493
        %v4430 = vunpack.c.l.b16 %v1494
        %v4431 = vunpack.c.h.b16 %v1494
        %v4432 = vunpack.c.l.b16 %v1495
        %v4433 = vunpack.c.h.b16 %v1495
        %v4434 = vunpack.c.l.b16 %v1496
        %v4435 = vunpack.c.h.b16 %v1496
        %v4436 = vunpack.c.l.b16 %v1497
        %v4437 = vunpack.c.h.b16 %v1497
        %v4438 = vunpack.c.l.b16 %v1498
        %v4439 = vunpack.c.h.b16 %v1498
        %v4440 = vunpack.c.l.b16 %v1499
        %v4441 = vunpack.c.h.b16 %v1499
        %v4442 = vunpack.c.l.b16 %v1500
        %v4443 = vunpack.c.h.b16 %v1500
        %v4444 = vunpack.c.l.b16 %v1501
        %v4445 = vunpack.c.h.b16 %v1501
        %v4446 = vunpack.c.l.b16 %v1502
        %v4447 = vunpack.c.h.b16 %v1502
        %v4448 = vunpack.c.l.b16 %v1503
        %v4449 = vunpack.c.h.b16 %v1503
        %v4450 = vunpack.c.l.b16 %v1504
        %v4451 = vunpack.c.h.b16 %v1504
        %v4452 = vunpack.c.l.b16 %v1505
        %v4453 = vunpack.c.h.b16 %v1505
        %v4454 = vunpack.c.l.b16 %v1506
        %v4455 = vunpack.c.h.b16 %v1506
        %v4456 = vunpack.c.l.b16 %v1507
        %v4457 = vunpack.c.h.b16 %v1507
        %v4458 = vunpack.c.l.b16 %v1508
        %v4459 = vunpack.c.h.b16 %v1508
        %v4460 = vunpack.c.l.b16 %v1509
        %v4461 = vunpack.c.h.b16 %v1509
        %v4462 = vunpack.c.l.b16 %v1510
        %v4463 = vunpack.c.h.b16 %v1510
        %v4464 = vunpack.c.l.b16 %v1511
        %v4465 = vunpack.c.h.b16 %v1511
        %v4466 = vunpack.c.l.b16 %v1512
        %v4467 = vunpack.c.h.b16 %v1512
        %v4468 = vunpack.c.l.b16 %v1513
        %v4469 = vunpack.c.h.b16 %v1513
        %v4470 = vunpack.c.l.b16 %v1514
        %v4471 = vunpack.c.h.b16 %v1514
        %v4472 = vunpack.c.l.b16 %v1515
        %v4473 = vunpack.c.h.b16 %v1515
        %v4474 = vunpack.c.l.b16 %v1516
        %v4475 = vunpack.c.h.b16 %v1516
        %v4476 = vunpack.c.l.b16 %v1517
        %v4477 = vunpack.c.h.b16 %v1517
        %v4478 = vunpack.c.l.b16 %v1518
        %v4479 = vunpack.c.h.b16 %v1518
        %v4480 = vunpack.c.l.b16 %v1519
        %v4481 = vunpack.c.h.b16 %v1519
        %v4482 = vunpack.c.l.b16 %v1520
        %v4483 = vunpack.c.h.b16 %v1520
        %v4484 = vunpack.c.l.b16 %v1521
        %v4485 = vunpack.c.h.b16 %v1521
        %v4486 = vunpack.c.l.b16 %v1522
        %v4487 = vunpack.c.h.b16 %v1522
        %v4488 = vunpack.c.l.b16 %v1523
        %v4489 = vunpack.c.h.b16 %v1523
        %v4490 = vunpack.c.l.b16 %v1524
        %v4491 = vunpack.c.h.b16 %v1524
        %v4492 = vunpack.c.l.b16 %v1525
        %v4493 = vunpack.c.h.b16 %v1525
        %v4494 = vunpack.c.l.b16 %v1526
        %v4495 = vunpack.c.h.b16 %v1526
        %v4496 = vunpack.c.l.b16 %v1527
        %v4497 = vunpack.c.h.b16 %v1527
        %v4498 = vunpack.c.l.b16 %v1528
        %v4499 = vunpack.c.h.b16 %v1528
        %v4500 = vunpack.c.l.b16 %v1529
        %v4501 = vunpack.c.h.b16 %v1529
        %v4502 = vunpack.c.l.b16 %v1530
        %v4503 = vunpack.c.h.b16 %v1530
        %v4504 = vunpack.c.l.b16 %v1531
        %v4505 = vunpack.c.h.b16 %v1531
        %v4506 = vunpack.c.l.b16 %v1532
        %v4507 = vunpack.c.h.b16 %v1532
        %v4508 = vunpack.c.l.b16 %v1533
        %v4509 = vunpack.c.h.b16 %v1533
        %v4510 = vunpack.c.l.b16 %v1534
        %v4511 = vunpack.c.h.b16 %v1534
        %v4512 = vunpack.c.l.b16 %v1535
        %v4513 = vunpack.c.h.b16 %v1535
        %v4514 = vunpack.c.l.b16 %v1536
        %v4515 = vunpack.c.h.b16 %v1536
        %v4516 = vunpack.c.l.b16 %v1537
        %v4517 = vunpack.c.h.b16 %v1537
        %v4518 = vunpack.c.l.b16 %v1538
        %v4519 = vunpack.c.h.b16 %v1538
        %v4520 = vunpack.c.l.b16 %v1539
        %v4521 = vunpack.c.h.b16 %v1539
        %v4522 = vunpack.c.l.b16 %v1540
        %v4523 = vunpack.c.h.b16 %v1540
        %v4524 = vunpack.c.l.b16 %v1541
        %v4525 = vunpack.c.h.b16 %v1541
        %v4526 = vunpack.c.l.b16 %v1542
        %v4527 = vunpack.c.h.b16 %v1542
        %v4528 = vunpack.c.l.b16 %v1543
        %v4529 = vunpack.c.h.b16 %v1543
        %v4530 = vunpack.c.l.b16 %v1544
        %v4531 = vunpack.c.h.b16 %v1544
        %v4532 = vunpack.c.l.b16 %v1545
        %v4533 = vunpack.c.h.b16 %v1545
        %v4534 = vunpack.c.l.b16 %v1546
        %v4535 = vunpack.c.h.b16 %v1546
        %v4536 = vunpack.c.l.b16 %v1547
        %v4537 = vunpack.c.h.b16 %v1547
        %v4538 = vunpack.c.l.b16 %v1548
        %v4539 = vunpack.c.h.b16 %v1548
        %v4540 = vunpack.c.l.b16 %v1549
        %v4541 = vunpack.c.h.b16 %v1549
        %v4542 = vunpack.c.l.b16 %v1550
        %v4543 = vunpack.c.h.b16 %v1550
        %v4544 = vunpack.c.l.b16 %v1551
        %v4545 = vunpack.c.h.b16 %v1551
        %v4546 = vunpack.c.l.b16 %v1552
        %v4547 = vunpack.c.h.b16 %v1552
        %v4548 = vunpack.c.l.b16 %v1553
        %v4549 = vunpack.c.h.b16 %v1553
        %v4550 = vunpack.c.l.b16 %v1554
        %v4551 = vunpack.c.h.b16 %v1554
        %v4552 = vunpack.c.l.b16 %v1555
        %v4553 = vunpack.c.h.b16 %v1555
        %v4554 = vunpack.c.l.b16 %v1556
        %v4555 = vunpack.c.h.b16 %v1556
        %v4556 = vunpack.c.l.b16 %v1557
        %v4557 = vunpack.c.h.b16 %v1557
        %v4558 = vunpack.c.l.b16 %v1558
        %v4559 = vunpack.c.h.b16 %v1558
        %v4560 = vunpack.c.l.b16 %v1559
        %v4561 = vunpack.c.h.b16 %v1559
        %v4562 = vunpack.c.l.b16 %v1560
        %v4563 = vunpack.c.h.b16 %v1560
        %v4564 = vunpack.c.l.b16 %v1561
        %v4565 = vunpack.c.h.b16 %v1561
        %v4566 = vunpack.c.l.b16 %v1562
        %v4567 = vunpack.c.h.b16 %v1562
        %v4568 = vunpack.c.l.b16 %v1563
        %v4569 = vunpack.c.h.b16 %v1563
        %v4570 = vunpack.c.l.b16 %v1564
        %v4571 = vunpack.c.h.b16 %v1564
        %v4572 = vunpack.c.l.b16 %v1565
        %v4573 = vunpack.c.h.b16 %v1565
        %v4574 = vunpack.c.l.b16 %v1566
        %v4575 = vunpack.c.h.b16 %v1566
        %v4576 = vunpack.c.l.b16 %v1567
        %v4577 = vunpack.c.h.b16 %v1567
        %v4578 = vunpack.c.l.b16 %v1568
        %v4579 = vunpack.c.h.b16 %v1568
        %v4580 = vunpack.c.l.b16 %v1569
        %v4581 = vunpack.c.h.b16 %v1569
        %v4582 = vunpack.c.l.b16 %v1570
        %v4583 = vunpack.c.h.b16 %v1570
        %v4584 = vunpack.c.l.b16 %v1571
        %v4585 = vunpack.c.h.b16 %v1571
        %v4586 = vunpack.c.l.b16 %v1572
        %v4587 = vunpack.c.h.b16 %v1572
        %v4588 = vunpack.c.l.b16 %v1573
        %v4589 = vunpack.c.h.b16 %v1573
        %v4590 = vunpack.c.l.b16 %v1574
        %v4591 = vunpack.c.h.b16 %v1574
        %v4592 = vunpack.c.l.b16 %v1575
        %v4593 = vunpack.c.h.b16 %v1575
        %v4594 = vunpack.c.l.b16 %v1576
        %v4595 = vunpack.c.h.b16 %v1576
        %v4596 = vunpack.c.l.b16 %v1577
        %v4597 = vunpack.c.h.b16 %v1577
        %v4598 = vunpack.c.l.b16 %v1578
        %v4599 = vunpack.c.h.b16 %v1578
        %v4600 = vunpack.c.l.b16 %v1579
        %v4601 = vunpack.c.h.b16 %v1579
        %v4602 = vunpack.c.l.b16 %v1580
        %v4603 = vunpack.c.h.b16 %v1580
        %v4604 = vunpack.c.l.b16 %v1581
        %v4605 = vunpack.c.h.b16 %v1581
        %v4606 = vunpack.c.l.b16 %v1582
        %v4607 = vunpack.c.h.b16 %v1582
        %v4608 = vunpack.c.l.b16 %v1583
        %v4609 = vunpack.c.h.b16 %v1583
        %v4610 = vunpack.c.l.b16 %v1584
        %v4611 = vunpack.c.h.b16 %v1584
        %v4612 = vunpack.c.l.b16 %v1585
        %v4613 = vunpack.c.h.b16 %v1585
        %v4614 = vunpack.c.l.b16 %v1586
        %v4615 = vunpack.c.h.b16 %v1586
        %v4616 = vunpack.c.l.b16 %v1587
        %v4617 = vunpack.c.h.b16 %v1587
        %v4618 = vunpack.c.l.b16 %v1588
        %v4619 = vunpack.c.h.b16 %v1588
        %v4620 = vunpack.c.l.b16 %v1589
        %v4621 = vunpack.c.h.b16 %v1589
        %v4622 = vunpack.c.l.b16 %v1590
        %v4623 = vunpack.c.h.b16 %v1590
        %v4624 = vunpack.c.l.b16 %v1591
        %v4625 = vunpack.c.h.b16 %v1591
        %v4626 = vunpack.c.l.b16 %v1592
        %v4627 = vunpack.c.h.b16 %v1592
        %v4628 = vunpack.c.l.b16 %v1593
        %v4629 = vunpack.c.h.b16 %v1593
        %v4630 = vunpack.c.l.b16 %v1594
        %v4631 = vunpack.c.h.b16 %v1594
        %v4632 = vunpack.c.l.b16 %v1595
        %v4633 = vunpack.c.h.b16 %v1595
        %v4634 = vunpack.c.l.b16 %v1596
        %v4635 = vunpack.c.h.b16 %v1596
        %v4636 = vunpack.c.l.b16 %v1597
        %v4637 = vunpack.c.h.b16 %v1597
        %v4638 = vunpack.c.l.b16 %v1598
        %v4639 = vunpack.c.h.b16 %v1598
        %v4640 = vunpack.c.l.b16 %v1599
        %v4641 = vunpack.c.h.b16 %v1599
        %v4642 = vunpack.c.l.b16 %v1600
        %v4643 = vunpack.c.h.b16 %v1600
        %v4644 = vunpack.c.l.b16 %v1601
        %v4645 = vunpack.c.h.b16 %v1601
        %v4646 = vunpack.c.l.b16 %v1602
        %v4647 = vunpack.c.h.b16 %v1602
        %v4648 = vunpack.c.l.b16 %v1603
        %v4649 = vunpack.c.h.b16 %v1603
        %v4650 = vunpack.c.l.b16 %v1604
        %v4651 = vunpack.c.h.b16 %v1604
        %v4652 = vunpack.c.l.b16 %v1605
        %v4653 = vunpack.c.h.b16 %v1605
        %v4654 = vunpack.c.l.b16 %v1606
        %v4655 = vunpack.c.h.b16 %v1606
        %v4656 = vunpack.c.l.b16 %v1607
        %v4657 = vunpack.c.h.b16 %v1607
        %v4658 = vunpack.c.l.b16 %v1608
        %v4659 = vunpack.c.h.b16 %v1608
        %v4660 = vunpack.c.l.b16 %v1609
        %v4661 = vunpack.c.h.b16 %v1609
        %v4662 = vunpack.c.l.b16 %v1610
        %v4663 = vunpack.c.h.b16 %v1610
        %v4664 = vunpack.c.l.b16 %v1611
        %v4665 = vunpack.c.h.b16 %v1611
        %v4666 = vunpack.c.l.b16 %v1612
        %v4667 = vunpack.c.h.b16 %v1612
        %v4668 = vunpack.c.l.b16 %v1613
        %v4669 = vunpack.c.h.b16 %v1613
        %v4670 = vunpack.c.l.b16 %v1614
        %v4671 = vunpack.c.h.b16 %v1614
        %v4672 = vunpack.c.l.b16 %v1615
        %v4673 = vunpack.c.h.b16 %v1615
        %v4674 = vunpack.c.l.b16 %v1616
        %v4675 = vunpack.c.h.b16 %v1616
        %v4676 = vunpack.c.l.b16 %v1617
        %v4677 = vunpack.c.h.b16 %v1617
        %v4678 = vunpack.c.l.b16 %v1618
        %v4679 = vunpack.c.h.b16 %v1618
        %v4680 = vunpack.c.l.b16 %v1619
        %v4681 = vunpack.c.h.b16 %v1619
        %v4682 = vunpack.c.l.b16 %v1620
        %v4683 = vunpack.c.h.b16 %v1620
        %v4684 = vunpack.c.l.b16 %v1621
        %v4685 = vunpack.c.h.b16 %v1621
        %v4686 = vunpack.c.l.b16 %v1622
        %v4687 = vunpack.c.h.b16 %v1622
        %v4688 = vunpack.c.l.b16 %v1623
        %v4689 = vunpack.c.h.b16 %v1623
        %v4690 = vunpack.c.l.b16 %v1624
        %v4691 = vunpack.c.h.b16 %v1624
        %v4692 = vunpack.c.l.b16 %v1625
        %v4693 = vunpack.c.h.b16 %v1625
        %v4694 = vunpack.c.l.b16 %v1626
        %v4695 = vunpack.c.h.b16 %v1626
        %v4696 = vunpack.c.l.b16 %v1627
        %v4697 = vunpack.c.h.b16 %v1627
        %v4698 = vunpack.c.l.b16 %v1628
        %v4699 = vunpack.c.h.b16 %v1628
        %v4700 = vunpack.c.l.b16 %v1629
        %v4701 = vunpack.c.h.b16 %v1629
        %v4702 = vunpack.c.l.b16 %v1630
        %v4703 = vunpack.c.h.b16 %v1630
        %v4704 = vunpack.c.l.b16 %v1631
        %v4705 = vunpack.c.h.b16 %v1631
        %v4706 = vunpack.c.l.b16 %v1632
        %v4707 = vunpack.c.h.b16 %v1632
        %v4708 = vunpack.c.l.b16 %v1633
        %v4709 = vunpack.c.h.b16 %v1633
        %v4710 = vunpack.c.l.b16 %v1634
        %v4711 = vunpack.c.h.b16 %v1634
        %v4712 = vunpack.c.l.b16 %v1635
        %v4713 = vunpack.c.h.b16 %v1635
        %v4714 = vunpack.c.l.b16 %v1636
        %v4715 = vunpack.c.h.b16 %v1636
        %v4716 = vunpack.c.l.b16 %v1637
        %v4717 = vunpack.c.h.b16 %v1637
        %v4718 = vunpack.c.l.b16 %v1638
        %v4719 = vunpack.c.h.b16 %v1638
        %v4720 = vunpack.c.l.b16 %v1639
        %v4721 = vunpack.c.h.b16 %v1639
        %v4722 = vunpack.c.l.b16 %v1640
        %v4723 = vunpack.c.h.b16 %v1640
        %v4724 = vunpack.c.l.b16 %v1641
        %v4725 = vunpack.c.h.b16 %v1641
        %v4726 = vunpack.c.l.b16 %v1642
        %v4727 = vunpack.c.h.b16 %v1642
        %v4728 = vunpack.c.l.b16 %v1643
        %v4729 = vunpack.c.h.b16 %v1643
        %v4730 = vunpack.c.l.b16 %v1644
        %v4731 = vunpack.c.h.b16 %v1644
        %v4732 = vunpack.c.l.b16 %v1645
        %v4733 = vunpack.c.h.b16 %v1645
        %v4734 = vunpack.c.l.b16 %v1646
        %v4735 = vunpack.c.h.b16 %v1646
        %v4736 = vunpack.c.l.b16 %v1647
        %v4737 = vunpack.c.h.b16 %v1647
        %v4738 = vunpack.c.l.b16 %v1648
        %v4739 = vunpack.c.h.b16 %v1648
        %v4740 = vunpack.c.l.b16 %v1649
        %v4741 = vunpack.c.h.b16 %v1649
        %v4742 = vunpack.c.l.b16 %v1650
        %v4743 = vunpack.c.h.b16 %v1650
        %v4744 = vunpack.c.l.b16 %v1651
        %v4745 = vunpack.c.h.b16 %v1651
        %v4746 = vunpack.c.l.b16 %v1652
        %v4747 = vunpack.c.h.b16 %v1652
        %v4748 = vunpack.c.l.b16 %v1653
        %v4749 = vunpack.c.h.b16 %v1653
        %v4750 = vunpack.c.l.b16 %v1654
        %v4751 = vunpack.c.h.b16 %v1654
        %v4752 = vunpack.c.l.b16 %v1655
        %v4753 = vunpack.c.h.b16 %v1655
        %v4754 = vunpack.c.l.b16 %v1656
        %v4755 = vunpack.c.h.b16 %v1656
        %v4756 = vunpack.c.l.b16 %v1657
        %v4757 = vunpack.c.h.b16 %v1657
        %v4758 = vunpack.c.l.b16 %v1658
        %v4759 = vunpack.c.h.b16 %v1658
        %v4760 = vunpack.c.l.b16 %v1659
        %v4761 = vunpack.c.h.b16 %v1659
        %v4762 = vunpack.c.l.b16 %v1660
        %v4763 = vunpack.c.h.b16 %v1660
        %v4764 = vunpack.c.l.b16 %v1661
        %v4765 = vunpack.c.h.b16 %v1661
        %v4766 = vunpack.c.l.b16 %v1662
        %v4767 = vunpack.c.h.b16 %v1662
        %v4768 = vunpack.c.l.b16 %v1663
        %v4769 = vunpack.c.h.b16 %v1663
        %v4770 = vunpack.c.l.b16 %v1664
        %v4771 = vunpack.c.h.b16 %v1664
        %v4772 = vunpack.c.l.b16 %v1665
        %v4773 = vunpack.c.h.b16 %v1665
        %v4774 = vunpack.c.l.b16 %v1666
        %v4775 = vunpack.c.h.b16 %v1666
        %v4776 = vunpack.c.l.b16 %v1667
        %v4777 = vunpack.c.h.b16 %v1667
        %v4778 = vunpack.c.l.b16 %v1668
        %v4779 = vunpack.c.h.b16 %v1668
        %v4780 = vunpack.c.l.b16 %v1669
        %v4781 = vunpack.c.h.b16 %v1669
        %v4782 = vunpack.c.l.b16 %v1670
        %v4783 = vunpack.c.h.b16 %v1670
        %v4784 = vunpack.c.l.b16 %v1671
        %v4785 = vunpack.c.h.b16 %v1671
        %v4786 = vunpack.c.l.b16 %v1672
        %v4787 = vunpack.c.h.b16 %v1672
        %v4788 = vunpack.c.l.b16 %v1673
        %v4789 = vunpack.c.h.b16 %v1673
        %v4790 = vunpack.c.l.b16 %v1674
        %v4791 = vunpack.c.h.b16 %v1674
        %v4792 = vunpack.c.l.b16 %v1675
        %v4793 = vunpack.c.h.b16 %v1675
        %v4794 = vunpack.c.l.b16 %v1676
        %v4795 = vunpack.c.h.b16 %v1676
        %v4796 = vunpack.c.l.b16 %v1677
        %v4797 = vunpack.c.h.b16 %v1677
        %v4798 = vunpack.c.l.b16 %v1678
        %v4799 = vunpack.c.h.b16 %v1678
        %v4800 = vunpack.c.l.b16 %v1679
        %v4801 = vunpack.c.h.b16 %v1679
        %v4802 = vunpack.c.l.b16 %v1680
        %v4803 = vunpack.c.h.b16 %v1680
        %v4804 = vunpack.c.l.b16 %v1681
        %v4805 = vunpack.c.h.b16 %v1681
        %v4806 = vunpack.c.l.b16 %v1682
        %v4807 = vunpack.c.h.b16 %v1682
        %v4808 = vunpack.c.l.b16 %v1683
        %v4809 = vunpack.c.h.b16 %v1683
        %v4810 = vunpack.c.l.b16 %v1684
        %v4811 = vunpack.c.h.b16 %v1684
        %v4812 = vunpack.c.l.b16 %v1685
        %v4813 = vunpack.c.h.b16 %v1685
        %v4814 = vunpack.c.l.b16 %v1686
        %v4815 = vunpack.c.h.b16 %v1686
        %v4816 = vunpack.c.l.b16 %v1687
        %v4817 = vunpack.c.h.b16 %v1687
        %v4818 = vunpack.c.l.b16 %v1688
        %v4819 = vunpack.c.h.b16 %v1688
        %v4820 = vunpack.c.l.b16 %v1689
        %v4821 = vunpack.c.h.b16 %v1689
        %v4822 = vunpack.c.l.b16 %v1690
        %v4823 = vunpack.c.h.b16 %v1690
        %v4824 = vunpack.c.l.b16 %v1691
        %v4825 = vunpack.c.h.b16 %v1691
        %v4826 = vunpack.c.l.b16 %v1692
        %v4827 = vunpack.c.h.b16 %v1692
        %v4828 = vunpack.c.l.b16 %v1693
        %v4829 = vunpack.c.h.b16 %v1693
        %v4830 = vunpack.c.l.b16 %v1694
        %v4831 = vunpack.c.h.b16 %v1694
        %v4832 = vunpack.c.l.b16 %v1695
        %v4833 = vunpack.c.h.b16 %v1695
        %v4834 = vunpack.c.l.b16 %v1696
        %v4835 = vunpack.c.h.b16 %v1696
        %v4836 = vunpack.c.l.b16 %v1697
        %v4837 = vunpack.c.h.b16 %v1697
        %v4838 = vunpack.c.l.b16 %v1698
        %v4839 = vunpack.c.h.b16 %v1698
        %v4840 = vunpack.c.l.b16 %v1699
        %v4841 = vunpack.c.h.b16 %v1699
        %v4842 = vunpack.c.l.b16 %v1700
        %v4843 = vunpack.c.h.b16 %v1700
        %v4844 = vunpack.c.l.b16 %v1701
        %v4845 = vunpack.c.h.b16 %v1701
        %v4846 = vunpack.c.l.b16 %v1702
        %v4847 = vunpack.c.h.b16 %v1702
        %v4848 = vunpack.c.l.b16 %v1703
        %v4849 = vunpack.c.h.b16 %v1703
        %v4850 = vunpack.c.l.b16 %v1704
        %v4851 = vunpack.c.h.b16 %v1704
        %v4852 = vunpack.c.l.b16 %v1705
        %v4853 = vunpack.c.h.b16 %v1705
        %v4854 = vunpack.c.l.b16 %v1706
        %v4855 = vunpack.c.h.b16 %v1706
        %v4856 = vunpack.c.l.b16 %v1707
        %v4857 = vunpack.c.h.b16 %v1707
        %v4858 = vunpack.c.l.b16 %v1708
        %v4859 = vunpack.c.h.b16 %v1708
        %v4860 = vunpack.c.l.b16 %v1709
        %v4861 = vunpack.c.h.b16 %v1709
        %v4862 = vunpack.c.l.b16 %v1710
        %v4863 = vunpack.c.h.b16 %v1710
        %v4864 = vunpack.c.l.b16 %v1711
        %v4865 = vunpack.c.h.b16 %v1711
        %v4866 = vunpack.c.l.b16 %v1712
        %v4867 = vunpack.c.h.b16 %v1712
        %v4868 = vunpack.c.l.b16 %v1713
        %v4869 = vunpack.c.h.b16 %v1713
        %v4870 = vunpack.c.l.b16 %v1714
        %v4871 = vunpack.c.h.b16 %v1714
        %v4872 = vunpack.c.l.b16 %v1715
        %v4873 = vunpack.c.h.b16 %v1715
        %v4874 = vunpack.c.l.b16 %v1716
        %v4875 = vunpack.c.h.b16 %v1716
        %v4876 = vunpack.c.l.b16 %v1717
        %v4877 = vunpack.c.h.b16 %v1717
        %v4878 = vunpack.c.l.b16 %v1718
        %v4879 = vunpack.c.h.b16 %v1718
        %v4880 = vunpack.c.l.b16 %v1719
        %v4881 = vunpack.c.h.b16 %v1719
        %v4882 = vunpack.c.l.b16 %v1720
        %v4883 = vunpack.c.h.b16 %v1720
        %v4884 = vunpack.c.l.b16 %v1721
        %v4885 = vunpack.c.h.b16 %v1721
        %v4886 = vunpack.c.l.b16 %v1722
        %v4887 = vunpack.c.h.b16 %v1722
        %v4888 = vunpack.c.l.b16 %v1723
        %v4889 = vunpack.c.h.b16 %v1723
        %v4890 = vunpack.c.l.b16 %v1724
        %v4891 = vunpack.c.h.b16 %v1724
        %v4892 = vunpack.c.l.b16 %v1725
        %v4893 = vunpack.c.h.b16 %v1725
        %v4894 = vunpack.c.l.b16 %v1726
        %v4895 = vunpack.c.h.b16 %v1726
        %v4896 = vunpack.c.l.b16 %v1727
        %v4897 = vunpack.c.h.b16 %v1727
        %v4898 = vunpack.c.l.b16 %v1728
        %v4899 = vunpack.c.h.b16 %v1728
        %v4900 = vunpack.c.l.b16 %v1729
        %v4901 = vunpack.c.h.b16 %v1729
        %v4902 = vunpack.c.l.b16 %v1730
        %v4903 = vunpack.c.h.b16 %v1730
        %v4904 = vunpack.c.l.b16 %v1731
        %v4905 = vunpack.c.h.b16 %v1731
        %v4906 = vunpack.c.l.b16 %v1732
        %v4907 = vunpack.c.h.b16 %v1732
        %v4908 = vunpack.c.l.b16 %v1733
        %v4909 = vunpack.c.h.b16 %v1733
        %v4910 = vunpack.c.l.b16 %v1734
        %v4911 = vunpack.c.h.b16 %v1734
        %v4912 = vunpack.c.l.b16 %v1735
        %v4913 = vunpack.c.h.b16 %v1735
        %v4914 = vunpack.c.l.b16 %v1736
        %v4915 = vunpack.c.h.b16 %v1736
        %v4916 = vunpack.c.l.b16 %v1737
        %v4917 = vunpack.c.h.b16 %v1737
        %v4918 = vunpack.c.l.b16 %v1738
        %v4919 = vunpack.c.h.b16 %v1738
        %v4920 = vunpack.c.l.b16 %v1739
        %v4921 = vunpack.c.h.b16 %v1739
        %v4922 = vunpack.c.l.b16 %v1740
        %v4923 = vunpack.c.h.b16 %v1740
        %v4924 = vunpack.c.l.b16 %v1741
        %v4925 = vunpack.c.h.b16 %v1741
        %v4926 = vunpack.c.l.b16 %v1742
        %v4927 = vunpack.c.h.b16 %v1742
        %v4928 = vunpack.c.l.b16 %v1743
        %v4929 = vunpack.c.h.b16 %v1743
        %v4930 = vunpack.c.l.b16 %v1744
        %v4931 = vunpack.c.h.b16 %v1744
        %v4932 = vunpack.c.l.b16 %v1745
        %v4933 = vunpack.c.h.b16 %v1745
        %v4934 = vunpack.c.l.b16 %v1746
        %v4935 = vunpack.c.h.b16 %v1746
        %v4936 = vunpack.c.l.b16 %v1747
        %v4937 = vunpack.c.h.b16 %v1747
        %v4938 = vunpack.c.l.b16 %v1748
        %v4939 = vunpack.c.h.b16 %v1748
        %v4940 = vunpack.c.l.b16 %v1749
        %v4941 = vunpack.c.h.b16 %v1749
        %v4942 = vunpack.c.l.b16 %v1750
        %v4943 = vunpack.c.h.b16 %v1750
        %v4944 = vunpack.c.l.b16 %v1751
        %v4945 = vunpack.c.h.b16 %v1751
        %v4946 = vunpack.c.l.b16 %v1752
        %v4947 = vunpack.c.h.b16 %v1752
        %v4948 = vunpack.c.l.b16 %v1753
        %v4949 = vunpack.c.h.b16 %v1753
        %v4950 = vunpack.c.l.b16 %v1754
        %v4951 = vunpack.c.h.b16 %v1754
        %v4952 = vunpack.c.l.b16 %v1755
        %v4953 = vunpack.c.h.b16 %v1755
        %v4954 = vunpack.c.l.b16 %v1756
        %v4955 = vunpack.c.h.b16 %v1756
        %v4956 = vunpack.c.l.b16 %v1757
        %v4957 = vunpack.c.h.b16 %v1757
        %v4958 = vunpack.c.l.b16 %v1758
        %v4959 = vunpack.c.h.b16 %v1758
        %v4960 = vunpack.c.l.b16 %v1759
        %v4961 = vunpack.c.h.b16 %v1759
        %v4962 = vunpack.c.l.b16 %v1760
        %v4963 = vunpack.c.h.b16 %v1760
        %v4964 = vunpack.c.l.b16 %v1761
        %v4965 = vunpack.c.h.b16 %v1761
        %v4966 = vunpack.c.l.b16 %v1762
        %v4967 = vunpack.c.h.b16 %v1762
        %v4968 = vunpack.c.l.b16 %v1763
        %v4969 = vunpack.c.h.b16 %v1763
        %v4970 = vunpack.c.l.b16 %v1764
        %v4971 = vunpack.c.h.b16 %v1764
        %v4972 = vunpack.c.l.b16 %v1765
        %v4973 = vunpack.c.h.b16 %v1765
        %v4974 = vunpack.c.l.b16 %v1766
        %v4975 = vunpack.c.h.b16 %v1766
        %v4976 = vunpack.c.l.b16 %v1767
        %v4977 = vunpack.c.h.b16 %v1767
        %v4978 = vunpack.c.l.b16 %v1768
        %v4979 = vunpack.c.h.b16 %v1768
        %v4980 = vunpack.c.l.b16 %v1769
        %v4981 = vunpack.c.h.b16 %v1769
        %v4982 = vunpack.c.l.b16 %v1770
        %v4983 = vunpack.c.h.b16 %v1770
        %v4984 = vunpack.c.l.b16 %v1771
        %v4985 = vunpack.c.h.b16 %v1771
        %v4986 = vunpack.c.l.b16 %v1772
        %v4987 = vunpack.c.h.b16 %v1772
        %v4988 = vunpack.c.l.b16 %v1773
        %v4989 = vunpack.c.h.b16 %v1773
        %v4990 = vunpack.c.l.b16 %v1774
        %v4991 = vunpack.c.h.b16 %v1774
        %v4992 = vunpack.c.l.b16 %v1775
        %v4993 = vunpack.c.h.b16 %v1775
        %v4994 = vunpack.c.l.b16 %v1776
        %v4995 = vunpack.c.h.b16 %v1776
        %v4996 = vunpack.c.l.b16 %v1777
        %v4997 = vunpack.c.h.b16 %v1777
        %v4998 = vunpack.c.l.b16 %v1778
        %v4999 = vunpack.c.h.b16 %v1778
        %v5000 = vunpack.c.l.b16 %v1779
        %v5001 = vunpack.c.h.b16 %v1779
        %v5002 = vunpack.c.l.b16 %v1780
        %v5003 = vunpack.c.h.b16 %v1780
        %v5004 = vunpack.c.l.b16 %v1781
        %v5005 = vunpack.c.h.b16 %v1781
        %v5006 = vunpack.c.l.b16 %v1782
        %v5007 = vunpack.c.h.b16 %v1782
        %v5008 = vunpack.c.l.b16 %v1783
        %v5009 = vunpack.c.h.b16 %v1783
        %v5010 = vunpack.c.l.b16 %v1784
        %v5011 = vunpack.c.h.b16 %v1784
        %v5012 = vunpack.c.l.b16 %v1785
        %v5013 = vunpack.c.h.b16 %v1785
        %v5014 = vunpack.c.l.b16 %v1786
        %v5015 = vunpack.c.h.b16 %v1786
        %v5016 = vunpack.c.l.b16 %v1787
        %v5017 = vunpack.c.h.b16 %v1787
        %v5018 = vunpack.c.l.b16 %v1788
        %v5019 = vunpack.c.h.b16 %v1788
        %v5020 = vunpack.c.l.b16 %v1789
        %v5021 = vunpack.c.h.b16 %v1789
        %v5022 = vunpack.c.l.b16 %v1790
        %v5023 = vunpack.c.h.b16 %v1790
        %v5024 = vunpack.c.l.b16 %v1791
        %v5025 = vunpack.c.h.b16 %v1791
        %v5026 = vunpack.c.l.b16 %v1792
        %v5027 = vunpack.c.h.b16 %v1792
        %v5028 = vunpack.c.l.b16 %v1793
        %v5029 = vunpack.c.h.b16 %v1793
        %v5030 = vunpack.c.l.b16 %v1794
        %v5031 = vunpack.c.h.b16 %v1794
        %v5032 = vunpack.c.l.b16 %v1795
        %v5033 = vunpack.c.h.b16 %v1795
        %v5034 = vunpack.c.l.b16 %v1796
        %v5035 = vunpack.c.h.b16 %v1796
        %v5036 = vunpack.c.l.b16 %v1797
        %v5037 = vunpack.c.h.b16 %v1797
        %v5038 = vunpack.c.l.b16 %v1798
        %v5039 = vunpack.c.h.b16 %v1798
        %v5040 = vunpack.c.l.b16 %v1799
        %v5041 = vunpack.c.h.b16 %v1799
        %v5042 = vunpack.c.l.b16 %v1800
        %v5043 = vunpack.c.h.b16 %v1800
        %v5044 = vunpack.c.l.b16 %v1801
        %v5045 = vunpack.c.h.b16 %v1801
        %v5046 = vunpack.c.l.b16 %v1802
        %v5047 = vunpack.c.h.b16 %v1802
        %v5048 = vunpack.c.l.b16 %v1803
        %v5049 = vunpack.c.h.b16 %v1803
        %v5050 = vunpack.c.l.b16 %v1804
        %v5051 = vunpack.c.h.b16 %v1804
        %v5052 = vunpack.c.l.b16 %v1805
        %v5053 = vunpack.c.h.b16 %v1805
        %v5054 = vunpack.c.l.b16 %v1806
        %v5055 = vunpack.c.h.b16 %v1806
        %v5056 = vunpack.c.l.b16 %v1807
        %v5057 = vunpack.c.h.b16 %v1807
        %v5058 = vunpack.c.l.b16 %v1808
        %v5059 = vunpack.c.h.b16 %v1808
        %v5060 = vunpack.c.l.b16 %v1809
        %v5061 = vunpack.c.h.b16 %v1809
        %v5062 = vunpack.c.l.b16 %v1810
        %v5063 = vunpack.c.h.b16 %v1810
        %v5064 = vunpack.c.l.b16 %v1811
        %v5065 = vunpack.c.h.b16 %v1811
        %v5066 = vunpack.c.l.b16 %v1812
        %v5067 = vunpack.c.h.b16 %v1812
        %v5068 = vunpack.c.l.b16 %v1813
        %v5069 = vunpack.c.h.b16 %v1813
        %v5070 = vunpack.c.l.b16 %v1814
        %v5071 = vunpack.c.h.b16 %v1814
        %v5072 = vunpack.c.l.b16 %v1815
        %v5073 = vunpack.c.h.b16 %v1815
        %v5074 = vunpack.c.l.b16 %v1816
        %v5075 = vunpack.c.h.b16 %v1816
        %v5076 = vunpack.c.l.b16 %v1817
        %v5077 = vunpack.c.h.b16 %v1817
        %v5078 = vunpack.c.l.b16 %v1818
        %v5079 = vunpack.c.h.b16 %v1818
        %v5080 = vunpack.c.l.b16 %v1819
        %v5081 = vunpack.c.h.b16 %v1819
        %v5082 = vunpack.c.l.b16 %v1820
        %v5083 = vunpack.c.h.b16 %v1820
        %v5084 = vunpack.c.l.b16 %v1821
        %v5085 = vunpack.c.h.b16 %v1821
        %v5086 = vunpack.c.l.b16 %v1822
        %v5087 = vunpack.c.h.b16 %v1822
        %v5088 = vunpack.c.l.b16 %v1823
        %v5089 = vunpack.c.h.b16 %v1823
        %v5090 = vunpack.c.l.b16 %v1824
        %v5091 = vunpack.c.h.b16 %v1824
        %v5092 = vunpack.c.l.b16 %v1825
        %v5093 = vunpack.c.h.b16 %v1825
        %v5094 = vunpack.c.l.b16 %v1826
        %v5095 = vunpack.c.h.b16 %v1826
        %v5096 = vunpack.c.l.b16 %v1827
        %v5097 = vunpack.c.h.b16 %v1827
        %v5098 = vunpack.c.l.b16 %v1828
        %v5099 = vunpack.c.h.b16 %v1828
        %v5100 = vunpack.c.l.b16 %v1829
        %v5101 = vunpack.c.h.b16 %v1829
        %v5102 = vunpack.c.l.b16 %v1830
        %v5103 = vunpack.c.h.b16 %v1830
        %v5104 = vunpack.c.l.b16 %v1831
        %v5105 = vunpack.c.h.b16 %v1831
        %v5106 = vunpack.c.l.b16 %v1832
        %v5107 = vunpack.c.h.b16 %v1832
        %v5108 = vunpack.c.l.b16 %v1833
        %v5109 = vunpack.c.h.b16 %v1833
        %v5110 = vunpack.c.l.b16 %v1834
        %v5111 = vunpack.c.h.b16 %v1834
        %v5112 = vunpack.c.l.b16 %v1835
        %v5113 = vunpack.c.h.b16 %v1835
        %v5114 = vunpack.c.l.b16 %v1836
        %v5115 = vunpack.c.h.b16 %v1836
        %v5116 = vunpack.c.l.b16 %v1837
        %v5117 = vunpack.c.h.b16 %v1837
        %v5118 = vunpack.c.l.b16 %v1838
        %v5119 = vunpack.c.h.b16 %v1838
        %v5120 = vunpack.c.l.b16 %v1839
        %v5121 = vunpack.c.h.b16 %v1839
        %v5122 = vunpack.c.l.b16 %v1840
        %v5123 = vunpack.c.h.b16 %v1840
        %v5124 = vunpack.c.l.b16 %v1841
        %v5125 = vunpack.c.h.b16 %v1841
        %v5126 = vunpack.c.l.b16 %v1842
        %v5127 = vunpack.c.h.b16 %v1842
        %v5128 = vunpack.c.l.b16 %v1843
        %v5129 = vunpack.c.h.b16 %v1843
        %v5130 = vunpack.c.l.b16 %v1844
        %v5131 = vunpack.c.h.b16 %v1844
        %v5132 = vunpack.c.l.b16 %v1845
        %v5133 = vunpack.c.h.b16 %v1845
        %v5134 = vunpack.c.l.b16 %v1846
        %v5135 = vunpack.c.h.b16 %v1846
        %v5136 = vunpack.c.l.b16 %v1847
        %v5137 = vunpack.c.h.b16 %v1847
        %v5138 = vunpack.c.l.b16 %v1848
        %v5139 = vunpack.c.h.b16 %v1848
        %v5140 = vunpack.c.l.b16 %v1849
        %v5141 = vunpack.c.h.b16 %v1849
        %v5142 = vunpack.c.l.b16 %v1850
        %v5143 = vunpack.c.h.b16 %v1850
        %v5144 = vunpack.c.l.b16 %v1851
        %v5145 = vunpack.c.h.b16 %v1851
        %v5146 = vunpack.c.l.b16 %v1852
        %v5147 = vunpack.c.h.b16 %v1852
        %v5148 = vunpack.c.l.b16 %v1853
        %v5149 = vunpack.c.h.b16 %v1853
        %v5150 = vunpack.c.l.b16 %v1854
        %v5151 = vunpack.c.h.b16 %v1854
        %v5152 = vunpack.c.l.b16 %v1855
        %v5153 = vunpack.c.h.b16 %v1855
        %v5154 = vunpack.c.l.b16 %v1856
        %v5155 = vunpack.c.h.b16 %v1856
        %v5156 = vunpack.c.l.b16 %v1857
        %v5157 = vunpack.c.h.b16 %v1857
        %v5158 = vunpack.c.l.b16 %v1858
        %v5159 = vunpack.c.h.b16 %v1858
        %v5160 = vunpack.c.l.b16 %v1859
        %v5161 = vunpack.c.h.b16 %v1859
        %v5162 = vunpack.c.l.b16 %v1860
        %v5163 = vunpack.c.h.b16 %v1860
        %v5164 = vunpack.c.l.b16 %v1861
        %v5165 = vunpack.c.h.b16 %v1861
        %v5166 = vunpack.c.l.b16 %v1862
        %v5167 = vunpack.c.h.b16 %v1862
        %v5168 = vunpack.c.l.b16 %v1863
        %v5169 = vunpack.c.h.b16 %v1863
        %v5170 = vunpack.c.l.b16 %v1864
        %v5171 = vunpack.c.h.b16 %v1864
        %v5172 = vunpack.c.l.b16 %v1865
        %v5173 = vunpack.c.h.b16 %v1865
        %v5174 = vunpack.c.l.b16 %v1866
        %v5175 = vunpack.c.h.b16 %v1866
        %v5176 = vunpack.c.l.b16 %v1867
        %v5177 = vunpack.c.h.b16 %v1867
        %v5178 = vunpack.c.l.b16 %v1868
        %v5179 = vunpack.c.h.b16 %v1868
        %v5180 = vunpack.c.l.b16 %v1869
        %v5181 = vunpack.c.h.b16 %v1869
        %v5182 = vpack.c.b16 %v2982, %v2974
        %v5183 = vpack.c.b16 %v2983, %v2975
        %v5184 = vpack.c.b16 %v2984, %v2976
        %v5185 = vpack.c.b16 %v2985, %v2977
        %v5186 = vpack.c.b16 %v2986, %v2978
        %v5187 = vpack.c.b16 %v2987, %v2979
        %v5188 = vpack.c.b16 %v2988, %v2980
        %v5189 = vpack.c.b16 %v2989, %v2981
        %v5190 = vpack.c.b16 %v2998, %v2990
        %v5191 = vpack.c.b16 %v2999, %v2991
        %v5192 = vpack.c.b16 %v3000, %v2992
        %v5193 = vpack.c.b16 %v3001, %v2993
        %v5194 = vpack.c.b16 %v3002, %v2994
        %v5195 = vpack.c.b16 %v3003, %v2995
        %v5196 = vpack.c.b16 %v3004, %v2996
        %v5197 = vpack.c.b16 %v3005, %v2997
        %v5198 = vpack.c.b16 %v3014, %v3006
        %v5199 = vpack.c.b16 %v3015, %v3007
        %v5200 = vpack.c.b16 %v3016, %v3008
        %v5201 = vpack.c.b16 %v3017, %v3009
        %v5202 = vpack.c.b16 %v3018, %v3010
        %v5203 = vpack.c.b16 %v3019, %v3011
        %v5204 = vpack.c.b16 %v3020, %v3012
        %v5205 = vpack.c.b16 %v3021, %v3013
        %v5206 = vpack.c.b16 %v3030, %v3022
        %v5207 = vpack.c.b16 %v3031, %v3023
        %v5208 = vpack.c.b16 %v3032, %v3024
        %v5209 = vpack.c.b16 %v3033, %v3025
        %v5210 = vpack.c.b16 %v3034, %v3026
        %v5211 = vpack.c.b16 %v3035, %v3027
        %v5212 = vpack.c.b16 %v3036, %v3028
        %v5213 = vpack.c.b16 %v3037, %v3029
        %v5214 = vpack.c.b16 %v3046, %v3038
        %v5215 = vpack.c.b16 %v3047, %v3039
        %v5216 = vpack.c.b16 %v3048, %v3040
        %v5217 = vpack.c.b16 %v3049, %v3041
        %v5218 = vpack.c.b16 %v3050, %v3042
        %v5219 = vpack.c.b16 %v3051, %v3043
        %v5220 = vpack.c.b16 %v3052, %v3044
        %v5221 = vpack.c.b16 %v3053, %v3045
        %v5222 = vpack.c.b16 %v3062, %v3054
        %v5223 = vpack.c.b16 %v3063, %v3055
        %v5224 = vpack.c.b16 %v3064, %v3056
        %v5225 = vpack.c.b16 %v3065, %v3057
        %v5226 = vpack.c.b16 %v3066, %v3058
        %v5227 = vpack.c.b16 %v3067, %v3059
        %v5228 = vpack.c.b16 %v3068, %v3060
        %v5229 = vpack.c.b16 %v3069, %v3061
        %v5230 = vpack.c.b16 %v3078, %v3070
        %v5231 = vpack.c.b16 %v3079, %v3071
        %v5232 = vpack.c.b16 %v3080, %v3072
        %v5233 = vpack.c.b16 %v3081, %v3073
        %v5234 = vpack.c.b16 %v3082, %v3074
        %v5235 = vpack.c.b16 %v3083, %v3075
        %v5236 = vpack.c.b16 %v3084, %v3076
        %v5237 = vpack.c.b16 %v3085, %v3077
        %v5238 = vpack.c.b16 %v3094, %v3086
        %v5239 = vpack.c.b16 %v3095, %v3087
        %v5240 = vpack.c.b16 %v3096, %v3088
        %v5241 = vpack.c.b16 %v3097, %v3089
        %v5242 = vpack.c.b16 %v3098, %v3090
        %v5243 = vpack.c.b16 %v3099, %v3091
        %v5244 = vpack.c.b16 %v3100, %v3092
        %v5245 = vpack.c.b16 %v3101, %v3093
        %v5246 = vpack.c.b16 %v3110, %v3102
        %v5247 = vpack.c.b16 %v3111, %v3103
        %v5248 = vpack.c.b16 %v3112, %v3104
        %v5249 = vpack.c.b16 %v3113, %v3105
        %v5250 = vpack.c.b16 %v3114, %v3106
        %v5251 = vpack.c.b16 %v3115, %v3107
        %v5252 = vpack.c.b16 %v3116, %v3108
        %v5253 = vpack.c.b16 %v3117, %v3109
        %v5254 = vpack.c.b16 %v3126, %v3118
        %v5255 = vpack.c.b16 %v3127, %v3119
        %v5256 = vpack.c.b16 %v3128, %v3120
        %v5257 = vpack.c.b16 %v3129, %v3121
        %v5258 = vpack.c.b16 %v3130, %v3122
        %v5259 = vpack.c.b16 %v3131, %v3123
        %v5260 = vpack.c.b16 %v3132, %v3124
        %v5261 = vpack.c.b16 %v3133, %v3125
        %v5262 = vpack.c.b16 %v3142, %v3134
        %v5263 = vpack.c.b16 %v3143, %v3135
        %v5264 = vpack.c.b16 %v3144, %v3136
        %v5265 = vpack.c.b16 %v3145, %v3137
        %v5266 = vpack.c.b16 %v3146, %v3138
        %v5267 = vpack.c.b16 %v3147, %v3139
        %v5268 = vpack.c.b16 %v3148, %v3140
        %v5269 = vpack.c.b16 %v3149, %v3141
        %v5270 = vpack.c.b16 %v3158, %v3150
        %v5271 = vpack.c.b16 %v3159, %v3151
        %v5272 = vpack.c.b16 %v3160, %v3152
        %v5273 = vpack.c.b16 %v3161, %v3153
        %v5274 = vpack.c.b16 %v3162, %v3154
        %v5275 = vpack.c.b16 %v3163, %v3155
        %v5276 = vpack.c.b16 %v3164, %v3156
        %v5277 = vpack.c.b16 %v3165, %v3157
        %v5278 = vpack.c.b16 %v3174, %v3166
        %v5279 = vpack.c.b16 %v3175, %v3167
        %v5280 = vpack.c.b16 %v3176, %v3168
        %v5281 = vpack.c.b16 %v3177, %v3169
        %v5282 = vpack.c.b16 %v3178, %v3170
        %v5283 = vpack.c.b16 %v3179, %v3171
        %v5284 = vpack.c.b16 %v3180, %v3172
        %v5285 = vpack.c.b16 %v3181, %v3173
        %v5286 = vpack.c.b16 %v3190, %v3182
        %v5287 = vpack.c.b16 %v3191, %v3183
        %v5288 = vpack.c.b16 %v3192, %v3184
        %v5289 = vpack.c.b16 %v3193, %v3185
        %v5290 = vpack.c.b16 %v3194, %v3186
        %v5291 = vpack.c.b16 %v3195, %v3187
        %v5292 = vpack.c.b16 %v3196, %v3188
        %v5293 = vpack.c.b16 %v3197, %v3189
        %v5294 = vpack.c.b16 %v3206, %v3198
        %v5295 = vpack.c.b16 %v3207, %v3199
        %v5296 = vpack.c.b16 %v3208, %v3200
        %v5297 = vpack.c.b16 %v3209, %v3201
        %v5298 = vpack.c.b16 %v3210, %v3202
        %v5299 = vpack.c.b16 %v3211, %v3203
        %v5300 = vpack.c.b16 %v3212, %v3204
        %v5301 = vpack.c.b16 %v3213, %v3205
        %v5302 = vpack.c.b16 %v3222, %v3214
        %v5303 = vpack.c.b16 %v3223, %v3215
        %v5304 = vpack.c.b16 %v3224, %v3216
        %v5305 = vpack.c.b16 %v3225, %v3217
        %v5306 = vpack.c.b16 %v3226, %v3218
        %v5307 = vpack.c.b16 %v3227, %v3219
        %v5308 = vpack.c.b16 %v3228, %v3220
        %v5309 = vpack.c.b16 %v3229, %v3221
        %v5310 = vpack.c.b16 %v3238, %v3230
        %v5311 = vpack.c.b16 %v3239, %v3231
        %v5312 = vpack.c.b16 %v3240, %v3232
        %v5313 = vpack.c.b16 %v3241, %v3233
        %v5314 = vpack.c.b16 %v3242, %v3234
        %v5315 = vpack.c.b16 %v3243, %v3235
        %v5316 = vpack.c.b16 %v3244, %v3236
        %v5317 = vpack.c.b16 %v3245, %v3237
        %v5318 = vpack.c.b16 %v3254, %v3246
        %v5319 = vpack.c.b16 %v3255, %v3247
        %v5320 = vpack.c.b16 %v3256, %v3248
        %v5321 = vpack.c.b16 %v3257, %v3249
        %v5322 = vpack.c.b16 %v3258, %v3250
        %v5323 = vpack.c.b16 %v3259, %v3251
        %v5324 = vpack.c.b16 %v3260, %v3252
        %v5325 = vpack.c.b16 %v3261, %v3253
        %v5326 = vpack.c.b16 %v3270, %v3262
        %v5327 = vpack.c.b16 %v3271, %v3263
        %v5328 = vpack.c.b16 %v3272, %v3264
        %v5329 = vpack.c.b16 %v3273, %v3265
        %v5330 = vpack.c.b16 %v3274, %v3266
        %v5331 = vpack.c.b16 %v3275, %v3267
        %v5332 = vpack.c.b16 %v3276, %v3268
        %v5333 = vpack.c.b16 %v3277, %v3269
        %v5334 = vpack.c.b16 %v3286, %v3278
        %v5335 = vpack.c.b16 %v3287, %v3279
        %v5336 = vpack.c.b16 %v3288, %v3280
        %v5337 = vpack.c.b16 %v3289, %v3281
        %v5338 = vpack.c.b16 %v3290, %v3282
        %v5339 = vpack.c.b16 %v3291, %v3283
        %v5340 = vpack.c.b16 %v3292, %v3284
        %v5341 = vpack.c.b16 %v3293, %v3285
        %v5342 = vpack.c.b16 %v3302, %v3294
        %v5343 = vpack.c.b16 %v3303, %v3295
        %v5344 = vpack.c.b16 %v3304, %v3296
        %v5345 = vpack.c.b16 %v3305, %v3297
        %v5346 = vpack.c.b16 %v3306, %v3298
        %v5347 = vpack.c.b16 %v3307, %v3299
        %v5348 = vpack.c.b16 %v3308, %v3300
        %v5349 = vpack.c.b16 %v3309, %v3301
        %v5350 = vpack.c.b16 %v3318, %v3310
        %v5351 = vpack.c.b16 %v3319, %v3311
        %v5352 = vpack.c.b16 %v3320, %v3312
        %v5353 = vpack.c.b16 %v3321, %v3313
        %v5354 = vpack.c.b16 %v3322, %v3314
        %v5355 = vpack.c.b16 %v3323, %v3315
        %v5356 = vpack.c.b16 %v3324, %v3316
        %v5357 = vpack.c.b16 %v3325, %v3317
        %v5358 = vpack.c.b16 %v3334, %v3326
        %v5359 = vpack.c.b16 %v3335, %v3327
        %v5360 = vpack.c.b16 %v3336, %v3328
        %v5361 = vpack.c.b16 %v3337, %v3329
        %v5362 = vpack.c.b16 %v3338, %v3330
        %v5363 = vpack.c.b16 %v3339, %v3331
        %v5364 = vpack.c.b16 %v3340, %v3332
        %v5365 = vpack.c.b16 %v3341, %v3333
        %v5366 = vpack.c.b16 %v3350, %v3342
        %v5367 = vpack.c.b16 %v3351, %v3343
        %v5368 = vpack.c.b16 %v3352, %v3344
        %v5369 = vpack.c.b16 %v3353, %v3345
        %v5370 = vpack.c.b16 %v3354, %v3346
        %v5371 = vpack.c.b16 %v3355, %v3347
        %v5372 = vpack.c.b16 %v3356, %v3348
        %v5373 = vpack.c.b16 %v3357, %v3349
        %v5374 = vpack.c.b16 %v3366, %v3358
        %v5375 = vpack.c.b16 %v3367, %v3359
        %v5376 = vpack.c.b16 %v3368, %v3360
        %v5377 = vpack.c.b16 %v3369, %v3361
        %v5378 = vpack.c.b16 %v3370, %v3362
        %v5379 = vpack.c.b16 %v3371, %v3363
        %v5380 = vpack.c.b16 %v3372, %v3364
        %v5381 = vpack.c.b16 %v3373, %v3365
        %v5382 = vpack.c.b16 %v3382, %v3374
        %v5383 = vpack.c.b16 %v3383, %v3375
        %v5384 = vpack.c.b16 %v3384, %v3376
        %v5385 = vpack.c.b16 %v3385, %v3377
        %v5386 = vpack.c.b16 %v3386, %v3378
        %v5387 = vpack.c.b16 %v3387, %v3379
        %v5388 = vpack.c.b16 %v3388, %v3380
        %v5389 = vpack.c.b16 %v3389, %v3381
        %v5390 = vpack.c.b16 %v3398, %v3390
        %v5391 = vpack.c.b16 %v3399, %v3391
        %v5392 = vpack.c.b16 %v3400, %v3392
        %v5393 = vpack.c.b16 %v3401, %v3393
        %v5394 = vpack.c.b16 %v3402, %v3394
        %v5395 = vpack.c.b16 %v3403, %v3395
        %v5396 = vpack.c.b16 %v3404, %v3396
        %v5397 = vpack.c.b16 %v3405, %v3397
        %v5398 = vpack.c.b16 %v3414, %v3406
        %v5399 = vpack.c.b16 %v3415, %v3407
        %v5400 = vpack.c.b16 %v3416, %v3408
        %v5401 = vpack.c.b16 %v3417, %v3409
        %v5402 = vpack.c.b16 %v3418, %v3410
        %v5403 = vpack.c.b16 %v3419, %v3411
        %v5404 = vpack.c.b16 %v3420, %v3412
        %v5405 = vpack.c.b16 %v3421, %v3413
        %v5406 = vpack.c.b16 %v3430, %v3422
        %v5407 = vpack.c.b16 %v3431, %v3423
        %v5408 = vpack.c.b16 %v3432, %v3424
        %v5409 = vpack.c.b16 %v3433, %v3425
        %v5410 = vpack.c.b16 %v3434, %v3426
        %v5411 = vpack.c.b16 %v3435, %v3427
        %v5412 = vpack.c.b16 %v3436, %v3428
        %v5413 = vpack.c.b16 %v3437, %v3429
        %v5414 = vpack.c.b16 %v3446, %v3438
        %v5415 = vpack.c.b16 %v3447, %v3439
        %v5416 = vpack.c.b16 %v3448, %v3440
        %v5417 = vpack.c.b16 %v3449, %v3441
        %v5418 = vpack.c.b16 %v3450, %v3442
        %v5419 = vpack.c.b16 %v3451, %v3443
        %v5420 = vpack.c.b16 %v3452, %v3444
        %v5421 = vpack.c.b16 %v3453, %v3445
        %v5422 = vpack.c.b16 %v3462, %v3454
        %v5423 = vpack.c.b16 %v3463, %v3455
        %v5424 = vpack.c.b16 %v3464, %v3456
        %v5425 = vpack.c.b16 %v3465, %v3457
        %v5426 = vpack.c.b16 %v3466, %v3458
        %v5427 = vpack.c.b16 %v3467, %v3459
        %v5428 = vpack.c.b16 %v3468, %v3460
        %v5429 = vpack.c.b16 %v3469, %v3461
        %v5430 = vpack.c.b16 %v3478, %v3470
        %v5431 = vpack.c.b16 %v3479, %v3471
        %v5432 = vpack.c.b16 %v3480, %v3472
        %v5433 = vpack.c.b16 %v3481, %v3473
        %v5434 = vpack.c.b16 %v3482, %v3474
        %v5435 = vpack.c.b16 %v3483, %v3475
        %v5436 = vpack.c.b16 %v3484, %v3476
        %v5437 = vpack.c.b16 %v3485, %v3477
        %v5438 = vpack.c.b16 %v3494, %v3486
        %v5439 = vpack.c.b16 %v3495, %v3487
        %v5440 = vpack.c.b16 %v3496, %v3488
        %v5441 = vpack.c.b16 %v3497, %v3489
        %v5442 = vpack.c.b16 %v3498, %v3490
        %v5443 = vpack.c.b16 %v3499, %v3491
        %v5444 = vpack.c.b16 %v3500, %v3492
        %v5445 = vpack.c.b16 %v3501, %v3493
        %v5446 = vpack.c.b16 %v3510, %v3502
        %v5447 = vpack.c.b16 %v3511, %v3503
        %v5448 = vpack.c.b16 %v3512, %v3504
        %v5449 = vpack.c.b16 %v3513, %v3505
        %v5450 = vpack.c.b16 %v3514, %v3506
        %v5451 = vpack.c.b16 %v3515, %v3507
        %v5452 = vpack.c.b16 %v3516, %v3508
        %v5453 = vpack.c.b16 %v3517, %v3509
        %v5454 = vpack.c.b16 %v3526, %v3518
        %v5455 = vpack.c.b16 %v3527, %v3519
        %v5456 = vpack.c.b16 %v3528, %v3520
        %v5457 = vpack.c.b16 %v3529, %v3521
        %v5458 = vpack.c.b16 %v3530, %v3522
        %v5459 = vpack.c.b16 %v3531, %v3523
        %v5460 = vpack.c.b16 %v3532, %v3524
        %v5461 = vpack.c.b16 %v3533, %v3525
        %v5462 = vpack.c.b16 %v3542, %v3534
        %v5463 = vpack.c.b16 %v3543, %v3535
        %v5464 = vpack.c.b16 %v3544, %v3536
        %v5465 = vpack.c.b16 %v3545, %v3537
        %v5466 = vpack.c.b16 %v3546, %v3538
        %v5467 = vpack.c.b16 %v3547, %v3539
        %v5468 = vpack.c.b16 %v3548, %v3540
        %v5469 = vpack.c.b16 %v3549, %v3541
        %v5470 = vpack.c.b16 %v3558, %v3550
        %v5471 = vpack.c.b16 %v3559, %v3551
        %v5472 = vpack.c.b16 %v3560, %v3552
        %v5473 = vpack.c.b16 %v3561, %v3553
        %v5474 = vpack.c.b16 %v3562, %v3554
        %v5475 = vpack.c.b16 %v3563, %v3555
        %v5476 = vpack.c.b16 %v3564, %v3556
        %v5477 = vpack.c.b16 %v3565, %v3557
        %v5478 = vpack.c.b16 %v3574, %v3566
        %v5479 = vpack.c.b16 %v3575, %v3567
        %v5480 = vpack.c.b16 %v3576, %v3568
        %v5481 = vpack.c.b16 %v3577, %v3569
        %v5482 = vpack.c.b16 %v3578, %v3570
        %v5483 = vpack.c.b16 %v3579, %v3571
        %v5484 = vpack.c.b16 %v3580, %v3572
        %v5485 = vpack.c.b16 %v3581, %v3573
        %v5486 = vpack.c.b16 %v3590, %v3582
        %v5487 = vpack.c.b16 %v3591, %v3583
        %v5488 = vpack.c.b16 %v3592, %v3584
        %v5489 = vpack.c.b16 %v3593, %v3585
        %v5490 = vpack.c.b16 %v3594, %v3586
        %v5491 = vpack.c.b16 %v3595, %v3587
        %v5492 = vpack.c.b16 %v3596, %v3588
        %v5493 = vpack.c.b16 %v3597, %v3589
        %v5494 = vpack.c.b16 %v3606, %v3598
        %v5495 = vpack.c.b16 %v3607, %v3599
        %v5496 = vpack.c.b16 %v3608, %v3600
        %v5497 = vpack.c.b16 %v3609, %v3601
        %v5498 = vpack.c.b16 %v3610, %v3602
        %v5499 = vpack.c.b16 %v3611, %v3603
        %v5500 = vpack.c.b16 %v3612, %v3604
        %v5501 = vpack.c.b16 %v3613, %v3605
        %v5502 = vpack.c.b16 %v3622, %v3614
        %v5503 = vpack.c.b16 %v3623, %v3615
        %v5504 = vpack.c.b16 %v3624, %v3616
        %v5505 = vpack.c.b16 %v3625, %v3617
        %v5506 = vpack.c.b16 %v3626, %v3618
        %v5507 = vpack.c.b16 %v3627, %v3619
        %v5508 = vpack.c.b16 %v3628, %v3620
        %v5509 = vpack.c.b16 %v3629, %v3621
        %v5510 = vpack.c.b16 %v3638, %v3630
        %v5511 = vpack.c.b16 %v3639, %v3631
        %v5512 = vpack.c.b16 %v3640, %v3632
        %v5513 = vpack.c.b16 %v3641, %v3633
        %v5514 = vpack.c.b16 %v3642, %v3634
        %v5515 = vpack.c.b16 %v3643, %v3635
        %v5516 = vpack.c.b16 %v3644, %v3636
        %v5517 = vpack.c.b16 %v3645, %v3637
        %v5518 = vpack.c.b16 %v3654, %v3646
        %v5519 = vpack.c.b16 %v3655, %v3647
        %v5520 = vpack.c.b16 %v3656, %v3648
        %v5521 = vpack.c.b16 %v3657, %v3649
        %v5522 = vpack.c.b16 %v3658, %v3650
        %v5523 = vpack.c.b16 %v3659, %v3651
        %v5524 = vpack.c.b16 %v3660, %v3652
        %v5525 = vpack.c.b16 %v3661, %v3653
        %v5526 = vpack.c.b16 %v3670, %v3662
        %v5527 = vpack.c.b16 %v3671, %v3663
        %v5528 = vpack.c.b16 %v3672, %v3664
        %v5529 = vpack.c.b16 %v3673, %v3665
        %v5530 = vpack.c.b16 %v3674, %v3666
        %v5531 = vpack.c.b16 %v3675, %v3667
        %v5532 = vpack.c.b16 %v3676, %v3668
        %v5533 = vpack.c.b16 %v3677, %v3669
        %v5534 = vpack.c.b16 %v3686, %v3678
        %v5535 = vpack.c.b16 %v3687, %v3679
        %v5536 = vpack.c.b16 %v3688, %v3680
        %v5537 = vpack.c.b16 %v3689, %v3681
        %v5538 = vpack.c.b16 %v3690, %v3682
        %v5539 = vpack.c.b16 %v3691, %v3683
        %v5540 = vpack.c.b16 %v3692, %v3684
        %v5541 = vpack.c.b16 %v3693, %v3685
        %v5542 = vpack.c.b16 %v3702, %v3694
        %v5543 = vpack.c.b16 %v3703, %v3695
        %v5544 = vpack.c.b16 %v3704, %v3696
        %v5545 = vpack.c.b16 %v3705, %v3697
        %v5546 = vpack.c.b16 %v3706, %v3698
        %v5547 = vpack.c.b16 %v3707, %v3699
        %v5548 = vpack.c.b16 %v3708, %v3700
        %v5549 = vpack.c.b16 %v3709, %v3701
        %v5550 = vpack.c.b16 %v3718, %v3710
        %v5551 = vpack.c.b16 %v3719, %v3711
        %v5552 = vpack.c.b16 %v3720, %v3712
        %v5553 = vpack.c.b16 %v3721, %v3713
        %v5554 = vpack.c.b16 %v3722, %v3714
        %v5555 = vpack.c.b16 %v3723, %v3715
        %v5556 = vpack.c.b16 %v3724, %v3716
        %v5557 = vpack.c.b16 %v3725, %v3717
        %v5558 = vpack.c.b16 %v3734, %v3726
        %v5559 = vpack.c.b16 %v3735, %v3727
        %v5560 = vpack.c.b16 %v3736, %v3728
        %v5561 = vpack.c.b16 %v3737, %v3729
        %v5562 = vpack.c.b16 %v3738, %v3730
        %v5563 = vpack.c.b16 %v3739, %v3731
        %v5564 = vpack.c.b16 %v3740, %v3732
        %v5565 = vpack.c.b16 %v3741, %v3733
        %v5566 = vpack.c.b16 %v3750, %v3742
        %v5567 = vpack.c.b16 %v3751, %v3743
        %v5568 = vpack.c.b16 %v3752, %v3744
        %v5569 = vpack.c.b16 %v3753, %v3745
        %v5570 = vpack.c.b16 %v3754, %v3746
        %v5571 = vpack.c.b16 %v3755, %v3747
        %v5572 = vpack.c.b16 %v3756, %v3748
        %v5573 = vpack.c.b16 %v3757, %v3749
        %v5574 = vpack.c.b16 %v3766, %v3758
        %v5575 = vpack.c.b16 %v3767, %v3759
        %v5576 = vpack.c.b16 %v3768, %v3760
        %v5577 = vpack.c.b16 %v3769, %v3761
        %v5578 = vpack.c.b16 %v3770, %v3762
        %v5579 = vpack.c.b16 %v3771, %v3763
        %v5580 = vpack.c.b16 %v3772, %v3764
        %v5581 = vpack.c.b16 %v3773, %v3765
        %v5582 = vpack.c.b16 %v3782, %v3774
        %v5583 = vpack.c.b16 %v3783, %v3775
        %v5584 = vpack.c.b16 %v3784, %v3776
        %v5585 = vpack.c.b16 %v3785, %v3777
        %v5586 = vpack.c.b16 %v3786, %v3778
        %v5587 = vpack.c.b16 %v3787, %v3779
        %v5588 = vpack.c.b16 %v3788, %v3780
        %v5589 = vpack.c.b16 %v3789, %v3781
        %v5590 = vpack.c.b16 %v3798, %v3790
        %v5591 = vpack.c.b16 %v3799, %v3791
        %v5592 = vpack.c.b16 %v3800, %v3792
        %v5593 = vpack.c.b16 %v3801, %v3793
        %v5594 = vpack.c.b16 %v3802, %v3794
        %v5595 = vpack.c.b16 %v3803, %v3795
        %v5596 = vpack.c.b16 %v3804, %v3796
        %v5597 = vpack.c.b16 %v3805, %v3797
        %v5598 = vpack.c.b16 %v3814, %v3806
        %v5599 = vpack.c.b16 %v3815, %v3807
        %v5600 = vpack.c.b16 %v3816, %v3808
        %v5601 = vpack.c.b16 %v3817, %v3809
        %v5602 = vpack.c.b16 %v3818, %v3810
        %v5603 = vpack.c.b16 %v3819, %v3811
        %v5604 = vpack.c.b16 %v3820, %v3812
        %v5605 = vpack.c.b16 %v3821, %v3813
        %v5606 = vpack.c.b16 %v3830, %v3822
        %v5607 = vpack.c.b16 %v3831, %v3823
        %v5608 = vpack.c.b16 %v3832, %v3824
        %v5609 = vpack.c.b16 %v3833, %v3825
        %v5610 = vpack.c.b16 %v3834, %v3826
        %v5611 = vpack.c.b16 %v3835, %v3827
        %v5612 = vpack.c.b16 %v3836, %v3828
        %v5613 = vpack.c.b16 %v3837, %v3829
        %v5614 = vpack.c.b16 %v3846, %v3838
        %v5615 = vpack.c.b16 %v3847, %v3839
        %v5616 = vpack.c.b16 %v3848, %v3840
        %v5617 = vpack.c.b16 %v3849, %v3841
        %v5618 = vpack.c.b16 %v3850, %v3842
        %v5619 = vpack.c.b16 %v3851, %v3843
        %v5620 = vpack.c.b16 %v3852, %v3844
        %v5621 = vpack.c.b16 %v3853, %v3845
        %v5622 = vpack.c.b16 %v3862, %v3854
        %v5623 = vpack.c.b16 %v3863, %v3855
        %v5624 = vpack.c.b16 %v3864, %v3856
        %v5625 = vpack.c.b16 %v3865, %v3857
        %v5626 = vpack.c.b16 %v3866, %v3858
        %v5627 = vpack.c.b16 %v3867, %v3859
        %v5628 = vpack.c.b16 %v3868, %v3860
        %v5629 = vpack.c.b16 %v3869, %v3861
        %v5630 = vpack.c.b16 %v3878, %v3870
        %v5631 = vpack.c.b16 %v3879, %v3871
        %v5632 = vpack.c.b16 %v3880, %v3872
        %v5633 = vpack.c.b16 %v3881, %v3873
        %v5634 = vpack.c.b16 %v3882, %v3874
        %v5635 = vpack.c.b16 %v3883, %v3875
        %v5636 = vpack.c.b16 %v3884, %v3876
        %v5637 = vpack.c.b16 %v3885, %v3877
        %v5638 = vpack.c.b16 %v3894, %v3886
        %v5639 = vpack.c.b16 %v3895, %v3887
        %v5640 = vpack.c.b16 %v3896, %v3888
        %v5641 = vpack.c.b16 %v3897, %v3889
        %v5642 = vpack.c.b16 %v3898, %v3890
        %v5643 = vpack.c.b16 %v3899, %v3891
        %v5644 = vpack.c.b16 %v3900, %v3892
        %v5645 = vpack.c.b16 %v3901, %v3893
        %v5646 = vpack.c.b16 %v3910, %v3902
        %v5647 = vpack.c.b16 %v3911, %v3903
        %v5648 = vpack.c.b16 %v3912, %v3904
        %v5649 = vpack.c.b16 %v3913, %v3905
        %v5650 = vpack.c.b16 %v3914, %v3906
        %v5651 = vpack.c.b16 %v3915, %v3907
        %v5652 = vpack.c.b16 %v3916, %v3908
        %v5653 = vpack.c.b16 %v3917, %v3909
        %v5654 = vpack.c.b16 %v3926, %v3918
        %v5655 = vpack.c.b16 %v3927, %v3919
        %v5656 = vpack.c.b16 %v3928, %v3920
        %v5657 = vpack.c.b16 %v3929, %v3921
        %v5658 = vpack.c.b16 %v3930, %v3922
        %v5659 = vpack.c.b16 %v3931, %v3923
        %v5660 = vpack.c.b16 %v3932, %v3924
        %v5661 = vpack.c.b16 %v3933, %v3925
        %v5662 = vpack.c.b16 %v3942, %v3934
        %v5663 = vpack.c.b16 %v3943, %v3935
        %v5664 = vpack.c.b16 %v3944, %v3936
        %v5665 = vpack.c.b16 %v3945, %v3937
        %v5666 = vpack.c.b16 %v3946, %v3938
        %v5667 = vpack.c.b16 %v3947, %v3939
        %v5668 = vpack.c.b16 %v3948, %v3940
        %v5669 = vpack.c.b16 %v3949, %v3941
        %v5670 = vpack.c.b16 %v3958, %v3950
        %v5671 = vpack.c.b16 %v3959, %v3951
        %v5672 = vpack.c.b16 %v3960, %v3952
        %v5673 = vpack.c.b16 %v3961, %v3953
        %v5674 = vpack.c.b16 %v3962, %v3954
        %v5675 = vpack.c.b16 %v3963, %v3955
        %v5676 = vpack.c.b16 %v3964, %v3956
        %v5677 = vpack.c.b16 %v3965, %v3957
        %v5678 = vpack.c.b16 %v3974, %v3966
        %v5679 = vpack.c.b16 %v3975, %v3967
        %v5680 = vpack.c.b16 %v3976, %v3968
        %v5681 = vpack.c.b16 %v3977, %v3969
        %v5682 = vpack.c.b16 %v3978, %v3970
        %v5683 = vpack.c.b16 %v3979, %v3971
        %v5684 = vpack.c.b16 %v3980, %v3972
        %v5685 = vpack.c.b16 %v3981, %v3973
        %v5686 = vpack.c.b16 %v3990, %v3982
        %v5687 = vpack.c.b16 %v3991, %v3983
        %v5688 = vpack.c.b16 %v3992, %v3984
        %v5689 = vpack.c.b16 %v3993, %v3985
        %v5690 = vpack.c.b16 %v3994, %v3986
        %v5691 = vpack.c.b16 %v3995, %v3987
        %v5692 = vpack.c.b16 %v3996, %v3988
        %v5693 = vpack.c.b16 %v3997, %v3989
        %v5694 = vpack.c.b16 %v4006, %v3998
        %v5695 = vpack.c.b16 %v4007, %v3999
        %v5696 = vpack.c.b16 %v4008, %v4000
        %v5697 = vpack.c.b16 %v4009, %v4001
        %v5698 = vpack.c.b16 %v4010, %v4002
        %v5699 = vpack.c.b16 %v4011, %v4003
        %v5700 = vpack.c.b16 %v4012, %v4004
        %v5701 = vpack.c.b16 %v4013, %v4005
        %v5702 = vpack.c.b16 %v4022, %v4014
        %v5703 = vpack.c.b16 %v4023, %v4015
        %v5704 = vpack.c.b16 %v4024, %v4016
        %v5705 = vpack.c.b16 %v4025, %v4017
        %v5706 = vpack.c.b16 %v4026, %v4018
        %v5707 = vpack.c.b16 %v4027, %v4019
        %v5708 = vpack.c.b16 %v4028, %v4020
        %v5709 = vpack.c.b16 %v4029, %v4021
        %v5710 = vpack.c.b16 %v4038, %v4030
        %v5711 = vpack.c.b16 %v4039, %v4031
        %v5712 = vpack.c.b16 %v4040, %v4032
        %v5713 = vpack.c.b16 %v4041, %v4033
        %v5714 = vpack.c.b16 %v4042, %v4034
        %v5715 = vpack.c.b16 %v4043, %v4035
        %v5716 = vpack.c.b16 %v4044, %v4036
        %v5717 = vpack.c.b16 %v4045, %v4037
        %v5718 = vpack.c.b16 %v4054, %v4046
        %v5719 = vpack.c.b16 %v4055, %v4047
        %v5720 = vpack.c.b16 %v4056, %v4048
        %v5721 = vpack.c.b16 %v4057, %v4049
        %v5722 = vpack.c.b16 %v4058, %v4050
        %v5723 = vpack.c.b16 %v4059, %v4051
        %v5724 = vpack.c.b16 %v4060, %v4052
        %v5725 = vpack.c.b16 %v4061, %v4053
        %v5726 = vpack.c.b16 %v4070, %v4062
        %v5727 = vpack.c.b16 %v4071, %v4063
        %v5728 = vpack.c.b16 %v4072, %v4064
        %v5729 = vpack.c.b16 %v4073, %v4065
        %v5730 = vpack.c.b16 %v4074, %v4066
        %v5731 = vpack.c.b16 %v4075, %v4067
        %v5732 = vpack.c.b16 %v4076, %v4068
        %v5733 = vpack.c.b16 %v4077, %v4069
        %v5734 = vpack.c.b16 %v4086, %v4078
        %v5735 = vpack.c.b16 %v4087, %v4079
        %v5736 = vpack.c.b16 %v4088, %v4080
        %v5737 = vpack.c.b16 %v4089, %v4081
        %v5738 = vpack.c.b16 %v4090, %v4082
        %v5739 = vpack.c.b16 %v4091, %v4083
        %v5740 = vpack.c.b16 %v4092, %v4084
        %v5741 = vpack.c.b16 %v4093, %v4085
        %v5742 = vpack.c.b16 %v4102, %v4094
        %v5743 = vpack.c.b16 %v4103, %v4095
        %v5744 = vpack.c.b16 %v4104, %v4096
        %v5745 = vpack.c.b16 %v4105, %v4097
        %v5746 = vpack.c.b16 %v4106, %v4098
        %v5747 = vpack.c.b16 %v4107, %v4099
        %v5748 = vpack.c.b16 %v4108, %v4100
        %v5749 = vpack.c.b16 %v4109, %v4101
        %v5750 = vpack.c.b16 %v4118, %v4110
        %v5751 = vpack.c.b16 %v4119, %v4111
        %v5752 = vpack.c.b16 %v4120, %v4112
        %v5753 = vpack.c.b16 %v4121, %v4113
        %v5754 = vpack.c.b16 %v4122, %v4114
        %v5755 = vpack.c.b16 %v4123, %v4115
        %v5756 = vpack.c.b16 %v4124, %v4116
        %v5757 = vpack.c.b16 %v4125, %v4117
        %v5758 = vpack.c.b16 %v4134, %v4126
        %v5759 = vpack.c.b16 %v4135, %v4127
        %v5760 = vpack.c.b16 %v4136, %v4128
        %v5761 = vpack.c.b16 %v4137, %v4129
        %v5762 = vpack.c.b16 %v4138, %v4130
        %v5763 = vpack.c.b16 %v4139, %v4131
        %v5764 = vpack.c.b16 %v4140, %v4132
        %v5765 = vpack.c.b16 %v4141, %v4133
        %v5766 = vpack.c.b16 %v4150, %v4142
        %v5767 = vpack.c.b16 %v4151, %v4143
        %v5768 = vpack.c.b16 %v4152, %v4144
        %v5769 = vpack.c.b16 %v4153, %v4145
        %v5770 = vpack.c.b16 %v4154, %v4146
        %v5771 = vpack.c.b16 %v4155, %v4147
        %v5772 = vpack.c.b16 %v4156, %v4148
        %v5773 = vpack.c.b16 %v4157, %v4149
        %v5774 = vpack.c.b16 %v4166, %v4158
        %v5775 = vpack.c.b16 %v4167, %v4159
        %v5776 = vpack.c.b16 %v4168, %v4160
        %v5777 = vpack.c.b16 %v4169, %v4161
        %v5778 = vpack.c.b16 %v4170, %v4162
        %v5779 = vpack.c.b16 %v4171, %v4163
        %v5780 = vpack.c.b16 %v4172, %v4164
        %v5781 = vpack.c.b16 %v4173, %v4165
        %v5782 = vpack.c.b16 %v4182, %v4174
        %v5783 = vpack.c.b16 %v4183, %v4175
        %v5784 = vpack.c.b16 %v4184, %v4176
        %v5785 = vpack.c.b16 %v4185, %v4177
        %v5786 = vpack.c.b16 %v4186, %v4178
        %v5787 = vpack.c.b16 %v4187, %v4179
        %v5788 = vpack.c.b16 %v4188, %v4180
        %v5789 = vpack.c.b16 %v4189, %v4181
        %v5790 = vpack.c.b16 %v4198, %v4190
        %v5791 = vpack.c.b16 %v4199, %v4191
        %v5792 = vpack.c.b16 %v4200, %v4192
        %v5793 = vpack.c.b16 %v4201, %v4193
        %v5794 = vpack.c.b16 %v4202, %v4194
        %v5795 = vpack.c.b16 %v4203, %v4195
        %v5796 = vpack.c.b16 %v4204, %v4196
        %v5797 = vpack.c.b16 %v4205, %v4197
        %v5798 = vpack.c.b16 %v4214, %v4206
        %v5799 = vpack.c.b16 %v4215, %v4207
        %v5800 = vpack.c.b16 %v4216, %v4208
        %v5801 = vpack.c.b16 %v4217, %v4209
        %v5802 = vpack.c.b16 %v4218, %v4210
        %v5803 = vpack.c.b16 %v4219, %v4211
        %v5804 = vpack.c.b16 %v4220, %v4212
        %v5805 = vpack.c.b16 %v4221, %v4213
        %v5806 = vpack.c.b16 %v4230, %v4222
        %v5807 = vpack.c.b16 %v4231, %v4223
        %v5808 = vpack.c.b16 %v4232, %v4224
        %v5809 = vpack.c.b16 %v4233, %v4225
        %v5810 = vpack.c.b16 %v4234, %v4226
        %v5811 = vpack.c.b16 %v4235, %v4227
        %v5812 = vpack.c.b16 %v4236, %v4228
        %v5813 = vpack.c.b16 %v4237, %v4229
        %v5814 = vpack.c.b16 %v4246, %v4238
        %v5815 = vpack.c.b16 %v4247, %v4239
        %v5816 = vpack.c.b16 %v4248, %v4240
        %v5817 = vpack.c.b16 %v4249, %v4241
        %v5818 = vpack.c.b16 %v4250, %v4242
        %v5819 = vpack.c.b16 %v4251, %v4243
        %v5820 = vpack.c.b16 %v4252, %v4244
        %v5821 = vpack.c.b16 %v4253, %v4245
        %v5822 = vpack.c.b16 %v4262, %v4254
        %v5823 = vpack.c.b16 %v4263, %v4255
        %v5824 = vpack.c.b16 %v4264, %v4256
        %v5825 = vpack.c.b16 %v4265, %v4257
        %v5826 = vpack.c.b16 %v4266, %v4258
        %v5827 = vpack.c.b16 %v4267, %v4259
        %v5828 = vpack.c.b16 %v4268, %v4260
        %v5829 = vpack.c.b16 %v4269, %v4261
        %v5830 = vpack.c.b16 %v4278, %v4270
        %v5831 = vpack.c.b16 %v4279, %v4271
        %v5832 = vpack.c.b16 %v4280, %v4272
        %v5833 = vpack.c.b16 %v4281, %v4273
        %v5834 = vpack.c.b16 %v4282, %v4274
        %v5835 = vpack.c.b16 %v4283, %v4275
        %v5836 = vpack.c.b16 %v4284, %v4276
        %v5837 = vpack.c.b16 %v4285, %v4277
        %v5838 = vpack.c.b16 %v4294, %v4286
        %v5839 = vpack.c.b16 %v4295, %v4287
        %v5840 = vpack.c.b16 %v4296, %v4288
        %v5841 = vpack.c.b16 %v4297, %v4289
        %v5842 = vpack.c.b16 %v4298, %v4290
        %v5843 = vpack.c.b16 %v4299, %v4291
        %v5844 = vpack.c.b16 %v4300, %v4292
        %v5845 = vpack.c.b16 %v4301, %v4293
        %v5846 = vpack.c.b16 %v4310, %v4302
        %v5847 = vpack.c.b16 %v4311, %v4303
        %v5848 = vpack.c.b16 %v4312, %v4304
        %v5849 = vpack.c.b16 %v4313, %v4305
        %v5850 = vpack.c.b16 %v4314, %v4306
        %v5851 = vpack.c.b16 %v4315, %v4307
        %v5852 = vpack.c.b16 %v4316, %v4308
        %v5853 = vpack.c.b16 %v4317, %v4309
        %v5854 = vpack.c.b16 %v4326, %v4318
        %v5855 = vpack.c.b16 %v4327, %v4319
        %v5856 = vpack.c.b16 %v4328, %v4320
        %v5857 = vpack.c.b16 %v4329, %v4321
        %v5858 = vpack.c.b16 %v4330, %v4322
        %v5859 = vpack.c.b16 %v4331, %v4323
        %v5860 = vpack.c.b16 %v4332, %v4324
        %v5861 = vpack.c.b16 %v4333, %v4325
        %v5862 = vpack.c.b16 %v4342, %v4334
        %v5863 = vpack.c.b16 %v4343, %v4335
        %v5864 = vpack.c.b16 %v4344, %v4336
        %v5865 = vpack.c.b16 %v4345, %v4337
        %v5866 = vpack.c.b16 %v4346, %v4338
        %v5867 = vpack.c.b16 %v4347, %v4339
        %v5868 = vpack.c.b16 %v4348, %v4340
        %v5869 = vpack.c.b16 %v4349, %v4341
        %v5870 = vpack.c.b16 %v4358, %v4350
        %v5871 = vpack.c.b16 %v4359, %v4351
        %v5872 = vpack.c.b16 %v4360, %v4352
        %v5873 = vpack.c.b16 %v4361, %v4353
        %v5874 = vpack.c.b16 %v4362, %v4354
        %v5875 = vpack.c.b16 %v4363, %v4355
        %v5876 = vpack.c.b16 %v4364, %v4356
        %v5877 = vpack.c.b16 %v4365, %v4357
        %v5878 = vpack.c.b16 %v4374, %v4366
        %v5879 = vpack.c.b16 %v4375, %v4367
        %v5880 = vpack.c.b16 %v4376, %v4368
        %v5881 = vpack.c.b16 %v4377, %v4369
        %v5882 = vpack.c.b16 %v4378, %v4370
        %v5883 = vpack.c.b16 %v4379, %v4371
        %v5884 = vpack.c.b16 %v4380, %v4372
        %v5885 = vpack.c.b16 %v4381, %v4373
        %v5886 = vpack.c.b16 %v4390, %v4382
        %v5887 = vpack.c.b16 %v4391, %v4383
        %v5888 = vpack.c.b16 %v4392, %v4384
        %v5889 = vpack.c.b16 %v4393, %v4385
        %v5890 = vpack.c.b16 %v4394, %v4386
        %v5891 = vpack.c.b16 %v4395, %v4387
        %v5892 = vpack.c.b16 %v4396, %v4388
        %v5893 = vpack.c.b16 %v4397, %v4389
        %v5894 = vpack.c.b16 %v4406, %v4398
        %v5895 = vpack.c.b16 %v4407, %v4399
        %v5896 = vpack.c.b16 %v4408, %v4400
        %v5897 = vpack.c.b16 %v4409, %v4401
        %v5898 = vpack.c.b16 %v4410, %v4402
        %v5899 = vpack.c.b16 %v4411, %v4403
        %v5900 = vpack.c.b16 %v4412, %v4404
        %v5901 = vpack.c.b16 %v4413, %v4405
        %v5902 = vpack.c.b16 %v4422, %v4414
        %v5903 = vpack.c.b16 %v4423, %v4415
        %v5904 = vpack.c.b16 %v4424, %v4416
        %v5905 = vpack.c.b16 %v4425, %v4417
        %v5906 = vpack.c.b16 %v4426, %v4418
        %v5907 = vpack.c.b16 %v4427, %v4419
        %v5908 = vpack.c.b16 %v4428, %v4420
        %v5909 = vpack.c.b16 %v4429, %v4421
        %v5910 = vpack.c.b16 %v4438, %v4430
        %v5911 = vpack.c.b16 %v4439, %v4431
        %v5912 = vpack.c.b16 %v4440, %v4432
        %v5913 = vpack.c.b16 %v4441, %v4433
        %v5914 = vpack.c.b16 %v4442, %v4434
        %v5915 = vpack.c.b16 %v4443, %v4435
        %v5916 = vpack.c.b16 %v4444, %v4436
        %v5917 = vpack.c.b16 %v4445, %v4437
        %v5918 = vpack.c.b16 %v4454, %v4446
        %v5919 = vpack.c.b16 %v4455, %v4447
        %v5920 = vpack.c.b16 %v4456, %v4448
        %v5921 = vpack.c.b16 %v4457, %v4449
        %v5922 = vpack.c.b16 %v4458, %v4450
        %v5923 = vpack.c.b16 %v4459, %v4451
        %v5924 = vpack.c.b16 %v4460, %v4452
        %v5925 = vpack.c.b16 %v4461, %v4453
        %v5926 = vpack.c.b16 %v4470, %v4462
        %v5927 = vpack.c.b16 %v4471, %v4463
        %v5928 = vpack.c.b16 %v4472, %v4464
        %v5929 = vpack.c.b16 %v4473, %v4465
        %v5930 = vpack.c.b16 %v4474, %v4466
        %v5931 = vpack.c.b16 %v4475, %v4467
        %v5932 = vpack.c.b16 %v4476, %v4468
        %v5933 = vpack.c.b16 %v4477, %v4469
        %v5934 = vpack.c.b16 %v4486, %v4478
        %v5935 = vpack.c.b16 %v4487, %v4479
        %v5936 = vpack.c.b16 %v4488, %v4480
        %v5937 = vpack.c.b16 %v4489, %v4481
        %v5938 = vpack.c.b16 %v4490, %v4482
        %v5939 = vpack.c.b16 %v4491, %v4483
        %v5940 = vpack.c.b16 %v4492, %v4484
        %v5941 = vpack.c.b16 %v4493, %v4485
        %v5942 = vpack.c.b16 %v4502, %v4494
        %v5943 = vpack.c.b16 %v4503, %v4495
        %v5944 = vpack.c.b16 %v4504, %v4496
        %v5945 = vpack.c.b16 %v4505, %v4497
        %v5946 = vpack.c.b16 %v4506, %v4498
        %v5947 = vpack.c.b16 %v4507, %v4499
        %v5948 = vpack.c.b16 %v4508, %v4500
        %v5949 = vpack.c.b16 %v4509, %v4501
        %v5950 = vpack.c.b16 %v4518, %v4510
        %v5951 = vpack.c.b16 %v4519, %v4511
        %v5952 = vpack.c.b16 %v4520, %v4512
        %v5953 = vpack.c.b16 %v4521, %v4513
        %v5954 = vpack.c.b16 %v4522, %v4514
        %v5955 = vpack.c.b16 %v4523, %v4515
        %v5956 = vpack.c.b16 %v4524, %v4516
        %v5957 = vpack.c.b16 %v4525, %v4517
        %v5958 = vpack.c.b16 %v4534, %v4526
        %v5959 = vpack.c.b16 %v4535, %v4527
        %v5960 = vpack.c.b16 %v4536, %v4528
        %v5961 = vpack.c.b16 %v4537, %v4529
        %v5962 = vpack.c.b16 %v4538, %v4530
        %v5963 = vpack.c.b16 %v4539, %v4531
        %v5964 = vpack.c.b16 %v4540, %v4532
        %v5965 = vpack.c.b16 %v4541, %v4533
        %v5966 = vpack.c.b16 %v4550, %v4542
        %v5967 = vpack.c.b16 %v4551, %v4543
        %v5968 = vpack.c.b16 %v4552, %v4544
        %v5969 = vpack.c.b16 %v4553, %v4545
        %v5970 = vpack.c.b16 %v4554, %v4546
        %v5971 = vpack.c.b16 %v4555, %v4547
        %v5972 = vpack.c.b16 %v4556, %v4548
        %v5973 = vpack.c.b16 %v4557, %v4549
        %v5974 = vpack.c.b16 %v4566, %v4558
        %v5975 = vpack.c.b16 %v4567, %v4559
        %v5976 = vpack.c.b16 %v4568, %v4560
        %v5977 = vpack.c.b16 %v4569, %v4561
        %v5978 = vpack.c.b16 %v4570, %v4562
        %v5979 = vpack.c.b16 %v4571, %v4563
        %v5980 = vpack.c.b16 %v4572, %v4564
        %v5981 = vpack.c.b16 %v4573, %v4565
        %v5982 = vpack.c.b16 %v4582, %v4574
        %v5983 = vpack.c.b16 %v4583, %v4575
        %v5984 = vpack.c.b16 %v4584, %v4576
        %v5985 = vpack.c.b16 %v4585, %v4577
        %v5986 = vpack.c.b16 %v4586, %v4578
        %v5987 = vpack.c.b16 %v4587, %v4579
        %v5988 = vpack.c.b16 %v4588, %v4580
        %v5989 = vpack.c.b16 %v4589, %v4581
        %v5990 = vpack.c.b16 %v4598, %v4590
        %v5991 = vpack.c.b16 %v4599, %v4591
        %v5992 = vpack.c.b16 %v4600, %v4592
        %v5993 = vpack.c.b16 %v4601, %v4593
        %v5994 = vpack.c.b16 %v4602, %v4594
        %v5995 = vpack.c.b16 %v4603, %v4595
        %v5996 = vpack.c.b16 %v4604, %v4596
        %v5997 = vpack.c.b16 %v4605, %v4597
        %v5998 = vpack.c.b16 %v4614, %v4606
        %v5999 = vpack.c.b16 %v4615, %v4607
        %v6000 = vpack.c.b16 %v4616, %v4608
        %v6001 = vpack.c.b16 %v4617, %v4609
        %v6002 = vpack.c.b16 %v4618, %v4610
        %v6003 = vpack.c.b16 %v4619, %v4611
        %v6004 = vpack.c.b16 %v4620, %v4612
        %v6005 = vpack.c.b16 %v4621, %v4613
        %v6006 = vpack.c.b16 %v4630, %v4622
        %v6007 = vpack.c.b16 %v4631, %v4623
        %v6008 = vpack.c.b16 %v4632, %v4624
        %v6009 = vpack.c.b16 %v4633, %v4625
        %v6010 = vpack.c.b16 %v4634, %v4626
        %v6011 = vpack.c.b16 %v4635, %v4627
        %v6012 = vpack.c.b16 %v4636, %v4628
        %v6013 = vpack.c.b16 %v4637, %v4629
        %v6014 = vpack.c.b16 %v4646, %v4638
        %v6015 = vpack.c.b16 %v4647, %v4639
        %v6016 = vpack.c.b16 %v4648, %v4640
        %v6017 = vpack.c.b16 %v4649, %v4641
        %v6018 = vpack.c.b16 %v4650, %v4642
        %v6019 = vpack.c.b16 %v4651, %v4643
        %v6020 = vpack.c.b16 %v4652, %v4644
        %v6021 = vpack.c.b16 %v4653, %v4645
        %v6022 = vpack.c.b16 %v4662, %v4654
        %v6023 = vpack.c.b16 %v4663, %v4655
        %v6024 = vpack.c.b16 %v4664, %v4656
        %v6025 = vpack.c.b16 %v4665, %v4657
        %v6026 = vpack.c.b16 %v4666, %v4658
        %v6027 = vpack.c.b16 %v4667, %v4659
        %v6028 = vpack.c.b16 %v4668, %v4660
        %v6029 = vpack.c.b16 %v4669, %v4661
        %v6030 = vpack.c.b16 %v4678, %v4670
        %v6031 = vpack.c.b16 %v4679, %v4671
        %v6032 = vpack.c.b16 %v4680, %v4672
        %v6033 = vpack.c.b16 %v4681, %v4673
        %v6034 = vpack.c.b16 %v4682, %v4674
        %v6035 = vpack.c.b16 %v4683, %v4675
        %v6036 = vpack.c.b16 %v4684, %v4676
        %v6037 = vpack.c.b16 %v4685, %v4677
        %v6038 = vpack.c.b16 %v4694, %v4686
        %v6039 = vpack.c.b16 %v4695, %v4687
        %v6040 = vpack.c.b16 %v4696, %v4688
        %v6041 = vpack.c.b16 %v4697, %v4689
        %v6042 = vpack.c.b16 %v4698, %v4690
        %v6043 = vpack.c.b16 %v4699, %v4691
        %v6044 = vpack.c.b16 %v4700, %v4692
        %v6045 = vpack.c.b16 %v4701, %v4693
        %v6046 = vpack.c.b16 %v4710, %v4702
        %v6047 = vpack.c.b16 %v4711, %v4703
        %v6048 = vpack.c.b16 %v4712, %v4704
        %v6049 = vpack.c.b16 %v4713, %v4705
        %v6050 = vpack.c.b16 %v4714, %v4706
        %v6051 = vpack.c.b16 %v4715, %v4707
        %v6052 = vpack.c.b16 %v4716, %v4708
        %v6053 = vpack.c.b16 %v4717, %v4709
        %v6054 = vpack.c.b16 %v4726, %v4718
        %v6055 = vpack.c.b16 %v4727, %v4719
        %v6056 = vpack.c.b16 %v4728, %v4720
        %v6057 = vpack.c.b16 %v4729, %v4721
        %v6058 = vpack.c.b16 %v4730, %v4722
        %v6059 = vpack.c.b16 %v4731, %v4723
        %v6060 = vpack.c.b16 %v4732, %v4724
        %v6061 = vpack.c.b16 %v4733, %v4725
        %v6062 = vpack.c.b16 %v4742, %v4734
        %v6063 = vpack.c.b16 %v4743, %v4735
        %v6064 = vpack.c.b16 %v4744, %v4736
        %v6065 = vpack.c.b16 %v4745, %v4737
        %v6066 = vpack.c.b16 %v4746, %v4738
        %v6067 = vpack.c.b16 %v4747, %v4739
        %v6068 = vpack.c.b16 %v4748, %v4740
        %v6069 = vpack.c.b16 %v4749, %v4741
        %v6070 = vpack.c.b16 %v4758, %v4750
        %v6071 = vpack.c.b16 %v4759, %v4751
        %v6072 = vpack.c.b16 %v4760, %v4752
        %v6073 = vpack.c.b16 %v4761, %v4753
        %v6074 = vpack.c.b16 %v4762, %v4754
        %v6075 = vpack.c.b16 %v4763, %v4755
        %v6076 = vpack.c.b16 %v4764, %v4756
        %v6077 = vpack.c.b16 %v4765, %v4757
        %v6078 = vpack.c.b16 %v4774, %v4766
        %v6079 = vpack.c.b16 %v4775, %v4767
        %v6080 = vpack.c.b16 %v4776, %v4768
        %v6081 = vpack.c.b16 %v4777, %v4769
        %v6082 = vpack.c.b16 %v4778, %v4770
        %v6083 = vpack.c.b16 %v4779, %v4771
        %v6084 = vpack.c.b16 %v4780, %v4772
        %v6085 = vpack.c.b16 %v4781, %v4773
        %v6086 = vpack.c.b16 %v4790, %v4782
        %v6087 = vpack.c.b16 %v4791, %v4783
        %v6088 = vpack.c.b16 %v4792, %v4784
        %v6089 = vpack.c.b16 %v4793, %v4785
        %v6090 = vpack.c.b16 %v4794, %v4786
        %v6091 = vpack.c.b16 %v4795, %v4787
        %v6092 = vpack.c.b16 %v4796, %v4788
        %v6093 = vpack.c.b16 %v4797, %v4789
        %v6094 = vpack.c.b16 %v4806, %v4798
        %v6095 = vpack.c.b16 %v4807, %v4799
        %v6096 = vpack.c.b16 %v4808, %v4800
        %v6097 = vpack.c.b16 %v4809, %v4801
        %v6098 = vpack.c.b16 %v4810, %v4802
        %v6099 = vpack.c.b16 %v4811, %v4803
        %v6100 = vpack.c.b16 %v4812, %v4804
        %v6101 = vpack.c.b16 %v4813, %v4805
        %v6102 = vpack.c.b16 %v4822, %v4814
        %v6103 = vpack.c.b16 %v4823, %v4815
        %v6104 = vpack.c.b16 %v4824, %v4816
        %v6105 = vpack.c.b16 %v4825, %v4817
        %v6106 = vpack.c.b16 %v4826, %v4818
        %v6107 = vpack.c.b16 %v4827, %v4819
        %v6108 = vpack.c.b16 %v4828, %v4820
        %v6109 = vpack.c.b16 %v4829, %v4821
        %v6110 = vpack.c.b16 %v4838, %v4830
        %v6111 = vpack.c.b16 %v4839, %v4831
        %v6112 = vpack.c.b16 %v4840, %v4832
        %v6113 = vpack.c.b16 %v4841, %v4833
        %v6114 = vpack.c.b16 %v4842, %v4834
        %v6115 = vpack.c.b16 %v4843, %v4835
        %v6116 = vpack.c.b16 %v4844, %v4836
        %v6117 = vpack.c.b16 %v4845, %v4837
        %v6118 = vpack.c.b16 %v4854, %v4846
        %v6119 = vpack.c.b16 %v4855, %v4847
        %v6120 = vpack.c.b16 %v4856, %v4848
        %v6121 = vpack.c.b16 %v4857, %v4849
        %v6122 = vpack.c.b16 %v4858, %v4850
        %v6123 = vpack.c.b16 %v4859, %v4851
        %v6124 = vpack.c.b16 %v4860, %v4852
        %v6125 = vpack.c.b16 %v4861, %v4853
        %v6126 = vpack.c.b16 %v4870, %v4862
        %v6127 = vpack.c.b16 %v4871, %v4863
        %v6128 = vpack.c.b16 %v4872, %v4864
        %v6129 = vpack.c.b16 %v4873, %v4865
        %v6130 = vpack.c.b16 %v4874, %v4866
        %v6131 = vpack.c.b16 %v4875, %v4867
        %v6132 = vpack.c.b16 %v4876, %v4868
        %v6133 = vpack.c.b16 %v4877, %v4869
        %v6134 = vpack.c.b16 %v4886, %v4878
        %v6135 = vpack.c.b16 %v4887, %v4879
        %v6136 = vpack.c.b16 %v4888, %v4880
        %v6137 = vpack.c.b16 %v4889, %v4881
        %v6138 = vpack.c.b16 %v4890, %v4882
        %v6139 = vpack.c.b16 %v4891, %v4883
        %v6140 = vpack.c.b16 %v4892, %v4884
        %v6141 = vpack.c.b16 %v4893, %v4885
        %v6142 = vpack.c.b16 %v4902, %v4894
        %v6143 = vpack.c.b16 %v4903, %v4895
        %v6144 = vpack.c.b16 %v4904, %v4896
        %v6145 = vpack.c.b16 %v4905, %v4897
        %v6146 = vpack.c.b16 %v4906, %v4898
        %v6147 = vpack.c.b16 %v4907, %v4899
        %v6148 = vpack.c.b16 %v4908, %v4900
        %v6149 = vpack.c.b16 %v4909, %v4901
        %v6150 = vpack.c.b16 %v4918, %v4910
        %v6151 = vpack.c.b16 %v4919, %v4911
        %v6152 = vpack.c.b16 %v4920, %v4912
        %v6153 = vpack.c.b16 %v4921, %v4913
        %v6154 = vpack.c.b16 %v4922, %v4914
        %v6155 = vpack.c.b16 %v4923, %v4915
        %v6156 = vpack.c.b16 %v4924, %v4916
        %v6157 = vpack.c.b16 %v4925, %v4917
        %v6158 = vpack.c.b16 %v4934, %v4926
        %v6159 = vpack.c.b16 %v4935, %v4927
        %v6160 = vpack.c.b16 %v4936, %v4928
        %v6161 = vpack.c.b16 %v4937, %v4929
        %v6162 = vpack.c.b16 %v4938, %v4930
        %v6163 = vpack.c.b16 %v4939, %v4931
        %v6164 = vpack.c.b16 %v4940, %v4932
        %v6165 = vpack.c.b16 %v4941, %v4933
        %v6166 = vpack.c.b16 %v4950, %v4942
        %v6167 = vpack.c.b16 %v4951, %v4943
        %v6168 = vpack.c.b16 %v4952, %v4944
        %v6169 = vpack.c.b16 %v4953, %v4945
        %v6170 = vpack.c.b16 %v4954, %v4946
        %v6171 = vpack.c.b16 %v4955, %v4947
        %v6172 = vpack.c.b16 %v4956, %v4948
        %v6173 = vpack.c.b16 %v4957, %v4949
        %v6174 = vpack.c.b16 %v4966, %v4958
        %v6175 = vpack.c.b16 %v4967, %v4959
        %v6176 = vpack.c.b16 %v4968, %v4960
        %v6177 = vpack.c.b16 %v4969, %v4961
        %v6178 = vpack.c.b16 %v4970, %v4962
        %v6179 = vpack.c.b16 %v4971, %v4963
        %v6180 = vpack.c.b16 %v4972, %v4964
        %v6181 = vpack.c.b16 %v4973, %v4965
        %v6182 = vpack.c.b16 %v4982, %v4974
        %v6183 = vpack.c.b16 %v4983, %v4975
        %v6184 = vpack.c.b16 %v4984, %v4976
        %v6185 = vpack.c.b16 %v4985, %v4977
        %v6186 = vpack.c.b16 %v4986, %v4978
        %v6187 = vpack.c.b16 %v4987, %v4979
        %v6188 = vpack.c.b16 %v4988, %v4980
        %v6189 = vpack.c.b16 %v4989, %v4981
        %v6190 = vpack.c.b16 %v4998, %v4990
        %v6191 = vpack.c.b16 %v4999, %v4991
        %v6192 = vpack.c.b16 %v5000, %v4992
        %v6193 = vpack.c.b16 %v5001, %v4993
        %v6194 = vpack.c.b16 %v5002, %v4994
        %v6195 = vpack.c.b16 %v5003, %v4995
        %v6196 = vpack.c.b16 %v5004, %v4996
        %v6197 = vpack.c.b16 %v5005, %v4997
        %v6198 = vpack.c.b16 %v5014, %v5006
        %v6199 = vpack.c.b16 %v5015, %v5007
        %v6200 = vpack.c.b16 %v5016, %v5008
        %v6201 = vpack.c.b16 %v5017, %v5009
        %v6202 = vpack.c.b16 %v5018, %v5010
        %v6203 = vpack.c.b16 %v5019, %v5011
        %v6204 = vpack.c.b16 %v5020, %v5012
        %v6205 = vpack.c.b16 %v5021, %v5013
        %v6206 = vpack.c.b16 %v5030, %v5022
        %v6207 = vpack.c.b16 %v5031, %v5023
        %v6208 = vpack.c.b16 %v5032, %v5024
        %v6209 = vpack.c.b16 %v5033, %v5025
        %v6210 = vpack.c.b16 %v5034, %v5026
        %v6211 = vpack.c.b16 %v5035, %v5027
        %v6212 = vpack.c.b16 %v5036, %v5028
        %v6213 = vpack.c.b16 %v5037, %v5029
        %v6214 = vpack.c.b16 %v5046, %v5038
        %v6215 = vpack.c.b16 %v5047, %v5039
        %v6216 = vpack.c.b16 %v5048, %v5040
        %v6217 = vpack.c.b16 %v5049, %v5041
        %v6218 = vpack.c.b16 %v5050, %v5042
        %v6219 = vpack.c.b16 %v5051, %v5043
        %v6220 = vpack.c.b16 %v5052, %v5044
        %v6221 = vpack.c.b16 %v5053, %v5045
        %v6222 = vpack.c.b16 %v5062, %v5054
        %v6223 = vpack.c.b16 %v5063, %v5055
        %v6224 = vpack.c.b16 %v5064, %v5056
        %v6225 = vpack.c.b16 %v5065, %v5057
        %v6226 = vpack.c.b16 %v5066, %v5058
        %v6227 = vpack.c.b16 %v5067, %v5059
        %v6228 = vpack.c.b16 %v5068, %v5060
        %v6229 = vpack.c.b16 %v5069, %v5061
        %v6230 = vpack.c.b16 %v5078, %v5070
        %v6231 = vpack.c.b16 %v5079, %v5071
        %v6232 = vpack.c.b16 %v5080, %v5072
        %v6233 = vpack.c.b16 %v5081, %v5073
        %v6234 = vpack.c.b16 %v5082, %v5074
        %v6235 = vpack.c.b16 %v5083, %v5075
        %v6236 = vpack.c.b16 %v5084, %v5076
        %v6237 = vpack.c.b16 %v5085, %v5077
        %v6238 = vpack.c.b16 %v5094, %v5086
        %v6239 = vpack.c.b16 %v5095, %v5087
        %v6240 = vpack.c.b16 %v5096, %v5088
        %v6241 = vpack.c.b16 %v5097, %v5089
        %v6242 = vpack.c.b16 %v5098, %v5090
        %v6243 = vpack.c.b16 %v5099, %v5091
        %v6244 = vpack.c.b16 %v5100, %v5092
        %v6245 = vpack.c.b16 %v5101, %v5093
        %v6246 = vpack.c.b16 %v5110, %v5102
        %v6247 = vpack.c.b16 %v5111, %v5103
        %v6248 = vpack.c.b16 %v5112, %v5104
        %v6249 = vpack.c.b16 %v5113, %v5105
        %v6250 = vpack.c.b16 %v5114, %v5106
        %v6251 = vpack.c.b16 %v5115, %v5107
        %v6252 = vpack.c.b16 %v5116, %v5108
        %v6253 = vpack.c.b16 %v5117, %v5109
        %v6254 = vpack.c.b16 %v5126, %v5118
        %v6255 = vpack.c.b16 %v5127, %v5119
        %v6256 = vpack.c.b16 %v5128, %v5120
        %v6257 = vpack.c.b16 %v5129, %v5121
        %v6258 = vpack.c.b16 %v5130, %v5122
        %v6259 = vpack.c.b16 %v5131, %v5123
        %v6260 = vpack.c.b16 %v5132, %v5124
        %v6261 = vpack.c.b16 %v5133, %v5125
        %v6262 = vpack.c.b16 %v5142, %v5134
        %v6263 = vpack.c.b16 %v5143, %v5135
        %v6264 = vpack.c.b16 %v5144, %v5136
        %v6265 = vpack.c.b16 %v5145, %v5137
        %v6266 = vpack.c.b16 %v5146, %v5138
        %v6267 = vpack.c.b16 %v5147, %v5139
        %v6268 = vpack.c.b16 %v5148, %v5140
        %v6269 = vpack.c.b16 %v5149, %v5141
        %v6270 = vpack.c.b16 %v5158, %v5150
        %v6271 = vpack.c.b16 %v5159, %v5151
        %v6272 = vpack.c.b16 %v5160, %v5152
        %v6273 = vpack.c.b16 %v5161, %v5153
        %v6274 = vpack.c.b16 %v5162, %v5154
        %v6275 = vpack.c.b16 %v5163, %v5155
        %v6276 = vpack.c.b16 %v5164, %v5156
        %v6277 = vpack.c.b16 %v5165, %v5157
        %v6278 = vpack.c.b16 %v5174, %v5166
        %v6279 = vpack.c.b16 %v5175, %v5167
        %v6280 = vpack.c.b16 %v5176, %v5168
        %v6281 = vpack.c.b16 %v5177, %v5169
        %v6282 = vpack.c.b16 %v5178, %v5170
        %v6283 = vpack.c.b16 %v5179, %v5171
        %v6284 = vpack.c.b16 %v5180, %v5172
        %v6285 = vpack.c.b16 %v5181, %v5173
        %vm7390 = vcmask 261120
        %v7392 = vsel %vm7390, %v639, 0
        %v7395 = vsel %vm7390, %v657, 0
        %v7398 = vsel %vm7390, %v675, 0
        %v7401 = vsel %vm7390, %v693, 0
        %v7404 = vsel %vm7390, %v711, 0
        %v7407 = vsel %vm7390, %v729, 0
        %v7410 = vsel %vm7390, %v747, 0
        %v7413 = vsel %vm7390, %v765, 0
        %7415 = vmatprep.subr.bf16.mxu0 %v5239
        %7416 = vmatpush1.bf16.msra.mxu0 %v5238
        %7417 = vmatprep.subr.bf16.mxu0 %v5231
        %7418 = vmatpush1.bf16.msra.mxu0 %v5230
        %7419 = vmatprep.subr.bf16.mxu0 %v5223
        %7420 = vmatpush1.bf16.msra.mxu0 %v5222
        %7421 = vmatprep.subr.bf16.mxu0 %v5215
        %7422 = vmatpush1.bf16.msra.mxu0 %v5214
        %7423 = vmatprep.subr.bf16.mxu0 %v5207
        %7424 = vmatpush1.bf16.msra.mxu0 %v5206
        %7425 = vmatprep.subr.bf16.mxu0 %v5199
        %7426 = vmatpush1.bf16.msra.mxu0 %v5198
        %7427 = vmatprep.subr.bf16.mxu0 %v5191
        %7428 = vmatpush1.bf16.msra.mxu0 %v5190
        %7429 = vmatprep.subr.bf16.mxu0 %v5183
        %7430 = vmatpush1.bf16.msra.mxu0 %v5182
        %7431 = vmatprep.subr.bf16.mxu0 %v5303
        %7432 = vmatpush2.bf16.msra.mxu0 %v5302
        %7433 = vmatprep.subr.bf16.mxu0 %v5295
        %7434 = vmatpush2.bf16.msra.mxu0 %v5294
        %7435 = vmatprep.subr.bf16.mxu0 %v5287
        %7436 = vmatpush2.bf16.msra.mxu0 %v5286
        %7437 = vmatprep.subr.bf16.mxu0 %v5279
        %7438 = vmatpush2.bf16.msra.mxu0 %v5278
        %7439 = vmatprep.subr.bf16.mxu0 %v5271
        %7440 = vmatpush2.bf16.msra.mxu0 %v5270
        %7441 = vmatprep.subr.bf16.mxu0 %v5263
        %7442 = vmatpush2.bf16.msra.mxu0 %v5262
        %7443 = vmatprep.subr.bf16.mxu0 %v5255
        %7444 = vmatpush2.bf16.msra.mxu0 %v5254
        %7445 = vmatprep.subr.bf16.mxu0 %v5247
        %7446 = vmatpush2.bf16.msra.mxu0 %v5246
        %7447 = vmatprep.mubr.bf16.mxu0 %v623
        %7448 = vmatmul.mubr.bf16.gmra.mxu0 %v622
        %v7449 = vpop.f32.mrf.mxu0
        %v7450 = vadd.f32 0.0, %v7449
        %v7451 = vpop.f32.mrf.mxu0
        %v7452 = vadd.f32 0.0, %v7451
        %v7453 = vpop.f32.mrf.mxu0
        %v7454 = vadd.f32 0.0, %v7453
        %v7455 = vpop.f32.mrf.mxu0
        %v7456 = vadd.f32 0.0, %v7455
        %7457 = vmatprep.mubr.bf16.mxu0 %v641
        %7458 = vmatmul.mubr.bf16.gmra.mxu0 %v640
        %v7459 = vpop.f32.mrf.mxu0
        %v7460 = vadd.f32 0.0, %v7459
        %v7461 = vpop.f32.mrf.mxu0
        %v7462 = vadd.f32 0.0, %v7461
        %v7463 = vpop.f32.mrf.mxu0
        %v7464 = vadd.f32 0.0, %v7463
        %v7465 = vpop.f32.mrf.mxu0
        %v7466 = vadd.f32 0.0, %v7465
        %7467 = vmatprep.mubr.bf16.mxu0 %v659
        %7468 = vmatmul.mubr.bf16.gmra.mxu0 %v658
        %v7469 = vpop.f32.mrf.mxu0
        %v7470 = vadd.f32 0.0, %v7469
        %v7471 = vpop.f32.mrf.mxu0
        %v7472 = vadd.f32 0.0, %v7471
        %v7473 = vpop.f32.mrf.mxu0
        %v7474 = vadd.f32 0.0, %v7473
        %v7475 = vpop.f32.mrf.mxu0
        %v7476 = vadd.f32 0.0, %v7475
        %7477 = vmatprep.mubr.bf16.mxu0 %v677
        %7478 = vmatmul.mubr.bf16.gmra.mxu0 %v676
        %v7479 = vpop.f32.mrf.mxu0
        %v7480 = vadd.f32 0.0, %v7479
        %v7481 = vpop.f32.mrf.mxu0
        %v7482 = vadd.f32 0.0, %v7481
        %v7483 = vpop.f32.mrf.mxu0
        %v7484 = vadd.f32 0.0, %v7483
        %v7485 = vpop.f32.mrf.mxu0
        %v7486 = vadd.f32 0.0, %v7485
        %7487 = vmatprep.mubr.bf16.mxu0 %v695
        %7488 = vmatmul.mubr.bf16.gmra.mxu0 %v694
        %v7489 = vpop.f32.mrf.mxu0
        %v7490 = vadd.f32 0.0, %v7489
        %v7491 = vpop.f32.mrf.mxu0
        %v7492 = vadd.f32 0.0, %v7491
        %v7493 = vpop.f32.mrf.mxu0
        %v7494 = vadd.f32 0.0, %v7493
        %v7495 = vpop.f32.mrf.mxu0
        %v7496 = vadd.f32 0.0, %v7495
        %7497 = vmatprep.mubr.bf16.mxu0 %v713
        %7498 = vmatmul.mubr.bf16.gmra.mxu0 %v712
        %v7499 = vpop.f32.mrf.mxu0
        %v7500 = vadd.f32 0.0, %v7499
        %v7501 = vpop.f32.mrf.mxu0
        %v7502 = vadd.f32 0.0, %v7501
        %v7503 = vpop.f32.mrf.mxu0
        %v7504 = vadd.f32 0.0, %v7503
        %v7505 = vpop.f32.mrf.mxu0
        %v7506 = vadd.f32 0.0, %v7505
        %7507 = vmatprep.mubr.bf16.mxu0 %v731
        %7508 = vmatmul.mubr.bf16.gmra.mxu0 %v730
        %v7509 = vpop.f32.mrf.mxu0
        %v7510 = vadd.f32 0.0, %v7509
        %v7511 = vpop.f32.mrf.mxu0
        %v7512 = vadd.f32 0.0, %v7511
        %v7513 = vpop.f32.mrf.mxu0
        %v7514 = vadd.f32 0.0, %v7513
        %v7515 = vpop.f32.mrf.mxu0
        %v7516 = vadd.f32 0.0, %v7515
        %7517 = vmatprep.mubr.bf16.mxu0 %v749
        %7518 = vmatmul.mubr.bf16.gmra.mxu0 %v748
        %v7519 = vpop.f32.mrf.mxu0
        %v7520 = vadd.f32 0.0, %v7519
        %v7521 = vpop.f32.mrf.mxu0
        %v7522 = vadd.f32 0.0, %v7521
        %v7523 = vpop.f32.mrf.mxu0
        %v7524 = vadd.f32 0.0, %v7523
        %v7525 = vpop.f32.mrf.mxu0
        %v7526 = vadd.f32 0.0, %v7525
        %7527 = vdwg.mxu0
        %7528 = vmatprep.subr.bf16.mxu0 %v5367
        %7529 = vmatpush1.bf16.msra.mxu0 %v5366
        %7530 = vmatprep.subr.bf16.mxu0 %v5359
        %7531 = vmatpush1.bf16.msra.mxu0 %v5358
        %7532 = vmatprep.subr.bf16.mxu0 %v5351
        %7533 = vmatpush1.bf16.msra.mxu0 %v5350
        %7534 = vmatprep.subr.bf16.mxu0 %v5343
        %7535 = vmatpush1.bf16.msra.mxu0 %v5342
        %7536 = vmatprep.subr.bf16.mxu0 %v5335
        %7537 = vmatpush1.bf16.msra.mxu0 %v5334
        %7538 = vmatprep.subr.bf16.mxu0 %v5327
        %7539 = vmatpush1.bf16.msra.mxu0 %v5326
        %7540 = vmatprep.subr.bf16.mxu0 %v5319
        %7541 = vmatpush1.bf16.msra.mxu0 %v5318
        %7542 = vmatprep.subr.bf16.mxu0 %v5311
        %7543 = vmatpush1.bf16.msra.mxu0 %v5310
        %7544 = vmatprep.subr.bf16.mxu0 %v5431
        %7545 = vmatpush2.bf16.msra.mxu0 %v5430
        %7546 = vmatprep.subr.bf16.mxu0 %v5423
        %7547 = vmatpush2.bf16.msra.mxu0 %v5422
        %7548 = vmatprep.subr.bf16.mxu0 %v5415
        %7549 = vmatpush2.bf16.msra.mxu0 %v5414
        %7550 = vmatprep.subr.bf16.mxu0 %v5407
        %7551 = vmatpush2.bf16.msra.mxu0 %v5406
        %7552 = vmatprep.subr.bf16.mxu0 %v5399
        %7553 = vmatpush2.bf16.msra.mxu0 %v5398
        %7554 = vmatprep.subr.bf16.mxu0 %v5391
        %7555 = vmatpush2.bf16.msra.mxu0 %v5390
        %7556 = vmatprep.subr.bf16.mxu0 %v5383
        %7557 = vmatpush2.bf16.msra.mxu0 %v5382
        %7558 = vmatprep.subr.bf16.mxu0 %v5375
        %7559 = vmatpush2.bf16.msra.mxu0 %v5374
        %7560 = vmatprep.mubr.bf16.mxu0 %v625
        %7561 = vmatmul.mubr.bf16.gmra.mxu0 %v624
        %v7562 = vpop.f32.mrf.mxu0
        %v7563 = vadd.f32 %v7450, %v7562
        %v7564 = vpop.f32.mrf.mxu0
        %v7565 = vadd.f32 %v7452, %v7564
        %v7566 = vpop.f32.mrf.mxu0
        %v7567 = vadd.f32 %v7454, %v7566
        %v7568 = vpop.f32.mrf.mxu0
        %v7569 = vadd.f32 %v7456, %v7568
        %7570 = vmatprep.mubr.bf16.mxu0 %v643
        %7571 = vmatmul.mubr.bf16.gmra.mxu0 %v642
        %v7572 = vpop.f32.mrf.mxu0
        %v7573 = vadd.f32 %v7460, %v7572
        %v7574 = vpop.f32.mrf.mxu0
        %v7575 = vadd.f32 %v7462, %v7574
        %v7576 = vpop.f32.mrf.mxu0
        %v7577 = vadd.f32 %v7464, %v7576
        %v7578 = vpop.f32.mrf.mxu0
        %v7579 = vadd.f32 %v7466, %v7578
        %7580 = vmatprep.mubr.bf16.mxu0 %v661
        %7581 = vmatmul.mubr.bf16.gmra.mxu0 %v660
        %v7582 = vpop.f32.mrf.mxu0
        %v7583 = vadd.f32 %v7470, %v7582
        %v7584 = vpop.f32.mrf.mxu0
        %v7585 = vadd.f32 %v7472, %v7584
        %v7586 = vpop.f32.mrf.mxu0
        %v7587 = vadd.f32 %v7474, %v7586
        %v7588 = vpop.f32.mrf.mxu0
        %v7589 = vadd.f32 %v7476, %v7588
        %7590 = vmatprep.mubr.bf16.mxu0 %v679
        %7591 = vmatmul.mubr.bf16.gmra.mxu0 %v678
        %v7592 = vpop.f32.mrf.mxu0
        %v7593 = vadd.f32 %v7480, %v7592
        %v7594 = vpop.f32.mrf.mxu0
        %v7595 = vadd.f32 %v7482, %v7594
        %v7596 = vpop.f32.mrf.mxu0
        %v7597 = vadd.f32 %v7484, %v7596
        %v7598 = vpop.f32.mrf.mxu0
        %v7599 = vadd.f32 %v7486, %v7598
        %7600 = vmatprep.mubr.bf16.mxu0 %v697
        %7601 = vmatmul.mubr.bf16.gmra.mxu0 %v696
        %v7602 = vpop.f32.mrf.mxu0
        %v7603 = vadd.f32 %v7490, %v7602
        %v7604 = vpop.f32.mrf.mxu0
        %v7605 = vadd.f32 %v7492, %v7604
        %v7606 = vpop.f32.mrf.mxu0
        %v7607 = vadd.f32 %v7494, %v7606
        %v7608 = vpop.f32.mrf.mxu0
        %v7609 = vadd.f32 %v7496, %v7608
        %7610 = vmatprep.mubr.bf16.mxu0 %v715
        %7611 = vmatmul.mubr.bf16.gmra.mxu0 %v714
        %v7612 = vpop.f32.mrf.mxu0
        %v7613 = vadd.f32 %v7500, %v7612
        %v7614 = vpop.f32.mrf.mxu0
        %v7615 = vadd.f32 %v7502, %v7614
        %v7616 = vpop.f32.mrf.mxu0
        %v7617 = vadd.f32 %v7504, %v7616
        %v7618 = vpop.f32.mrf.mxu0
        %v7619 = vadd.f32 %v7506, %v7618
        %7620 = vmatprep.mubr.bf16.mxu0 %v733
        %7621 = vmatmul.mubr.bf16.gmra.mxu0 %v732
        %v7622 = vpop.f32.mrf.mxu0
        %v7623 = vadd.f32 %v7510, %v7622
        %v7624 = vpop.f32.mrf.mxu0
        %v7625 = vadd.f32 %v7512, %v7624
        %v7626 = vpop.f32.mrf.mxu0
        %v7627 = vadd.f32 %v7514, %v7626
        %v7628 = vpop.f32.mrf.mxu0
        %v7629 = vadd.f32 %v7516, %v7628
        %7630 = vmatprep.mubr.bf16.mxu0 %v751
        %7631 = vmatmul.mubr.bf16.gmra.mxu0 %v750
        %v7632 = vpop.f32.mrf.mxu0
        %v7633 = vadd.f32 %v7520, %v7632
        %v7634 = vpop.f32.mrf.mxu0
        %v7635 = vadd.f32 %v7522, %v7634
        %v7636 = vpop.f32.mrf.mxu0
        %v7637 = vadd.f32 %v7524, %v7636
        %v7638 = vpop.f32.mrf.mxu0
        %v7639 = vadd.f32 %v7526, %v7638
        %7640 = vdwg.mxu0
        %7641 = vmatprep.subr.bf16.mxu0 %v5495
        %7642 = vmatpush1.bf16.msra.mxu0 %v5494
        %7643 = vmatprep.subr.bf16.mxu0 %v5487
        %7644 = vmatpush1.bf16.msra.mxu0 %v5486
        %7645 = vmatprep.subr.bf16.mxu0 %v5479
        %7646 = vmatpush1.bf16.msra.mxu0 %v5478
        %7647 = vmatprep.subr.bf16.mxu0 %v5471
        %7648 = vmatpush1.bf16.msra.mxu0 %v5470
        %7649 = vmatprep.subr.bf16.mxu0 %v5463
        %7650 = vmatpush1.bf16.msra.mxu0 %v5462
        %7651 = vmatprep.subr.bf16.mxu0 %v5455
        %7652 = vmatpush1.bf16.msra.mxu0 %v5454
        %7653 = vmatprep.subr.bf16.mxu0 %v5447
        %7654 = vmatpush1.bf16.msra.mxu0 %v5446
        %7655 = vmatprep.subr.bf16.mxu0 %v5439
        %7656 = vmatpush1.bf16.msra.mxu0 %v5438
        %7657 = vmatprep.subr.bf16.mxu0 %v5559
        %7658 = vmatpush2.bf16.msra.mxu0 %v5558
        %7659 = vmatprep.subr.bf16.mxu0 %v5551
        %7660 = vmatpush2.bf16.msra.mxu0 %v5550
        %7661 = vmatprep.subr.bf16.mxu0 %v5543
        %7662 = vmatpush2.bf16.msra.mxu0 %v5542
        %7663 = vmatprep.subr.bf16.mxu0 %v5535
        %7664 = vmatpush2.bf16.msra.mxu0 %v5534
        %7665 = vmatprep.subr.bf16.mxu0 %v5527
        %7666 = vmatpush2.bf16.msra.mxu0 %v5526
        %7667 = vmatprep.subr.bf16.mxu0 %v5519
        %7668 = vmatpush2.bf16.msra.mxu0 %v5518
        %7669 = vmatprep.subr.bf16.mxu0 %v5511
        %7670 = vmatpush2.bf16.msra.mxu0 %v5510
        %7671 = vmatprep.subr.bf16.mxu0 %v5503
        %7672 = vmatpush2.bf16.msra.mxu0 %v5502
        %7673 = vmatprep.mubr.bf16.mxu0 %v627
        %7674 = vmatmul.mubr.bf16.gmra.mxu0 %v626
        %v7675 = vpop.f32.mrf.mxu0
        %v7676 = vadd.f32 %v7563, %v7675
        %v7677 = vpop.f32.mrf.mxu0
        %v7678 = vadd.f32 %v7565, %v7677
        %v7679 = vpop.f32.mrf.mxu0
        %v7680 = vadd.f32 %v7567, %v7679
        %v7681 = vpop.f32.mrf.mxu0
        %v7682 = vadd.f32 %v7569, %v7681
        %7683 = vmatprep.mubr.bf16.mxu0 %v645
        %7684 = vmatmul.mubr.bf16.gmra.mxu0 %v644
        %v7685 = vpop.f32.mrf.mxu0
        %v7686 = vadd.f32 %v7573, %v7685
        %v7687 = vpop.f32.mrf.mxu0
        %v7688 = vadd.f32 %v7575, %v7687
        %v7689 = vpop.f32.mrf.mxu0
        %v7690 = vadd.f32 %v7577, %v7689
        %v7691 = vpop.f32.mrf.mxu0
        %v7692 = vadd.f32 %v7579, %v7691
        %7693 = vmatprep.mubr.bf16.mxu0 %v663
        %7694 = vmatmul.mubr.bf16.gmra.mxu0 %v662
        %v7695 = vpop.f32.mrf.mxu0
        %v7696 = vadd.f32 %v7583, %v7695
        %v7697 = vpop.f32.mrf.mxu0
        %v7698 = vadd.f32 %v7585, %v7697
        %v7699 = vpop.f32.mrf.mxu0
        %v7700 = vadd.f32 %v7587, %v7699
        %v7701 = vpop.f32.mrf.mxu0
        %v7702 = vadd.f32 %v7589, %v7701
        %7703 = vmatprep.mubr.bf16.mxu0 %v681
        %7704 = vmatmul.mubr.bf16.gmra.mxu0 %v680
        %v7705 = vpop.f32.mrf.mxu0
        %v7706 = vadd.f32 %v7593, %v7705
        %v7707 = vpop.f32.mrf.mxu0
        %v7708 = vadd.f32 %v7595, %v7707
        %v7709 = vpop.f32.mrf.mxu0
        %v7710 = vadd.f32 %v7597, %v7709
        %v7711 = vpop.f32.mrf.mxu0
        %v7712 = vadd.f32 %v7599, %v7711
        %7713 = vmatprep.mubr.bf16.mxu0 %v699
        %7714 = vmatmul.mubr.bf16.gmra.mxu0 %v698
        %v7715 = vpop.f32.mrf.mxu0
        %v7716 = vadd.f32 %v7603, %v7715
        %v7717 = vpop.f32.mrf.mxu0
        %v7718 = vadd.f32 %v7605, %v7717
        %v7719 = vpop.f32.mrf.mxu0
        %v7720 = vadd.f32 %v7607, %v7719
        %v7721 = vpop.f32.mrf.mxu0
        %v7722 = vadd.f32 %v7609, %v7721
        %7723 = vmatprep.mubr.bf16.mxu0 %v717
        %7724 = vmatmul.mubr.bf16.gmra.mxu0 %v716
        %v7725 = vpop.f32.mrf.mxu0
        %v7726 = vadd.f32 %v7613, %v7725
        %v7727 = vpop.f32.mrf.mxu0
        %v7728 = vadd.f32 %v7615, %v7727
        %v7729 = vpop.f32.mrf.mxu0
        %v7730 = vadd.f32 %v7617, %v7729
        %v7731 = vpop.f32.mrf.mxu0
        %v7732 = vadd.f32 %v7619, %v7731
        %7733 = vmatprep.mubr.bf16.mxu0 %v735
        %7734 = vmatmul.mubr.bf16.gmra.mxu0 %v734
        %v7735 = vpop.f32.mrf.mxu0
        %v7736 = vadd.f32 %v7623, %v7735
        %v7737 = vpop.f32.mrf.mxu0
        %v7738 = vadd.f32 %v7625, %v7737
        %v7739 = vpop.f32.mrf.mxu0
        %v7740 = vadd.f32 %v7627, %v7739
        %v7741 = vpop.f32.mrf.mxu0
        %v7742 = vadd.f32 %v7629, %v7741
        %7743 = vmatprep.mubr.bf16.mxu0 %v753
        %7744 = vmatmul.mubr.bf16.gmra.mxu0 %v752
        %v7745 = vpop.f32.mrf.mxu0
        %v7746 = vadd.f32 %v7633, %v7745
        %v7747 = vpop.f32.mrf.mxu0
        %v7748 = vadd.f32 %v7635, %v7747
        %v7749 = vpop.f32.mrf.mxu0
        %v7750 = vadd.f32 %v7637, %v7749
        %v7751 = vpop.f32.mrf.mxu0
        %v7752 = vadd.f32 %v7639, %v7751
        %7753 = vdwg.mxu0
        %7754 = vmatprep.subr.bf16.mxu0 %v5623
        %7755 = vmatpush1.bf16.msra.mxu0 %v5622
        %7756 = vmatprep.subr.bf16.mxu0 %v5615
        %7757 = vmatpush1.bf16.msra.mxu0 %v5614
        %7758 = vmatprep.subr.bf16.mxu0 %v5607
        %7759 = vmatpush1.bf16.msra.mxu0 %v5606
        %7760 = vmatprep.subr.bf16.mxu0 %v5599
        %7761 = vmatpush1.bf16.msra.mxu0 %v5598
        %7762 = vmatprep.subr.bf16.mxu0 %v5591
        %7763 = vmatpush1.bf16.msra.mxu0 %v5590
        %7764 = vmatprep.subr.bf16.mxu0 %v5583
        %7765 = vmatpush1.bf16.msra.mxu0 %v5582
        %7766 = vmatprep.subr.bf16.mxu0 %v5575
        %7767 = vmatpush1.bf16.msra.mxu0 %v5574
        %7768 = vmatprep.subr.bf16.mxu0 %v5567
        %7769 = vmatpush1.bf16.msra.mxu0 %v5566
        %7770 = vmatprep.subr.bf16.mxu0 %v5687
        %7771 = vmatpush2.bf16.msra.mxu0 %v5686
        %7772 = vmatprep.subr.bf16.mxu0 %v5679
        %7773 = vmatpush2.bf16.msra.mxu0 %v5678
        %7774 = vmatprep.subr.bf16.mxu0 %v5671
        %7775 = vmatpush2.bf16.msra.mxu0 %v5670
        %7776 = vmatprep.subr.bf16.mxu0 %v5663
        %7777 = vmatpush2.bf16.msra.mxu0 %v5662
        %7778 = vmatprep.subr.bf16.mxu0 %v5655
        %7779 = vmatpush2.bf16.msra.mxu0 %v5654
        %7780 = vmatprep.subr.bf16.mxu0 %v5647
        %7781 = vmatpush2.bf16.msra.mxu0 %v5646
        %7782 = vmatprep.subr.bf16.mxu0 %v5639
        %7783 = vmatpush2.bf16.msra.mxu0 %v5638
        %7784 = vmatprep.subr.bf16.mxu0 %v5631
        %7785 = vmatpush2.bf16.msra.mxu0 %v5630
        %7786 = vmatprep.mubr.bf16.mxu0 %v629
        %7787 = vmatmul.mubr.bf16.gmra.mxu0 %v628
        %v7788 = vpop.f32.mrf.mxu0
        %v7789 = vadd.f32 %v7676, %v7788
        %v7790 = vpop.f32.mrf.mxu0
        %v7791 = vadd.f32 %v7678, %v7790
        %v7792 = vpop.f32.mrf.mxu0
        %v7793 = vadd.f32 %v7680, %v7792
        %v7794 = vpop.f32.mrf.mxu0
        %v7795 = vadd.f32 %v7682, %v7794
        %7796 = vmatprep.mubr.bf16.mxu0 %v647
        %7797 = vmatmul.mubr.bf16.gmra.mxu0 %v646
        %v7798 = vpop.f32.mrf.mxu0
        %v7799 = vadd.f32 %v7686, %v7798
        %v7800 = vpop.f32.mrf.mxu0
        %v7801 = vadd.f32 %v7688, %v7800
        %v7802 = vpop.f32.mrf.mxu0
        %v7803 = vadd.f32 %v7690, %v7802
        %v7804 = vpop.f32.mrf.mxu0
        %v7805 = vadd.f32 %v7692, %v7804
        %7806 = vmatprep.mubr.bf16.mxu0 %v665
        %7807 = vmatmul.mubr.bf16.gmra.mxu0 %v664
        %v7808 = vpop.f32.mrf.mxu0
        %v7809 = vadd.f32 %v7696, %v7808
        %v7810 = vpop.f32.mrf.mxu0
        %v7811 = vadd.f32 %v7698, %v7810
        %v7812 = vpop.f32.mrf.mxu0
        %v7813 = vadd.f32 %v7700, %v7812
        %v7814 = vpop.f32.mrf.mxu0
        %v7815 = vadd.f32 %v7702, %v7814
        %7816 = vmatprep.mubr.bf16.mxu0 %v683
        %7817 = vmatmul.mubr.bf16.gmra.mxu0 %v682
        %v7818 = vpop.f32.mrf.mxu0
        %v7819 = vadd.f32 %v7706, %v7818
        %v7820 = vpop.f32.mrf.mxu0
        %v7821 = vadd.f32 %v7708, %v7820
        %v7822 = vpop.f32.mrf.mxu0
        %v7823 = vadd.f32 %v7710, %v7822
        %v7824 = vpop.f32.mrf.mxu0
        %v7825 = vadd.f32 %v7712, %v7824
        %7826 = vmatprep.mubr.bf16.mxu0 %v701
        %7827 = vmatmul.mubr.bf16.gmra.mxu0 %v700
        %v7828 = vpop.f32.mrf.mxu0
        %v7829 = vadd.f32 %v7716, %v7828
        %v7830 = vpop.f32.mrf.mxu0
        %v7831 = vadd.f32 %v7718, %v7830
        %v7832 = vpop.f32.mrf.mxu0
        %v7833 = vadd.f32 %v7720, %v7832
        %v7834 = vpop.f32.mrf.mxu0
        %v7835 = vadd.f32 %v7722, %v7834
        %7836 = vmatprep.mubr.bf16.mxu0 %v719
        %7837 = vmatmul.mubr.bf16.gmra.mxu0 %v718
        %v7838 = vpop.f32.mrf.mxu0
        %v7839 = vadd.f32 %v7726, %v7838
        %v7840 = vpop.f32.mrf.mxu0
        %v7841 = vadd.f32 %v7728, %v7840
        %v7842 = vpop.f32.mrf.mxu0
        %v7843 = vadd.f32 %v7730, %v7842
        %v7844 = vpop.f32.mrf.mxu0
        %v7845 = vadd.f32 %v7732, %v7844
        %7846 = vmatprep.mubr.bf16.mxu0 %v737
        %7847 = vmatmul.mubr.bf16.gmra.mxu0 %v736
        %v7848 = vpop.f32.mrf.mxu0
        %v7849 = vadd.f32 %v7736, %v7848
        %v7850 = vpop.f32.mrf.mxu0
        %v7851 = vadd.f32 %v7738, %v7850
        %v7852 = vpop.f32.mrf.mxu0
        %v7853 = vadd.f32 %v7740, %v7852
        %v7854 = vpop.f32.mrf.mxu0
        %v7855 = vadd.f32 %v7742, %v7854
        %7856 = vmatprep.mubr.bf16.mxu0 %v755
        %7857 = vmatmul.mubr.bf16.gmra.mxu0 %v754
        %v7858 = vpop.f32.mrf.mxu0
        %v7859 = vadd.f32 %v7746, %v7858
        %v7860 = vpop.f32.mrf.mxu0
        %v7861 = vadd.f32 %v7748, %v7860
        %v7862 = vpop.f32.mrf.mxu0
        %v7863 = vadd.f32 %v7750, %v7862
        %v7864 = vpop.f32.mrf.mxu0
        %v7865 = vadd.f32 %v7752, %v7864
        %7866 = vdwg.mxu0
        %7867 = vmatprep.subr.bf16.mxu0 %v5751
        %7868 = vmatpush1.bf16.msra.mxu0 %v5750
        %7869 = vmatprep.subr.bf16.mxu0 %v5743
        %7870 = vmatpush1.bf16.msra.mxu0 %v5742
        %7871 = vmatprep.subr.bf16.mxu0 %v5735
        %7872 = vmatpush1.bf16.msra.mxu0 %v5734
        %7873 = vmatprep.subr.bf16.mxu0 %v5727
        %7874 = vmatpush1.bf16.msra.mxu0 %v5726
        %7875 = vmatprep.subr.bf16.mxu0 %v5719
        %7876 = vmatpush1.bf16.msra.mxu0 %v5718
        %7877 = vmatprep.subr.bf16.mxu0 %v5711
        %7878 = vmatpush1.bf16.msra.mxu0 %v5710
        %7879 = vmatprep.subr.bf16.mxu0 %v5703
        %7880 = vmatpush1.bf16.msra.mxu0 %v5702
        %7881 = vmatprep.subr.bf16.mxu0 %v5695
        %7882 = vmatpush1.bf16.msra.mxu0 %v5694
        %7883 = vmatprep.subr.bf16.mxu0 %v5815
        %7884 = vmatpush2.bf16.msra.mxu0 %v5814
        %7885 = vmatprep.subr.bf16.mxu0 %v5807
        %7886 = vmatpush2.bf16.msra.mxu0 %v5806
        %7887 = vmatprep.subr.bf16.mxu0 %v5799
        %7888 = vmatpush2.bf16.msra.mxu0 %v5798
        %7889 = vmatprep.subr.bf16.mxu0 %v5791
        %7890 = vmatpush2.bf16.msra.mxu0 %v5790
        %7891 = vmatprep.subr.bf16.mxu0 %v5783
        %7892 = vmatpush2.bf16.msra.mxu0 %v5782
        %7893 = vmatprep.subr.bf16.mxu0 %v5775
        %7894 = vmatpush2.bf16.msra.mxu0 %v5774
        %7895 = vmatprep.subr.bf16.mxu0 %v5767
        %7896 = vmatpush2.bf16.msra.mxu0 %v5766
        %7897 = vmatprep.subr.bf16.mxu0 %v5759
        %7898 = vmatpush2.bf16.msra.mxu0 %v5758
        %7899 = vmatprep.mubr.bf16.mxu0 %v631
        %7900 = vmatmul.mubr.bf16.gmra.mxu0 %v630
        %v7901 = vpop.f32.mrf.mxu0
        %v7902 = vadd.f32 %v7789, %v7901
        %v7903 = vpop.f32.mrf.mxu0
        %v7904 = vadd.f32 %v7791, %v7903
        %v7905 = vpop.f32.mrf.mxu0
        %v7906 = vadd.f32 %v7793, %v7905
        %v7907 = vpop.f32.mrf.mxu0
        %v7908 = vadd.f32 %v7795, %v7907
        %7909 = vmatprep.mubr.bf16.mxu0 %v649
        %7910 = vmatmul.mubr.bf16.gmra.mxu0 %v648
        %v7911 = vpop.f32.mrf.mxu0
        %v7912 = vadd.f32 %v7799, %v7911
        %v7913 = vpop.f32.mrf.mxu0
        %v7914 = vadd.f32 %v7801, %v7913
        %v7915 = vpop.f32.mrf.mxu0
        %v7916 = vadd.f32 %v7803, %v7915
        %v7917 = vpop.f32.mrf.mxu0
        %v7918 = vadd.f32 %v7805, %v7917
        %7919 = vmatprep.mubr.bf16.mxu0 %v667
        %7920 = vmatmul.mubr.bf16.gmra.mxu0 %v666
        %v7921 = vpop.f32.mrf.mxu0
        %v7922 = vadd.f32 %v7809, %v7921
        %v7923 = vpop.f32.mrf.mxu0
        %v7924 = vadd.f32 %v7811, %v7923
        %v7925 = vpop.f32.mrf.mxu0
        %v7926 = vadd.f32 %v7813, %v7925
        %v7927 = vpop.f32.mrf.mxu0
        %v7928 = vadd.f32 %v7815, %v7927
        %7929 = vmatprep.mubr.bf16.mxu0 %v685
        %7930 = vmatmul.mubr.bf16.gmra.mxu0 %v684
        %v7931 = vpop.f32.mrf.mxu0
        %v7932 = vadd.f32 %v7819, %v7931
        %v7933 = vpop.f32.mrf.mxu0
        %v7934 = vadd.f32 %v7821, %v7933
        %v7935 = vpop.f32.mrf.mxu0
        %v7936 = vadd.f32 %v7823, %v7935
        %v7937 = vpop.f32.mrf.mxu0
        %v7938 = vadd.f32 %v7825, %v7937
        %7939 = vmatprep.mubr.bf16.mxu0 %v703
        %7940 = vmatmul.mubr.bf16.gmra.mxu0 %v702
        %v7941 = vpop.f32.mrf.mxu0
        %v7942 = vadd.f32 %v7829, %v7941
        %v7943 = vpop.f32.mrf.mxu0
        %v7944 = vadd.f32 %v7831, %v7943
        %v7945 = vpop.f32.mrf.mxu0
        %v7946 = vadd.f32 %v7833, %v7945
        %v7947 = vpop.f32.mrf.mxu0
        %v7948 = vadd.f32 %v7835, %v7947
        %7949 = vmatprep.mubr.bf16.mxu0 %v721
        %7950 = vmatmul.mubr.bf16.gmra.mxu0 %v720
        %v7951 = vpop.f32.mrf.mxu0
        %v7952 = vadd.f32 %v7839, %v7951
        %v7953 = vpop.f32.mrf.mxu0
        %v7954 = vadd.f32 %v7841, %v7953
        %v7955 = vpop.f32.mrf.mxu0
        %v7956 = vadd.f32 %v7843, %v7955
        %v7957 = vpop.f32.mrf.mxu0
        %v7958 = vadd.f32 %v7845, %v7957
        %7959 = vmatprep.mubr.bf16.mxu0 %v739
        %7960 = vmatmul.mubr.bf16.gmra.mxu0 %v738
        %v7961 = vpop.f32.mrf.mxu0
        %v7962 = vadd.f32 %v7849, %v7961
        %v7963 = vpop.f32.mrf.mxu0
        %v7964 = vadd.f32 %v7851, %v7963
        %v7965 = vpop.f32.mrf.mxu0
        %v7966 = vadd.f32 %v7853, %v7965
        %v7967 = vpop.f32.mrf.mxu0
        %v7968 = vadd.f32 %v7855, %v7967
        %7969 = vmatprep.mubr.bf16.mxu0 %v757
        %7970 = vmatmul.mubr.bf16.gmra.mxu0 %v756
        %v7971 = vpop.f32.mrf.mxu0
        %v7972 = vadd.f32 %v7859, %v7971
        %v7973 = vpop.f32.mrf.mxu0
        %v7974 = vadd.f32 %v7861, %v7973
        %v7975 = vpop.f32.mrf.mxu0
        %v7976 = vadd.f32 %v7863, %v7975
        %v7977 = vpop.f32.mrf.mxu0
        %v7978 = vadd.f32 %v7865, %v7977
        %7979 = vdwg.mxu0
        %7980 = vmatprep.subr.bf16.mxu0 %v5879
        %7981 = vmatpush1.bf16.msra.mxu0 %v5878
        %7982 = vmatprep.subr.bf16.mxu0 %v5871
        %7983 = vmatpush1.bf16.msra.mxu0 %v5870
        %7984 = vmatprep.subr.bf16.mxu0 %v5863
        %7985 = vmatpush1.bf16.msra.mxu0 %v5862
        %7986 = vmatprep.subr.bf16.mxu0 %v5855
        %7987 = vmatpush1.bf16.msra.mxu0 %v5854
        %7988 = vmatprep.subr.bf16.mxu0 %v5847
        %7989 = vmatpush1.bf16.msra.mxu0 %v5846
        %7990 = vmatprep.subr.bf16.mxu0 %v5839
        %7991 = vmatpush1.bf16.msra.mxu0 %v5838
        %7992 = vmatprep.subr.bf16.mxu0 %v5831
        %7993 = vmatpush1.bf16.msra.mxu0 %v5830
        %7994 = vmatprep.subr.bf16.mxu0 %v5823
        %7995 = vmatpush1.bf16.msra.mxu0 %v5822
        %7996 = vmatprep.subr.bf16.mxu0 %v5943
        %7997 = vmatpush2.bf16.msra.mxu0 %v5942
        %7998 = vmatprep.subr.bf16.mxu0 %v5935
        %7999 = vmatpush2.bf16.msra.mxu0 %v5934
        %8000 = vmatprep.subr.bf16.mxu0 %v5927
        %8001 = vmatpush2.bf16.msra.mxu0 %v5926
        %8002 = vmatprep.subr.bf16.mxu0 %v5919
        %8003 = vmatpush2.bf16.msra.mxu0 %v5918
        %8004 = vmatprep.subr.bf16.mxu0 %v5911
        %8005 = vmatpush2.bf16.msra.mxu0 %v5910
        %8006 = vmatprep.subr.bf16.mxu0 %v5903
        %8007 = vmatpush2.bf16.msra.mxu0 %v5902
        %8008 = vmatprep.subr.bf16.mxu0 %v5895
        %8009 = vmatpush2.bf16.msra.mxu0 %v5894
        %8010 = vmatprep.subr.bf16.mxu0 %v5887
        %8011 = vmatpush2.bf16.msra.mxu0 %v5886
        %8012 = vmatprep.mubr.bf16.mxu0 %v633
        %8013 = vmatmul.mubr.bf16.gmra.mxu0 %v632
        %v8014 = vpop.f32.mrf.mxu0
        %v8015 = vadd.f32 %v7902, %v8014
        %v8016 = vpop.f32.mrf.mxu0
        %v8017 = vadd.f32 %v7904, %v8016
        %v8018 = vpop.f32.mrf.mxu0
        %v8019 = vadd.f32 %v7906, %v8018
        %v8020 = vpop.f32.mrf.mxu0
        %v8021 = vadd.f32 %v7908, %v8020
        %8022 = vmatprep.mubr.bf16.mxu0 %v651
        %8023 = vmatmul.mubr.bf16.gmra.mxu0 %v650
        %v8024 = vpop.f32.mrf.mxu0
        %v8025 = vadd.f32 %v7912, %v8024
        %v8026 = vpop.f32.mrf.mxu0
        %v8027 = vadd.f32 %v7914, %v8026
        %v8028 = vpop.f32.mrf.mxu0
        %v8029 = vadd.f32 %v7916, %v8028
        %v8030 = vpop.f32.mrf.mxu0
        %v8031 = vadd.f32 %v7918, %v8030
        %8032 = vmatprep.mubr.bf16.mxu0 %v669
        %8033 = vmatmul.mubr.bf16.gmra.mxu0 %v668
        %v8034 = vpop.f32.mrf.mxu0
        %v8035 = vadd.f32 %v7922, %v8034
        %v8036 = vpop.f32.mrf.mxu0
        %v8037 = vadd.f32 %v7924, %v8036
        %v8038 = vpop.f32.mrf.mxu0
        %v8039 = vadd.f32 %v7926, %v8038
        %v8040 = vpop.f32.mrf.mxu0
        %v8041 = vadd.f32 %v7928, %v8040
        %8042 = vmatprep.mubr.bf16.mxu0 %v687
        %8043 = vmatmul.mubr.bf16.gmra.mxu0 %v686
        %v8044 = vpop.f32.mrf.mxu0
        %v8045 = vadd.f32 %v7932, %v8044
        %v8046 = vpop.f32.mrf.mxu0
        %v8047 = vadd.f32 %v7934, %v8046
        %v8048 = vpop.f32.mrf.mxu0
        %v8049 = vadd.f32 %v7936, %v8048
        %v8050 = vpop.f32.mrf.mxu0
        %v8051 = vadd.f32 %v7938, %v8050
        %8052 = vmatprep.mubr.bf16.mxu0 %v705
        %8053 = vmatmul.mubr.bf16.gmra.mxu0 %v704
        %v8054 = vpop.f32.mrf.mxu0
        %v8055 = vadd.f32 %v7942, %v8054
        %v8056 = vpop.f32.mrf.mxu0
        %v8057 = vadd.f32 %v7944, %v8056
        %v8058 = vpop.f32.mrf.mxu0
        %v8059 = vadd.f32 %v7946, %v8058
        %v8060 = vpop.f32.mrf.mxu0
        %v8061 = vadd.f32 %v7948, %v8060
        %8062 = vmatprep.mubr.bf16.mxu0 %v723
        %8063 = vmatmul.mubr.bf16.gmra.mxu0 %v722
        %v8064 = vpop.f32.mrf.mxu0
        %v8065 = vadd.f32 %v7952, %v8064
        %v8066 = vpop.f32.mrf.mxu0
        %v8067 = vadd.f32 %v7954, %v8066
        %v8068 = vpop.f32.mrf.mxu0
        %v8069 = vadd.f32 %v7956, %v8068
        %v8070 = vpop.f32.mrf.mxu0
        %v8071 = vadd.f32 %v7958, %v8070
        %8072 = vmatprep.mubr.bf16.mxu0 %v741
        %8073 = vmatmul.mubr.bf16.gmra.mxu0 %v740
        %v8074 = vpop.f32.mrf.mxu0
        %v8075 = vadd.f32 %v7962, %v8074
        %v8076 = vpop.f32.mrf.mxu0
        %v8077 = vadd.f32 %v7964, %v8076
        %v8078 = vpop.f32.mrf.mxu0
        %v8079 = vadd.f32 %v7966, %v8078
        %v8080 = vpop.f32.mrf.mxu0
        %v8081 = vadd.f32 %v7968, %v8080
        %8082 = vmatprep.mubr.bf16.mxu0 %v759
        %8083 = vmatmul.mubr.bf16.gmra.mxu0 %v758
        %v8084 = vpop.f32.mrf.mxu0
        %v8085 = vadd.f32 %v7972, %v8084
        %v8086 = vpop.f32.mrf.mxu0
        %v8087 = vadd.f32 %v7974, %v8086
        %v8088 = vpop.f32.mrf.mxu0
        %v8089 = vadd.f32 %v7976, %v8088
        %v8090 = vpop.f32.mrf.mxu0
        %v8091 = vadd.f32 %v7978, %v8090
        %8092 = vdwg.mxu0
        %8093 = vmatprep.subr.bf16.mxu0 %v6007
        %8094 = vmatpush1.bf16.msra.mxu0 %v6006
        %8095 = vmatprep.subr.bf16.mxu0 %v5999
        %8096 = vmatpush1.bf16.msra.mxu0 %v5998
        %8097 = vmatprep.subr.bf16.mxu0 %v5991
        %8098 = vmatpush1.bf16.msra.mxu0 %v5990
        %8099 = vmatprep.subr.bf16.mxu0 %v5983
        %8100 = vmatpush1.bf16.msra.mxu0 %v5982
        %8101 = vmatprep.subr.bf16.mxu0 %v5975
        %8102 = vmatpush1.bf16.msra.mxu0 %v5974
        %8103 = vmatprep.subr.bf16.mxu0 %v5967
        %8104 = vmatpush1.bf16.msra.mxu0 %v5966
        %8105 = vmatprep.subr.bf16.mxu0 %v5959
        %8106 = vmatpush1.bf16.msra.mxu0 %v5958
        %8107 = vmatprep.subr.bf16.mxu0 %v5951
        %8108 = vmatpush1.bf16.msra.mxu0 %v5950
        %8109 = vmatprep.subr.bf16.mxu0 %v6071
        %8110 = vmatpush2.bf16.msra.mxu0 %v6070
        %8111 = vmatprep.subr.bf16.mxu0 %v6063
        %8112 = vmatpush2.bf16.msra.mxu0 %v6062
        %8113 = vmatprep.subr.bf16.mxu0 %v6055
        %8114 = vmatpush2.bf16.msra.mxu0 %v6054
        %8115 = vmatprep.subr.bf16.mxu0 %v6047
        %8116 = vmatpush2.bf16.msra.mxu0 %v6046
        %8117 = vmatprep.subr.bf16.mxu0 %v6039
        %8118 = vmatpush2.bf16.msra.mxu0 %v6038
        %8119 = vmatprep.subr.bf16.mxu0 %v6031
        %8120 = vmatpush2.bf16.msra.mxu0 %v6030
        %8121 = vmatprep.subr.bf16.mxu0 %v6023
        %8122 = vmatpush2.bf16.msra.mxu0 %v6022
        %8123 = vmatprep.subr.bf16.mxu0 %v6015
        %8124 = vmatpush2.bf16.msra.mxu0 %v6014
        %8125 = vmatprep.mubr.bf16.mxu0 %v635
        %8126 = vmatmul.mubr.bf16.gmra.mxu0 %v634
        %v8127 = vpop.f32.mrf.mxu0
        %v8128 = vadd.f32 %v8015, %v8127
        %v8129 = vpop.f32.mrf.mxu0
        %v8130 = vadd.f32 %v8017, %v8129
        %v8131 = vpop.f32.mrf.mxu0
        %v8132 = vadd.f32 %v8019, %v8131
        %v8133 = vpop.f32.mrf.mxu0
        %v8134 = vadd.f32 %v8021, %v8133
        %8135 = vmatprep.mubr.bf16.mxu0 %v653
        %8136 = vmatmul.mubr.bf16.gmra.mxu0 %v652
        %v8137 = vpop.f32.mrf.mxu0
        %v8138 = vadd.f32 %v8025, %v8137
        %v8139 = vpop.f32.mrf.mxu0
        %v8140 = vadd.f32 %v8027, %v8139
        %v8141 = vpop.f32.mrf.mxu0
        %v8142 = vadd.f32 %v8029, %v8141
        %v8143 = vpop.f32.mrf.mxu0
        %v8144 = vadd.f32 %v8031, %v8143
        %8145 = vmatprep.mubr.bf16.mxu0 %v671
        %8146 = vmatmul.mubr.bf16.gmra.mxu0 %v670
        %v8147 = vpop.f32.mrf.mxu0
        %v8148 = vadd.f32 %v8035, %v8147
        %v8149 = vpop.f32.mrf.mxu0
        %v8150 = vadd.f32 %v8037, %v8149
        %v8151 = vpop.f32.mrf.mxu0
        %v8152 = vadd.f32 %v8039, %v8151
        %v8153 = vpop.f32.mrf.mxu0
        %v8154 = vadd.f32 %v8041, %v8153
        %8155 = vmatprep.mubr.bf16.mxu0 %v689
        %8156 = vmatmul.mubr.bf16.gmra.mxu0 %v688
        %v8157 = vpop.f32.mrf.mxu0
        %v8158 = vadd.f32 %v8045, %v8157
        %v8159 = vpop.f32.mrf.mxu0
        %v8160 = vadd.f32 %v8047, %v8159
        %v8161 = vpop.f32.mrf.mxu0
        %v8162 = vadd.f32 %v8049, %v8161
        %v8163 = vpop.f32.mrf.mxu0
        %v8164 = vadd.f32 %v8051, %v8163
        %8165 = vmatprep.mubr.bf16.mxu0 %v707
        %8166 = vmatmul.mubr.bf16.gmra.mxu0 %v706
        %v8167 = vpop.f32.mrf.mxu0
        %v8168 = vadd.f32 %v8055, %v8167
        %v8169 = vpop.f32.mrf.mxu0
        %v8170 = vadd.f32 %v8057, %v8169
        %v8171 = vpop.f32.mrf.mxu0
        %v8172 = vadd.f32 %v8059, %v8171
        %v8173 = vpop.f32.mrf.mxu0
        %v8174 = vadd.f32 %v8061, %v8173
        %8175 = vmatprep.mubr.bf16.mxu0 %v725
        %8176 = vmatmul.mubr.bf16.gmra.mxu0 %v724
        %v8177 = vpop.f32.mrf.mxu0
        %v8178 = vadd.f32 %v8065, %v8177
        %v8179 = vpop.f32.mrf.mxu0
        %v8180 = vadd.f32 %v8067, %v8179
        %v8181 = vpop.f32.mrf.mxu0
        %v8182 = vadd.f32 %v8069, %v8181
        %v8183 = vpop.f32.mrf.mxu0
        %v8184 = vadd.f32 %v8071, %v8183
        %8185 = vmatprep.mubr.bf16.mxu0 %v743
        %8186 = vmatmul.mubr.bf16.gmra.mxu0 %v742
        %v8187 = vpop.f32.mrf.mxu0
        %v8188 = vadd.f32 %v8075, %v8187
        %v8189 = vpop.f32.mrf.mxu0
        %v8190 = vadd.f32 %v8077, %v8189
        %v8191 = vpop.f32.mrf.mxu0
        %v8192 = vadd.f32 %v8079, %v8191
        %v8193 = vpop.f32.mrf.mxu0
        %v8194 = vadd.f32 %v8081, %v8193
        %8195 = vmatprep.mubr.bf16.mxu0 %v761
        %8196 = vmatmul.mubr.bf16.gmra.mxu0 %v760
        %v8197 = vpop.f32.mrf.mxu0
        %v8198 = vadd.f32 %v8085, %v8197
        %v8199 = vpop.f32.mrf.mxu0
        %v8200 = vadd.f32 %v8087, %v8199
        %v8201 = vpop.f32.mrf.mxu0
        %v8202 = vadd.f32 %v8089, %v8201
        %v8203 = vpop.f32.mrf.mxu0
        %v8204 = vadd.f32 %v8091, %v8203
        %8205 = vdwg.mxu0
        %8206 = vmatprep.subr.bf16.mxu0 %v6135
        %8207 = vmatpush1.bf16.msra.mxu0 %v6134
        %8208 = vmatprep.subr.bf16.mxu0 %v6127
        %8209 = vmatpush1.bf16.msra.mxu0 %v6126
        %8210 = vmatprep.subr.bf16.mxu0 %v6119
        %8211 = vmatpush1.bf16.msra.mxu0 %v6118
        %8212 = vmatprep.subr.bf16.mxu0 %v6111
        %8213 = vmatpush1.bf16.msra.mxu0 %v6110
        %8214 = vmatprep.subr.bf16.mxu0 %v6103
        %8215 = vmatpush1.bf16.msra.mxu0 %v6102
        %8216 = vmatprep.subr.bf16.mxu0 %v6095
        %8217 = vmatpush1.bf16.msra.mxu0 %v6094
        %8218 = vmatprep.subr.bf16.mxu0 %v6087
        %8219 = vmatpush1.bf16.msra.mxu0 %v6086
        %8220 = vmatprep.subr.bf16.mxu0 %v6079
        %8221 = vmatpush1.bf16.msra.mxu0 %v6078
        %8222 = vmatprep.subr.bf16.mxu0 %v6199
        %8223 = vmatpush2.bf16.msra.mxu0 %v6198
        %8224 = vmatprep.subr.bf16.mxu0 %v6191
        %8225 = vmatpush2.bf16.msra.mxu0 %v6190
        %8226 = vmatprep.subr.bf16.mxu0 %v6183
        %8227 = vmatpush2.bf16.msra.mxu0 %v6182
        %8228 = vmatprep.subr.bf16.mxu0 %v6175
        %8229 = vmatpush2.bf16.msra.mxu0 %v6174
        %8230 = vmatprep.subr.bf16.mxu0 %v6167
        %8231 = vmatpush2.bf16.msra.mxu0 %v6166
        %8232 = vmatprep.subr.bf16.mxu0 %v6159
        %8233 = vmatpush2.bf16.msra.mxu0 %v6158
        %8234 = vmatprep.subr.bf16.mxu0 %v6151
        %8235 = vmatpush2.bf16.msra.mxu0 %v6150
        %8236 = vmatprep.subr.bf16.mxu0 %v6143
        %8237 = vmatpush2.bf16.msra.mxu0 %v6142
        %8238 = vmatprep.mubr.bf16.mxu0 %v637
        %8239 = vmatmul.mubr.bf16.gmra.mxu0 %v636
        %v8240 = vpop.f32.mrf.mxu0
        %v8241 = vadd.f32 %v8128, %v8240
        %v8242 = vpop.f32.mrf.mxu0
        %v8243 = vadd.f32 %v8130, %v8242
        %v8244 = vpop.f32.mrf.mxu0
        %v8245 = vadd.f32 %v8132, %v8244
        %v8246 = vpop.f32.mrf.mxu0
        %v8247 = vadd.f32 %v8134, %v8246
        %8248 = vmatprep.mubr.bf16.mxu0 %v655
        %8249 = vmatmul.mubr.bf16.gmra.mxu0 %v654
        %v8250 = vpop.f32.mrf.mxu0
        %v8251 = vadd.f32 %v8138, %v8250
        %v8252 = vpop.f32.mrf.mxu0
        %v8253 = vadd.f32 %v8140, %v8252
        %v8254 = vpop.f32.mrf.mxu0
        %v8255 = vadd.f32 %v8142, %v8254
        %v8256 = vpop.f32.mrf.mxu0
        %v8257 = vadd.f32 %v8144, %v8256
        %8258 = vmatprep.mubr.bf16.mxu0 %v673
        %8259 = vmatmul.mubr.bf16.gmra.mxu0 %v672
        %v8260 = vpop.f32.mrf.mxu0
        %v8261 = vadd.f32 %v8148, %v8260
        %v8262 = vpop.f32.mrf.mxu0
        %v8263 = vadd.f32 %v8150, %v8262
        %v8264 = vpop.f32.mrf.mxu0
        %v8265 = vadd.f32 %v8152, %v8264
        %v8266 = vpop.f32.mrf.mxu0
        %v8267 = vadd.f32 %v8154, %v8266
        %8268 = vmatprep.mubr.bf16.mxu0 %v691
        %8269 = vmatmul.mubr.bf16.gmra.mxu0 %v690
        %v8270 = vpop.f32.mrf.mxu0
        %v8271 = vadd.f32 %v8158, %v8270
        %v8272 = vpop.f32.mrf.mxu0
        %v8273 = vadd.f32 %v8160, %v8272
        %v8274 = vpop.f32.mrf.mxu0
        %v8275 = vadd.f32 %v8162, %v8274
        %v8276 = vpop.f32.mrf.mxu0
        %v8277 = vadd.f32 %v8164, %v8276
        %8278 = vmatprep.mubr.bf16.mxu0 %v709
        %8279 = vmatmul.mubr.bf16.gmra.mxu0 %v708
        %v8280 = vpop.f32.mrf.mxu0
        %v8281 = vadd.f32 %v8168, %v8280
        %v8282 = vpop.f32.mrf.mxu0
        %v8283 = vadd.f32 %v8170, %v8282
        %v8284 = vpop.f32.mrf.mxu0
        %v8285 = vadd.f32 %v8172, %v8284
        %v8286 = vpop.f32.mrf.mxu0
        %v8287 = vadd.f32 %v8174, %v8286
        %8288 = vmatprep.mubr.bf16.mxu0 %v727
        %8289 = vmatmul.mubr.bf16.gmra.mxu0 %v726
        %v8290 = vpop.f32.mrf.mxu0
        %v8291 = vadd.f32 %v8178, %v8290
        %v8292 = vpop.f32.mrf.mxu0
        %v8293 = vadd.f32 %v8180, %v8292
        %v8294 = vpop.f32.mrf.mxu0
        %v8295 = vadd.f32 %v8182, %v8294
        %v8296 = vpop.f32.mrf.mxu0
        %v8297 = vadd.f32 %v8184, %v8296
        %8298 = vmatprep.mubr.bf16.mxu0 %v745
        %8299 = vmatmul.mubr.bf16.gmra.mxu0 %v744
        %v8300 = vpop.f32.mrf.mxu0
        %v8301 = vadd.f32 %v8188, %v8300
        %v8302 = vpop.f32.mrf.mxu0
        %v8303 = vadd.f32 %v8190, %v8302
        %v8304 = vpop.f32.mrf.mxu0
        %v8305 = vadd.f32 %v8192, %v8304
        %v8306 = vpop.f32.mrf.mxu0
        %v8307 = vadd.f32 %v8194, %v8306
        %8308 = vmatprep.mubr.bf16.mxu0 %v763
        %8309 = vmatmul.mubr.bf16.gmra.mxu0 %v762
        %v8310 = vpop.f32.mrf.mxu0
        %v8311 = vadd.f32 %v8198, %v8310
        %v8312 = vpop.f32.mrf.mxu0
        %v8313 = vadd.f32 %v8200, %v8312
        %v8314 = vpop.f32.mrf.mxu0
        %v8315 = vadd.f32 %v8202, %v8314
        %v8316 = vpop.f32.mrf.mxu0
        %v8317 = vadd.f32 %v8204, %v8316
        %8318 = vdwg.mxu0
        %8319 = vmatprep.subr.bf16.mxu0 %v6263
        %8320 = vmatpush1.bf16.msra.mxu0 %v6262
        %8321 = vmatprep.subr.bf16.mxu0 %v6255
        %8322 = vmatpush1.bf16.msra.mxu0 %v6254
        %8323 = vmatprep.subr.bf16.mxu0 %v6247
        %8324 = vmatpush1.bf16.msra.mxu0 %v6246
        %8325 = vmatprep.subr.bf16.mxu0 %v6239
        %8326 = vmatpush1.bf16.msra.mxu0 %v6238
        %8327 = vmatprep.subr.bf16.mxu0 %v6231
        %8328 = vmatpush1.bf16.msra.mxu0 %v6230
        %8329 = vmatprep.subr.bf16.mxu0 %v6223
        %8330 = vmatpush1.bf16.msra.mxu0 %v6222
        %8331 = vmatprep.subr.bf16.mxu0 %v6215
        %8332 = vmatpush1.bf16.msra.mxu0 %v6214
        %8333 = vmatprep.subr.bf16.mxu0 %v6207
        %8334 = vmatpush1.bf16.msra.mxu0 %v6206
        %8335 = vmatprep.subr.bf16.mxu0 0
        %8336 = vmatpush2.bf16.msra.mxu0 0
        %8337 = vmatprep.subr.bf16.mxu0 0
        %8338 = vmatpush2.bf16.msra.mxu0 0
        %8339 = vmatprep.subr.bf16.mxu0 0
        %8340 = vmatpush2.bf16.msra.mxu0 0
        %8341 = vmatprep.subr.bf16.mxu0 0
        %8342 = vmatpush2.bf16.msra.mxu0 0
        %8343 = vmatprep.subr.bf16.mxu0 0
        %8344 = vmatpush2.bf16.msra.mxu0 0
        %8345 = vmatprep.subr.bf16.mxu0 0
        %8346 = vmatpush2.bf16.msra.mxu0 0
        %8347 = vmatprep.subr.bf16.mxu0 %v6279
        %8348 = vmatpush2.bf16.msra.mxu0 %v6278
        %8349 = vmatprep.subr.bf16.mxu0 %v6271
        %8350 = vmatpush2.bf16.msra.mxu0 %v6270
        %8351 = vmatprep.mubr.bf16.mxu0 %v7392
        %8352 = vmatmul.mubr.bf16.gmra.mxu0 %v638
        %v8353 = vpop.f32.mrf.mxu0
        %v8354 = vadd.f32 %v8241, %v8353
        %v8355 = vpop.f32.mrf.mxu0
        %v8356 = vadd.f32 %v8243, %v8355
        %v8357 = vpop.f32.mrf.mxu0
        %v8358 = vadd.f32 %v8245, %v8357
        %v8359 = vpop.f32.mrf.mxu0
        %v8360 = vadd.f32 %v8247, %v8359
        %8361 = vmatprep.mubr.bf16.mxu0 %v7395
        %8362 = vmatmul.mubr.bf16.gmra.mxu0 %v656
        %v8363 = vpop.f32.mrf.mxu0
        %v8364 = vadd.f32 %v8251, %v8363
        %v8365 = vpop.f32.mrf.mxu0
        %v8366 = vadd.f32 %v8253, %v8365
        %v8367 = vpop.f32.mrf.mxu0
        %v8368 = vadd.f32 %v8255, %v8367
        %v8369 = vpop.f32.mrf.mxu0
        %v8370 = vadd.f32 %v8257, %v8369
        %8371 = vmatprep.mubr.bf16.mxu0 %v7398
        %8372 = vmatmul.mubr.bf16.gmra.mxu0 %v674
        %v8373 = vpop.f32.mrf.mxu0
        %v8374 = vadd.f32 %v8261, %v8373
        %v8375 = vpop.f32.mrf.mxu0
        %v8376 = vadd.f32 %v8263, %v8375
        %v8377 = vpop.f32.mrf.mxu0
        %v8378 = vadd.f32 %v8265, %v8377
        %v8379 = vpop.f32.mrf.mxu0
        %v8380 = vadd.f32 %v8267, %v8379
        %8381 = vmatprep.mubr.bf16.mxu0 %v7401
        %8382 = vmatmul.mubr.bf16.gmra.mxu0 %v692
        %v8383 = vpop.f32.mrf.mxu0
        %v8384 = vadd.f32 %v8271, %v8383
        %v8385 = vpop.f32.mrf.mxu0
        %v8386 = vadd.f32 %v8273, %v8385
        %v8387 = vpop.f32.mrf.mxu0
        %v8388 = vadd.f32 %v8275, %v8387
        %v8389 = vpop.f32.mrf.mxu0
        %v8390 = vadd.f32 %v8277, %v8389
        %8391 = vmatprep.mubr.bf16.mxu0 %v7404
        %8392 = vmatmul.mubr.bf16.gmra.mxu0 %v710
        %v8393 = vpop.f32.mrf.mxu0
        %v8394 = vadd.f32 %v8281, %v8393
        %v8395 = vpop.f32.mrf.mxu0
        %v8396 = vadd.f32 %v8283, %v8395
        %v8397 = vpop.f32.mrf.mxu0
        %v8398 = vadd.f32 %v8285, %v8397
        %v8399 = vpop.f32.mrf.mxu0
        %v8400 = vadd.f32 %v8287, %v8399
        %8401 = vmatprep.mubr.bf16.mxu0 %v7407
        %8402 = vmatmul.mubr.bf16.gmra.mxu0 %v728
        %v8403 = vpop.f32.mrf.mxu0
        %v8404 = vadd.f32 %v8291, %v8403
        %v8405 = vpop.f32.mrf.mxu0
        %v8406 = vadd.f32 %v8293, %v8405
        %v8407 = vpop.f32.mrf.mxu0
        %v8408 = vadd.f32 %v8295, %v8407
        %v8409 = vpop.f32.mrf.mxu0
        %v8410 = vadd.f32 %v8297, %v8409
        %8411 = vmatprep.mubr.bf16.mxu0 %v7410
        %8412 = vmatmul.mubr.bf16.gmra.mxu0 %v746
        %v8413 = vpop.f32.mrf.mxu0
        %v8414 = vadd.f32 %v8301, %v8413
        %v8415 = vpop.f32.mrf.mxu0
        %v8416 = vadd.f32 %v8303, %v8415
        %v8417 = vpop.f32.mrf.mxu0
        %v8418 = vadd.f32 %v8305, %v8417
        %v8419 = vpop.f32.mrf.mxu0
        %v8420 = vadd.f32 %v8307, %v8419
        %8421 = vmatprep.mubr.bf16.mxu0 %v7413
        %8422 = vmatmul.mubr.bf16.gmra.mxu0 %v764
        %v8423 = vpop.f32.mrf.mxu0
        %v8424 = vadd.f32 %v8311, %v8423
        %v8425 = vpop.f32.mrf.mxu0
        %v8426 = vadd.f32 %v8313, %v8425
        %v8427 = vpop.f32.mrf.mxu0
        %v8428 = vadd.f32 %v8315, %v8427
        %v8429 = vpop.f32.mrf.mxu0
        %v8430 = vadd.f32 %v8317, %v8429
        %8431 = vdwg.mxu0
        %8432 = vmatprep.subr.bf16.mxu0 %v5241
        %8433 = vmatpush1.bf16.msra.mxu0 %v5240
        %8434 = vmatprep.subr.bf16.mxu0 %v5233
        %8435 = vmatpush1.bf16.msra.mxu0 %v5232
        %8436 = vmatprep.subr.bf16.mxu0 %v5225
        %8437 = vmatpush1.bf16.msra.mxu0 %v5224
        %8438 = vmatprep.subr.bf16.mxu0 %v5217
        %8439 = vmatpush1.bf16.msra.mxu0 %v5216
        %8440 = vmatprep.subr.bf16.mxu0 %v5209
        %8441 = vmatpush1.bf16.msra.mxu0 %v5208
        %8442 = vmatprep.subr.bf16.mxu0 %v5201
        %8443 = vmatpush1.bf16.msra.mxu0 %v5200
        %8444 = vmatprep.subr.bf16.mxu0 %v5193
        %8445 = vmatpush1.bf16.msra.mxu0 %v5192
        %8446 = vmatprep.subr.bf16.mxu0 %v5185
        %8447 = vmatpush1.bf16.msra.mxu0 %v5184
        %8448 = vmatprep.subr.bf16.mxu0 %v5305
        %8449 = vmatpush2.bf16.msra.mxu0 %v5304
        %8450 = vmatprep.subr.bf16.mxu0 %v5297
        %8451 = vmatpush2.bf16.msra.mxu0 %v5296
        %8452 = vmatprep.subr.bf16.mxu0 %v5289
        %8453 = vmatpush2.bf16.msra.mxu0 %v5288
        %8454 = vmatprep.subr.bf16.mxu0 %v5281
        %8455 = vmatpush2.bf16.msra.mxu0 %v5280
        %8456 = vmatprep.subr.bf16.mxu0 %v5273
        %8457 = vmatpush2.bf16.msra.mxu0 %v5272
        %8458 = vmatprep.subr.bf16.mxu0 %v5265
        %8459 = vmatpush2.bf16.msra.mxu0 %v5264
        %8460 = vmatprep.subr.bf16.mxu0 %v5257
        %8461 = vmatpush2.bf16.msra.mxu0 %v5256
        %8462 = vmatprep.subr.bf16.mxu0 %v5249
        %8463 = vmatpush2.bf16.msra.mxu0 %v5248
        %8464 = vmatprep.mubr.bf16.mxu0 %v623
        %8465 = vmatmul.mubr.bf16.gmra.mxu0 %v622
        %v8466 = vpop.f32.mrf.mxu0
        %v8467 = vadd.f32 0.0, %v8466
        %v8468 = vpop.f32.mrf.mxu0
        %v8469 = vadd.f32 0.0, %v8468
        %v8470 = vpop.f32.mrf.mxu0
        %v8471 = vadd.f32 0.0, %v8470
        %v8472 = vpop.f32.mrf.mxu0
        %v8473 = vadd.f32 0.0, %v8472
        %8474 = vmatprep.mubr.bf16.mxu0 %v641
        %8475 = vmatmul.mubr.bf16.gmra.mxu0 %v640
        %v8476 = vpop.f32.mrf.mxu0
        %v8477 = vadd.f32 0.0, %v8476
        %v8478 = vpop.f32.mrf.mxu0
        %v8479 = vadd.f32 0.0, %v8478
        %v8480 = vpop.f32.mrf.mxu0
        %v8481 = vadd.f32 0.0, %v8480
        %v8482 = vpop.f32.mrf.mxu0
        %v8483 = vadd.f32 0.0, %v8482
        %8484 = vmatprep.mubr.bf16.mxu0 %v659
        %8485 = vmatmul.mubr.bf16.gmra.mxu0 %v658
        %v8486 = vpop.f32.mrf.mxu0
        %v8487 = vadd.f32 0.0, %v8486
        %v8488 = vpop.f32.mrf.mxu0
        %v8489 = vadd.f32 0.0, %v8488
        %v8490 = vpop.f32.mrf.mxu0
        %v8491 = vadd.f32 0.0, %v8490
        %v8492 = vpop.f32.mrf.mxu0
        %v8493 = vadd.f32 0.0, %v8492
        %8494 = vmatprep.mubr.bf16.mxu0 %v677
        %8495 = vmatmul.mubr.bf16.gmra.mxu0 %v676
        %v8496 = vpop.f32.mrf.mxu0
        %v8497 = vadd.f32 0.0, %v8496
        %v8498 = vpop.f32.mrf.mxu0
        %v8499 = vadd.f32 0.0, %v8498
        %v8500 = vpop.f32.mrf.mxu0
        %v8501 = vadd.f32 0.0, %v8500
        %v8502 = vpop.f32.mrf.mxu0
        %v8503 = vadd.f32 0.0, %v8502
        %8504 = vmatprep.mubr.bf16.mxu0 %v695
        %8505 = vmatmul.mubr.bf16.gmra.mxu0 %v694
        %v8506 = vpop.f32.mrf.mxu0
        %v8507 = vadd.f32 0.0, %v8506
        %v8508 = vpop.f32.mrf.mxu0
        %v8509 = vadd.f32 0.0, %v8508
        %v8510 = vpop.f32.mrf.mxu0
        %v8511 = vadd.f32 0.0, %v8510
        %v8512 = vpop.f32.mrf.mxu0
        %v8513 = vadd.f32 0.0, %v8512
        %8514 = vmatprep.mubr.bf16.mxu0 %v713
        %8515 = vmatmul.mubr.bf16.gmra.mxu0 %v712
        %v8516 = vpop.f32.mrf.mxu0
        %v8517 = vadd.f32 0.0, %v8516
        %v8518 = vpop.f32.mrf.mxu0
        %v8519 = vadd.f32 0.0, %v8518
        %v8520 = vpop.f32.mrf.mxu0
        %v8521 = vadd.f32 0.0, %v8520
        %v8522 = vpop.f32.mrf.mxu0
        %v8523 = vadd.f32 0.0, %v8522
        %8524 = vmatprep.mubr.bf16.mxu0 %v731
        %8525 = vmatmul.mubr.bf16.gmra.mxu0 %v730
        %v8526 = vpop.f32.mrf.mxu0
        %v8527 = vadd.f32 0.0, %v8526
        %v8528 = vpop.f32.mrf.mxu0
        %v8529 = vadd.f32 0.0, %v8528
        %v8530 = vpop.f32.mrf.mxu0
        %v8531 = vadd.f32 0.0, %v8530
        %v8532 = vpop.f32.mrf.mxu0
        %v8533 = vadd.f32 0.0, %v8532
        %8534 = vmatprep.mubr.bf16.mxu0 %v749
        %8535 = vmatmul.mubr.bf16.gmra.mxu0 %v748
        %v8536 = vpop.f32.mrf.mxu0
        %v8537 = vadd.f32 0.0, %v8536
        %v8538 = vpop.f32.mrf.mxu0
        %v8539 = vadd.f32 0.0, %v8538
        %v8540 = vpop.f32.mrf.mxu0
        %v8541 = vadd.f32 0.0, %v8540
        %v8542 = vpop.f32.mrf.mxu0
        %v8543 = vadd.f32 0.0, %v8542
        %8544 = vdwg.mxu0
        %8545 = vmatprep.subr.bf16.mxu0 %v5369
        %8546 = vmatpush1.bf16.msra.mxu0 %v5368
        %8547 = vmatprep.subr.bf16.mxu0 %v5361
        %8548 = vmatpush1.bf16.msra.mxu0 %v5360
        %8549 = vmatprep.subr.bf16.mxu0 %v5353
        %8550 = vmatpush1.bf16.msra.mxu0 %v5352
        %8551 = vmatprep.subr.bf16.mxu0 %v5345
        %8552 = vmatpush1.bf16.msra.mxu0 %v5344
        %8553 = vmatprep.subr.bf16.mxu0 %v5337
        %8554 = vmatpush1.bf16.msra.mxu0 %v5336
        %8555 = vmatprep.subr.bf16.mxu0 %v5329
        %8556 = vmatpush1.bf16.msra.mxu0 %v5328
        %8557 = vmatprep.subr.bf16.mxu0 %v5321
        %8558 = vmatpush1.bf16.msra.mxu0 %v5320
        %8559 = vmatprep.subr.bf16.mxu0 %v5313
        %8560 = vmatpush1.bf16.msra.mxu0 %v5312
        %8561 = vmatprep.subr.bf16.mxu0 %v5433
        %8562 = vmatpush2.bf16.msra.mxu0 %v5432
        %8563 = vmatprep.subr.bf16.mxu0 %v5425
        %8564 = vmatpush2.bf16.msra.mxu0 %v5424
        %8565 = vmatprep.subr.bf16.mxu0 %v5417
        %8566 = vmatpush2.bf16.msra.mxu0 %v5416
        %8567 = vmatprep.subr.bf16.mxu0 %v5409
        %8568 = vmatpush2.bf16.msra.mxu0 %v5408
        %8569 = vmatprep.subr.bf16.mxu0 %v5401
        %8570 = vmatpush2.bf16.msra.mxu0 %v5400
        %8571 = vmatprep.subr.bf16.mxu0 %v5393
        %8572 = vmatpush2.bf16.msra.mxu0 %v5392
        %8573 = vmatprep.subr.bf16.mxu0 %v5385
        %8574 = vmatpush2.bf16.msra.mxu0 %v5384
        %8575 = vmatprep.subr.bf16.mxu0 %v5377
        %8576 = vmatpush2.bf16.msra.mxu0 %v5376
        %8577 = vmatprep.mubr.bf16.mxu0 %v625
        %8578 = vmatmul.mubr.bf16.gmra.mxu0 %v624
        %v8579 = vpop.f32.mrf.mxu0
        %v8580 = vadd.f32 %v8467, %v8579
        %v8581 = vpop.f32.mrf.mxu0
        %v8582 = vadd.f32 %v8469, %v8581
        %v8583 = vpop.f32.mrf.mxu0
        %v8584 = vadd.f32 %v8471, %v8583
        %v8585 = vpop.f32.mrf.mxu0
        %v8586 = vadd.f32 %v8473, %v8585
        %8587 = vmatprep.mubr.bf16.mxu0 %v643
        %8588 = vmatmul.mubr.bf16.gmra.mxu0 %v642
        %v8589 = vpop.f32.mrf.mxu0
        %v8590 = vadd.f32 %v8477, %v8589
        %v8591 = vpop.f32.mrf.mxu0
        %v8592 = vadd.f32 %v8479, %v8591
        %v8593 = vpop.f32.mrf.mxu0
        %v8594 = vadd.f32 %v8481, %v8593
        %v8595 = vpop.f32.mrf.mxu0
        %v8596 = vadd.f32 %v8483, %v8595
        %8597 = vmatprep.mubr.bf16.mxu0 %v661
        %8598 = vmatmul.mubr.bf16.gmra.mxu0 %v660
        %v8599 = vpop.f32.mrf.mxu0
        %v8600 = vadd.f32 %v8487, %v8599
        %v8601 = vpop.f32.mrf.mxu0
        %v8602 = vadd.f32 %v8489, %v8601
        %v8603 = vpop.f32.mrf.mxu0
        %v8604 = vadd.f32 %v8491, %v8603
        %v8605 = vpop.f32.mrf.mxu0
        %v8606 = vadd.f32 %v8493, %v8605
        %8607 = vmatprep.mubr.bf16.mxu0 %v679
        %8608 = vmatmul.mubr.bf16.gmra.mxu0 %v678
        %v8609 = vpop.f32.mrf.mxu0
        %v8610 = vadd.f32 %v8497, %v8609
        %v8611 = vpop.f32.mrf.mxu0
        %v8612 = vadd.f32 %v8499, %v8611
        %v8613 = vpop.f32.mrf.mxu0
        %v8614 = vadd.f32 %v8501, %v8613
        %v8615 = vpop.f32.mrf.mxu0
        %v8616 = vadd.f32 %v8503, %v8615
        %8617 = vmatprep.mubr.bf16.mxu0 %v697
        %8618 = vmatmul.mubr.bf16.gmra.mxu0 %v696
        %v8619 = vpop.f32.mrf.mxu0
        %v8620 = vadd.f32 %v8507, %v8619
        %v8621 = vpop.f32.mrf.mxu0
        %v8622 = vadd.f32 %v8509, %v8621
        %v8623 = vpop.f32.mrf.mxu0
        %v8624 = vadd.f32 %v8511, %v8623
        %v8625 = vpop.f32.mrf.mxu0
        %v8626 = vadd.f32 %v8513, %v8625
        %8627 = vmatprep.mubr.bf16.mxu0 %v715
        %8628 = vmatmul.mubr.bf16.gmra.mxu0 %v714
        %v8629 = vpop.f32.mrf.mxu0
        %v8630 = vadd.f32 %v8517, %v8629
        %v8631 = vpop.f32.mrf.mxu0
        %v8632 = vadd.f32 %v8519, %v8631
        %v8633 = vpop.f32.mrf.mxu0
        %v8634 = vadd.f32 %v8521, %v8633
        %v8635 = vpop.f32.mrf.mxu0
        %v8636 = vadd.f32 %v8523, %v8635
        %8637 = vmatprep.mubr.bf16.mxu0 %v733
        %8638 = vmatmul.mubr.bf16.gmra.mxu0 %v732
        %v8639 = vpop.f32.mrf.mxu0
        %v8640 = vadd.f32 %v8527, %v8639
        %v8641 = vpop.f32.mrf.mxu0
        %v8642 = vadd.f32 %v8529, %v8641
        %v8643 = vpop.f32.mrf.mxu0
        %v8644 = vadd.f32 %v8531, %v8643
        %v8645 = vpop.f32.mrf.mxu0
        %v8646 = vadd.f32 %v8533, %v8645
        %8647 = vmatprep.mubr.bf16.mxu0 %v751
        %8648 = vmatmul.mubr.bf16.gmra.mxu0 %v750
        %v8649 = vpop.f32.mrf.mxu0
        %v8650 = vadd.f32 %v8537, %v8649
        %v8651 = vpop.f32.mrf.mxu0
        %v8652 = vadd.f32 %v8539, %v8651
        %v8653 = vpop.f32.mrf.mxu0
        %v8654 = vadd.f32 %v8541, %v8653
        %v8655 = vpop.f32.mrf.mxu0
        %v8656 = vadd.f32 %v8543, %v8655
        %8657 = vdwg.mxu0
        %8658 = vmatprep.subr.bf16.mxu0 %v5497
        %8659 = vmatpush1.bf16.msra.mxu0 %v5496
        %8660 = vmatprep.subr.bf16.mxu0 %v5489
        %8661 = vmatpush1.bf16.msra.mxu0 %v5488
        %8662 = vmatprep.subr.bf16.mxu0 %v5481
        %8663 = vmatpush1.bf16.msra.mxu0 %v5480
        %8664 = vmatprep.subr.bf16.mxu0 %v5473
        %8665 = vmatpush1.bf16.msra.mxu0 %v5472
        %8666 = vmatprep.subr.bf16.mxu0 %v5465
        %8667 = vmatpush1.bf16.msra.mxu0 %v5464
        %8668 = vmatprep.subr.bf16.mxu0 %v5457
        %8669 = vmatpush1.bf16.msra.mxu0 %v5456
        %8670 = vmatprep.subr.bf16.mxu0 %v5449
        %8671 = vmatpush1.bf16.msra.mxu0 %v5448
        %8672 = vmatprep.subr.bf16.mxu0 %v5441
        %8673 = vmatpush1.bf16.msra.mxu0 %v5440
        %8674 = vmatprep.subr.bf16.mxu0 %v5561
        %8675 = vmatpush2.bf16.msra.mxu0 %v5560
        %8676 = vmatprep.subr.bf16.mxu0 %v5553
        %8677 = vmatpush2.bf16.msra.mxu0 %v5552
        %8678 = vmatprep.subr.bf16.mxu0 %v5545
        %8679 = vmatpush2.bf16.msra.mxu0 %v5544
        %8680 = vmatprep.subr.bf16.mxu0 %v5537
        %8681 = vmatpush2.bf16.msra.mxu0 %v5536
        %8682 = vmatprep.subr.bf16.mxu0 %v5529
        %8683 = vmatpush2.bf16.msra.mxu0 %v5528
        %8684 = vmatprep.subr.bf16.mxu0 %v5521
        %8685 = vmatpush2.bf16.msra.mxu0 %v5520
        %8686 = vmatprep.subr.bf16.mxu0 %v5513
        %8687 = vmatpush2.bf16.msra.mxu0 %v5512
        %8688 = vmatprep.subr.bf16.mxu0 %v5505
        %8689 = vmatpush2.bf16.msra.mxu0 %v5504
        %8690 = vmatprep.mubr.bf16.mxu0 %v627
        %8691 = vmatmul.mubr.bf16.gmra.mxu0 %v626
        %v8692 = vpop.f32.mrf.mxu0
        %v8693 = vadd.f32 %v8580, %v8692
        %v8694 = vpop.f32.mrf.mxu0
        %v8695 = vadd.f32 %v8582, %v8694
        %v8696 = vpop.f32.mrf.mxu0
        %v8697 = vadd.f32 %v8584, %v8696
        %v8698 = vpop.f32.mrf.mxu0
        %v8699 = vadd.f32 %v8586, %v8698
        %8700 = vmatprep.mubr.bf16.mxu0 %v645
        %8701 = vmatmul.mubr.bf16.gmra.mxu0 %v644
        %v8702 = vpop.f32.mrf.mxu0
        %v8703 = vadd.f32 %v8590, %v8702
        %v8704 = vpop.f32.mrf.mxu0
        %v8705 = vadd.f32 %v8592, %v8704
        %v8706 = vpop.f32.mrf.mxu0
        %v8707 = vadd.f32 %v8594, %v8706
        %v8708 = vpop.f32.mrf.mxu0
        %v8709 = vadd.f32 %v8596, %v8708
        %8710 = vmatprep.mubr.bf16.mxu0 %v663
        %8711 = vmatmul.mubr.bf16.gmra.mxu0 %v662
        %v8712 = vpop.f32.mrf.mxu0
        %v8713 = vadd.f32 %v8600, %v8712
        %v8714 = vpop.f32.mrf.mxu0
        %v8715 = vadd.f32 %v8602, %v8714
        %v8716 = vpop.f32.mrf.mxu0
        %v8717 = vadd.f32 %v8604, %v8716
        %v8718 = vpop.f32.mrf.mxu0
        %v8719 = vadd.f32 %v8606, %v8718
        %8720 = vmatprep.mubr.bf16.mxu0 %v681
        %8721 = vmatmul.mubr.bf16.gmra.mxu0 %v680
        %v8722 = vpop.f32.mrf.mxu0
        %v8723 = vadd.f32 %v8610, %v8722
        %v8724 = vpop.f32.mrf.mxu0
        %v8725 = vadd.f32 %v8612, %v8724
        %v8726 = vpop.f32.mrf.mxu0
        %v8727 = vadd.f32 %v8614, %v8726
        %v8728 = vpop.f32.mrf.mxu0
        %v8729 = vadd.f32 %v8616, %v8728
        %8730 = vmatprep.mubr.bf16.mxu0 %v699
        %8731 = vmatmul.mubr.bf16.gmra.mxu0 %v698
        %v8732 = vpop.f32.mrf.mxu0
        %v8733 = vadd.f32 %v8620, %v8732
        %v8734 = vpop.f32.mrf.mxu0
        %v8735 = vadd.f32 %v8622, %v8734
        %v8736 = vpop.f32.mrf.mxu0
        %v8737 = vadd.f32 %v8624, %v8736
        %v8738 = vpop.f32.mrf.mxu0
        %v8739 = vadd.f32 %v8626, %v8738
        %8740 = vmatprep.mubr.bf16.mxu0 %v717
        %8741 = vmatmul.mubr.bf16.gmra.mxu0 %v716
        %v8742 = vpop.f32.mrf.mxu0
        %v8743 = vadd.f32 %v8630, %v8742
        %v8744 = vpop.f32.mrf.mxu0
        %v8745 = vadd.f32 %v8632, %v8744
        %v8746 = vpop.f32.mrf.mxu0
        %v8747 = vadd.f32 %v8634, %v8746
        %v8748 = vpop.f32.mrf.mxu0
        %v8749 = vadd.f32 %v8636, %v8748
        %8750 = vmatprep.mubr.bf16.mxu0 %v735
        %8751 = vmatmul.mubr.bf16.gmra.mxu0 %v734
        %v8752 = vpop.f32.mrf.mxu0
        %v8753 = vadd.f32 %v8640, %v8752
        %v8754 = vpop.f32.mrf.mxu0
        %v8755 = vadd.f32 %v8642, %v8754
        %v8756 = vpop.f32.mrf.mxu0
        %v8757 = vadd.f32 %v8644, %v8756
        %v8758 = vpop.f32.mrf.mxu0
        %v8759 = vadd.f32 %v8646, %v8758
        %8760 = vmatprep.mubr.bf16.mxu0 %v753
        %8761 = vmatmul.mubr.bf16.gmra.mxu0 %v752
        %v8762 = vpop.f32.mrf.mxu0
        %v8763 = vadd.f32 %v8650, %v8762
        %v8764 = vpop.f32.mrf.mxu0
        %v8765 = vadd.f32 %v8652, %v8764
        %v8766 = vpop.f32.mrf.mxu0
        %v8767 = vadd.f32 %v8654, %v8766
        %v8768 = vpop.f32.mrf.mxu0
        %v8769 = vadd.f32 %v8656, %v8768
        %8770 = vdwg.mxu0
        %8771 = vmatprep.subr.bf16.mxu0 %v5625
        %8772 = vmatpush1.bf16.msra.mxu0 %v5624
        %8773 = vmatprep.subr.bf16.mxu0 %v5617
        %8774 = vmatpush1.bf16.msra.mxu0 %v5616
        %8775 = vmatprep.subr.bf16.mxu0 %v5609
        %8776 = vmatpush1.bf16.msra.mxu0 %v5608
        %8777 = vmatprep.subr.bf16.mxu0 %v5601
        %8778 = vmatpush1.bf16.msra.mxu0 %v5600
        %8779 = vmatprep.subr.bf16.mxu0 %v5593
        %8780 = vmatpush1.bf16.msra.mxu0 %v5592
        %8781 = vmatprep.subr.bf16.mxu0 %v5585
        %8782 = vmatpush1.bf16.msra.mxu0 %v5584
        %8783 = vmatprep.subr.bf16.mxu0 %v5577
        %8784 = vmatpush1.bf16.msra.mxu0 %v5576
        %8785 = vmatprep.subr.bf16.mxu0 %v5569
        %8786 = vmatpush1.bf16.msra.mxu0 %v5568
        %8787 = vmatprep.subr.bf16.mxu0 %v5689
        %8788 = vmatpush2.bf16.msra.mxu0 %v5688
        %8789 = vmatprep.subr.bf16.mxu0 %v5681
        %8790 = vmatpush2.bf16.msra.mxu0 %v5680
        %8791 = vmatprep.subr.bf16.mxu0 %v5673
        %8792 = vmatpush2.bf16.msra.mxu0 %v5672
        %8793 = vmatprep.subr.bf16.mxu0 %v5665
        %8794 = vmatpush2.bf16.msra.mxu0 %v5664
        %8795 = vmatprep.subr.bf16.mxu0 %v5657
        %8796 = vmatpush2.bf16.msra.mxu0 %v5656
        %8797 = vmatprep.subr.bf16.mxu0 %v5649
        %8798 = vmatpush2.bf16.msra.mxu0 %v5648
        %8799 = vmatprep.subr.bf16.mxu0 %v5641
        %8800 = vmatpush2.bf16.msra.mxu0 %v5640
        %8801 = vmatprep.subr.bf16.mxu0 %v5633
        %8802 = vmatpush2.bf16.msra.mxu0 %v5632
        %8803 = vmatprep.mubr.bf16.mxu0 %v629
        %8804 = vmatmul.mubr.bf16.gmra.mxu0 %v628
        %v8805 = vpop.f32.mrf.mxu0
        %v8806 = vadd.f32 %v8693, %v8805
        %v8807 = vpop.f32.mrf.mxu0
        %v8808 = vadd.f32 %v8695, %v8807
        %v8809 = vpop.f32.mrf.mxu0
        %v8810 = vadd.f32 %v8697, %v8809
        %v8811 = vpop.f32.mrf.mxu0
        %v8812 = vadd.f32 %v8699, %v8811
        %8813 = vmatprep.mubr.bf16.mxu0 %v647
        %8814 = vmatmul.mubr.bf16.gmra.mxu0 %v646
        %v8815 = vpop.f32.mrf.mxu0
        %v8816 = vadd.f32 %v8703, %v8815
        %v8817 = vpop.f32.mrf.mxu0
        %v8818 = vadd.f32 %v8705, %v8817
        %v8819 = vpop.f32.mrf.mxu0
        %v8820 = vadd.f32 %v8707, %v8819
        %v8821 = vpop.f32.mrf.mxu0
        %v8822 = vadd.f32 %v8709, %v8821
        %8823 = vmatprep.mubr.bf16.mxu0 %v665
        %8824 = vmatmul.mubr.bf16.gmra.mxu0 %v664
        %v8825 = vpop.f32.mrf.mxu0
        %v8826 = vadd.f32 %v8713, %v8825
        %v8827 = vpop.f32.mrf.mxu0
        %v8828 = vadd.f32 %v8715, %v8827
        %v8829 = vpop.f32.mrf.mxu0
        %v8830 = vadd.f32 %v8717, %v8829
        %v8831 = vpop.f32.mrf.mxu0
        %v8832 = vadd.f32 %v8719, %v8831
        %8833 = vmatprep.mubr.bf16.mxu0 %v683
        %8834 = vmatmul.mubr.bf16.gmra.mxu0 %v682
        %v8835 = vpop.f32.mrf.mxu0
        %v8836 = vadd.f32 %v8723, %v8835
        %v8837 = vpop.f32.mrf.mxu0
        %v8838 = vadd.f32 %v8725, %v8837
        %v8839 = vpop.f32.mrf.mxu0
        %v8840 = vadd.f32 %v8727, %v8839
        %v8841 = vpop.f32.mrf.mxu0
        %v8842 = vadd.f32 %v8729, %v8841
        %8843 = vmatprep.mubr.bf16.mxu0 %v701
        %8844 = vmatmul.mubr.bf16.gmra.mxu0 %v700
        %v8845 = vpop.f32.mrf.mxu0
        %v8846 = vadd.f32 %v8733, %v8845
        %v8847 = vpop.f32.mrf.mxu0
        %v8848 = vadd.f32 %v8735, %v8847
        %v8849 = vpop.f32.mrf.mxu0
        %v8850 = vadd.f32 %v8737, %v8849
        %v8851 = vpop.f32.mrf.mxu0
        %v8852 = vadd.f32 %v8739, %v8851
        %8853 = vmatprep.mubr.bf16.mxu0 %v719
        %8854 = vmatmul.mubr.bf16.gmra.mxu0 %v718
        %v8855 = vpop.f32.mrf.mxu0
        %v8856 = vadd.f32 %v8743, %v8855
        %v8857 = vpop.f32.mrf.mxu0
        %v8858 = vadd.f32 %v8745, %v8857
        %v8859 = vpop.f32.mrf.mxu0
        %v8860 = vadd.f32 %v8747, %v8859
        %v8861 = vpop.f32.mrf.mxu0
        %v8862 = vadd.f32 %v8749, %v8861
        %8863 = vmatprep.mubr.bf16.mxu0 %v737
        %8864 = vmatmul.mubr.bf16.gmra.mxu0 %v736
        %v8865 = vpop.f32.mrf.mxu0
        %v8866 = vadd.f32 %v8753, %v8865
        %v8867 = vpop.f32.mrf.mxu0
        %v8868 = vadd.f32 %v8755, %v8867
        %v8869 = vpop.f32.mrf.mxu0
        %v8870 = vadd.f32 %v8757, %v8869
        %v8871 = vpop.f32.mrf.mxu0
        %v8872 = vadd.f32 %v8759, %v8871
        %8873 = vmatprep.mubr.bf16.mxu0 %v755
        %8874 = vmatmul.mubr.bf16.gmra.mxu0 %v754
        %v8875 = vpop.f32.mrf.mxu0
        %v8876 = vadd.f32 %v8763, %v8875
        %v8877 = vpop.f32.mrf.mxu0
        %v8878 = vadd.f32 %v8765, %v8877
        %v8879 = vpop.f32.mrf.mxu0
        %v8880 = vadd.f32 %v8767, %v8879
        %v8881 = vpop.f32.mrf.mxu0
        %v8882 = vadd.f32 %v8769, %v8881
        %8883 = vdwg.mxu0
        %8884 = vmatprep.subr.bf16.mxu0 %v5753
        %8885 = vmatpush1.bf16.msra.mxu0 %v5752
        %8886 = vmatprep.subr.bf16.mxu0 %v5745
        %8887 = vmatpush1.bf16.msra.mxu0 %v5744
        %8888 = vmatprep.subr.bf16.mxu0 %v5737
        %8889 = vmatpush1.bf16.msra.mxu0 %v5736
        %8890 = vmatprep.subr.bf16.mxu0 %v5729
        %8891 = vmatpush1.bf16.msra.mxu0 %v5728
        %8892 = vmatprep.subr.bf16.mxu0 %v5721
        %8893 = vmatpush1.bf16.msra.mxu0 %v5720
        %8894 = vmatprep.subr.bf16.mxu0 %v5713
        %8895 = vmatpush1.bf16.msra.mxu0 %v5712
        %8896 = vmatprep.subr.bf16.mxu0 %v5705
        %8897 = vmatpush1.bf16.msra.mxu0 %v5704
        %8898 = vmatprep.subr.bf16.mxu0 %v5697
        %8899 = vmatpush1.bf16.msra.mxu0 %v5696
        %8900 = vmatprep.subr.bf16.mxu0 %v5817
        %8901 = vmatpush2.bf16.msra.mxu0 %v5816
        %8902 = vmatprep.subr.bf16.mxu0 %v5809
        %8903 = vmatpush2.bf16.msra.mxu0 %v5808
        %8904 = vmatprep.subr.bf16.mxu0 %v5801
        %8905 = vmatpush2.bf16.msra.mxu0 %v5800
        %8906 = vmatprep.subr.bf16.mxu0 %v5793
        %8907 = vmatpush2.bf16.msra.mxu0 %v5792
        %8908 = vmatprep.subr.bf16.mxu0 %v5785
        %8909 = vmatpush2.bf16.msra.mxu0 %v5784
        %8910 = vmatprep.subr.bf16.mxu0 %v5777
        %8911 = vmatpush2.bf16.msra.mxu0 %v5776
        %8912 = vmatprep.subr.bf16.mxu0 %v5769
        %8913 = vmatpush2.bf16.msra.mxu0 %v5768
        %8914 = vmatprep.subr.bf16.mxu0 %v5761
        %8915 = vmatpush2.bf16.msra.mxu0 %v5760
        %8916 = vmatprep.mubr.bf16.mxu0 %v631
        %8917 = vmatmul.mubr.bf16.gmra.mxu0 %v630
        %v8918 = vpop.f32.mrf.mxu0
        %v8919 = vadd.f32 %v8806, %v8918
        %v8920 = vpop.f32.mrf.mxu0
        %v8921 = vadd.f32 %v8808, %v8920
        %v8922 = vpop.f32.mrf.mxu0
        %v8923 = vadd.f32 %v8810, %v8922
        %v8924 = vpop.f32.mrf.mxu0
        %v8925 = vadd.f32 %v8812, %v8924
        %8926 = vmatprep.mubr.bf16.mxu0 %v649
        %8927 = vmatmul.mubr.bf16.gmra.mxu0 %v648
        %v8928 = vpop.f32.mrf.mxu0
        %v8929 = vadd.f32 %v8816, %v8928
        %v8930 = vpop.f32.mrf.mxu0
        %v8931 = vadd.f32 %v8818, %v8930
        %v8932 = vpop.f32.mrf.mxu0
        %v8933 = vadd.f32 %v8820, %v8932
        %v8934 = vpop.f32.mrf.mxu0
        %v8935 = vadd.f32 %v8822, %v8934
        %8936 = vmatprep.mubr.bf16.mxu0 %v667
        %8937 = vmatmul.mubr.bf16.gmra.mxu0 %v666
        %v8938 = vpop.f32.mrf.mxu0
        %v8939 = vadd.f32 %v8826, %v8938
        %v8940 = vpop.f32.mrf.mxu0
        %v8941 = vadd.f32 %v8828, %v8940
        %v8942 = vpop.f32.mrf.mxu0
        %v8943 = vadd.f32 %v8830, %v8942
        %v8944 = vpop.f32.mrf.mxu0
        %v8945 = vadd.f32 %v8832, %v8944
        %8946 = vmatprep.mubr.bf16.mxu0 %v685
        %8947 = vmatmul.mubr.bf16.gmra.mxu0 %v684
        %v8948 = vpop.f32.mrf.mxu0
        %v8949 = vadd.f32 %v8836, %v8948
        %v8950 = vpop.f32.mrf.mxu0
        %v8951 = vadd.f32 %v8838, %v8950
        %v8952 = vpop.f32.mrf.mxu0
        %v8953 = vadd.f32 %v8840, %v8952
        %v8954 = vpop.f32.mrf.mxu0
        %v8955 = vadd.f32 %v8842, %v8954
        %8956 = vmatprep.mubr.bf16.mxu0 %v703
        %8957 = vmatmul.mubr.bf16.gmra.mxu0 %v702
        %v8958 = vpop.f32.mrf.mxu0
        %v8959 = vadd.f32 %v8846, %v8958
        %v8960 = vpop.f32.mrf.mxu0
        %v8961 = vadd.f32 %v8848, %v8960
        %v8962 = vpop.f32.mrf.mxu0
        %v8963 = vadd.f32 %v8850, %v8962
        %v8964 = vpop.f32.mrf.mxu0
        %v8965 = vadd.f32 %v8852, %v8964
        %8966 = vmatprep.mubr.bf16.mxu0 %v721
        %8967 = vmatmul.mubr.bf16.gmra.mxu0 %v720
        %v8968 = vpop.f32.mrf.mxu0
        %v8969 = vadd.f32 %v8856, %v8968
        %v8970 = vpop.f32.mrf.mxu0
        %v8971 = vadd.f32 %v8858, %v8970
        %v8972 = vpop.f32.mrf.mxu0
        %v8973 = vadd.f32 %v8860, %v8972
        %v8974 = vpop.f32.mrf.mxu0
        %v8975 = vadd.f32 %v8862, %v8974
        %8976 = vmatprep.mubr.bf16.mxu0 %v739
        %8977 = vmatmul.mubr.bf16.gmra.mxu0 %v738
        %v8978 = vpop.f32.mrf.mxu0
        %v8979 = vadd.f32 %v8866, %v8978
        %v8980 = vpop.f32.mrf.mxu0
        %v8981 = vadd.f32 %v8868, %v8980
        %v8982 = vpop.f32.mrf.mxu0
        %v8983 = vadd.f32 %v8870, %v8982
        %v8984 = vpop.f32.mrf.mxu0
        %v8985 = vadd.f32 %v8872, %v8984
        %8986 = vmatprep.mubr.bf16.mxu0 %v757
        %8987 = vmatmul.mubr.bf16.gmra.mxu0 %v756
        %v8988 = vpop.f32.mrf.mxu0
        %v8989 = vadd.f32 %v8876, %v8988
        %v8990 = vpop.f32.mrf.mxu0
        %v8991 = vadd.f32 %v8878, %v8990
        %v8992 = vpop.f32.mrf.mxu0
        %v8993 = vadd.f32 %v8880, %v8992
        %v8994 = vpop.f32.mrf.mxu0
        %v8995 = vadd.f32 %v8882, %v8994
        %8996 = vdwg.mxu0
        %8997 = vmatprep.subr.bf16.mxu0 %v5881
        %8998 = vmatpush1.bf16.msra.mxu0 %v5880
        %8999 = vmatprep.subr.bf16.mxu0 %v5873
        %9000 = vmatpush1.bf16.msra.mxu0 %v5872
        %9001 = vmatprep.subr.bf16.mxu0 %v5865
        %9002 = vmatpush1.bf16.msra.mxu0 %v5864
        %9003 = vmatprep.subr.bf16.mxu0 %v5857
        %9004 = vmatpush1.bf16.msra.mxu0 %v5856
        %9005 = vmatprep.subr.bf16.mxu0 %v5849
        %9006 = vmatpush1.bf16.msra.mxu0 %v5848
        %9007 = vmatprep.subr.bf16.mxu0 %v5841
        %9008 = vmatpush1.bf16.msra.mxu0 %v5840
        %9009 = vmatprep.subr.bf16.mxu0 %v5833
        %9010 = vmatpush1.bf16.msra.mxu0 %v5832
        %9011 = vmatprep.subr.bf16.mxu0 %v5825
        %9012 = vmatpush1.bf16.msra.mxu0 %v5824
        %9013 = vmatprep.subr.bf16.mxu0 %v5945
        %9014 = vmatpush2.bf16.msra.mxu0 %v5944
        %9015 = vmatprep.subr.bf16.mxu0 %v5937
        %9016 = vmatpush2.bf16.msra.mxu0 %v5936
        %9017 = vmatprep.subr.bf16.mxu0 %v5929
        %9018 = vmatpush2.bf16.msra.mxu0 %v5928
        %9019 = vmatprep.subr.bf16.mxu0 %v5921
        %9020 = vmatpush2.bf16.msra.mxu0 %v5920
        %9021 = vmatprep.subr.bf16.mxu0 %v5913
        %9022 = vmatpush2.bf16.msra.mxu0 %v5912
        %9023 = vmatprep.subr.bf16.mxu0 %v5905
        %9024 = vmatpush2.bf16.msra.mxu0 %v5904
        %9025 = vmatprep.subr.bf16.mxu0 %v5897
        %9026 = vmatpush2.bf16.msra.mxu0 %v5896
        %9027 = vmatprep.subr.bf16.mxu0 %v5889
        %9028 = vmatpush2.bf16.msra.mxu0 %v5888
        %9029 = vmatprep.mubr.bf16.mxu0 %v633
        %9030 = vmatmul.mubr.bf16.gmra.mxu0 %v632
        %v9031 = vpop.f32.mrf.mxu0
        %v9032 = vadd.f32 %v8919, %v9031
        %v9033 = vpop.f32.mrf.mxu0
        %v9034 = vadd.f32 %v8921, %v9033
        %v9035 = vpop.f32.mrf.mxu0
        %v9036 = vadd.f32 %v8923, %v9035
        %v9037 = vpop.f32.mrf.mxu0
        %v9038 = vadd.f32 %v8925, %v9037
        %9039 = vmatprep.mubr.bf16.mxu0 %v651
        %9040 = vmatmul.mubr.bf16.gmra.mxu0 %v650
        %v9041 = vpop.f32.mrf.mxu0
        %v9042 = vadd.f32 %v8929, %v9041
        %v9043 = vpop.f32.mrf.mxu0
        %v9044 = vadd.f32 %v8931, %v9043
        %v9045 = vpop.f32.mrf.mxu0
        %v9046 = vadd.f32 %v8933, %v9045
        %v9047 = vpop.f32.mrf.mxu0
        %v9048 = vadd.f32 %v8935, %v9047
        %9049 = vmatprep.mubr.bf16.mxu0 %v669
        %9050 = vmatmul.mubr.bf16.gmra.mxu0 %v668
        %v9051 = vpop.f32.mrf.mxu0
        %v9052 = vadd.f32 %v8939, %v9051
        %v9053 = vpop.f32.mrf.mxu0
        %v9054 = vadd.f32 %v8941, %v9053
        %v9055 = vpop.f32.mrf.mxu0
        %v9056 = vadd.f32 %v8943, %v9055
        %v9057 = vpop.f32.mrf.mxu0
        %v9058 = vadd.f32 %v8945, %v9057
        %9059 = vmatprep.mubr.bf16.mxu0 %v687
        %9060 = vmatmul.mubr.bf16.gmra.mxu0 %v686
        %v9061 = vpop.f32.mrf.mxu0
        %v9062 = vadd.f32 %v8949, %v9061
        %v9063 = vpop.f32.mrf.mxu0
        %v9064 = vadd.f32 %v8951, %v9063
        %v9065 = vpop.f32.mrf.mxu0
        %v9066 = vadd.f32 %v8953, %v9065
        %v9067 = vpop.f32.mrf.mxu0
        %v9068 = vadd.f32 %v8955, %v9067
        %9069 = vmatprep.mubr.bf16.mxu0 %v705
        %9070 = vmatmul.mubr.bf16.gmra.mxu0 %v704
        %v9071 = vpop.f32.mrf.mxu0
        %v9072 = vadd.f32 %v8959, %v9071
        %v9073 = vpop.f32.mrf.mxu0
        %v9074 = vadd.f32 %v8961, %v9073
        %v9075 = vpop.f32.mrf.mxu0
        %v9076 = vadd.f32 %v8963, %v9075
        %v9077 = vpop.f32.mrf.mxu0
        %v9078 = vadd.f32 %v8965, %v9077
        %9079 = vmatprep.mubr.bf16.mxu0 %v723
        %9080 = vmatmul.mubr.bf16.gmra.mxu0 %v722
        %v9081 = vpop.f32.mrf.mxu0
        %v9082 = vadd.f32 %v8969, %v9081
        %v9083 = vpop.f32.mrf.mxu0
        %v9084 = vadd.f32 %v8971, %v9083
        %v9085 = vpop.f32.mrf.mxu0
        %v9086 = vadd.f32 %v8973, %v9085
        %v9087 = vpop.f32.mrf.mxu0
        %v9088 = vadd.f32 %v8975, %v9087
        %9089 = vmatprep.mubr.bf16.mxu0 %v741
        %9090 = vmatmul.mubr.bf16.gmra.mxu0 %v740
        %v9091 = vpop.f32.mrf.mxu0
        %v9092 = vadd.f32 %v8979, %v9091
        %v9093 = vpop.f32.mrf.mxu0
        %v9094 = vadd.f32 %v8981, %v9093
        %v9095 = vpop.f32.mrf.mxu0
        %v9096 = vadd.f32 %v8983, %v9095
        %v9097 = vpop.f32.mrf.mxu0
        %v9098 = vadd.f32 %v8985, %v9097
        %9099 = vmatprep.mubr.bf16.mxu0 %v759
        %9100 = vmatmul.mubr.bf16.gmra.mxu0 %v758
        %v9101 = vpop.f32.mrf.mxu0
        %v9102 = vadd.f32 %v8989, %v9101
        %v9103 = vpop.f32.mrf.mxu0
        %v9104 = vadd.f32 %v8991, %v9103
        %v9105 = vpop.f32.mrf.mxu0
        %v9106 = vadd.f32 %v8993, %v9105
        %v9107 = vpop.f32.mrf.mxu0
        %v9108 = vadd.f32 %v8995, %v9107
        %9109 = vdwg.mxu0
        %9110 = vmatprep.subr.bf16.mxu0 %v6009
        %9111 = vmatpush1.bf16.msra.mxu0 %v6008
        %9112 = vmatprep.subr.bf16.mxu0 %v6001
        %9113 = vmatpush1.bf16.msra.mxu0 %v6000
        %9114 = vmatprep.subr.bf16.mxu0 %v5993
        %9115 = vmatpush1.bf16.msra.mxu0 %v5992
        %9116 = vmatprep.subr.bf16.mxu0 %v5985
        %9117 = vmatpush1.bf16.msra.mxu0 %v5984
        %9118 = vmatprep.subr.bf16.mxu0 %v5977
        %9119 = vmatpush1.bf16.msra.mxu0 %v5976
        %9120 = vmatprep.subr.bf16.mxu0 %v5969
        %9121 = vmatpush1.bf16.msra.mxu0 %v5968
        %9122 = vmatprep.subr.bf16.mxu0 %v5961
        %9123 = vmatpush1.bf16.msra.mxu0 %v5960
        %9124 = vmatprep.subr.bf16.mxu0 %v5953
        %9125 = vmatpush1.bf16.msra.mxu0 %v5952
        %9126 = vmatprep.subr.bf16.mxu0 %v6073
        %9127 = vmatpush2.bf16.msra.mxu0 %v6072
        %9128 = vmatprep.subr.bf16.mxu0 %v6065
        %9129 = vmatpush2.bf16.msra.mxu0 %v6064
        %9130 = vmatprep.subr.bf16.mxu0 %v6057
        %9131 = vmatpush2.bf16.msra.mxu0 %v6056
        %9132 = vmatprep.subr.bf16.mxu0 %v6049
        %9133 = vmatpush2.bf16.msra.mxu0 %v6048
        %9134 = vmatprep.subr.bf16.mxu0 %v6041
        %9135 = vmatpush2.bf16.msra.mxu0 %v6040
        %9136 = vmatprep.subr.bf16.mxu0 %v6033
        %9137 = vmatpush2.bf16.msra.mxu0 %v6032
        %9138 = vmatprep.subr.bf16.mxu0 %v6025
        %9139 = vmatpush2.bf16.msra.mxu0 %v6024
        %9140 = vmatprep.subr.bf16.mxu0 %v6017
        %9141 = vmatpush2.bf16.msra.mxu0 %v6016
        %9142 = vmatprep.mubr.bf16.mxu0 %v635
        %9143 = vmatmul.mubr.bf16.gmra.mxu0 %v634
        %v9144 = vpop.f32.mrf.mxu0
        %v9145 = vadd.f32 %v9032, %v9144
        %v9146 = vpop.f32.mrf.mxu0
        %v9147 = vadd.f32 %v9034, %v9146
        %v9148 = vpop.f32.mrf.mxu0
        %v9149 = vadd.f32 %v9036, %v9148
        %v9150 = vpop.f32.mrf.mxu0
        %v9151 = vadd.f32 %v9038, %v9150
        %9152 = vmatprep.mubr.bf16.mxu0 %v653
        %9153 = vmatmul.mubr.bf16.gmra.mxu0 %v652
        %v9154 = vpop.f32.mrf.mxu0
        %v9155 = vadd.f32 %v9042, %v9154
        %v9156 = vpop.f32.mrf.mxu0
        %v9157 = vadd.f32 %v9044, %v9156
        %v9158 = vpop.f32.mrf.mxu0
        %v9159 = vadd.f32 %v9046, %v9158
        %v9160 = vpop.f32.mrf.mxu0
        %v9161 = vadd.f32 %v9048, %v9160
        %9162 = vmatprep.mubr.bf16.mxu0 %v671
        %9163 = vmatmul.mubr.bf16.gmra.mxu0 %v670
        %v9164 = vpop.f32.mrf.mxu0
        %v9165 = vadd.f32 %v9052, %v9164
        %v9166 = vpop.f32.mrf.mxu0
        %v9167 = vadd.f32 %v9054, %v9166
        %v9168 = vpop.f32.mrf.mxu0
        %v9169 = vadd.f32 %v9056, %v9168
        %v9170 = vpop.f32.mrf.mxu0
        %v9171 = vadd.f32 %v9058, %v9170
        %9172 = vmatprep.mubr.bf16.mxu0 %v689
        %9173 = vmatmul.mubr.bf16.gmra.mxu0 %v688
        %v9174 = vpop.f32.mrf.mxu0
        %v9175 = vadd.f32 %v9062, %v9174
        %v9176 = vpop.f32.mrf.mxu0
        %v9177 = vadd.f32 %v9064, %v9176
        %v9178 = vpop.f32.mrf.mxu0
        %v9179 = vadd.f32 %v9066, %v9178
        %v9180 = vpop.f32.mrf.mxu0
        %v9181 = vadd.f32 %v9068, %v9180
        %9182 = vmatprep.mubr.bf16.mxu0 %v707
        %9183 = vmatmul.mubr.bf16.gmra.mxu0 %v706
        %v9184 = vpop.f32.mrf.mxu0
        %v9185 = vadd.f32 %v9072, %v9184
        %v9186 = vpop.f32.mrf.mxu0
        %v9187 = vadd.f32 %v9074, %v9186
        %v9188 = vpop.f32.mrf.mxu0
        %v9189 = vadd.f32 %v9076, %v9188
        %v9190 = vpop.f32.mrf.mxu0
        %v9191 = vadd.f32 %v9078, %v9190
        %9192 = vmatprep.mubr.bf16.mxu0 %v725
        %9193 = vmatmul.mubr.bf16.gmra.mxu0 %v724
        %v9194 = vpop.f32.mrf.mxu0
        %v9195 = vadd.f32 %v9082, %v9194
        %v9196 = vpop.f32.mrf.mxu0
        %v9197 = vadd.f32 %v9084, %v9196
        %v9198 = vpop.f32.mrf.mxu0
        %v9199 = vadd.f32 %v9086, %v9198
        %v9200 = vpop.f32.mrf.mxu0
        %v9201 = vadd.f32 %v9088, %v9200
        %9202 = vmatprep.mubr.bf16.mxu0 %v743
        %9203 = vmatmul.mubr.bf16.gmra.mxu0 %v742
        %v9204 = vpop.f32.mrf.mxu0
        %v9205 = vadd.f32 %v9092, %v9204
        %v9206 = vpop.f32.mrf.mxu0
        %v9207 = vadd.f32 %v9094, %v9206
        %v9208 = vpop.f32.mrf.mxu0
        %v9209 = vadd.f32 %v9096, %v9208
        %v9210 = vpop.f32.mrf.mxu0
        %v9211 = vadd.f32 %v9098, %v9210
        %9212 = vmatprep.mubr.bf16.mxu0 %v761
        %9213 = vmatmul.mubr.bf16.gmra.mxu0 %v760
        %v9214 = vpop.f32.mrf.mxu0
        %v9215 = vadd.f32 %v9102, %v9214
        %v9216 = vpop.f32.mrf.mxu0
        %v9217 = vadd.f32 %v9104, %v9216
        %v9218 = vpop.f32.mrf.mxu0
        %v9219 = vadd.f32 %v9106, %v9218
        %v9220 = vpop.f32.mrf.mxu0
        %v9221 = vadd.f32 %v9108, %v9220
        %9222 = vdwg.mxu0
        %9223 = vmatprep.subr.bf16.mxu0 %v6137
        %9224 = vmatpush1.bf16.msra.mxu0 %v6136
        %9225 = vmatprep.subr.bf16.mxu0 %v6129
        %9226 = vmatpush1.bf16.msra.mxu0 %v6128
        %9227 = vmatprep.subr.bf16.mxu0 %v6121
        %9228 = vmatpush1.bf16.msra.mxu0 %v6120
        %9229 = vmatprep.subr.bf16.mxu0 %v6113
        %9230 = vmatpush1.bf16.msra.mxu0 %v6112
        %9231 = vmatprep.subr.bf16.mxu0 %v6105
        %9232 = vmatpush1.bf16.msra.mxu0 %v6104
        %9233 = vmatprep.subr.bf16.mxu0 %v6097
        %9234 = vmatpush1.bf16.msra.mxu0 %v6096
        %9235 = vmatprep.subr.bf16.mxu0 %v6089
        %9236 = vmatpush1.bf16.msra.mxu0 %v6088
        %9237 = vmatprep.subr.bf16.mxu0 %v6081
        %9238 = vmatpush1.bf16.msra.mxu0 %v6080
        %9239 = vmatprep.subr.bf16.mxu0 %v6201
        %9240 = vmatpush2.bf16.msra.mxu0 %v6200
        %9241 = vmatprep.subr.bf16.mxu0 %v6193
        %9242 = vmatpush2.bf16.msra.mxu0 %v6192
        %9243 = vmatprep.subr.bf16.mxu0 %v6185
        %9244 = vmatpush2.bf16.msra.mxu0 %v6184
        %9245 = vmatprep.subr.bf16.mxu0 %v6177
        %9246 = vmatpush2.bf16.msra.mxu0 %v6176
        %9247 = vmatprep.subr.bf16.mxu0 %v6169
        %9248 = vmatpush2.bf16.msra.mxu0 %v6168
        %9249 = vmatprep.subr.bf16.mxu0 %v6161
        %9250 = vmatpush2.bf16.msra.mxu0 %v6160
        %9251 = vmatprep.subr.bf16.mxu0 %v6153
        %9252 = vmatpush2.bf16.msra.mxu0 %v6152
        %9253 = vmatprep.subr.bf16.mxu0 %v6145
        %9254 = vmatpush2.bf16.msra.mxu0 %v6144
        %9255 = vmatprep.mubr.bf16.mxu0 %v637
        %9256 = vmatmul.mubr.bf16.gmra.mxu0 %v636
        %v9257 = vpop.f32.mrf.mxu0
        %v9258 = vadd.f32 %v9145, %v9257
        %v9259 = vpop.f32.mrf.mxu0
        %v9260 = vadd.f32 %v9147, %v9259
        %v9261 = vpop.f32.mrf.mxu0
        %v9262 = vadd.f32 %v9149, %v9261
        %v9263 = vpop.f32.mrf.mxu0
        %v9264 = vadd.f32 %v9151, %v9263
        %9265 = vmatprep.mubr.bf16.mxu0 %v655
        %9266 = vmatmul.mubr.bf16.gmra.mxu0 %v654
        %v9267 = vpop.f32.mrf.mxu0
        %v9268 = vadd.f32 %v9155, %v9267
        %v9269 = vpop.f32.mrf.mxu0
        %v9270 = vadd.f32 %v9157, %v9269
        %v9271 = vpop.f32.mrf.mxu0
        %v9272 = vadd.f32 %v9159, %v9271
        %v9273 = vpop.f32.mrf.mxu0
        %v9274 = vadd.f32 %v9161, %v9273
        %9275 = vmatprep.mubr.bf16.mxu0 %v673
        %9276 = vmatmul.mubr.bf16.gmra.mxu0 %v672
        %v9277 = vpop.f32.mrf.mxu0
        %v9278 = vadd.f32 %v9165, %v9277
        %v9279 = vpop.f32.mrf.mxu0
        %v9280 = vadd.f32 %v9167, %v9279
        %v9281 = vpop.f32.mrf.mxu0
        %v9282 = vadd.f32 %v9169, %v9281
        %v9283 = vpop.f32.mrf.mxu0
        %v9284 = vadd.f32 %v9171, %v9283
        %9285 = vmatprep.mubr.bf16.mxu0 %v691
        %9286 = vmatmul.mubr.bf16.gmra.mxu0 %v690
        %v9287 = vpop.f32.mrf.mxu0
        %v9288 = vadd.f32 %v9175, %v9287
        %v9289 = vpop.f32.mrf.mxu0
        %v9290 = vadd.f32 %v9177, %v9289
        %v9291 = vpop.f32.mrf.mxu0
        %v9292 = vadd.f32 %v9179, %v9291
        %v9293 = vpop.f32.mrf.mxu0
        %v9294 = vadd.f32 %v9181, %v9293
        %9295 = vmatprep.mubr.bf16.mxu0 %v709
        %9296 = vmatmul.mubr.bf16.gmra.mxu0 %v708
        %v9297 = vpop.f32.mrf.mxu0
        %v9298 = vadd.f32 %v9185, %v9297
        %v9299 = vpop.f32.mrf.mxu0
        %v9300 = vadd.f32 %v9187, %v9299
        %v9301 = vpop.f32.mrf.mxu0
        %v9302 = vadd.f32 %v9189, %v9301
        %v9303 = vpop.f32.mrf.mxu0
        %v9304 = vadd.f32 %v9191, %v9303
        %9305 = vmatprep.mubr.bf16.mxu0 %v727
        %9306 = vmatmul.mubr.bf16.gmra.mxu0 %v726
        %v9307 = vpop.f32.mrf.mxu0
        %v9308 = vadd.f32 %v9195, %v9307
        %v9309 = vpop.f32.mrf.mxu0
        %v9310 = vadd.f32 %v9197, %v9309
        %v9311 = vpop.f32.mrf.mxu0
        %v9312 = vadd.f32 %v9199, %v9311
        %v9313 = vpop.f32.mrf.mxu0
        %v9314 = vadd.f32 %v9201, %v9313
        %9315 = vmatprep.mubr.bf16.mxu0 %v745
        %9316 = vmatmul.mubr.bf16.gmra.mxu0 %v744
        %v9317 = vpop.f32.mrf.mxu0
        %v9318 = vadd.f32 %v9205, %v9317
        %v9319 = vpop.f32.mrf.mxu0
        %v9320 = vadd.f32 %v9207, %v9319
        %v9321 = vpop.f32.mrf.mxu0
        %v9322 = vadd.f32 %v9209, %v9321
        %v9323 = vpop.f32.mrf.mxu0
        %v9324 = vadd.f32 %v9211, %v9323
        %9325 = vmatprep.mubr.bf16.mxu0 %v763
        %9326 = vmatmul.mubr.bf16.gmra.mxu0 %v762
        %v9327 = vpop.f32.mrf.mxu0
        %v9328 = vadd.f32 %v9215, %v9327
        %v9329 = vpop.f32.mrf.mxu0
        %v9330 = vadd.f32 %v9217, %v9329
        %v9331 = vpop.f32.mrf.mxu0
        %v9332 = vadd.f32 %v9219, %v9331
        %v9333 = vpop.f32.mrf.mxu0
        %v9334 = vadd.f32 %v9221, %v9333
        %9335 = vdwg.mxu0
        %9336 = vmatprep.subr.bf16.mxu0 %v6265
        %9337 = vmatpush1.bf16.msra.mxu0 %v6264
        %9338 = vmatprep.subr.bf16.mxu0 %v6257
        %9339 = vmatpush1.bf16.msra.mxu0 %v6256
        %9340 = vmatprep.subr.bf16.mxu0 %v6249
        %9341 = vmatpush1.bf16.msra.mxu0 %v6248
        %9342 = vmatprep.subr.bf16.mxu0 %v6241
        %9343 = vmatpush1.bf16.msra.mxu0 %v6240
        %9344 = vmatprep.subr.bf16.mxu0 %v6233
        %9345 = vmatpush1.bf16.msra.mxu0 %v6232
        %9346 = vmatprep.subr.bf16.mxu0 %v6225
        %9347 = vmatpush1.bf16.msra.mxu0 %v6224
        %9348 = vmatprep.subr.bf16.mxu0 %v6217
        %9349 = vmatpush1.bf16.msra.mxu0 %v6216
        %9350 = vmatprep.subr.bf16.mxu0 %v6209
        %9351 = vmatpush1.bf16.msra.mxu0 %v6208
        %9352 = vmatprep.subr.bf16.mxu0 0
        %9353 = vmatpush2.bf16.msra.mxu0 0
        %9354 = vmatprep.subr.bf16.mxu0 0
        %9355 = vmatpush2.bf16.msra.mxu0 0
        %9356 = vmatprep.subr.bf16.mxu0 0
        %9357 = vmatpush2.bf16.msra.mxu0 0
        %9358 = vmatprep.subr.bf16.mxu0 0
        %9359 = vmatpush2.bf16.msra.mxu0 0
        %9360 = vmatprep.subr.bf16.mxu0 0
        %9361 = vmatpush2.bf16.msra.mxu0 0
        %9362 = vmatprep.subr.bf16.mxu0 0
        %9363 = vmatpush2.bf16.msra.mxu0 0
        %9364 = vmatprep.subr.bf16.mxu0 %v6281
        %9365 = vmatpush2.bf16.msra.mxu0 %v6280
        %9366 = vmatprep.subr.bf16.mxu0 %v6273
        %9367 = vmatpush2.bf16.msra.mxu0 %v6272
        %9368 = vmatprep.mubr.bf16.mxu0 %v7392
        %9369 = vmatmul.mubr.bf16.gmra.mxu0 %v638
        %v9370 = vpop.f32.mrf.mxu0
        %v9371 = vadd.f32 %v9258, %v9370
        %v9372 = vpop.f32.mrf.mxu0
        %v9373 = vadd.f32 %v9260, %v9372
        %v9374 = vpop.f32.mrf.mxu0
        %v9375 = vadd.f32 %v9262, %v9374
        %v9376 = vpop.f32.mrf.mxu0
        %v9377 = vadd.f32 %v9264, %v9376
        %9378 = vmatprep.mubr.bf16.mxu0 %v7395
        %9379 = vmatmul.mubr.bf16.gmra.mxu0 %v656
        %v9380 = vpop.f32.mrf.mxu0
        %v9381 = vadd.f32 %v9268, %v9380
        %v9382 = vpop.f32.mrf.mxu0
        %v9383 = vadd.f32 %v9270, %v9382
        %v9384 = vpop.f32.mrf.mxu0
        %v9385 = vadd.f32 %v9272, %v9384
        %v9386 = vpop.f32.mrf.mxu0
        %v9387 = vadd.f32 %v9274, %v9386
        %9388 = vmatprep.mubr.bf16.mxu0 %v7398
        %9389 = vmatmul.mubr.bf16.gmra.mxu0 %v674
        %v9390 = vpop.f32.mrf.mxu0
        %v9391 = vadd.f32 %v9278, %v9390
        %v9392 = vpop.f32.mrf.mxu0
        %v9393 = vadd.f32 %v9280, %v9392
        %v9394 = vpop.f32.mrf.mxu0
        %v9395 = vadd.f32 %v9282, %v9394
        %v9396 = vpop.f32.mrf.mxu0
        %v9397 = vadd.f32 %v9284, %v9396
        %9398 = vmatprep.mubr.bf16.mxu0 %v7401
        %9399 = vmatmul.mubr.bf16.gmra.mxu0 %v692
        %v9400 = vpop.f32.mrf.mxu0
        %v9401 = vadd.f32 %v9288, %v9400
        %v9402 = vpop.f32.mrf.mxu0
        %v9403 = vadd.f32 %v9290, %v9402
        %v9404 = vpop.f32.mrf.mxu0
        %v9405 = vadd.f32 %v9292, %v9404
        %v9406 = vpop.f32.mrf.mxu0
        %v9407 = vadd.f32 %v9294, %v9406
        %9408 = vmatprep.mubr.bf16.mxu0 %v7404
        %9409 = vmatmul.mubr.bf16.gmra.mxu0 %v710
        %v9410 = vpop.f32.mrf.mxu0
        %v9411 = vadd.f32 %v9298, %v9410
        %v9412 = vpop.f32.mrf.mxu0
        %v9413 = vadd.f32 %v9300, %v9412
        %v9414 = vpop.f32.mrf.mxu0
        %v9415 = vadd.f32 %v9302, %v9414
        %v9416 = vpop.f32.mrf.mxu0
        %v9417 = vadd.f32 %v9304, %v9416
        %9418 = vmatprep.mubr.bf16.mxu0 %v7407
        %9419 = vmatmul.mubr.bf16.gmra.mxu0 %v728
        %v9420 = vpop.f32.mrf.mxu0
        %v9421 = vadd.f32 %v9308, %v9420
        %v9422 = vpop.f32.mrf.mxu0
        %v9423 = vadd.f32 %v9310, %v9422
        %v9424 = vpop.f32.mrf.mxu0
        %v9425 = vadd.f32 %v9312, %v9424
        %v9426 = vpop.f32.mrf.mxu0
        %v9427 = vadd.f32 %v9314, %v9426
        %9428 = vmatprep.mubr.bf16.mxu0 %v7410
        %9429 = vmatmul.mubr.bf16.gmra.mxu0 %v746
        %v9430 = vpop.f32.mrf.mxu0
        %v9431 = vadd.f32 %v9318, %v9430
        %v9432 = vpop.f32.mrf.mxu0
        %v9433 = vadd.f32 %v9320, %v9432
        %v9434 = vpop.f32.mrf.mxu0
        %v9435 = vadd.f32 %v9322, %v9434
        %v9436 = vpop.f32.mrf.mxu0
        %v9437 = vadd.f32 %v9324, %v9436
        %9438 = vmatprep.mubr.bf16.mxu0 %v7413
        %9439 = vmatmul.mubr.bf16.gmra.mxu0 %v764
        %v9440 = vpop.f32.mrf.mxu0
        %v9441 = vadd.f32 %v9328, %v9440
        %v9442 = vpop.f32.mrf.mxu0
        %v9443 = vadd.f32 %v9330, %v9442
        %v9444 = vpop.f32.mrf.mxu0
        %v9445 = vadd.f32 %v9332, %v9444
        %v9446 = vpop.f32.mrf.mxu0
        %v9447 = vadd.f32 %v9334, %v9446
        %9448 = vdwg.mxu0
        %9449 = vmatprep.subr.bf16.mxu0 %v5243
        %9450 = vmatpush1.bf16.msra.mxu0 %v5242
        %9451 = vmatprep.subr.bf16.mxu0 %v5235
        %9452 = vmatpush1.bf16.msra.mxu0 %v5234
        %9453 = vmatprep.subr.bf16.mxu0 %v5227
        %9454 = vmatpush1.bf16.msra.mxu0 %v5226
        %9455 = vmatprep.subr.bf16.mxu0 %v5219
        %9456 = vmatpush1.bf16.msra.mxu0 %v5218
        %9457 = vmatprep.subr.bf16.mxu0 %v5211
        %9458 = vmatpush1.bf16.msra.mxu0 %v5210
        %9459 = vmatprep.subr.bf16.mxu0 %v5203
        %9460 = vmatpush1.bf16.msra.mxu0 %v5202
        %9461 = vmatprep.subr.bf16.mxu0 %v5195
        %9462 = vmatpush1.bf16.msra.mxu0 %v5194
        %9463 = vmatprep.subr.bf16.mxu0 %v5187
        %9464 = vmatpush1.bf16.msra.mxu0 %v5186
        %9465 = vmatprep.subr.bf16.mxu0 %v5307
        %9466 = vmatpush2.bf16.msra.mxu0 %v5306
        %9467 = vmatprep.subr.bf16.mxu0 %v5299
        %9468 = vmatpush2.bf16.msra.mxu0 %v5298
        %9469 = vmatprep.subr.bf16.mxu0 %v5291
        %9470 = vmatpush2.bf16.msra.mxu0 %v5290
        %9471 = vmatprep.subr.bf16.mxu0 %v5283
        %9472 = vmatpush2.bf16.msra.mxu0 %v5282
        %9473 = vmatprep.subr.bf16.mxu0 %v5275
        %9474 = vmatpush2.bf16.msra.mxu0 %v5274
        %9475 = vmatprep.subr.bf16.mxu0 %v5267
        %9476 = vmatpush2.bf16.msra.mxu0 %v5266
        %9477 = vmatprep.subr.bf16.mxu0 %v5259
        %9478 = vmatpush2.bf16.msra.mxu0 %v5258
        %9479 = vmatprep.subr.bf16.mxu0 %v5251
        %9480 = vmatpush2.bf16.msra.mxu0 %v5250
        %9481 = vmatprep.mubr.bf16.mxu0 %v623
        %9482 = vmatmul.mubr.bf16.gmra.mxu0 %v622
        %v9483 = vpop.f32.mrf.mxu0
        %v9484 = vadd.f32 0.0, %v9483
        %v9485 = vpop.f32.mrf.mxu0
        %v9486 = vadd.f32 0.0, %v9485
        %v9487 = vpop.f32.mrf.mxu0
        %v9488 = vadd.f32 0.0, %v9487
        %v9489 = vpop.f32.mrf.mxu0
        %v9490 = vadd.f32 0.0, %v9489
        %9491 = vmatprep.mubr.bf16.mxu0 %v641
        %9492 = vmatmul.mubr.bf16.gmra.mxu0 %v640
        %v9493 = vpop.f32.mrf.mxu0
        %v9494 = vadd.f32 0.0, %v9493
        %v9495 = vpop.f32.mrf.mxu0
        %v9496 = vadd.f32 0.0, %v9495
        %v9497 = vpop.f32.mrf.mxu0
        %v9498 = vadd.f32 0.0, %v9497
        %v9499 = vpop.f32.mrf.mxu0
        %v9500 = vadd.f32 0.0, %v9499
        %9501 = vmatprep.mubr.bf16.mxu0 %v659
        %9502 = vmatmul.mubr.bf16.gmra.mxu0 %v658
        %v9503 = vpop.f32.mrf.mxu0
        %v9504 = vadd.f32 0.0, %v9503
        %v9505 = vpop.f32.mrf.mxu0
        %v9506 = vadd.f32 0.0, %v9505
        %v9507 = vpop.f32.mrf.mxu0
        %v9508 = vadd.f32 0.0, %v9507
        %v9509 = vpop.f32.mrf.mxu0
        %v9510 = vadd.f32 0.0, %v9509
        %9511 = vmatprep.mubr.bf16.mxu0 %v677
        %9512 = vmatmul.mubr.bf16.gmra.mxu0 %v676
        %v9513 = vpop.f32.mrf.mxu0
        %v9514 = vadd.f32 0.0, %v9513
        %v9515 = vpop.f32.mrf.mxu0
        %v9516 = vadd.f32 0.0, %v9515
        %v9517 = vpop.f32.mrf.mxu0
        %v9518 = vadd.f32 0.0, %v9517
        %v9519 = vpop.f32.mrf.mxu0
        %v9520 = vadd.f32 0.0, %v9519
        %9521 = vmatprep.mubr.bf16.mxu0 %v695
        %9522 = vmatmul.mubr.bf16.gmra.mxu0 %v694
        %v9523 = vpop.f32.mrf.mxu0
        %v9524 = vadd.f32 0.0, %v9523
        %v9525 = vpop.f32.mrf.mxu0
        %v9526 = vadd.f32 0.0, %v9525
        %v9527 = vpop.f32.mrf.mxu0
        %v9528 = vadd.f32 0.0, %v9527
        %v9529 = vpop.f32.mrf.mxu0
        %v9530 = vadd.f32 0.0, %v9529
        %9531 = vmatprep.mubr.bf16.mxu0 %v713
        %9532 = vmatmul.mubr.bf16.gmra.mxu0 %v712
        %v9533 = vpop.f32.mrf.mxu0
        %v9534 = vadd.f32 0.0, %v9533
        %v9535 = vpop.f32.mrf.mxu0
        %v9536 = vadd.f32 0.0, %v9535
        %v9537 = vpop.f32.mrf.mxu0
        %v9538 = vadd.f32 0.0, %v9537
        %v9539 = vpop.f32.mrf.mxu0
        %v9540 = vadd.f32 0.0, %v9539
        %9541 = vmatprep.mubr.bf16.mxu0 %v731
        %9542 = vmatmul.mubr.bf16.gmra.mxu0 %v730
        %v9543 = vpop.f32.mrf.mxu0
        %v9544 = vadd.f32 0.0, %v9543
        %v9545 = vpop.f32.mrf.mxu0
        %v9546 = vadd.f32 0.0, %v9545
        %v9547 = vpop.f32.mrf.mxu0
        %v9548 = vadd.f32 0.0, %v9547
        %v9549 = vpop.f32.mrf.mxu0
        %v9550 = vadd.f32 0.0, %v9549
        %9551 = vmatprep.mubr.bf16.mxu0 %v749
        %9552 = vmatmul.mubr.bf16.gmra.mxu0 %v748
        %v9553 = vpop.f32.mrf.mxu0
        %v9554 = vadd.f32 0.0, %v9553
        %v9555 = vpop.f32.mrf.mxu0
        %v9556 = vadd.f32 0.0, %v9555
        %v9557 = vpop.f32.mrf.mxu0
        %v9558 = vadd.f32 0.0, %v9557
        %v9559 = vpop.f32.mrf.mxu0
        %v9560 = vadd.f32 0.0, %v9559
        %9561 = vdwg.mxu0
        %9562 = vmatprep.subr.bf16.mxu0 %v5371
        %9563 = vmatpush1.bf16.msra.mxu0 %v5370
        %9564 = vmatprep.subr.bf16.mxu0 %v5363
        %9565 = vmatpush1.bf16.msra.mxu0 %v5362
        %9566 = vmatprep.subr.bf16.mxu0 %v5355
        %9567 = vmatpush1.bf16.msra.mxu0 %v5354
        %9568 = vmatprep.subr.bf16.mxu0 %v5347
        %9569 = vmatpush1.bf16.msra.mxu0 %v5346
        %9570 = vmatprep.subr.bf16.mxu0 %v5339
        %9571 = vmatpush1.bf16.msra.mxu0 %v5338
        %9572 = vmatprep.subr.bf16.mxu0 %v5331
        %9573 = vmatpush1.bf16.msra.mxu0 %v5330
        %9574 = vmatprep.subr.bf16.mxu0 %v5323
        %9575 = vmatpush1.bf16.msra.mxu0 %v5322
        %9576 = vmatprep.subr.bf16.mxu0 %v5315
        %9577 = vmatpush1.bf16.msra.mxu0 %v5314
        %9578 = vmatprep.subr.bf16.mxu0 %v5435
        %9579 = vmatpush2.bf16.msra.mxu0 %v5434
        %9580 = vmatprep.subr.bf16.mxu0 %v5427
        %9581 = vmatpush2.bf16.msra.mxu0 %v5426
        %9582 = vmatprep.subr.bf16.mxu0 %v5419
        %9583 = vmatpush2.bf16.msra.mxu0 %v5418
        %9584 = vmatprep.subr.bf16.mxu0 %v5411
        %9585 = vmatpush2.bf16.msra.mxu0 %v5410
        %9586 = vmatprep.subr.bf16.mxu0 %v5403
        %9587 = vmatpush2.bf16.msra.mxu0 %v5402
        %9588 = vmatprep.subr.bf16.mxu0 %v5395
        %9589 = vmatpush2.bf16.msra.mxu0 %v5394
        %9590 = vmatprep.subr.bf16.mxu0 %v5387
        %9591 = vmatpush2.bf16.msra.mxu0 %v5386
        %9592 = vmatprep.subr.bf16.mxu0 %v5379
        %9593 = vmatpush2.bf16.msra.mxu0 %v5378
        %9594 = vmatprep.mubr.bf16.mxu0 %v625
        %9595 = vmatmul.mubr.bf16.gmra.mxu0 %v624
        %v9596 = vpop.f32.mrf.mxu0
        %v9597 = vadd.f32 %v9484, %v9596
        %v9598 = vpop.f32.mrf.mxu0
        %v9599 = vadd.f32 %v9486, %v9598
        %v9600 = vpop.f32.mrf.mxu0
        %v9601 = vadd.f32 %v9488, %v9600
        %v9602 = vpop.f32.mrf.mxu0
        %v9603 = vadd.f32 %v9490, %v9602
        %9604 = vmatprep.mubr.bf16.mxu0 %v643
        %9605 = vmatmul.mubr.bf16.gmra.mxu0 %v642
        %v9606 = vpop.f32.mrf.mxu0
        %v9607 = vadd.f32 %v9494, %v9606
        %v9608 = vpop.f32.mrf.mxu0
        %v9609 = vadd.f32 %v9496, %v9608
        %v9610 = vpop.f32.mrf.mxu0
        %v9611 = vadd.f32 %v9498, %v9610
        %v9612 = vpop.f32.mrf.mxu0
        %v9613 = vadd.f32 %v9500, %v9612
        %9614 = vmatprep.mubr.bf16.mxu0 %v661
        %9615 = vmatmul.mubr.bf16.gmra.mxu0 %v660
        %v9616 = vpop.f32.mrf.mxu0
        %v9617 = vadd.f32 %v9504, %v9616
        %v9618 = vpop.f32.mrf.mxu0
        %v9619 = vadd.f32 %v9506, %v9618
        %v9620 = vpop.f32.mrf.mxu0
        %v9621 = vadd.f32 %v9508, %v9620
        %v9622 = vpop.f32.mrf.mxu0
        %v9623 = vadd.f32 %v9510, %v9622
        %9624 = vmatprep.mubr.bf16.mxu0 %v679
        %9625 = vmatmul.mubr.bf16.gmra.mxu0 %v678
        %v9626 = vpop.f32.mrf.mxu0
        %v9627 = vadd.f32 %v9514, %v9626
        %v9628 = vpop.f32.mrf.mxu0
        %v9629 = vadd.f32 %v9516, %v9628
        %v9630 = vpop.f32.mrf.mxu0
        %v9631 = vadd.f32 %v9518, %v9630
        %v9632 = vpop.f32.mrf.mxu0
        %v9633 = vadd.f32 %v9520, %v9632
        %9634 = vmatprep.mubr.bf16.mxu0 %v697
        %9635 = vmatmul.mubr.bf16.gmra.mxu0 %v696
        %v9636 = vpop.f32.mrf.mxu0
        %v9637 = vadd.f32 %v9524, %v9636
        %v9638 = vpop.f32.mrf.mxu0
        %v9639 = vadd.f32 %v9526, %v9638
        %v9640 = vpop.f32.mrf.mxu0
        %v9641 = vadd.f32 %v9528, %v9640
        %v9642 = vpop.f32.mrf.mxu0
        %v9643 = vadd.f32 %v9530, %v9642
        %9644 = vmatprep.mubr.bf16.mxu0 %v715
        %9645 = vmatmul.mubr.bf16.gmra.mxu0 %v714
        %v9646 = vpop.f32.mrf.mxu0
        %v9647 = vadd.f32 %v9534, %v9646
        %v9648 = vpop.f32.mrf.mxu0
        %v9649 = vadd.f32 %v9536, %v9648
        %v9650 = vpop.f32.mrf.mxu0
        %v9651 = vadd.f32 %v9538, %v9650
        %v9652 = vpop.f32.mrf.mxu0
        %v9653 = vadd.f32 %v9540, %v9652
        %9654 = vmatprep.mubr.bf16.mxu0 %v733
        %9655 = vmatmul.mubr.bf16.gmra.mxu0 %v732
        %v9656 = vpop.f32.mrf.mxu0
        %v9657 = vadd.f32 %v9544, %v9656
        %v9658 = vpop.f32.mrf.mxu0
        %v9659 = vadd.f32 %v9546, %v9658
        %v9660 = vpop.f32.mrf.mxu0
        %v9661 = vadd.f32 %v9548, %v9660
        %v9662 = vpop.f32.mrf.mxu0
        %v9663 = vadd.f32 %v9550, %v9662
        %9664 = vmatprep.mubr.bf16.mxu0 %v751
        %9665 = vmatmul.mubr.bf16.gmra.mxu0 %v750
        %v9666 = vpop.f32.mrf.mxu0
        %v9667 = vadd.f32 %v9554, %v9666
        %v9668 = vpop.f32.mrf.mxu0
        %v9669 = vadd.f32 %v9556, %v9668
        %v9670 = vpop.f32.mrf.mxu0
        %v9671 = vadd.f32 %v9558, %v9670
        %v9672 = vpop.f32.mrf.mxu0
        %v9673 = vadd.f32 %v9560, %v9672
        %9674 = vdwg.mxu0
        %9675 = vmatprep.subr.bf16.mxu0 %v5499
        %9676 = vmatpush1.bf16.msra.mxu0 %v5498
        %9677 = vmatprep.subr.bf16.mxu0 %v5491
        %9678 = vmatpush1.bf16.msra.mxu0 %v5490
        %9679 = vmatprep.subr.bf16.mxu0 %v5483
        %9680 = vmatpush1.bf16.msra.mxu0 %v5482
        %9681 = vmatprep.subr.bf16.mxu0 %v5475
        %9682 = vmatpush1.bf16.msra.mxu0 %v5474
        %9683 = vmatprep.subr.bf16.mxu0 %v5467
        %9684 = vmatpush1.bf16.msra.mxu0 %v5466
        %9685 = vmatprep.subr.bf16.mxu0 %v5459
        %9686 = vmatpush1.bf16.msra.mxu0 %v5458
        %9687 = vmatprep.subr.bf16.mxu0 %v5451
        %9688 = vmatpush1.bf16.msra.mxu0 %v5450
        %9689 = vmatprep.subr.bf16.mxu0 %v5443
        %9690 = vmatpush1.bf16.msra.mxu0 %v5442
        %9691 = vmatprep.subr.bf16.mxu0 %v5563
        %9692 = vmatpush2.bf16.msra.mxu0 %v5562
        %9693 = vmatprep.subr.bf16.mxu0 %v5555
        %9694 = vmatpush2.bf16.msra.mxu0 %v5554
        %9695 = vmatprep.subr.bf16.mxu0 %v5547
        %9696 = vmatpush2.bf16.msra.mxu0 %v5546
        %9697 = vmatprep.subr.bf16.mxu0 %v5539
        %9698 = vmatpush2.bf16.msra.mxu0 %v5538
        %9699 = vmatprep.subr.bf16.mxu0 %v5531
        %9700 = vmatpush2.bf16.msra.mxu0 %v5530
        %9701 = vmatprep.subr.bf16.mxu0 %v5523
        %9702 = vmatpush2.bf16.msra.mxu0 %v5522
        %9703 = vmatprep.subr.bf16.mxu0 %v5515
        %9704 = vmatpush2.bf16.msra.mxu0 %v5514
        %9705 = vmatprep.subr.bf16.mxu0 %v5507
        %9706 = vmatpush2.bf16.msra.mxu0 %v5506
        %9707 = vmatprep.mubr.bf16.mxu0 %v627
        %9708 = vmatmul.mubr.bf16.gmra.mxu0 %v626
        %v9709 = vpop.f32.mrf.mxu0
        %v9710 = vadd.f32 %v9597, %v9709
        %v9711 = vpop.f32.mrf.mxu0
        %v9712 = vadd.f32 %v9599, %v9711
        %v9713 = vpop.f32.mrf.mxu0
        %v9714 = vadd.f32 %v9601, %v9713
        %v9715 = vpop.f32.mrf.mxu0
        %v9716 = vadd.f32 %v9603, %v9715
        %9717 = vmatprep.mubr.bf16.mxu0 %v645
        %9718 = vmatmul.mubr.bf16.gmra.mxu0 %v644
        %v9719 = vpop.f32.mrf.mxu0
        %v9720 = vadd.f32 %v9607, %v9719
        %v9721 = vpop.f32.mrf.mxu0
        %v9722 = vadd.f32 %v9609, %v9721
        %v9723 = vpop.f32.mrf.mxu0
        %v9724 = vadd.f32 %v9611, %v9723
        %v9725 = vpop.f32.mrf.mxu0
        %v9726 = vadd.f32 %v9613, %v9725
        %9727 = vmatprep.mubr.bf16.mxu0 %v663
        %9728 = vmatmul.mubr.bf16.gmra.mxu0 %v662
        %v9729 = vpop.f32.mrf.mxu0
        %v9730 = vadd.f32 %v9617, %v9729
        %v9731 = vpop.f32.mrf.mxu0
        %v9732 = vadd.f32 %v9619, %v9731
        %v9733 = vpop.f32.mrf.mxu0
        %v9734 = vadd.f32 %v9621, %v9733
        %v9735 = vpop.f32.mrf.mxu0
        %v9736 = vadd.f32 %v9623, %v9735
        %9737 = vmatprep.mubr.bf16.mxu0 %v681
        %9738 = vmatmul.mubr.bf16.gmra.mxu0 %v680
        %v9739 = vpop.f32.mrf.mxu0
        %v9740 = vadd.f32 %v9627, %v9739
        %v9741 = vpop.f32.mrf.mxu0
        %v9742 = vadd.f32 %v9629, %v9741
        %v9743 = vpop.f32.mrf.mxu0
        %v9744 = vadd.f32 %v9631, %v9743
        %v9745 = vpop.f32.mrf.mxu0
        %v9746 = vadd.f32 %v9633, %v9745
        %9747 = vmatprep.mubr.bf16.mxu0 %v699
        %9748 = vmatmul.mubr.bf16.gmra.mxu0 %v698
        %v9749 = vpop.f32.mrf.mxu0
        %v9750 = vadd.f32 %v9637, %v9749
        %v9751 = vpop.f32.mrf.mxu0
        %v9752 = vadd.f32 %v9639, %v9751
        %v9753 = vpop.f32.mrf.mxu0
        %v9754 = vadd.f32 %v9641, %v9753
        %v9755 = vpop.f32.mrf.mxu0
        %v9756 = vadd.f32 %v9643, %v9755
        %9757 = vmatprep.mubr.bf16.mxu0 %v717
        %9758 = vmatmul.mubr.bf16.gmra.mxu0 %v716
        %v9759 = vpop.f32.mrf.mxu0
        %v9760 = vadd.f32 %v9647, %v9759
        %v9761 = vpop.f32.mrf.mxu0
        %v9762 = vadd.f32 %v9649, %v9761
        %v9763 = vpop.f32.mrf.mxu0
        %v9764 = vadd.f32 %v9651, %v9763
        %v9765 = vpop.f32.mrf.mxu0
        %v9766 = vadd.f32 %v9653, %v9765
        %9767 = vmatprep.mubr.bf16.mxu0 %v735
        %9768 = vmatmul.mubr.bf16.gmra.mxu0 %v734
        %v9769 = vpop.f32.mrf.mxu0
        %v9770 = vadd.f32 %v9657, %v9769
        %v9771 = vpop.f32.mrf.mxu0
        %v9772 = vadd.f32 %v9659, %v9771
        %v9773 = vpop.f32.mrf.mxu0
        %v9774 = vadd.f32 %v9661, %v9773
        %v9775 = vpop.f32.mrf.mxu0
        %v9776 = vadd.f32 %v9663, %v9775
        %9777 = vmatprep.mubr.bf16.mxu0 %v753
        %9778 = vmatmul.mubr.bf16.gmra.mxu0 %v752
        %v9779 = vpop.f32.mrf.mxu0
        %v9780 = vadd.f32 %v9667, %v9779
        %v9781 = vpop.f32.mrf.mxu0
        %v9782 = vadd.f32 %v9669, %v9781
        %v9783 = vpop.f32.mrf.mxu0
        %v9784 = vadd.f32 %v9671, %v9783
        %v9785 = vpop.f32.mrf.mxu0
        %v9786 = vadd.f32 %v9673, %v9785
        %9787 = vdwg.mxu0
        %9788 = vmatprep.subr.bf16.mxu0 %v5627
        %9789 = vmatpush1.bf16.msra.mxu0 %v5626
        %9790 = vmatprep.subr.bf16.mxu0 %v5619
        %9791 = vmatpush1.bf16.msra.mxu0 %v5618
        %9792 = vmatprep.subr.bf16.mxu0 %v5611
        %9793 = vmatpush1.bf16.msra.mxu0 %v5610
        %9794 = vmatprep.subr.bf16.mxu0 %v5603
        %9795 = vmatpush1.bf16.msra.mxu0 %v5602
        %9796 = vmatprep.subr.bf16.mxu0 %v5595
        %9797 = vmatpush1.bf16.msra.mxu0 %v5594
        %9798 = vmatprep.subr.bf16.mxu0 %v5587
        %9799 = vmatpush1.bf16.msra.mxu0 %v5586
        %9800 = vmatprep.subr.bf16.mxu0 %v5579
        %9801 = vmatpush1.bf16.msra.mxu0 %v5578
        %9802 = vmatprep.subr.bf16.mxu0 %v5571
        %9803 = vmatpush1.bf16.msra.mxu0 %v5570
        %9804 = vmatprep.subr.bf16.mxu0 %v5691
        %9805 = vmatpush2.bf16.msra.mxu0 %v5690
        %9806 = vmatprep.subr.bf16.mxu0 %v5683
        %9807 = vmatpush2.bf16.msra.mxu0 %v5682
        %9808 = vmatprep.subr.bf16.mxu0 %v5675
        %9809 = vmatpush2.bf16.msra.mxu0 %v5674
        %9810 = vmatprep.subr.bf16.mxu0 %v5667
        %9811 = vmatpush2.bf16.msra.mxu0 %v5666
        %9812 = vmatprep.subr.bf16.mxu0 %v5659
        %9813 = vmatpush2.bf16.msra.mxu0 %v5658
        %9814 = vmatprep.subr.bf16.mxu0 %v5651
        %9815 = vmatpush2.bf16.msra.mxu0 %v5650
        %9816 = vmatprep.subr.bf16.mxu0 %v5643
        %9817 = vmatpush2.bf16.msra.mxu0 %v5642
        %9818 = vmatprep.subr.bf16.mxu0 %v5635
        %9819 = vmatpush2.bf16.msra.mxu0 %v5634
        %9820 = vmatprep.mubr.bf16.mxu0 %v629
        %9821 = vmatmul.mubr.bf16.gmra.mxu0 %v628
        %v9822 = vpop.f32.mrf.mxu0
        %v9823 = vadd.f32 %v9710, %v9822
        %v9824 = vpop.f32.mrf.mxu0
        %v9825 = vadd.f32 %v9712, %v9824
        %v9826 = vpop.f32.mrf.mxu0
        %v9827 = vadd.f32 %v9714, %v9826
        %v9828 = vpop.f32.mrf.mxu0
        %v9829 = vadd.f32 %v9716, %v9828
        %9830 = vmatprep.mubr.bf16.mxu0 %v647
        %9831 = vmatmul.mubr.bf16.gmra.mxu0 %v646
        %v9832 = vpop.f32.mrf.mxu0
        %v9833 = vadd.f32 %v9720, %v9832
        %v9834 = vpop.f32.mrf.mxu0
        %v9835 = vadd.f32 %v9722, %v9834
        %v9836 = vpop.f32.mrf.mxu0
        %v9837 = vadd.f32 %v9724, %v9836
        %v9838 = vpop.f32.mrf.mxu0
        %v9839 = vadd.f32 %v9726, %v9838
        %9840 = vmatprep.mubr.bf16.mxu0 %v665
        %9841 = vmatmul.mubr.bf16.gmra.mxu0 %v664
        %v9842 = vpop.f32.mrf.mxu0
        %v9843 = vadd.f32 %v9730, %v9842
        %v9844 = vpop.f32.mrf.mxu0
        %v9845 = vadd.f32 %v9732, %v9844
        %v9846 = vpop.f32.mrf.mxu0
        %v9847 = vadd.f32 %v9734, %v9846
        %v9848 = vpop.f32.mrf.mxu0
        %v9849 = vadd.f32 %v9736, %v9848
        %9850 = vmatprep.mubr.bf16.mxu0 %v683
        %9851 = vmatmul.mubr.bf16.gmra.mxu0 %v682
        %v9852 = vpop.f32.mrf.mxu0
        %v9853 = vadd.f32 %v9740, %v9852
        %v9854 = vpop.f32.mrf.mxu0
        %v9855 = vadd.f32 %v9742, %v9854
        %v9856 = vpop.f32.mrf.mxu0
        %v9857 = vadd.f32 %v9744, %v9856
        %v9858 = vpop.f32.mrf.mxu0
        %v9859 = vadd.f32 %v9746, %v9858
        %9860 = vmatprep.mubr.bf16.mxu0 %v701
        %9861 = vmatmul.mubr.bf16.gmra.mxu0 %v700
        %v9862 = vpop.f32.mrf.mxu0
        %v9863 = vadd.f32 %v9750, %v9862
        %v9864 = vpop.f32.mrf.mxu0
        %v9865 = vadd.f32 %v9752, %v9864
        %v9866 = vpop.f32.mrf.mxu0
        %v9867 = vadd.f32 %v9754, %v9866
        %v9868 = vpop.f32.mrf.mxu0
        %v9869 = vadd.f32 %v9756, %v9868
        %9870 = vmatprep.mubr.bf16.mxu0 %v719
        %9871 = vmatmul.mubr.bf16.gmra.mxu0 %v718
        %v9872 = vpop.f32.mrf.mxu0
        %v9873 = vadd.f32 %v9760, %v9872
        %v9874 = vpop.f32.mrf.mxu0
        %v9875 = vadd.f32 %v9762, %v9874
        %v9876 = vpop.f32.mrf.mxu0
        %v9877 = vadd.f32 %v9764, %v9876
        %v9878 = vpop.f32.mrf.mxu0
        %v9879 = vadd.f32 %v9766, %v9878
        %9880 = vmatprep.mubr.bf16.mxu0 %v737
        %9881 = vmatmul.mubr.bf16.gmra.mxu0 %v736
        %v9882 = vpop.f32.mrf.mxu0
        %v9883 = vadd.f32 %v9770, %v9882
        %v9884 = vpop.f32.mrf.mxu0
        %v9885 = vadd.f32 %v9772, %v9884
        %v9886 = vpop.f32.mrf.mxu0
        %v9887 = vadd.f32 %v9774, %v9886
        %v9888 = vpop.f32.mrf.mxu0
        %v9889 = vadd.f32 %v9776, %v9888
        %9890 = vmatprep.mubr.bf16.mxu0 %v755
        %9891 = vmatmul.mubr.bf16.gmra.mxu0 %v754
        %v9892 = vpop.f32.mrf.mxu0
        %v9893 = vadd.f32 %v9780, %v9892
        %v9894 = vpop.f32.mrf.mxu0
        %v9895 = vadd.f32 %v9782, %v9894
        %v9896 = vpop.f32.mrf.mxu0
        %v9897 = vadd.f32 %v9784, %v9896
        %v9898 = vpop.f32.mrf.mxu0
        %v9899 = vadd.f32 %v9786, %v9898
        %9900 = vdwg.mxu0
        %9901 = vmatprep.subr.bf16.mxu0 %v5755
        %9902 = vmatpush1.bf16.msra.mxu0 %v5754
        %9903 = vmatprep.subr.bf16.mxu0 %v5747
        %9904 = vmatpush1.bf16.msra.mxu0 %v5746
        %9905 = vmatprep.subr.bf16.mxu0 %v5739
        %9906 = vmatpush1.bf16.msra.mxu0 %v5738
        %9907 = vmatprep.subr.bf16.mxu0 %v5731
        %9908 = vmatpush1.bf16.msra.mxu0 %v5730
        %9909 = vmatprep.subr.bf16.mxu0 %v5723
        %9910 = vmatpush1.bf16.msra.mxu0 %v5722
        %9911 = vmatprep.subr.bf16.mxu0 %v5715
        %9912 = vmatpush1.bf16.msra.mxu0 %v5714
        %9913 = vmatprep.subr.bf16.mxu0 %v5707
        %9914 = vmatpush1.bf16.msra.mxu0 %v5706
        %9915 = vmatprep.subr.bf16.mxu0 %v5699
        %9916 = vmatpush1.bf16.msra.mxu0 %v5698
        %9917 = vmatprep.subr.bf16.mxu0 %v5819
        %9918 = vmatpush2.bf16.msra.mxu0 %v5818
        %9919 = vmatprep.subr.bf16.mxu0 %v5811
        %9920 = vmatpush2.bf16.msra.mxu0 %v5810
        %9921 = vmatprep.subr.bf16.mxu0 %v5803
        %9922 = vmatpush2.bf16.msra.mxu0 %v5802
        %9923 = vmatprep.subr.bf16.mxu0 %v5795
        %9924 = vmatpush2.bf16.msra.mxu0 %v5794
        %9925 = vmatprep.subr.bf16.mxu0 %v5787
        %9926 = vmatpush2.bf16.msra.mxu0 %v5786
        %9927 = vmatprep.subr.bf16.mxu0 %v5779
        %9928 = vmatpush2.bf16.msra.mxu0 %v5778
        %9929 = vmatprep.subr.bf16.mxu0 %v5771
        %9930 = vmatpush2.bf16.msra.mxu0 %v5770
        %9931 = vmatprep.subr.bf16.mxu0 %v5763
        %9932 = vmatpush2.bf16.msra.mxu0 %v5762
        %9933 = vmatprep.mubr.bf16.mxu0 %v631
        %9934 = vmatmul.mubr.bf16.gmra.mxu0 %v630
        %v9935 = vpop.f32.mrf.mxu0
        %v9936 = vadd.f32 %v9823, %v9935
        %v9937 = vpop.f32.mrf.mxu0
        %v9938 = vadd.f32 %v9825, %v9937
        %v9939 = vpop.f32.mrf.mxu0
        %v9940 = vadd.f32 %v9827, %v9939
        %v9941 = vpop.f32.mrf.mxu0
        %v9942 = vadd.f32 %v9829, %v9941
        %9943 = vmatprep.mubr.bf16.mxu0 %v649
        %9944 = vmatmul.mubr.bf16.gmra.mxu0 %v648
        %v9945 = vpop.f32.mrf.mxu0
        %v9946 = vadd.f32 %v9833, %v9945
        %v9947 = vpop.f32.mrf.mxu0
        %v9948 = vadd.f32 %v9835, %v9947
        %v9949 = vpop.f32.mrf.mxu0
        %v9950 = vadd.f32 %v9837, %v9949
        %v9951 = vpop.f32.mrf.mxu0
        %v9952 = vadd.f32 %v9839, %v9951
        %9953 = vmatprep.mubr.bf16.mxu0 %v667
        %9954 = vmatmul.mubr.bf16.gmra.mxu0 %v666
        %v9955 = vpop.f32.mrf.mxu0
        %v9956 = vadd.f32 %v9843, %v9955
        %v9957 = vpop.f32.mrf.mxu0
        %v9958 = vadd.f32 %v9845, %v9957
        %v9959 = vpop.f32.mrf.mxu0
        %v9960 = vadd.f32 %v9847, %v9959
        %v9961 = vpop.f32.mrf.mxu0
        %v9962 = vadd.f32 %v9849, %v9961
        %9963 = vmatprep.mubr.bf16.mxu0 %v685
        %9964 = vmatmul.mubr.bf16.gmra.mxu0 %v684
        %v9965 = vpop.f32.mrf.mxu0
        %v9966 = vadd.f32 %v9853, %v9965
        %v9967 = vpop.f32.mrf.mxu0
        %v9968 = vadd.f32 %v9855, %v9967
        %v9969 = vpop.f32.mrf.mxu0
        %v9970 = vadd.f32 %v9857, %v9969
        %v9971 = vpop.f32.mrf.mxu0
        %v9972 = vadd.f32 %v9859, %v9971
        %9973 = vmatprep.mubr.bf16.mxu0 %v703
        %9974 = vmatmul.mubr.bf16.gmra.mxu0 %v702
        %v9975 = vpop.f32.mrf.mxu0
        %v9976 = vadd.f32 %v9863, %v9975
        %v9977 = vpop.f32.mrf.mxu0
        %v9978 = vadd.f32 %v9865, %v9977
        %v9979 = vpop.f32.mrf.mxu0
        %v9980 = vadd.f32 %v9867, %v9979
        %v9981 = vpop.f32.mrf.mxu0
        %v9982 = vadd.f32 %v9869, %v9981
        %9983 = vmatprep.mubr.bf16.mxu0 %v721
        %9984 = vmatmul.mubr.bf16.gmra.mxu0 %v720
        %v9985 = vpop.f32.mrf.mxu0
        %v9986 = vadd.f32 %v9873, %v9985
        %v9987 = vpop.f32.mrf.mxu0
        %v9988 = vadd.f32 %v9875, %v9987
        %v9989 = vpop.f32.mrf.mxu0
        %v9990 = vadd.f32 %v9877, %v9989
        %v9991 = vpop.f32.mrf.mxu0
        %v9992 = vadd.f32 %v9879, %v9991
        %9993 = vmatprep.mubr.bf16.mxu0 %v739
        %9994 = vmatmul.mubr.bf16.gmra.mxu0 %v738
        %v9995 = vpop.f32.mrf.mxu0
        %v9996 = vadd.f32 %v9883, %v9995
        %v9997 = vpop.f32.mrf.mxu0
        %v9998 = vadd.f32 %v9885, %v9997
        %v9999 = vpop.f32.mrf.mxu0
        %v10000 = vadd.f32 %v9887, %v9999
        %v10001 = vpop.f32.mrf.mxu0
        %v10002 = vadd.f32 %v9889, %v10001
        %10003 = vmatprep.mubr.bf16.mxu0 %v757
        %10004 = vmatmul.mubr.bf16.gmra.mxu0 %v756
        %v10005 = vpop.f32.mrf.mxu0
        %v10006 = vadd.f32 %v9893, %v10005
        %v10007 = vpop.f32.mrf.mxu0
        %v10008 = vadd.f32 %v9895, %v10007
        %v10009 = vpop.f32.mrf.mxu0
        %v10010 = vadd.f32 %v9897, %v10009
        %v10011 = vpop.f32.mrf.mxu0
        %v10012 = vadd.f32 %v9899, %v10011
        %10013 = vdwg.mxu0
        %10014 = vmatprep.subr.bf16.mxu0 %v5883
        %10015 = vmatpush1.bf16.msra.mxu0 %v5882
        %10016 = vmatprep.subr.bf16.mxu0 %v5875
        %10017 = vmatpush1.bf16.msra.mxu0 %v5874
        %10018 = vmatprep.subr.bf16.mxu0 %v5867
        %10019 = vmatpush1.bf16.msra.mxu0 %v5866
        %10020 = vmatprep.subr.bf16.mxu0 %v5859
        %10021 = vmatpush1.bf16.msra.mxu0 %v5858
        %10022 = vmatprep.subr.bf16.mxu0 %v5851
        %10023 = vmatpush1.bf16.msra.mxu0 %v5850
        %10024 = vmatprep.subr.bf16.mxu0 %v5843
        %10025 = vmatpush1.bf16.msra.mxu0 %v5842
        %10026 = vmatprep.subr.bf16.mxu0 %v5835
        %10027 = vmatpush1.bf16.msra.mxu0 %v5834
        %10028 = vmatprep.subr.bf16.mxu0 %v5827
        %10029 = vmatpush1.bf16.msra.mxu0 %v5826
        %10030 = vmatprep.subr.bf16.mxu0 %v5947
        %10031 = vmatpush2.bf16.msra.mxu0 %v5946
        %10032 = vmatprep.subr.bf16.mxu0 %v5939
        %10033 = vmatpush2.bf16.msra.mxu0 %v5938
        %10034 = vmatprep.subr.bf16.mxu0 %v5931
        %10035 = vmatpush2.bf16.msra.mxu0 %v5930
        %10036 = vmatprep.subr.bf16.mxu0 %v5923
        %10037 = vmatpush2.bf16.msra.mxu0 %v5922
        %10038 = vmatprep.subr.bf16.mxu0 %v5915
        %10039 = vmatpush2.bf16.msra.mxu0 %v5914
        %10040 = vmatprep.subr.bf16.mxu0 %v5907
        %10041 = vmatpush2.bf16.msra.mxu0 %v5906
        %10042 = vmatprep.subr.bf16.mxu0 %v5899
        %10043 = vmatpush2.bf16.msra.mxu0 %v5898
        %10044 = vmatprep.subr.bf16.mxu0 %v5891
        %10045 = vmatpush2.bf16.msra.mxu0 %v5890
        %10046 = vmatprep.mubr.bf16.mxu0 %v633
        %10047 = vmatmul.mubr.bf16.gmra.mxu0 %v632
        %v10048 = vpop.f32.mrf.mxu0
        %v10049 = vadd.f32 %v9936, %v10048
        %v10050 = vpop.f32.mrf.mxu0
        %v10051 = vadd.f32 %v9938, %v10050
        %v10052 = vpop.f32.mrf.mxu0
        %v10053 = vadd.f32 %v9940, %v10052
        %v10054 = vpop.f32.mrf.mxu0
        %v10055 = vadd.f32 %v9942, %v10054
        %10056 = vmatprep.mubr.bf16.mxu0 %v651
        %10057 = vmatmul.mubr.bf16.gmra.mxu0 %v650
        %v10058 = vpop.f32.mrf.mxu0
        %v10059 = vadd.f32 %v9946, %v10058
        %v10060 = vpop.f32.mrf.mxu0
        %v10061 = vadd.f32 %v9948, %v10060
        %v10062 = vpop.f32.mrf.mxu0
        %v10063 = vadd.f32 %v9950, %v10062
        %v10064 = vpop.f32.mrf.mxu0
        %v10065 = vadd.f32 %v9952, %v10064
        %10066 = vmatprep.mubr.bf16.mxu0 %v669
        %10067 = vmatmul.mubr.bf16.gmra.mxu0 %v668
        %v10068 = vpop.f32.mrf.mxu0
        %v10069 = vadd.f32 %v9956, %v10068
        %v10070 = vpop.f32.mrf.mxu0
        %v10071 = vadd.f32 %v9958, %v10070
        %v10072 = vpop.f32.mrf.mxu0
        %v10073 = vadd.f32 %v9960, %v10072
        %v10074 = vpop.f32.mrf.mxu0
        %v10075 = vadd.f32 %v9962, %v10074
        %10076 = vmatprep.mubr.bf16.mxu0 %v687
        %10077 = vmatmul.mubr.bf16.gmra.mxu0 %v686
        %v10078 = vpop.f32.mrf.mxu0
        %v10079 = vadd.f32 %v9966, %v10078
        %v10080 = vpop.f32.mrf.mxu0
        %v10081 = vadd.f32 %v9968, %v10080
        %v10082 = vpop.f32.mrf.mxu0
        %v10083 = vadd.f32 %v9970, %v10082
        %v10084 = vpop.f32.mrf.mxu0
        %v10085 = vadd.f32 %v9972, %v10084
        %10086 = vmatprep.mubr.bf16.mxu0 %v705
        %10087 = vmatmul.mubr.bf16.gmra.mxu0 %v704
        %v10088 = vpop.f32.mrf.mxu0
        %v10089 = vadd.f32 %v9976, %v10088
        %v10090 = vpop.f32.mrf.mxu0
        %v10091 = vadd.f32 %v9978, %v10090
        %v10092 = vpop.f32.mrf.mxu0
        %v10093 = vadd.f32 %v9980, %v10092
        %v10094 = vpop.f32.mrf.mxu0
        %v10095 = vadd.f32 %v9982, %v10094
        %10096 = vmatprep.mubr.bf16.mxu0 %v723
        %10097 = vmatmul.mubr.bf16.gmra.mxu0 %v722
        %v10098 = vpop.f32.mrf.mxu0
        %v10099 = vadd.f32 %v9986, %v10098
        %v10100 = vpop.f32.mrf.mxu0
        %v10101 = vadd.f32 %v9988, %v10100
        %v10102 = vpop.f32.mrf.mxu0
        %v10103 = vadd.f32 %v9990, %v10102
        %v10104 = vpop.f32.mrf.mxu0
        %v10105 = vadd.f32 %v9992, %v10104
        %10106 = vmatprep.mubr.bf16.mxu0 %v741
        %10107 = vmatmul.mubr.bf16.gmra.mxu0 %v740
        %v10108 = vpop.f32.mrf.mxu0
        %v10109 = vadd.f32 %v9996, %v10108
        %v10110 = vpop.f32.mrf.mxu0
        %v10111 = vadd.f32 %v9998, %v10110
        %v10112 = vpop.f32.mrf.mxu0
        %v10113 = vadd.f32 %v10000, %v10112
        %v10114 = vpop.f32.mrf.mxu0
        %v10115 = vadd.f32 %v10002, %v10114
        %10116 = vmatprep.mubr.bf16.mxu0 %v759
        %10117 = vmatmul.mubr.bf16.gmra.mxu0 %v758
        %v10118 = vpop.f32.mrf.mxu0
        %v10119 = vadd.f32 %v10006, %v10118
        %v10120 = vpop.f32.mrf.mxu0
        %v10121 = vadd.f32 %v10008, %v10120
        %v10122 = vpop.f32.mrf.mxu0
        %v10123 = vadd.f32 %v10010, %v10122
        %v10124 = vpop.f32.mrf.mxu0
        %v10125 = vadd.f32 %v10012, %v10124
        %10126 = vdwg.mxu0
        %10127 = vmatprep.subr.bf16.mxu0 %v6011
        %10128 = vmatpush1.bf16.msra.mxu0 %v6010
        %10129 = vmatprep.subr.bf16.mxu0 %v6003
        %10130 = vmatpush1.bf16.msra.mxu0 %v6002
        %10131 = vmatprep.subr.bf16.mxu0 %v5995
        %10132 = vmatpush1.bf16.msra.mxu0 %v5994
        %10133 = vmatprep.subr.bf16.mxu0 %v5987
        %10134 = vmatpush1.bf16.msra.mxu0 %v5986
        %10135 = vmatprep.subr.bf16.mxu0 %v5979
        %10136 = vmatpush1.bf16.msra.mxu0 %v5978
        %10137 = vmatprep.subr.bf16.mxu0 %v5971
        %10138 = vmatpush1.bf16.msra.mxu0 %v5970
        %10139 = vmatprep.subr.bf16.mxu0 %v5963
        %10140 = vmatpush1.bf16.msra.mxu0 %v5962
        %10141 = vmatprep.subr.bf16.mxu0 %v5955
        %10142 = vmatpush1.bf16.msra.mxu0 %v5954
        %10143 = vmatprep.subr.bf16.mxu0 %v6075
        %10144 = vmatpush2.bf16.msra.mxu0 %v6074
        %10145 = vmatprep.subr.bf16.mxu0 %v6067
        %10146 = vmatpush2.bf16.msra.mxu0 %v6066
        %10147 = vmatprep.subr.bf16.mxu0 %v6059
        %10148 = vmatpush2.bf16.msra.mxu0 %v6058
        %10149 = vmatprep.subr.bf16.mxu0 %v6051
        %10150 = vmatpush2.bf16.msra.mxu0 %v6050
        %10151 = vmatprep.subr.bf16.mxu0 %v6043
        %10152 = vmatpush2.bf16.msra.mxu0 %v6042
        %10153 = vmatprep.subr.bf16.mxu0 %v6035
        %10154 = vmatpush2.bf16.msra.mxu0 %v6034
        %10155 = vmatprep.subr.bf16.mxu0 %v6027
        %10156 = vmatpush2.bf16.msra.mxu0 %v6026
        %10157 = vmatprep.subr.bf16.mxu0 %v6019
        %10158 = vmatpush2.bf16.msra.mxu0 %v6018
        %10159 = vmatprep.mubr.bf16.mxu0 %v635
        %10160 = vmatmul.mubr.bf16.gmra.mxu0 %v634
        %v10161 = vpop.f32.mrf.mxu0
        %v10162 = vadd.f32 %v10049, %v10161
        %v10163 = vpop.f32.mrf.mxu0
        %v10164 = vadd.f32 %v10051, %v10163
        %v10165 = vpop.f32.mrf.mxu0
        %v10166 = vadd.f32 %v10053, %v10165
        %v10167 = vpop.f32.mrf.mxu0
        %v10168 = vadd.f32 %v10055, %v10167
        %10169 = vmatprep.mubr.bf16.mxu0 %v653
        %10170 = vmatmul.mubr.bf16.gmra.mxu0 %v652
        %v10171 = vpop.f32.mrf.mxu0
        %v10172 = vadd.f32 %v10059, %v10171
        %v10173 = vpop.f32.mrf.mxu0
        %v10174 = vadd.f32 %v10061, %v10173
        %v10175 = vpop.f32.mrf.mxu0
        %v10176 = vadd.f32 %v10063, %v10175
        %v10177 = vpop.f32.mrf.mxu0
        %v10178 = vadd.f32 %v10065, %v10177
        %10179 = vmatprep.mubr.bf16.mxu0 %v671
        %10180 = vmatmul.mubr.bf16.gmra.mxu0 %v670
        %v10181 = vpop.f32.mrf.mxu0
        %v10182 = vadd.f32 %v10069, %v10181
        %v10183 = vpop.f32.mrf.mxu0
        %v10184 = vadd.f32 %v10071, %v10183
        %v10185 = vpop.f32.mrf.mxu0
        %v10186 = vadd.f32 %v10073, %v10185
        %v10187 = vpop.f32.mrf.mxu0
        %v10188 = vadd.f32 %v10075, %v10187
        %10189 = vmatprep.mubr.bf16.mxu0 %v689
        %10190 = vmatmul.mubr.bf16.gmra.mxu0 %v688
        %v10191 = vpop.f32.mrf.mxu0
        %v10192 = vadd.f32 %v10079, %v10191
        %v10193 = vpop.f32.mrf.mxu0
        %v10194 = vadd.f32 %v10081, %v10193
        %v10195 = vpop.f32.mrf.mxu0
        %v10196 = vadd.f32 %v10083, %v10195
        %v10197 = vpop.f32.mrf.mxu0
        %v10198 = vadd.f32 %v10085, %v10197
        %10199 = vmatprep.mubr.bf16.mxu0 %v707
        %10200 = vmatmul.mubr.bf16.gmra.mxu0 %v706
        %v10201 = vpop.f32.mrf.mxu0
        %v10202 = vadd.f32 %v10089, %v10201
        %v10203 = vpop.f32.mrf.mxu0
        %v10204 = vadd.f32 %v10091, %v10203
        %v10205 = vpop.f32.mrf.mxu0
        %v10206 = vadd.f32 %v10093, %v10205
        %v10207 = vpop.f32.mrf.mxu0
        %v10208 = vadd.f32 %v10095, %v10207
        %10209 = vmatprep.mubr.bf16.mxu0 %v725
        %10210 = vmatmul.mubr.bf16.gmra.mxu0 %v724
        %v10211 = vpop.f32.mrf.mxu0
        %v10212 = vadd.f32 %v10099, %v10211
        %v10213 = vpop.f32.mrf.mxu0
        %v10214 = vadd.f32 %v10101, %v10213
        %v10215 = vpop.f32.mrf.mxu0
        %v10216 = vadd.f32 %v10103, %v10215
        %v10217 = vpop.f32.mrf.mxu0
        %v10218 = vadd.f32 %v10105, %v10217
        %10219 = vmatprep.mubr.bf16.mxu0 %v743
        %10220 = vmatmul.mubr.bf16.gmra.mxu0 %v742
        %v10221 = vpop.f32.mrf.mxu0
        %v10222 = vadd.f32 %v10109, %v10221
        %v10223 = vpop.f32.mrf.mxu0
        %v10224 = vadd.f32 %v10111, %v10223
        %v10225 = vpop.f32.mrf.mxu0
        %v10226 = vadd.f32 %v10113, %v10225
        %v10227 = vpop.f32.mrf.mxu0
        %v10228 = vadd.f32 %v10115, %v10227
        %10229 = vmatprep.mubr.bf16.mxu0 %v761
        %10230 = vmatmul.mubr.bf16.gmra.mxu0 %v760
        %v10231 = vpop.f32.mrf.mxu0
        %v10232 = vadd.f32 %v10119, %v10231
        %v10233 = vpop.f32.mrf.mxu0
        %v10234 = vadd.f32 %v10121, %v10233
        %v10235 = vpop.f32.mrf.mxu0
        %v10236 = vadd.f32 %v10123, %v10235
        %v10237 = vpop.f32.mrf.mxu0
        %v10238 = vadd.f32 %v10125, %v10237
        %10239 = vdwg.mxu0
        %10240 = vmatprep.subr.bf16.mxu0 %v6139
        %10241 = vmatpush1.bf16.msra.mxu0 %v6138
        %10242 = vmatprep.subr.bf16.mxu0 %v6131
        %10243 = vmatpush1.bf16.msra.mxu0 %v6130
        %10244 = vmatprep.subr.bf16.mxu0 %v6123
        %10245 = vmatpush1.bf16.msra.mxu0 %v6122
        %10246 = vmatprep.subr.bf16.mxu0 %v6115
        %10247 = vmatpush1.bf16.msra.mxu0 %v6114
        %10248 = vmatprep.subr.bf16.mxu0 %v6107
        %10249 = vmatpush1.bf16.msra.mxu0 %v6106
        %10250 = vmatprep.subr.bf16.mxu0 %v6099
        %10251 = vmatpush1.bf16.msra.mxu0 %v6098
        %10252 = vmatprep.subr.bf16.mxu0 %v6091
        %10253 = vmatpush1.bf16.msra.mxu0 %v6090
        %10254 = vmatprep.subr.bf16.mxu0 %v6083
        %10255 = vmatpush1.bf16.msra.mxu0 %v6082
        %10256 = vmatprep.subr.bf16.mxu0 %v6203
        %10257 = vmatpush2.bf16.msra.mxu0 %v6202
        %10258 = vmatprep.subr.bf16.mxu0 %v6195
        %10259 = vmatpush2.bf16.msra.mxu0 %v6194
        %10260 = vmatprep.subr.bf16.mxu0 %v6187
        %10261 = vmatpush2.bf16.msra.mxu0 %v6186
        %10262 = vmatprep.subr.bf16.mxu0 %v6179
        %10263 = vmatpush2.bf16.msra.mxu0 %v6178
        %10264 = vmatprep.subr.bf16.mxu0 %v6171
        %10265 = vmatpush2.bf16.msra.mxu0 %v6170
        %10266 = vmatprep.subr.bf16.mxu0 %v6163
        %10267 = vmatpush2.bf16.msra.mxu0 %v6162
        %10268 = vmatprep.subr.bf16.mxu0 %v6155
        %10269 = vmatpush2.bf16.msra.mxu0 %v6154
        %10270 = vmatprep.subr.bf16.mxu0 %v6147
        %10271 = vmatpush2.bf16.msra.mxu0 %v6146
        %10272 = vmatprep.mubr.bf16.mxu0 %v637
        %10273 = vmatmul.mubr.bf16.gmra.mxu0 %v636
        %v10274 = vpop.f32.mrf.mxu0
        %v10275 = vadd.f32 %v10162, %v10274
        %v10276 = vpop.f32.mrf.mxu0
        %v10277 = vadd.f32 %v10164, %v10276
        %v10278 = vpop.f32.mrf.mxu0
        %v10279 = vadd.f32 %v10166, %v10278
        %v10280 = vpop.f32.mrf.mxu0
        %v10281 = vadd.f32 %v10168, %v10280
        %10282 = vmatprep.mubr.bf16.mxu0 %v655
        %10283 = vmatmul.mubr.bf16.gmra.mxu0 %v654
        %v10284 = vpop.f32.mrf.mxu0
        %v10285 = vadd.f32 %v10172, %v10284
        %v10286 = vpop.f32.mrf.mxu0
        %v10287 = vadd.f32 %v10174, %v10286
        %v10288 = vpop.f32.mrf.mxu0
        %v10289 = vadd.f32 %v10176, %v10288
        %v10290 = vpop.f32.mrf.mxu0
        %v10291 = vadd.f32 %v10178, %v10290
        %10292 = vmatprep.mubr.bf16.mxu0 %v673
        %10293 = vmatmul.mubr.bf16.gmra.mxu0 %v672
        %v10294 = vpop.f32.mrf.mxu0
        %v10295 = vadd.f32 %v10182, %v10294
        %v10296 = vpop.f32.mrf.mxu0
        %v10297 = vadd.f32 %v10184, %v10296
        %v10298 = vpop.f32.mrf.mxu0
        %v10299 = vadd.f32 %v10186, %v10298
        %v10300 = vpop.f32.mrf.mxu0
        %v10301 = vadd.f32 %v10188, %v10300
        %10302 = vmatprep.mubr.bf16.mxu0 %v691
        %10303 = vmatmul.mubr.bf16.gmra.mxu0 %v690
        %v10304 = vpop.f32.mrf.mxu0
        %v10305 = vadd.f32 %v10192, %v10304
        %v10306 = vpop.f32.mrf.mxu0
        %v10307 = vadd.f32 %v10194, %v10306
        %v10308 = vpop.f32.mrf.mxu0
        %v10309 = vadd.f32 %v10196, %v10308
        %v10310 = vpop.f32.mrf.mxu0
        %v10311 = vadd.f32 %v10198, %v10310
        %10312 = vmatprep.mubr.bf16.mxu0 %v709
        %10313 = vmatmul.mubr.bf16.gmra.mxu0 %v708
        %v10314 = vpop.f32.mrf.mxu0
        %v10315 = vadd.f32 %v10202, %v10314
        %v10316 = vpop.f32.mrf.mxu0
        %v10317 = vadd.f32 %v10204, %v10316
        %v10318 = vpop.f32.mrf.mxu0
        %v10319 = vadd.f32 %v10206, %v10318
        %v10320 = vpop.f32.mrf.mxu0
        %v10321 = vadd.f32 %v10208, %v10320
        %10322 = vmatprep.mubr.bf16.mxu0 %v727
        %10323 = vmatmul.mubr.bf16.gmra.mxu0 %v726
        %v10324 = vpop.f32.mrf.mxu0
        %v10325 = vadd.f32 %v10212, %v10324
        %v10326 = vpop.f32.mrf.mxu0
        %v10327 = vadd.f32 %v10214, %v10326
        %v10328 = vpop.f32.mrf.mxu0
        %v10329 = vadd.f32 %v10216, %v10328
        %v10330 = vpop.f32.mrf.mxu0
        %v10331 = vadd.f32 %v10218, %v10330
        %10332 = vmatprep.mubr.bf16.mxu0 %v745
        %10333 = vmatmul.mubr.bf16.gmra.mxu0 %v744
        %v10334 = vpop.f32.mrf.mxu0
        %v10335 = vadd.f32 %v10222, %v10334
        %v10336 = vpop.f32.mrf.mxu0
        %v10337 = vadd.f32 %v10224, %v10336
        %v10338 = vpop.f32.mrf.mxu0
        %v10339 = vadd.f32 %v10226, %v10338
        %v10340 = vpop.f32.mrf.mxu0
        %v10341 = vadd.f32 %v10228, %v10340
        %10342 = vmatprep.mubr.bf16.mxu0 %v763
        %10343 = vmatmul.mubr.bf16.gmra.mxu0 %v762
        %v10344 = vpop.f32.mrf.mxu0
        %v10345 = vadd.f32 %v10232, %v10344
        %v10346 = vpop.f32.mrf.mxu0
        %v10347 = vadd.f32 %v10234, %v10346
        %v10348 = vpop.f32.mrf.mxu0
        %v10349 = vadd.f32 %v10236, %v10348
        %v10350 = vpop.f32.mrf.mxu0
        %v10351 = vadd.f32 %v10238, %v10350
        %10352 = vdwg.mxu0
        %10353 = vmatprep.subr.bf16.mxu0 %v6267
        %10354 = vmatpush1.bf16.msra.mxu0 %v6266
        %10355 = vmatprep.subr.bf16.mxu0 %v6259
        %10356 = vmatpush1.bf16.msra.mxu0 %v6258
        %10357 = vmatprep.subr.bf16.mxu0 %v6251
        %10358 = vmatpush1.bf16.msra.mxu0 %v6250
        %10359 = vmatprep.subr.bf16.mxu0 %v6243
        %10360 = vmatpush1.bf16.msra.mxu0 %v6242
        %10361 = vmatprep.subr.bf16.mxu0 %v6235
        %10362 = vmatpush1.bf16.msra.mxu0 %v6234
        %10363 = vmatprep.subr.bf16.mxu0 %v6227
        %10364 = vmatpush1.bf16.msra.mxu0 %v6226
        %10365 = vmatprep.subr.bf16.mxu0 %v6219
        %10366 = vmatpush1.bf16.msra.mxu0 %v6218
        %10367 = vmatprep.subr.bf16.mxu0 %v6211
        %10368 = vmatpush1.bf16.msra.mxu0 %v6210
        %10369 = vmatprep.subr.bf16.mxu0 0
        %10370 = vmatpush2.bf16.msra.mxu0 0
        %10371 = vmatprep.subr.bf16.mxu0 0
        %10372 = vmatpush2.bf16.msra.mxu0 0
        %10373 = vmatprep.subr.bf16.mxu0 0
        %10374 = vmatpush2.bf16.msra.mxu0 0
        %10375 = vmatprep.subr.bf16.mxu0 0
        %10376 = vmatpush2.bf16.msra.mxu0 0
        %10377 = vmatprep.subr.bf16.mxu0 0
        %10378 = vmatpush2.bf16.msra.mxu0 0
        %10379 = vmatprep.subr.bf16.mxu0 0
        %10380 = vmatpush2.bf16.msra.mxu0 0
        %10381 = vmatprep.subr.bf16.mxu0 %v6283
        %10382 = vmatpush2.bf16.msra.mxu0 %v6282
        %10383 = vmatprep.subr.bf16.mxu0 %v6275
        %10384 = vmatpush2.bf16.msra.mxu0 %v6274
        %10385 = vmatprep.mubr.bf16.mxu0 %v7392
        %10386 = vmatmul.mubr.bf16.gmra.mxu0 %v638
        %v10387 = vpop.f32.mrf.mxu0
        %v10388 = vadd.f32 %v10275, %v10387
        %v10389 = vpop.f32.mrf.mxu0
        %v10390 = vadd.f32 %v10277, %v10389
        %v10391 = vpop.f32.mrf.mxu0
        %v10392 = vadd.f32 %v10279, %v10391
        %v10393 = vpop.f32.mrf.mxu0
        %v10394 = vadd.f32 %v10281, %v10393
        %10395 = vmatprep.mubr.bf16.mxu0 %v7395
        %10396 = vmatmul.mubr.bf16.gmra.mxu0 %v656
        %v10397 = vpop.f32.mrf.mxu0
        %v10398 = vadd.f32 %v10285, %v10397
        %v10399 = vpop.f32.mrf.mxu0
        %v10400 = vadd.f32 %v10287, %v10399
        %v10401 = vpop.f32.mrf.mxu0
        %v10402 = vadd.f32 %v10289, %v10401
        %v10403 = vpop.f32.mrf.mxu0
        %v10404 = vadd.f32 %v10291, %v10403
        %10405 = vmatprep.mubr.bf16.mxu0 %v7398
        %10406 = vmatmul.mubr.bf16.gmra.mxu0 %v674
        %v10407 = vpop.f32.mrf.mxu0
        %v10408 = vadd.f32 %v10295, %v10407
        %v10409 = vpop.f32.mrf.mxu0
        %v10410 = vadd.f32 %v10297, %v10409
        %v10411 = vpop.f32.mrf.mxu0
        %v10412 = vadd.f32 %v10299, %v10411
        %v10413 = vpop.f32.mrf.mxu0
        %v10414 = vadd.f32 %v10301, %v10413
        %10415 = vmatprep.mubr.bf16.mxu0 %v7401
        %10416 = vmatmul.mubr.bf16.gmra.mxu0 %v692
        %v10417 = vpop.f32.mrf.mxu0
        %v10418 = vadd.f32 %v10305, %v10417
        %v10419 = vpop.f32.mrf.mxu0
        %v10420 = vadd.f32 %v10307, %v10419
        %v10421 = vpop.f32.mrf.mxu0
        %v10422 = vadd.f32 %v10309, %v10421
        %v10423 = vpop.f32.mrf.mxu0
        %v10424 = vadd.f32 %v10311, %v10423
        %10425 = vmatprep.mubr.bf16.mxu0 %v7404
        %10426 = vmatmul.mubr.bf16.gmra.mxu0 %v710
        %v10427 = vpop.f32.mrf.mxu0
        %v10428 = vadd.f32 %v10315, %v10427
        %v10429 = vpop.f32.mrf.mxu0
        %v10430 = vadd.f32 %v10317, %v10429
        %v10431 = vpop.f32.mrf.mxu0
        %v10432 = vadd.f32 %v10319, %v10431
        %v10433 = vpop.f32.mrf.mxu0
        %v10434 = vadd.f32 %v10321, %v10433
        %10435 = vmatprep.mubr.bf16.mxu0 %v7407
        %10436 = vmatmul.mubr.bf16.gmra.mxu0 %v728
        %v10437 = vpop.f32.mrf.mxu0
        %v10438 = vadd.f32 %v10325, %v10437
        %v10439 = vpop.f32.mrf.mxu0
        %v10440 = vadd.f32 %v10327, %v10439
        %v10441 = vpop.f32.mrf.mxu0
        %v10442 = vadd.f32 %v10329, %v10441
        %v10443 = vpop.f32.mrf.mxu0
        %v10444 = vadd.f32 %v10331, %v10443
        %10445 = vmatprep.mubr.bf16.mxu0 %v7410
        %10446 = vmatmul.mubr.bf16.gmra.mxu0 %v746
        %v10447 = vpop.f32.mrf.mxu0
        %v10448 = vadd.f32 %v10335, %v10447
        %v10449 = vpop.f32.mrf.mxu0
        %v10450 = vadd.f32 %v10337, %v10449
        %v10451 = vpop.f32.mrf.mxu0
        %v10452 = vadd.f32 %v10339, %v10451
        %v10453 = vpop.f32.mrf.mxu0
        %v10454 = vadd.f32 %v10341, %v10453
        %10455 = vmatprep.mubr.bf16.mxu0 %v7413
        %10456 = vmatmul.mubr.bf16.gmra.mxu0 %v764
        %v10457 = vpop.f32.mrf.mxu0
        %v10458 = vadd.f32 %v10345, %v10457
        %v10459 = vpop.f32.mrf.mxu0
        %v10460 = vadd.f32 %v10347, %v10459
        %v10461 = vpop.f32.mrf.mxu0
        %v10462 = vadd.f32 %v10349, %v10461
        %v10463 = vpop.f32.mrf.mxu0
        %v10464 = vadd.f32 %v10351, %v10463
        %10465 = vdwg.mxu0
        %10466 = vmatprep.subr.bf16.mxu0 %v5245
        %10467 = vmatpush1.bf16.msra.mxu0 %v5244
        %10468 = vmatprep.subr.bf16.mxu0 %v5237
        %10469 = vmatpush1.bf16.msra.mxu0 %v5236
        %10470 = vmatprep.subr.bf16.mxu0 %v5229
        %10471 = vmatpush1.bf16.msra.mxu0 %v5228
        %10472 = vmatprep.subr.bf16.mxu0 %v5221
        %10473 = vmatpush1.bf16.msra.mxu0 %v5220
        %10474 = vmatprep.subr.bf16.mxu0 %v5213
        %10475 = vmatpush1.bf16.msra.mxu0 %v5212
        %10476 = vmatprep.subr.bf16.mxu0 %v5205
        %10477 = vmatpush1.bf16.msra.mxu0 %v5204
        %10478 = vmatprep.subr.bf16.mxu0 %v5197
        %10479 = vmatpush1.bf16.msra.mxu0 %v5196
        %10480 = vmatprep.subr.bf16.mxu0 %v5189
        %10481 = vmatpush1.bf16.msra.mxu0 %v5188
        %10482 = vmatprep.subr.bf16.mxu0 %v5309
        %10483 = vmatpush2.bf16.msra.mxu0 %v5308
        %10484 = vmatprep.subr.bf16.mxu0 %v5301
        %10485 = vmatpush2.bf16.msra.mxu0 %v5300
        %10486 = vmatprep.subr.bf16.mxu0 %v5293
        %10487 = vmatpush2.bf16.msra.mxu0 %v5292
        %10488 = vmatprep.subr.bf16.mxu0 %v5285
        %10489 = vmatpush2.bf16.msra.mxu0 %v5284
        %10490 = vmatprep.subr.bf16.mxu0 %v5277
        %10491 = vmatpush2.bf16.msra.mxu0 %v5276
        %10492 = vmatprep.subr.bf16.mxu0 %v5269
        %10493 = vmatpush2.bf16.msra.mxu0 %v5268
        %10494 = vmatprep.subr.bf16.mxu0 %v5261
        %10495 = vmatpush2.bf16.msra.mxu0 %v5260
        %10496 = vmatprep.subr.bf16.mxu0 %v5253
        %10497 = vmatpush2.bf16.msra.mxu0 %v5252
        %10498 = vmatprep.mubr.bf16.mxu0 %v623
        %10499 = vmatmul.mubr.bf16.gmra.mxu0 %v622
        %v10500 = vpop.f32.mrf.mxu0
        %v10501 = vadd.f32 0.0, %v10500
        %v10502 = vpop.f32.mrf.mxu0
        %v10503 = vadd.f32 0.0, %v10502
        %v10504 = vpop.f32.mrf.mxu0
        %v10505 = vadd.f32 0.0, %v10504
        %v10506 = vpop.f32.mrf.mxu0
        %v10507 = vadd.f32 0.0, %v10506
        %10508 = vmatprep.mubr.bf16.mxu0 %v641
        %10509 = vmatmul.mubr.bf16.gmra.mxu0 %v640
        %v10510 = vpop.f32.mrf.mxu0
        %v10511 = vadd.f32 0.0, %v10510
        %v10512 = vpop.f32.mrf.mxu0
        %v10513 = vadd.f32 0.0, %v10512
        %v10514 = vpop.f32.mrf.mxu0
        %v10515 = vadd.f32 0.0, %v10514
        %v10516 = vpop.f32.mrf.mxu0
        %v10517 = vadd.f32 0.0, %v10516
        %10518 = vmatprep.mubr.bf16.mxu0 %v659
        %10519 = vmatmul.mubr.bf16.gmra.mxu0 %v658
        %v10520 = vpop.f32.mrf.mxu0
        %v10521 = vadd.f32 0.0, %v10520
        %v10522 = vpop.f32.mrf.mxu0
        %v10523 = vadd.f32 0.0, %v10522
        %v10524 = vpop.f32.mrf.mxu0
        %v10525 = vadd.f32 0.0, %v10524
        %v10526 = vpop.f32.mrf.mxu0
        %v10527 = vadd.f32 0.0, %v10526
        %10528 = vmatprep.mubr.bf16.mxu0 %v677
        %10529 = vmatmul.mubr.bf16.gmra.mxu0 %v676
        %v10530 = vpop.f32.mrf.mxu0
        %v10531 = vadd.f32 0.0, %v10530
        %v10532 = vpop.f32.mrf.mxu0
        %v10533 = vadd.f32 0.0, %v10532
        %v10534 = vpop.f32.mrf.mxu0
        %v10535 = vadd.f32 0.0, %v10534
        %v10536 = vpop.f32.mrf.mxu0
        %v10537 = vadd.f32 0.0, %v10536
        %10538 = vmatprep.mubr.bf16.mxu0 %v695
        %10539 = vmatmul.mubr.bf16.gmra.mxu0 %v694
        %v10540 = vpop.f32.mrf.mxu0
        %v10541 = vadd.f32 0.0, %v10540
        %v10542 = vpop.f32.mrf.mxu0
        %v10543 = vadd.f32 0.0, %v10542
        %v10544 = vpop.f32.mrf.mxu0
        %v10545 = vadd.f32 0.0, %v10544
        %v10546 = vpop.f32.mrf.mxu0
        %v10547 = vadd.f32 0.0, %v10546
        %10548 = vmatprep.mubr.bf16.mxu0 %v713
        %10549 = vmatmul.mubr.bf16.gmra.mxu0 %v712
        %v10550 = vpop.f32.mrf.mxu0
        %v10551 = vadd.f32 0.0, %v10550
        %v10552 = vpop.f32.mrf.mxu0
        %v10553 = vadd.f32 0.0, %v10552
        %v10554 = vpop.f32.mrf.mxu0
        %v10555 = vadd.f32 0.0, %v10554
        %v10556 = vpop.f32.mrf.mxu0
        %v10557 = vadd.f32 0.0, %v10556
        %10558 = vmatprep.mubr.bf16.mxu0 %v731
        %10559 = vmatmul.mubr.bf16.gmra.mxu0 %v730
        %v10560 = vpop.f32.mrf.mxu0
        %v10561 = vadd.f32 0.0, %v10560
        %v10562 = vpop.f32.mrf.mxu0
        %v10563 = vadd.f32 0.0, %v10562
        %v10564 = vpop.f32.mrf.mxu0
        %v10565 = vadd.f32 0.0, %v10564
        %v10566 = vpop.f32.mrf.mxu0
        %v10567 = vadd.f32 0.0, %v10566
        %10568 = vmatprep.mubr.bf16.mxu0 %v749
        %10569 = vmatmul.mubr.bf16.gmra.mxu0 %v748
        %v10570 = vpop.f32.mrf.mxu0
        %v10571 = vadd.f32 0.0, %v10570
        %v10572 = vpop.f32.mrf.mxu0
        %v10573 = vadd.f32 0.0, %v10572
        %v10574 = vpop.f32.mrf.mxu0
        %v10575 = vadd.f32 0.0, %v10574
        %v10576 = vpop.f32.mrf.mxu0
        %v10577 = vadd.f32 0.0, %v10576
        %10578 = vdwg.mxu0
        %10579 = vmatprep.subr.bf16.mxu0 %v5373
        %10580 = vmatpush1.bf16.msra.mxu0 %v5372
        %10581 = vmatprep.subr.bf16.mxu0 %v5365
        %10582 = vmatpush1.bf16.msra.mxu0 %v5364
        %10583 = vmatprep.subr.bf16.mxu0 %v5357
        %10584 = vmatpush1.bf16.msra.mxu0 %v5356
        %10585 = vmatprep.subr.bf16.mxu0 %v5349
        %10586 = vmatpush1.bf16.msra.mxu0 %v5348
        %10587 = vmatprep.subr.bf16.mxu0 %v5341
        %10588 = vmatpush1.bf16.msra.mxu0 %v5340
        %10589 = vmatprep.subr.bf16.mxu0 %v5333
        %10590 = vmatpush1.bf16.msra.mxu0 %v5332
        %10591 = vmatprep.subr.bf16.mxu0 %v5325
        %10592 = vmatpush1.bf16.msra.mxu0 %v5324
        %10593 = vmatprep.subr.bf16.mxu0 %v5317
        %10594 = vmatpush1.bf16.msra.mxu0 %v5316
        %10595 = vmatprep.subr.bf16.mxu0 %v5437
        %10596 = vmatpush2.bf16.msra.mxu0 %v5436
        %10597 = vmatprep.subr.bf16.mxu0 %v5429
        %10598 = vmatpush2.bf16.msra.mxu0 %v5428
        %10599 = vmatprep.subr.bf16.mxu0 %v5421
        %10600 = vmatpush2.bf16.msra.mxu0 %v5420
        %10601 = vmatprep.subr.bf16.mxu0 %v5413
        %10602 = vmatpush2.bf16.msra.mxu0 %v5412
        %10603 = vmatprep.subr.bf16.mxu0 %v5405
        %10604 = vmatpush2.bf16.msra.mxu0 %v5404
        %10605 = vmatprep.subr.bf16.mxu0 %v5397
        %10606 = vmatpush2.bf16.msra.mxu0 %v5396
        %10607 = vmatprep.subr.bf16.mxu0 %v5389
        %10608 = vmatpush2.bf16.msra.mxu0 %v5388
        %10609 = vmatprep.subr.bf16.mxu0 %v5381
        %10610 = vmatpush2.bf16.msra.mxu0 %v5380
        %10611 = vmatprep.mubr.bf16.mxu0 %v625
        %10612 = vmatmul.mubr.bf16.gmra.mxu0 %v624
        %v10613 = vpop.f32.mrf.mxu0
        %v10614 = vadd.f32 %v10501, %v10613
        %v10615 = vpop.f32.mrf.mxu0
        %v10616 = vadd.f32 %v10503, %v10615
        %v10617 = vpop.f32.mrf.mxu0
        %v10618 = vadd.f32 %v10505, %v10617
        %v10619 = vpop.f32.mrf.mxu0
        %v10620 = vadd.f32 %v10507, %v10619
        %10621 = vmatprep.mubr.bf16.mxu0 %v643
        %10622 = vmatmul.mubr.bf16.gmra.mxu0 %v642
        %v10623 = vpop.f32.mrf.mxu0
        %v10624 = vadd.f32 %v10511, %v10623
        %v10625 = vpop.f32.mrf.mxu0
        %v10626 = vadd.f32 %v10513, %v10625
        %v10627 = vpop.f32.mrf.mxu0
        %v10628 = vadd.f32 %v10515, %v10627
        %v10629 = vpop.f32.mrf.mxu0
        %v10630 = vadd.f32 %v10517, %v10629
        %10631 = vmatprep.mubr.bf16.mxu0 %v661
        %10632 = vmatmul.mubr.bf16.gmra.mxu0 %v660
        %v10633 = vpop.f32.mrf.mxu0
        %v10634 = vadd.f32 %v10521, %v10633
        %v10635 = vpop.f32.mrf.mxu0
        %v10636 = vadd.f32 %v10523, %v10635
        %v10637 = vpop.f32.mrf.mxu0
        %v10638 = vadd.f32 %v10525, %v10637
        %v10639 = vpop.f32.mrf.mxu0
        %v10640 = vadd.f32 %v10527, %v10639
        %10641 = vmatprep.mubr.bf16.mxu0 %v679
        %10642 = vmatmul.mubr.bf16.gmra.mxu0 %v678
        %v10643 = vpop.f32.mrf.mxu0
        %v10644 = vadd.f32 %v10531, %v10643
        %v10645 = vpop.f32.mrf.mxu0
        %v10646 = vadd.f32 %v10533, %v10645
        %v10647 = vpop.f32.mrf.mxu0
        %v10648 = vadd.f32 %v10535, %v10647
        %v10649 = vpop.f32.mrf.mxu0
        %v10650 = vadd.f32 %v10537, %v10649
        %10651 = vmatprep.mubr.bf16.mxu0 %v697
        %10652 = vmatmul.mubr.bf16.gmra.mxu0 %v696
        %v10653 = vpop.f32.mrf.mxu0
        %v10654 = vadd.f32 %v10541, %v10653
        %v10655 = vpop.f32.mrf.mxu0
        %v10656 = vadd.f32 %v10543, %v10655
        %v10657 = vpop.f32.mrf.mxu0
        %v10658 = vadd.f32 %v10545, %v10657
        %v10659 = vpop.f32.mrf.mxu0
        %v10660 = vadd.f32 %v10547, %v10659
        %10661 = vmatprep.mubr.bf16.mxu0 %v715
        %10662 = vmatmul.mubr.bf16.gmra.mxu0 %v714
        %v10663 = vpop.f32.mrf.mxu0
        %v10664 = vadd.f32 %v10551, %v10663
        %v10665 = vpop.f32.mrf.mxu0
        %v10666 = vadd.f32 %v10553, %v10665
        %v10667 = vpop.f32.mrf.mxu0
        %v10668 = vadd.f32 %v10555, %v10667
        %v10669 = vpop.f32.mrf.mxu0
        %v10670 = vadd.f32 %v10557, %v10669
        %10671 = vmatprep.mubr.bf16.mxu0 %v733
        %10672 = vmatmul.mubr.bf16.gmra.mxu0 %v732
        %v10673 = vpop.f32.mrf.mxu0
        %v10674 = vadd.f32 %v10561, %v10673
        %v10675 = vpop.f32.mrf.mxu0
        %v10676 = vadd.f32 %v10563, %v10675
        %v10677 = vpop.f32.mrf.mxu0
        %v10678 = vadd.f32 %v10565, %v10677
        %v10679 = vpop.f32.mrf.mxu0
        %v10680 = vadd.f32 %v10567, %v10679
        %10681 = vmatprep.mubr.bf16.mxu0 %v751
        %10682 = vmatmul.mubr.bf16.gmra.mxu0 %v750
        %v10683 = vpop.f32.mrf.mxu0
        %v10684 = vadd.f32 %v10571, %v10683
        %v10685 = vpop.f32.mrf.mxu0
        %v10686 = vadd.f32 %v10573, %v10685
        %v10687 = vpop.f32.mrf.mxu0
        %v10688 = vadd.f32 %v10575, %v10687
        %v10689 = vpop.f32.mrf.mxu0
        %v10690 = vadd.f32 %v10577, %v10689
        %10691 = vdwg.mxu0
        %10692 = vmatprep.subr.bf16.mxu0 %v5501
        %10693 = vmatpush1.bf16.msra.mxu0 %v5500
        %10694 = vmatprep.subr.bf16.mxu0 %v5493
        %10695 = vmatpush1.bf16.msra.mxu0 %v5492
        %10696 = vmatprep.subr.bf16.mxu0 %v5485
        %10697 = vmatpush1.bf16.msra.mxu0 %v5484
        %10698 = vmatprep.subr.bf16.mxu0 %v5477
        %10699 = vmatpush1.bf16.msra.mxu0 %v5476
        %10700 = vmatprep.subr.bf16.mxu0 %v5469
        %10701 = vmatpush1.bf16.msra.mxu0 %v5468
        %10702 = vmatprep.subr.bf16.mxu0 %v5461
        %10703 = vmatpush1.bf16.msra.mxu0 %v5460
        %10704 = vmatprep.subr.bf16.mxu0 %v5453
        %10705 = vmatpush1.bf16.msra.mxu0 %v5452
        %10706 = vmatprep.subr.bf16.mxu0 %v5445
        %10707 = vmatpush1.bf16.msra.mxu0 %v5444
        %10708 = vmatprep.subr.bf16.mxu0 %v5565
        %10709 = vmatpush2.bf16.msra.mxu0 %v5564
        %10710 = vmatprep.subr.bf16.mxu0 %v5557
        %10711 = vmatpush2.bf16.msra.mxu0 %v5556
        %10712 = vmatprep.subr.bf16.mxu0 %v5549
        %10713 = vmatpush2.bf16.msra.mxu0 %v5548
        %10714 = vmatprep.subr.bf16.mxu0 %v5541
        %10715 = vmatpush2.bf16.msra.mxu0 %v5540
        %10716 = vmatprep.subr.bf16.mxu0 %v5533
        %10717 = vmatpush2.bf16.msra.mxu0 %v5532
        %10718 = vmatprep.subr.bf16.mxu0 %v5525
        %10719 = vmatpush2.bf16.msra.mxu0 %v5524
        %10720 = vmatprep.subr.bf16.mxu0 %v5517
        %10721 = vmatpush2.bf16.msra.mxu0 %v5516
        %10722 = vmatprep.subr.bf16.mxu0 %v5509
        %10723 = vmatpush2.bf16.msra.mxu0 %v5508
        %10724 = vmatprep.mubr.bf16.mxu0 %v627
        %10725 = vmatmul.mubr.bf16.gmra.mxu0 %v626
        %v10726 = vpop.f32.mrf.mxu0
        %v10727 = vadd.f32 %v10614, %v10726
        %v10728 = vpop.f32.mrf.mxu0
        %v10729 = vadd.f32 %v10616, %v10728
        %v10730 = vpop.f32.mrf.mxu0
        %v10731 = vadd.f32 %v10618, %v10730
        %v10732 = vpop.f32.mrf.mxu0
        %v10733 = vadd.f32 %v10620, %v10732
        %10734 = vmatprep.mubr.bf16.mxu0 %v645
        %10735 = vmatmul.mubr.bf16.gmra.mxu0 %v644
        %v10736 = vpop.f32.mrf.mxu0
        %v10737 = vadd.f32 %v10624, %v10736
        %v10738 = vpop.f32.mrf.mxu0
        %v10739 = vadd.f32 %v10626, %v10738
        %v10740 = vpop.f32.mrf.mxu0
        %v10741 = vadd.f32 %v10628, %v10740
        %v10742 = vpop.f32.mrf.mxu0
        %v10743 = vadd.f32 %v10630, %v10742
        %10744 = vmatprep.mubr.bf16.mxu0 %v663
        %10745 = vmatmul.mubr.bf16.gmra.mxu0 %v662
        %v10746 = vpop.f32.mrf.mxu0
        %v10747 = vadd.f32 %v10634, %v10746
        %v10748 = vpop.f32.mrf.mxu0
        %v10749 = vadd.f32 %v10636, %v10748
        %v10750 = vpop.f32.mrf.mxu0
        %v10751 = vadd.f32 %v10638, %v10750
        %v10752 = vpop.f32.mrf.mxu0
        %v10753 = vadd.f32 %v10640, %v10752
        %10754 = vmatprep.mubr.bf16.mxu0 %v681
        %10755 = vmatmul.mubr.bf16.gmra.mxu0 %v680
        %v10756 = vpop.f32.mrf.mxu0
        %v10757 = vadd.f32 %v10644, %v10756
        %v10758 = vpop.f32.mrf.mxu0
        %v10759 = vadd.f32 %v10646, %v10758
        %v10760 = vpop.f32.mrf.mxu0
        %v10761 = vadd.f32 %v10648, %v10760
        %v10762 = vpop.f32.mrf.mxu0
        %v10763 = vadd.f32 %v10650, %v10762
        %10764 = vmatprep.mubr.bf16.mxu0 %v699
        %10765 = vmatmul.mubr.bf16.gmra.mxu0 %v698
        %v10766 = vpop.f32.mrf.mxu0
        %v10767 = vadd.f32 %v10654, %v10766
        %v10768 = vpop.f32.mrf.mxu0
        %v10769 = vadd.f32 %v10656, %v10768
        %v10770 = vpop.f32.mrf.mxu0
        %v10771 = vadd.f32 %v10658, %v10770
        %v10772 = vpop.f32.mrf.mxu0
        %v10773 = vadd.f32 %v10660, %v10772
        %10774 = vmatprep.mubr.bf16.mxu0 %v717
        %10775 = vmatmul.mubr.bf16.gmra.mxu0 %v716
        %v10776 = vpop.f32.mrf.mxu0
        %v10777 = vadd.f32 %v10664, %v10776
        %v10778 = vpop.f32.mrf.mxu0
        %v10779 = vadd.f32 %v10666, %v10778
        %v10780 = vpop.f32.mrf.mxu0
        %v10781 = vadd.f32 %v10668, %v10780
        %v10782 = vpop.f32.mrf.mxu0
        %v10783 = vadd.f32 %v10670, %v10782
        %10784 = vmatprep.mubr.bf16.mxu0 %v735
        %10785 = vmatmul.mubr.bf16.gmra.mxu0 %v734
        %v10786 = vpop.f32.mrf.mxu0
        %v10787 = vadd.f32 %v10674, %v10786
        %v10788 = vpop.f32.mrf.mxu0
        %v10789 = vadd.f32 %v10676, %v10788
        %v10790 = vpop.f32.mrf.mxu0
        %v10791 = vadd.f32 %v10678, %v10790
        %v10792 = vpop.f32.mrf.mxu0
        %v10793 = vadd.f32 %v10680, %v10792
        %10794 = vmatprep.mubr.bf16.mxu0 %v753
        %10795 = vmatmul.mubr.bf16.gmra.mxu0 %v752
        %v10796 = vpop.f32.mrf.mxu0
        %v10797 = vadd.f32 %v10684, %v10796
        %v10798 = vpop.f32.mrf.mxu0
        %v10799 = vadd.f32 %v10686, %v10798
        %v10800 = vpop.f32.mrf.mxu0
        %v10801 = vadd.f32 %v10688, %v10800
        %v10802 = vpop.f32.mrf.mxu0
        %v10803 = vadd.f32 %v10690, %v10802
        %10804 = vdwg.mxu0
        %10805 = vmatprep.subr.bf16.mxu0 %v5629
        %10806 = vmatpush1.bf16.msra.mxu0 %v5628
        %10807 = vmatprep.subr.bf16.mxu0 %v5621
        %10808 = vmatpush1.bf16.msra.mxu0 %v5620
        %10809 = vmatprep.subr.bf16.mxu0 %v5613
        %10810 = vmatpush1.bf16.msra.mxu0 %v5612
        %10811 = vmatprep.subr.bf16.mxu0 %v5605
        %10812 = vmatpush1.bf16.msra.mxu0 %v5604
        %10813 = vmatprep.subr.bf16.mxu0 %v5597
        %10814 = vmatpush1.bf16.msra.mxu0 %v5596
        %10815 = vmatprep.subr.bf16.mxu0 %v5589
        %10816 = vmatpush1.bf16.msra.mxu0 %v5588
        %10817 = vmatprep.subr.bf16.mxu0 %v5581
        %10818 = vmatpush1.bf16.msra.mxu0 %v5580
        %10819 = vmatprep.subr.bf16.mxu0 %v5573
        %10820 = vmatpush1.bf16.msra.mxu0 %v5572
        %10821 = vmatprep.subr.bf16.mxu0 %v5693
        %10822 = vmatpush2.bf16.msra.mxu0 %v5692
        %10823 = vmatprep.subr.bf16.mxu0 %v5685
        %10824 = vmatpush2.bf16.msra.mxu0 %v5684
        %10825 = vmatprep.subr.bf16.mxu0 %v5677
        %10826 = vmatpush2.bf16.msra.mxu0 %v5676
        %10827 = vmatprep.subr.bf16.mxu0 %v5669
        %10828 = vmatpush2.bf16.msra.mxu0 %v5668
        %10829 = vmatprep.subr.bf16.mxu0 %v5661
        %10830 = vmatpush2.bf16.msra.mxu0 %v5660
        %10831 = vmatprep.subr.bf16.mxu0 %v5653
        %10832 = vmatpush2.bf16.msra.mxu0 %v5652
        %10833 = vmatprep.subr.bf16.mxu0 %v5645
        %10834 = vmatpush2.bf16.msra.mxu0 %v5644
        %10835 = vmatprep.subr.bf16.mxu0 %v5637
        %10836 = vmatpush2.bf16.msra.mxu0 %v5636
        %10837 = vmatprep.mubr.bf16.mxu0 %v629
        %10838 = vmatmul.mubr.bf16.gmra.mxu0 %v628
        %v10839 = vpop.f32.mrf.mxu0
        %v10840 = vadd.f32 %v10727, %v10839
        %v10841 = vpop.f32.mrf.mxu0
        %v10842 = vadd.f32 %v10729, %v10841
        %v10843 = vpop.f32.mrf.mxu0
        %v10844 = vadd.f32 %v10731, %v10843
        %v10845 = vpop.f32.mrf.mxu0
        %v10846 = vadd.f32 %v10733, %v10845
        %10847 = vmatprep.mubr.bf16.mxu0 %v647
        %10848 = vmatmul.mubr.bf16.gmra.mxu0 %v646
        %v10849 = vpop.f32.mrf.mxu0
        %v10850 = vadd.f32 %v10737, %v10849
        %v10851 = vpop.f32.mrf.mxu0
        %v10852 = vadd.f32 %v10739, %v10851
        %v10853 = vpop.f32.mrf.mxu0
        %v10854 = vadd.f32 %v10741, %v10853
        %v10855 = vpop.f32.mrf.mxu0
        %v10856 = vadd.f32 %v10743, %v10855
        %10857 = vmatprep.mubr.bf16.mxu0 %v665
        %10858 = vmatmul.mubr.bf16.gmra.mxu0 %v664
        %v10859 = vpop.f32.mrf.mxu0
        %v10860 = vadd.f32 %v10747, %v10859
        %v10861 = vpop.f32.mrf.mxu0
        %v10862 = vadd.f32 %v10749, %v10861
        %v10863 = vpop.f32.mrf.mxu0
        %v10864 = vadd.f32 %v10751, %v10863
        %v10865 = vpop.f32.mrf.mxu0
        %v10866 = vadd.f32 %v10753, %v10865
        %10867 = vmatprep.mubr.bf16.mxu0 %v683
        %10868 = vmatmul.mubr.bf16.gmra.mxu0 %v682
        %v10869 = vpop.f32.mrf.mxu0
        %v10870 = vadd.f32 %v10757, %v10869
        %v10871 = vpop.f32.mrf.mxu0
        %v10872 = vadd.f32 %v10759, %v10871
        %v10873 = vpop.f32.mrf.mxu0
        %v10874 = vadd.f32 %v10761, %v10873
        %v10875 = vpop.f32.mrf.mxu0
        %v10876 = vadd.f32 %v10763, %v10875
        %10877 = vmatprep.mubr.bf16.mxu0 %v701
        %10878 = vmatmul.mubr.bf16.gmra.mxu0 %v700
        %v10879 = vpop.f32.mrf.mxu0
        %v10880 = vadd.f32 %v10767, %v10879
        %v10881 = vpop.f32.mrf.mxu0
        %v10882 = vadd.f32 %v10769, %v10881
        %v10883 = vpop.f32.mrf.mxu0
        %v10884 = vadd.f32 %v10771, %v10883
        %v10885 = vpop.f32.mrf.mxu0
        %v10886 = vadd.f32 %v10773, %v10885
        %10887 = vmatprep.mubr.bf16.mxu0 %v719
        %10888 = vmatmul.mubr.bf16.gmra.mxu0 %v718
        %v10889 = vpop.f32.mrf.mxu0
        %v10890 = vadd.f32 %v10777, %v10889
        %v10891 = vpop.f32.mrf.mxu0
        %v10892 = vadd.f32 %v10779, %v10891
        %v10893 = vpop.f32.mrf.mxu0
        %v10894 = vadd.f32 %v10781, %v10893
        %v10895 = vpop.f32.mrf.mxu0
        %v10896 = vadd.f32 %v10783, %v10895
        %10897 = vmatprep.mubr.bf16.mxu0 %v737
        %10898 = vmatmul.mubr.bf16.gmra.mxu0 %v736
        %v10899 = vpop.f32.mrf.mxu0
        %v10900 = vadd.f32 %v10787, %v10899
        %v10901 = vpop.f32.mrf.mxu0
        %v10902 = vadd.f32 %v10789, %v10901
        %v10903 = vpop.f32.mrf.mxu0
        %v10904 = vadd.f32 %v10791, %v10903
        %v10905 = vpop.f32.mrf.mxu0
        %v10906 = vadd.f32 %v10793, %v10905
        %10907 = vmatprep.mubr.bf16.mxu0 %v755
        %10908 = vmatmul.mubr.bf16.gmra.mxu0 %v754
        %v10909 = vpop.f32.mrf.mxu0
        %v10910 = vadd.f32 %v10797, %v10909
        %v10911 = vpop.f32.mrf.mxu0
        %v10912 = vadd.f32 %v10799, %v10911
        %v10913 = vpop.f32.mrf.mxu0
        %v10914 = vadd.f32 %v10801, %v10913
        %v10915 = vpop.f32.mrf.mxu0
        %v10916 = vadd.f32 %v10803, %v10915
        %10917 = vdwg.mxu0
        %10918 = vmatprep.subr.bf16.mxu0 %v5757
        %10919 = vmatpush1.bf16.msra.mxu0 %v5756
        %10920 = vmatprep.subr.bf16.mxu0 %v5749
        %10921 = vmatpush1.bf16.msra.mxu0 %v5748
        %10922 = vmatprep.subr.bf16.mxu0 %v5741
        %10923 = vmatpush1.bf16.msra.mxu0 %v5740
        %10924 = vmatprep.subr.bf16.mxu0 %v5733
        %10925 = vmatpush1.bf16.msra.mxu0 %v5732
        %10926 = vmatprep.subr.bf16.mxu0 %v5725
        %10927 = vmatpush1.bf16.msra.mxu0 %v5724
        %10928 = vmatprep.subr.bf16.mxu0 %v5717
        %10929 = vmatpush1.bf16.msra.mxu0 %v5716
        %10930 = vmatprep.subr.bf16.mxu0 %v5709
        %10931 = vmatpush1.bf16.msra.mxu0 %v5708
        %10932 = vmatprep.subr.bf16.mxu0 %v5701
        %10933 = vmatpush1.bf16.msra.mxu0 %v5700
        %10934 = vmatprep.subr.bf16.mxu0 %v5821
        %10935 = vmatpush2.bf16.msra.mxu0 %v5820
        %10936 = vmatprep.subr.bf16.mxu0 %v5813
        %10937 = vmatpush2.bf16.msra.mxu0 %v5812
        %10938 = vmatprep.subr.bf16.mxu0 %v5805
        %10939 = vmatpush2.bf16.msra.mxu0 %v5804
        %10940 = vmatprep.subr.bf16.mxu0 %v5797
        %10941 = vmatpush2.bf16.msra.mxu0 %v5796
        %10942 = vmatprep.subr.bf16.mxu0 %v5789
        %10943 = vmatpush2.bf16.msra.mxu0 %v5788
        %10944 = vmatprep.subr.bf16.mxu0 %v5781
        %10945 = vmatpush2.bf16.msra.mxu0 %v5780
        %10946 = vmatprep.subr.bf16.mxu0 %v5773
        %10947 = vmatpush2.bf16.msra.mxu0 %v5772
        %10948 = vmatprep.subr.bf16.mxu0 %v5765
        %10949 = vmatpush2.bf16.msra.mxu0 %v5764
        %10950 = vmatprep.mubr.bf16.mxu0 %v631
        %10951 = vmatmul.mubr.bf16.gmra.mxu0 %v630
        %v10952 = vpop.f32.mrf.mxu0
        %v10953 = vadd.f32 %v10840, %v10952
        %v10954 = vpop.f32.mrf.mxu0
        %v10955 = vadd.f32 %v10842, %v10954
        %v10956 = vpop.f32.mrf.mxu0
        %v10957 = vadd.f32 %v10844, %v10956
        %v10958 = vpop.f32.mrf.mxu0
        %v10959 = vadd.f32 %v10846, %v10958
        %10960 = vmatprep.mubr.bf16.mxu0 %v649
        %10961 = vmatmul.mubr.bf16.gmra.mxu0 %v648
        %v10962 = vpop.f32.mrf.mxu0
        %v10963 = vadd.f32 %v10850, %v10962
        %v10964 = vpop.f32.mrf.mxu0
        %v10965 = vadd.f32 %v10852, %v10964
        %v10966 = vpop.f32.mrf.mxu0
        %v10967 = vadd.f32 %v10854, %v10966
        %v10968 = vpop.f32.mrf.mxu0
        %v10969 = vadd.f32 %v10856, %v10968
        %10970 = vmatprep.mubr.bf16.mxu0 %v667
        %10971 = vmatmul.mubr.bf16.gmra.mxu0 %v666
        %v10972 = vpop.f32.mrf.mxu0
        %v10973 = vadd.f32 %v10860, %v10972
        %v10974 = vpop.f32.mrf.mxu0
        %v10975 = vadd.f32 %v10862, %v10974
        %v10976 = vpop.f32.mrf.mxu0
        %v10977 = vadd.f32 %v10864, %v10976
        %v10978 = vpop.f32.mrf.mxu0
        %v10979 = vadd.f32 %v10866, %v10978
        %10980 = vmatprep.mubr.bf16.mxu0 %v685
        %10981 = vmatmul.mubr.bf16.gmra.mxu0 %v684
        %v10982 = vpop.f32.mrf.mxu0
        %v10983 = vadd.f32 %v10870, %v10982
        %v10984 = vpop.f32.mrf.mxu0
        %v10985 = vadd.f32 %v10872, %v10984
        %v10986 = vpop.f32.mrf.mxu0
        %v10987 = vadd.f32 %v10874, %v10986
        %v10988 = vpop.f32.mrf.mxu0
        %v10989 = vadd.f32 %v10876, %v10988
        %10990 = vmatprep.mubr.bf16.mxu0 %v703
        %10991 = vmatmul.mubr.bf16.gmra.mxu0 %v702
        %v10992 = vpop.f32.mrf.mxu0
        %v10993 = vadd.f32 %v10880, %v10992
        %v10994 = vpop.f32.mrf.mxu0
        %v10995 = vadd.f32 %v10882, %v10994
        %v10996 = vpop.f32.mrf.mxu0
        %v10997 = vadd.f32 %v10884, %v10996
        %v10998 = vpop.f32.mrf.mxu0
        %v10999 = vadd.f32 %v10886, %v10998
        %11000 = vmatprep.mubr.bf16.mxu0 %v721
        %11001 = vmatmul.mubr.bf16.gmra.mxu0 %v720
        %v11002 = vpop.f32.mrf.mxu0
        %v11003 = vadd.f32 %v10890, %v11002
        %v11004 = vpop.f32.mrf.mxu0
        %v11005 = vadd.f32 %v10892, %v11004
        %v11006 = vpop.f32.mrf.mxu0
        %v11007 = vadd.f32 %v10894, %v11006
        %v11008 = vpop.f32.mrf.mxu0
        %v11009 = vadd.f32 %v10896, %v11008
        %11010 = vmatprep.mubr.bf16.mxu0 %v739
        %11011 = vmatmul.mubr.bf16.gmra.mxu0 %v738
        %v11012 = vpop.f32.mrf.mxu0
        %v11013 = vadd.f32 %v10900, %v11012
        %v11014 = vpop.f32.mrf.mxu0
        %v11015 = vadd.f32 %v10902, %v11014
        %v11016 = vpop.f32.mrf.mxu0
        %v11017 = vadd.f32 %v10904, %v11016
        %v11018 = vpop.f32.mrf.mxu0
        %v11019 = vadd.f32 %v10906, %v11018
        %11020 = vmatprep.mubr.bf16.mxu0 %v757
        %11021 = vmatmul.mubr.bf16.gmra.mxu0 %v756
        %v11022 = vpop.f32.mrf.mxu0
        %v11023 = vadd.f32 %v10910, %v11022
        %v11024 = vpop.f32.mrf.mxu0
        %v11025 = vadd.f32 %v10912, %v11024
        %v11026 = vpop.f32.mrf.mxu0
        %v11027 = vadd.f32 %v10914, %v11026
        %v11028 = vpop.f32.mrf.mxu0
        %v11029 = vadd.f32 %v10916, %v11028
        %11030 = vdwg.mxu0
        %11031 = vmatprep.subr.bf16.mxu0 %v5885
        %11032 = vmatpush1.bf16.msra.mxu0 %v5884
        %11033 = vmatprep.subr.bf16.mxu0 %v5877
        %11034 = vmatpush1.bf16.msra.mxu0 %v5876
        %11035 = vmatprep.subr.bf16.mxu0 %v5869
        %11036 = vmatpush1.bf16.msra.mxu0 %v5868
        %11037 = vmatprep.subr.bf16.mxu0 %v5861
        %11038 = vmatpush1.bf16.msra.mxu0 %v5860
        %11039 = vmatprep.subr.bf16.mxu0 %v5853
        %11040 = vmatpush1.bf16.msra.mxu0 %v5852
        %11041 = vmatprep.subr.bf16.mxu0 %v5845
        %11042 = vmatpush1.bf16.msra.mxu0 %v5844
        %11043 = vmatprep.subr.bf16.mxu0 %v5837
        %11044 = vmatpush1.bf16.msra.mxu0 %v5836
        %11045 = vmatprep.subr.bf16.mxu0 %v5829
        %11046 = vmatpush1.bf16.msra.mxu0 %v5828
        %11047 = vmatprep.subr.bf16.mxu0 %v5949
        %11048 = vmatpush2.bf16.msra.mxu0 %v5948
        %11049 = vmatprep.subr.bf16.mxu0 %v5941
        %11050 = vmatpush2.bf16.msra.mxu0 %v5940
        %11051 = vmatprep.subr.bf16.mxu0 %v5933
        %11052 = vmatpush2.bf16.msra.mxu0 %v5932
        %11053 = vmatprep.subr.bf16.mxu0 %v5925
        %11054 = vmatpush2.bf16.msra.mxu0 %v5924
        %11055 = vmatprep.subr.bf16.mxu0 %v5917
        %11056 = vmatpush2.bf16.msra.mxu0 %v5916
        %11057 = vmatprep.subr.bf16.mxu0 %v5909
        %11058 = vmatpush2.bf16.msra.mxu0 %v5908
        %11059 = vmatprep.subr.bf16.mxu0 %v5901
        %11060 = vmatpush2.bf16.msra.mxu0 %v5900
        %11061 = vmatprep.subr.bf16.mxu0 %v5893
        %11062 = vmatpush2.bf16.msra.mxu0 %v5892
        %11063 = vmatprep.mubr.bf16.mxu0 %v633
        %11064 = vmatmul.mubr.bf16.gmra.mxu0 %v632
        %v11065 = vpop.f32.mrf.mxu0
        %v11066 = vadd.f32 %v10953, %v11065
        %v11067 = vpop.f32.mrf.mxu0
        %v11068 = vadd.f32 %v10955, %v11067
        %v11069 = vpop.f32.mrf.mxu0
        %v11070 = vadd.f32 %v10957, %v11069
        %v11071 = vpop.f32.mrf.mxu0
        %v11072 = vadd.f32 %v10959, %v11071
        %11073 = vmatprep.mubr.bf16.mxu0 %v651
        %11074 = vmatmul.mubr.bf16.gmra.mxu0 %v650
        %v11075 = vpop.f32.mrf.mxu0
        %v11076 = vadd.f32 %v10963, %v11075
        %v11077 = vpop.f32.mrf.mxu0
        %v11078 = vadd.f32 %v10965, %v11077
        %v11079 = vpop.f32.mrf.mxu0
        %v11080 = vadd.f32 %v10967, %v11079
        %v11081 = vpop.f32.mrf.mxu0
        %v11082 = vadd.f32 %v10969, %v11081
        %11083 = vmatprep.mubr.bf16.mxu0 %v669
        %11084 = vmatmul.mubr.bf16.gmra.mxu0 %v668
        %v11085 = vpop.f32.mrf.mxu0
        %v11086 = vadd.f32 %v10973, %v11085
        %v11087 = vpop.f32.mrf.mxu0
        %v11088 = vadd.f32 %v10975, %v11087
        %v11089 = vpop.f32.mrf.mxu0
        %v11090 = vadd.f32 %v10977, %v11089
        %v11091 = vpop.f32.mrf.mxu0
        %v11092 = vadd.f32 %v10979, %v11091
        %11093 = vmatprep.mubr.bf16.mxu0 %v687
        %11094 = vmatmul.mubr.bf16.gmra.mxu0 %v686
        %v11095 = vpop.f32.mrf.mxu0
        %v11096 = vadd.f32 %v10983, %v11095
        %v11097 = vpop.f32.mrf.mxu0
        %v11098 = vadd.f32 %v10985, %v11097
        %v11099 = vpop.f32.mrf.mxu0
        %v11100 = vadd.f32 %v10987, %v11099
        %v11101 = vpop.f32.mrf.mxu0
        %v11102 = vadd.f32 %v10989, %v11101
        %11103 = vmatprep.mubr.bf16.mxu0 %v705
        %11104 = vmatmul.mubr.bf16.gmra.mxu0 %v704
        %v11105 = vpop.f32.mrf.mxu0
        %v11106 = vadd.f32 %v10993, %v11105
        %v11107 = vpop.f32.mrf.mxu0
        %v11108 = vadd.f32 %v10995, %v11107
        %v11109 = vpop.f32.mrf.mxu0
        %v11110 = vadd.f32 %v10997, %v11109
        %v11111 = vpop.f32.mrf.mxu0
        %v11112 = vadd.f32 %v10999, %v11111
        %11113 = vmatprep.mubr.bf16.mxu0 %v723
        %11114 = vmatmul.mubr.bf16.gmra.mxu0 %v722
        %v11115 = vpop.f32.mrf.mxu0
        %v11116 = vadd.f32 %v11003, %v11115
        %v11117 = vpop.f32.mrf.mxu0
        %v11118 = vadd.f32 %v11005, %v11117
        %v11119 = vpop.f32.mrf.mxu0
        %v11120 = vadd.f32 %v11007, %v11119
        %v11121 = vpop.f32.mrf.mxu0
        %v11122 = vadd.f32 %v11009, %v11121
        %11123 = vmatprep.mubr.bf16.mxu0 %v741
        %11124 = vmatmul.mubr.bf16.gmra.mxu0 %v740
        %v11125 = vpop.f32.mrf.mxu0
        %v11126 = vadd.f32 %v11013, %v11125
        %v11127 = vpop.f32.mrf.mxu0
        %v11128 = vadd.f32 %v11015, %v11127
        %v11129 = vpop.f32.mrf.mxu0
        %v11130 = vadd.f32 %v11017, %v11129
        %v11131 = vpop.f32.mrf.mxu0
        %v11132 = vadd.f32 %v11019, %v11131
        %11133 = vmatprep.mubr.bf16.mxu0 %v759
        %11134 = vmatmul.mubr.bf16.gmra.mxu0 %v758
        %v11135 = vpop.f32.mrf.mxu0
        %v11136 = vadd.f32 %v11023, %v11135
        %v11137 = vpop.f32.mrf.mxu0
        %v11138 = vadd.f32 %v11025, %v11137
        %v11139 = vpop.f32.mrf.mxu0
        %v11140 = vadd.f32 %v11027, %v11139
        %v11141 = vpop.f32.mrf.mxu0
        %v11142 = vadd.f32 %v11029, %v11141
        %11143 = vdwg.mxu0
        %11144 = vmatprep.subr.bf16.mxu0 %v6013
        %11145 = vmatpush1.bf16.msra.mxu0 %v6012
        %11146 = vmatprep.subr.bf16.mxu0 %v6005
        %11147 = vmatpush1.bf16.msra.mxu0 %v6004
        %11148 = vmatprep.subr.bf16.mxu0 %v5997
        %11149 = vmatpush1.bf16.msra.mxu0 %v5996
        %11150 = vmatprep.subr.bf16.mxu0 %v5989
        %11151 = vmatpush1.bf16.msra.mxu0 %v5988
        %11152 = vmatprep.subr.bf16.mxu0 %v5981
        %11153 = vmatpush1.bf16.msra.mxu0 %v5980
        %11154 = vmatprep.subr.bf16.mxu0 %v5973
        %11155 = vmatpush1.bf16.msra.mxu0 %v5972
        %11156 = vmatprep.subr.bf16.mxu0 %v5965
        %11157 = vmatpush1.bf16.msra.mxu0 %v5964
        %11158 = vmatprep.subr.bf16.mxu0 %v5957
        %11159 = vmatpush1.bf16.msra.mxu0 %v5956
        %11160 = vmatprep.subr.bf16.mxu0 %v6077
        %11161 = vmatpush2.bf16.msra.mxu0 %v6076
        %11162 = vmatprep.subr.bf16.mxu0 %v6069
        %11163 = vmatpush2.bf16.msra.mxu0 %v6068
        %11164 = vmatprep.subr.bf16.mxu0 %v6061
        %11165 = vmatpush2.bf16.msra.mxu0 %v6060
        %11166 = vmatprep.subr.bf16.mxu0 %v6053
        %11167 = vmatpush2.bf16.msra.mxu0 %v6052
        %11168 = vmatprep.subr.bf16.mxu0 %v6045
        %11169 = vmatpush2.bf16.msra.mxu0 %v6044
        %11170 = vmatprep.subr.bf16.mxu0 %v6037
        %11171 = vmatpush2.bf16.msra.mxu0 %v6036
        %11172 = vmatprep.subr.bf16.mxu0 %v6029
        %11173 = vmatpush2.bf16.msra.mxu0 %v6028
        %11174 = vmatprep.subr.bf16.mxu0 %v6021
        %11175 = vmatpush2.bf16.msra.mxu0 %v6020
        %11176 = vmatprep.mubr.bf16.mxu0 %v635
        %11177 = vmatmul.mubr.bf16.gmra.mxu0 %v634
        %v11178 = vpop.f32.mrf.mxu0
        %v11179 = vadd.f32 %v11066, %v11178
        %v11180 = vpop.f32.mrf.mxu0
        %v11181 = vadd.f32 %v11068, %v11180
        %v11182 = vpop.f32.mrf.mxu0
        %v11183 = vadd.f32 %v11070, %v11182
        %v11184 = vpop.f32.mrf.mxu0
        %v11185 = vadd.f32 %v11072, %v11184
        %11186 = vmatprep.mubr.bf16.mxu0 %v653
        %11187 = vmatmul.mubr.bf16.gmra.mxu0 %v652
        %v11188 = vpop.f32.mrf.mxu0
        %v11189 = vadd.f32 %v11076, %v11188
        %v11190 = vpop.f32.mrf.mxu0
        %v11191 = vadd.f32 %v11078, %v11190
        %v11192 = vpop.f32.mrf.mxu0
        %v11193 = vadd.f32 %v11080, %v11192
        %v11194 = vpop.f32.mrf.mxu0
        %v11195 = vadd.f32 %v11082, %v11194
        %11196 = vmatprep.mubr.bf16.mxu0 %v671
        %11197 = vmatmul.mubr.bf16.gmra.mxu0 %v670
        %v11198 = vpop.f32.mrf.mxu0
        %v11199 = vadd.f32 %v11086, %v11198
        %v11200 = vpop.f32.mrf.mxu0
        %v11201 = vadd.f32 %v11088, %v11200
        %v11202 = vpop.f32.mrf.mxu0
        %v11203 = vadd.f32 %v11090, %v11202
        %v11204 = vpop.f32.mrf.mxu0
        %v11205 = vadd.f32 %v11092, %v11204
        %11206 = vmatprep.mubr.bf16.mxu0 %v689
        %11207 = vmatmul.mubr.bf16.gmra.mxu0 %v688
        %v11208 = vpop.f32.mrf.mxu0
        %v11209 = vadd.f32 %v11096, %v11208
        %v11210 = vpop.f32.mrf.mxu0
        %v11211 = vadd.f32 %v11098, %v11210
        %v11212 = vpop.f32.mrf.mxu0
        %v11213 = vadd.f32 %v11100, %v11212
        %v11214 = vpop.f32.mrf.mxu0
        %v11215 = vadd.f32 %v11102, %v11214
        %11216 = vmatprep.mubr.bf16.mxu0 %v707
        %11217 = vmatmul.mubr.bf16.gmra.mxu0 %v706
        %v11218 = vpop.f32.mrf.mxu0
        %v11219 = vadd.f32 %v11106, %v11218
        %v11220 = vpop.f32.mrf.mxu0
        %v11221 = vadd.f32 %v11108, %v11220
        %v11222 = vpop.f32.mrf.mxu0
        %v11223 = vadd.f32 %v11110, %v11222
        %v11224 = vpop.f32.mrf.mxu0
        %v11225 = vadd.f32 %v11112, %v11224
        %11226 = vmatprep.mubr.bf16.mxu0 %v725
        %11227 = vmatmul.mubr.bf16.gmra.mxu0 %v724
        %v11228 = vpop.f32.mrf.mxu0
        %v11229 = vadd.f32 %v11116, %v11228
        %v11230 = vpop.f32.mrf.mxu0
        %v11231 = vadd.f32 %v11118, %v11230
        %v11232 = vpop.f32.mrf.mxu0
        %v11233 = vadd.f32 %v11120, %v11232
        %v11234 = vpop.f32.mrf.mxu0
        %v11235 = vadd.f32 %v11122, %v11234
        %11236 = vmatprep.mubr.bf16.mxu0 %v743
        %11237 = vmatmul.mubr.bf16.gmra.mxu0 %v742
        %v11238 = vpop.f32.mrf.mxu0
        %v11239 = vadd.f32 %v11126, %v11238
        %v11240 = vpop.f32.mrf.mxu0
        %v11241 = vadd.f32 %v11128, %v11240
        %v11242 = vpop.f32.mrf.mxu0
        %v11243 = vadd.f32 %v11130, %v11242
        %v11244 = vpop.f32.mrf.mxu0
        %v11245 = vadd.f32 %v11132, %v11244
        %11246 = vmatprep.mubr.bf16.mxu0 %v761
        %11247 = vmatmul.mubr.bf16.gmra.mxu0 %v760
        %v11248 = vpop.f32.mrf.mxu0
        %v11249 = vadd.f32 %v11136, %v11248
        %v11250 = vpop.f32.mrf.mxu0
        %v11251 = vadd.f32 %v11138, %v11250
        %v11252 = vpop.f32.mrf.mxu0
        %v11253 = vadd.f32 %v11140, %v11252
        %v11254 = vpop.f32.mrf.mxu0
        %v11255 = vadd.f32 %v11142, %v11254
        %11256 = vdwg.mxu0
        %11257 = vmatprep.subr.bf16.mxu0 %v6141
        %11258 = vmatpush1.bf16.msra.mxu0 %v6140
        %11259 = vmatprep.subr.bf16.mxu0 %v6133
        %11260 = vmatpush1.bf16.msra.mxu0 %v6132
        %11261 = vmatprep.subr.bf16.mxu0 %v6125
        %11262 = vmatpush1.bf16.msra.mxu0 %v6124
        %11263 = vmatprep.subr.bf16.mxu0 %v6117
        %11264 = vmatpush1.bf16.msra.mxu0 %v6116
        %11265 = vmatprep.subr.bf16.mxu0 %v6109
        %11266 = vmatpush1.bf16.msra.mxu0 %v6108
        %11267 = vmatprep.subr.bf16.mxu0 %v6101
        %11268 = vmatpush1.bf16.msra.mxu0 %v6100
        %11269 = vmatprep.subr.bf16.mxu0 %v6093
        %11270 = vmatpush1.bf16.msra.mxu0 %v6092
        %11271 = vmatprep.subr.bf16.mxu0 %v6085
        %11272 = vmatpush1.bf16.msra.mxu0 %v6084
        %11273 = vmatprep.subr.bf16.mxu0 %v6205
        %11274 = vmatpush2.bf16.msra.mxu0 %v6204
        %11275 = vmatprep.subr.bf16.mxu0 %v6197
        %11276 = vmatpush2.bf16.msra.mxu0 %v6196
        %11277 = vmatprep.subr.bf16.mxu0 %v6189
        %11278 = vmatpush2.bf16.msra.mxu0 %v6188
        %11279 = vmatprep.subr.bf16.mxu0 %v6181
        %11280 = vmatpush2.bf16.msra.mxu0 %v6180
        %11281 = vmatprep.subr.bf16.mxu0 %v6173
        %11282 = vmatpush2.bf16.msra.mxu0 %v6172
        %11283 = vmatprep.subr.bf16.mxu0 %v6165
        %11284 = vmatpush2.bf16.msra.mxu0 %v6164
        %11285 = vmatprep.subr.bf16.mxu0 %v6157
        %11286 = vmatpush2.bf16.msra.mxu0 %v6156
        %11287 = vmatprep.subr.bf16.mxu0 %v6149
        %11288 = vmatpush2.bf16.msra.mxu0 %v6148
        %11289 = vmatprep.mubr.bf16.mxu0 %v637
        %11290 = vmatmul.mubr.bf16.gmra.mxu0 %v636
        %v11291 = vpop.f32.mrf.mxu0
        %v11292 = vadd.f32 %v11179, %v11291
        %v11293 = vpop.f32.mrf.mxu0
        %v11294 = vadd.f32 %v11181, %v11293
        %v11295 = vpop.f32.mrf.mxu0
        %v11296 = vadd.f32 %v11183, %v11295
        %v11297 = vpop.f32.mrf.mxu0
        %v11298 = vadd.f32 %v11185, %v11297
        %11299 = vmatprep.mubr.bf16.mxu0 %v655
        %11300 = vmatmul.mubr.bf16.gmra.mxu0 %v654
        %v11301 = vpop.f32.mrf.mxu0
        %v11302 = vadd.f32 %v11189, %v11301
        %v11303 = vpop.f32.mrf.mxu0
        %v11304 = vadd.f32 %v11191, %v11303
        %v11305 = vpop.f32.mrf.mxu0
        %v11306 = vadd.f32 %v11193, %v11305
        %v11307 = vpop.f32.mrf.mxu0
        %v11308 = vadd.f32 %v11195, %v11307
        %11309 = vmatprep.mubr.bf16.mxu0 %v673
        %11310 = vmatmul.mubr.bf16.gmra.mxu0 %v672
        %v11311 = vpop.f32.mrf.mxu0
        %v11312 = vadd.f32 %v11199, %v11311
        %v11313 = vpop.f32.mrf.mxu0
        %v11314 = vadd.f32 %v11201, %v11313
        %v11315 = vpop.f32.mrf.mxu0
        %v11316 = vadd.f32 %v11203, %v11315
        %v11317 = vpop.f32.mrf.mxu0
        %v11318 = vadd.f32 %v11205, %v11317
        %11319 = vmatprep.mubr.bf16.mxu0 %v691
        %11320 = vmatmul.mubr.bf16.gmra.mxu0 %v690
        %v11321 = vpop.f32.mrf.mxu0
        %v11322 = vadd.f32 %v11209, %v11321
        %v11323 = vpop.f32.mrf.mxu0
        %v11324 = vadd.f32 %v11211, %v11323
        %v11325 = vpop.f32.mrf.mxu0
        %v11326 = vadd.f32 %v11213, %v11325
        %v11327 = vpop.f32.mrf.mxu0
        %v11328 = vadd.f32 %v11215, %v11327
        %11329 = vmatprep.mubr.bf16.mxu0 %v709
        %11330 = vmatmul.mubr.bf16.gmra.mxu0 %v708
        %v11331 = vpop.f32.mrf.mxu0
        %v11332 = vadd.f32 %v11219, %v11331
        %v11333 = vpop.f32.mrf.mxu0
        %v11334 = vadd.f32 %v11221, %v11333
        %v11335 = vpop.f32.mrf.mxu0
        %v11336 = vadd.f32 %v11223, %v11335
        %v11337 = vpop.f32.mrf.mxu0
        %v11338 = vadd.f32 %v11225, %v11337
        %11339 = vmatprep.mubr.bf16.mxu0 %v727
        %11340 = vmatmul.mubr.bf16.gmra.mxu0 %v726
        %v11341 = vpop.f32.mrf.mxu0
        %v11342 = vadd.f32 %v11229, %v11341
        %v11343 = vpop.f32.mrf.mxu0
        %v11344 = vadd.f32 %v11231, %v11343
        %v11345 = vpop.f32.mrf.mxu0
        %v11346 = vadd.f32 %v11233, %v11345
        %v11347 = vpop.f32.mrf.mxu0
        %v11348 = vadd.f32 %v11235, %v11347
        %11349 = vmatprep.mubr.bf16.mxu0 %v745
        %11350 = vmatmul.mubr.bf16.gmra.mxu0 %v744
        %v11351 = vpop.f32.mrf.mxu0
        %v11352 = vadd.f32 %v11239, %v11351
        %v11353 = vpop.f32.mrf.mxu0
        %v11354 = vadd.f32 %v11241, %v11353
        %v11355 = vpop.f32.mrf.mxu0
        %v11356 = vadd.f32 %v11243, %v11355
        %v11357 = vpop.f32.mrf.mxu0
        %v11358 = vadd.f32 %v11245, %v11357
        %11359 = vmatprep.mubr.bf16.mxu0 %v763
        %11360 = vmatmul.mubr.bf16.gmra.mxu0 %v762
        %v11361 = vpop.f32.mrf.mxu0
        %v11362 = vadd.f32 %v11249, %v11361
        %v11363 = vpop.f32.mrf.mxu0
        %v11364 = vadd.f32 %v11251, %v11363
        %v11365 = vpop.f32.mrf.mxu0
        %v11366 = vadd.f32 %v11253, %v11365
        %v11367 = vpop.f32.mrf.mxu0
        %v11368 = vadd.f32 %v11255, %v11367
        %11369 = vdwg.mxu0
        %11370 = vmatprep.subr.bf16.mxu0 %v6269
        %11371 = vmatpush1.bf16.msra.mxu0 %v6268
        %11372 = vmatprep.subr.bf16.mxu0 %v6261
        %11373 = vmatpush1.bf16.msra.mxu0 %v6260
        %11374 = vmatprep.subr.bf16.mxu0 %v6253
        %11375 = vmatpush1.bf16.msra.mxu0 %v6252
        %11376 = vmatprep.subr.bf16.mxu0 %v6245
        %11377 = vmatpush1.bf16.msra.mxu0 %v6244
        %11378 = vmatprep.subr.bf16.mxu0 %v6237
        %11379 = vmatpush1.bf16.msra.mxu0 %v6236
        %11380 = vmatprep.subr.bf16.mxu0 %v6229
        %11381 = vmatpush1.bf16.msra.mxu0 %v6228
        %11382 = vmatprep.subr.bf16.mxu0 %v6221
        %11383 = vmatpush1.bf16.msra.mxu0 %v6220
        %11384 = vmatprep.subr.bf16.mxu0 %v6213
        %11385 = vmatpush1.bf16.msra.mxu0 %v6212
        %11386 = vmatprep.subr.bf16.mxu0 0
        %11387 = vmatpush2.bf16.msra.mxu0 0
        %11388 = vmatprep.subr.bf16.mxu0 0
        %11389 = vmatpush2.bf16.msra.mxu0 0
        %11390 = vmatprep.subr.bf16.mxu0 0
        %11391 = vmatpush2.bf16.msra.mxu0 0
        %11392 = vmatprep.subr.bf16.mxu0 0
        %11393 = vmatpush2.bf16.msra.mxu0 0
        %11394 = vmatprep.subr.bf16.mxu0 0
        %11395 = vmatpush2.bf16.msra.mxu0 0
        %11396 = vmatprep.subr.bf16.mxu0 0
        %11397 = vmatpush2.bf16.msra.mxu0 0
        %11398 = vmatprep.subr.bf16.mxu0 %v6285
        %11399 = vmatpush2.bf16.msra.mxu0 %v6284
        %11400 = vmatprep.subr.bf16.mxu0 %v6277
        %11401 = vmatpush2.bf16.msra.mxu0 %v6276
        %11402 = vmatprep.mubr.bf16.mxu0 %v7392
        %11403 = vmatmul.mubr.bf16.gmra.mxu0 %v638
        %v11404 = vpop.f32.mrf.mxu0
        %v11405 = vadd.f32 %v11292, %v11404
        %v11406 = vpop.f32.mrf.mxu0
        %v11407 = vadd.f32 %v11294, %v11406
        %v11408 = vpop.f32.mrf.mxu0
        %v11409 = vadd.f32 %v11296, %v11408
        %v11410 = vpop.f32.mrf.mxu0
        %v11411 = vadd.f32 %v11298, %v11410
        %11412 = vmatprep.mubr.bf16.mxu0 %v7395
        %11413 = vmatmul.mubr.bf16.gmra.mxu0 %v656
        %v11414 = vpop.f32.mrf.mxu0
        %v11415 = vadd.f32 %v11302, %v11414
        %v11416 = vpop.f32.mrf.mxu0
        %v11417 = vadd.f32 %v11304, %v11416
        %v11418 = vpop.f32.mrf.mxu0
        %v11419 = vadd.f32 %v11306, %v11418
        %v11420 = vpop.f32.mrf.mxu0
        %v11421 = vadd.f32 %v11308, %v11420
        %11422 = vmatprep.mubr.bf16.mxu0 %v7398
        %11423 = vmatmul.mubr.bf16.gmra.mxu0 %v674
        %v11424 = vpop.f32.mrf.mxu0
        %v11425 = vadd.f32 %v11312, %v11424
        %v11426 = vpop.f32.mrf.mxu0
        %v11427 = vadd.f32 %v11314, %v11426
        %v11428 = vpop.f32.mrf.mxu0
        %v11429 = vadd.f32 %v11316, %v11428
        %v11430 = vpop.f32.mrf.mxu0
        %v11431 = vadd.f32 %v11318, %v11430
        %11432 = vmatprep.mubr.bf16.mxu0 %v7401
        %11433 = vmatmul.mubr.bf16.gmra.mxu0 %v692
        %v11434 = vpop.f32.mrf.mxu0
        %v11435 = vadd.f32 %v11322, %v11434
        %v11436 = vpop.f32.mrf.mxu0
        %v11437 = vadd.f32 %v11324, %v11436
        %v11438 = vpop.f32.mrf.mxu0
        %v11439 = vadd.f32 %v11326, %v11438
        %v11440 = vpop.f32.mrf.mxu0
        %v11441 = vadd.f32 %v11328, %v11440
        %11442 = vmatprep.mubr.bf16.mxu0 %v7404
        %11443 = vmatmul.mubr.bf16.gmra.mxu0 %v710
        %v11444 = vpop.f32.mrf.mxu0
        %v11445 = vadd.f32 %v11332, %v11444
        %v11446 = vpop.f32.mrf.mxu0
        %v11447 = vadd.f32 %v11334, %v11446
        %v11448 = vpop.f32.mrf.mxu0
        %v11449 = vadd.f32 %v11336, %v11448
        %v11450 = vpop.f32.mrf.mxu0
        %v11451 = vadd.f32 %v11338, %v11450
        %11452 = vmatprep.mubr.bf16.mxu0 %v7407
        %11453 = vmatmul.mubr.bf16.gmra.mxu0 %v728
        %v11454 = vpop.f32.mrf.mxu0
        %v11455 = vadd.f32 %v11342, %v11454
        %v11456 = vpop.f32.mrf.mxu0
        %v11457 = vadd.f32 %v11344, %v11456
        %v11458 = vpop.f32.mrf.mxu0
        %v11459 = vadd.f32 %v11346, %v11458
        %v11460 = vpop.f32.mrf.mxu0
        %v11461 = vadd.f32 %v11348, %v11460
        %11462 = vmatprep.mubr.bf16.mxu0 %v7410
        %11463 = vmatmul.mubr.bf16.gmra.mxu0 %v746
        %v11464 = vpop.f32.mrf.mxu0
        %v11465 = vadd.f32 %v11352, %v11464
        %v11466 = vpop.f32.mrf.mxu0
        %v11467 = vadd.f32 %v11354, %v11466
        %v11468 = vpop.f32.mrf.mxu0
        %v11469 = vadd.f32 %v11356, %v11468
        %v11470 = vpop.f32.mrf.mxu0
        %v11471 = vadd.f32 %v11358, %v11470
        %11472 = vmatprep.mubr.bf16.mxu0 %v7413
        %11473 = vmatmul.mubr.bf16.gmra.mxu0 %v764
        %v11474 = vpop.f32.mrf.mxu0
        %v11475 = vadd.f32 %v11362, %v11474
        %v11476 = vpop.f32.mrf.mxu0
        %v11477 = vadd.f32 %v11364, %v11476
        %v11478 = vpop.f32.mrf.mxu0
        %v11479 = vadd.f32 %v11366, %v11478
        %v11480 = vpop.f32.mrf.mxu0
        %v11481 = vadd.f32 %v11368, %v11480
        %11482 = vdwg.mxu0
        %v11483 = vld [vmem:[%s283] sm:$0xff]
        %v11485 = vlaneseq
        %v11486 = vshrl.u32 %v11485, 7
        %v11487 = vsub.s32 0, %v11486
        %v11488 = vrot.slane %v11483, %v11487
        %v11489 = vlaneseq
        %v11490 = vshrl.u32 %v11489, 7
        %v11491 = vsub.s32 1, %v11490
        %v11492 = vrot.slane %v11483, %v11491
        %v11493 = vlaneseq
        %v11494 = vshrl.u32 %v11493, 7
        %v11495 = vsub.s32 2, %v11494
        %v11496 = vrot.slane %v11483, %v11495
        %v11497 = vlaneseq
        %v11498 = vshrl.u32 %v11497, 7
        %v11499 = vsub.s32 3, %v11498
        %v11500 = vrot.slane %v11483, %v11499
        %v11501 = vlaneseq
        %v11502 = vshrl.u32 %v11501, 7
        %v11503 = vsub.s32 4, %v11502
        %v11504 = vrot.slane %v11483, %v11503
        %v11505 = vlaneseq
        %v11506 = vshrl.u32 %v11505, 7
        %v11507 = vsub.s32 5, %v11506
        %v11508 = vrot.slane %v11483, %v11507
        %v11509 = vlaneseq
        %v11510 = vshrl.u32 %v11509, 7
        %v11511 = vsub.s32 6, %v11510
        %v11512 = vrot.slane %v11483, %v11511
        %v11513 = vlaneseq
        %v11514 = vshrl.u32 %v11513, 7
        %v11515 = vsub.s32 7, %v11514
        %v11516 = vrot.slane %v11483, %v11515
        %v11525 = vmul.f32 %v8354, %v11488
        %v11526 = vmul.f32 %v8356, %v11492
        %v11527 = vmul.f32 %v9371, %v11496
        %v11528 = vmul.f32 %v9373, %v11500
        %v11529 = vmul.f32 %v10388, %v11504
        %v11530 = vmul.f32 %v10390, %v11508
        %v11531 = vmul.f32 %v11405, %v11512
        %v11532 = vmul.f32 %v11407, %v11516
        %v11533 = vmul.f32 %v8358, %v11488
        %v11534 = vmul.f32 %v8360, %v11492
        %v11535 = vmul.f32 %v9375, %v11496
        %v11536 = vmul.f32 %v9377, %v11500
        %v11537 = vmul.f32 %v10392, %v11504
        %v11538 = vmul.f32 %v10394, %v11508
        %v11539 = vmul.f32 %v11409, %v11512
        %v11540 = vmul.f32 %v11411, %v11516
        %v11541 = vmul.f32 %v8364, %v11488
        %v11542 = vmul.f32 %v8366, %v11492
        %v11543 = vmul.f32 %v9381, %v11496
        %v11544 = vmul.f32 %v9383, %v11500
        %v11545 = vmul.f32 %v10398, %v11504
        %v11546 = vmul.f32 %v10400, %v11508
        %v11547 = vmul.f32 %v11415, %v11512
        %v11548 = vmul.f32 %v11417, %v11516
        %v11549 = vmul.f32 %v8368, %v11488
        %v11550 = vmul.f32 %v8370, %v11492
        %v11551 = vmul.f32 %v9385, %v11496
        %v11552 = vmul.f32 %v9387, %v11500
        %v11553 = vmul.f32 %v10402, %v11504
        %v11554 = vmul.f32 %v10404, %v11508
        %v11555 = vmul.f32 %v11419, %v11512
        %v11556 = vmul.f32 %v11421, %v11516
        %v11557 = vmul.f32 %v8374, %v11488
        %v11558 = vmul.f32 %v8376, %v11492
        %v11559 = vmul.f32 %v9391, %v11496
        %v11560 = vmul.f32 %v9393, %v11500
        %v11561 = vmul.f32 %v10408, %v11504
        %v11562 = vmul.f32 %v10410, %v11508
        %v11563 = vmul.f32 %v11425, %v11512
        %v11564 = vmul.f32 %v11427, %v11516
        %v11565 = vmul.f32 %v8378, %v11488
        %v11566 = vmul.f32 %v8380, %v11492
        %v11567 = vmul.f32 %v9395, %v11496
        %v11568 = vmul.f32 %v9397, %v11500
        %v11569 = vmul.f32 %v10412, %v11504
        %v11570 = vmul.f32 %v10414, %v11508
        %v11571 = vmul.f32 %v11429, %v11512
        %v11572 = vmul.f32 %v11431, %v11516
        %v11573 = vmul.f32 %v8384, %v11488
        %v11574 = vmul.f32 %v8386, %v11492
        %v11575 = vmul.f32 %v9401, %v11496
        %v11576 = vmul.f32 %v9403, %v11500
        %v11577 = vmul.f32 %v10418, %v11504
        %v11578 = vmul.f32 %v10420, %v11508
        %v11579 = vmul.f32 %v11435, %v11512
        %v11580 = vmul.f32 %v11437, %v11516
        %v11581 = vmul.f32 %v8388, %v11488
        %v11582 = vmul.f32 %v8390, %v11492
        %v11583 = vmul.f32 %v9405, %v11496
        %v11584 = vmul.f32 %v9407, %v11500
        %v11585 = vmul.f32 %v10422, %v11504
        %v11586 = vmul.f32 %v10424, %v11508
        %v11587 = vmul.f32 %v11439, %v11512
        %v11588 = vmul.f32 %v11441, %v11516
        %v11589 = vmul.f32 %v8394, %v11488
        %v11590 = vmul.f32 %v8396, %v11492
        %v11591 = vmul.f32 %v9411, %v11496
        %v11592 = vmul.f32 %v9413, %v11500
        %v11593 = vmul.f32 %v10428, %v11504
        %v11594 = vmul.f32 %v10430, %v11508
        %v11595 = vmul.f32 %v11445, %v11512
        %v11596 = vmul.f32 %v11447, %v11516
        %v11597 = vmul.f32 %v8398, %v11488
        %v11598 = vmul.f32 %v8400, %v11492
        %v11599 = vmul.f32 %v9415, %v11496
        %v11600 = vmul.f32 %v9417, %v11500
        %v11601 = vmul.f32 %v10432, %v11504
        %v11602 = vmul.f32 %v10434, %v11508
        %v11603 = vmul.f32 %v11449, %v11512
        %v11604 = vmul.f32 %v11451, %v11516
        %v11605 = vmul.f32 %v8404, %v11488
        %v11606 = vmul.f32 %v8406, %v11492
        %v11607 = vmul.f32 %v9421, %v11496
        %v11608 = vmul.f32 %v9423, %v11500
        %v11609 = vmul.f32 %v10438, %v11504
        %v11610 = vmul.f32 %v10440, %v11508
        %v11611 = vmul.f32 %v11455, %v11512
        %v11612 = vmul.f32 %v11457, %v11516
        %v11613 = vmul.f32 %v8408, %v11488
        %v11614 = vmul.f32 %v8410, %v11492
        %v11615 = vmul.f32 %v9425, %v11496
        %v11616 = vmul.f32 %v9427, %v11500
        %v11617 = vmul.f32 %v10442, %v11504
        %v11618 = vmul.f32 %v10444, %v11508
        %v11619 = vmul.f32 %v11459, %v11512
        %v11620 = vmul.f32 %v11461, %v11516
        %v11621 = vmul.f32 %v8414, %v11488
        %v11622 = vmul.f32 %v8416, %v11492
        %v11623 = vmul.f32 %v9431, %v11496
        %v11624 = vmul.f32 %v9433, %v11500
        %v11625 = vmul.f32 %v10448, %v11504
        %v11626 = vmul.f32 %v10450, %v11508
        %v11627 = vmul.f32 %v11465, %v11512
        %v11628 = vmul.f32 %v11467, %v11516
        %v11629 = vmul.f32 %v8418, %v11488
        %v11630 = vmul.f32 %v8420, %v11492
        %v11631 = vmul.f32 %v9435, %v11496
        %v11632 = vmul.f32 %v9437, %v11500
        %v11633 = vmul.f32 %v10452, %v11504
        %v11634 = vmul.f32 %v10454, %v11508
        %v11635 = vmul.f32 %v11469, %v11512
        %v11636 = vmul.f32 %v11471, %v11516
        %v11637 = vmul.f32 %v8424, %v11488
        %v11638 = vmul.f32 %v8426, %v11492
        %v11639 = vmul.f32 %v9441, %v11496
        %v11640 = vmul.f32 %v9443, %v11500
        %v11641 = vmul.f32 %v10458, %v11504
        %v11642 = vmul.f32 %v10460, %v11508
        %v11643 = vmul.f32 %v11475, %v11512
        %v11644 = vmul.f32 %v11477, %v11516
        %v11645 = vmul.f32 %v8428, %v11488
        %v11646 = vmul.f32 %v8430, %v11492
        %v11647 = vmul.f32 %v9445, %v11496
        %v11648 = vmul.f32 %v9447, %v11500
        %v11649 = vmul.f32 %v10462, %v11504
        %v11650 = vmul.f32 %v10464, %v11508
        %v11651 = vmul.f32 %v11479, %v11512
        %v11652 = vmul.f32 %v11481, %v11516
        %v11653 = vld [vmem:[%s292] sm:$0xff]
        %v11655 = vlaneseq
        %v11656 = vshrl.u32 %v11655, 7
        %v11657 = vsub.s32 0, %v11656
        %v11658 = vrot.slane %v11653, %v11657
        %v11659 = vlaneseq
        %v11660 = vshrl.u32 %v11659, 7
        %v11661 = vsub.s32 1, %v11660
        %v11662 = vrot.slane %v11653, %v11661
        %v11663 = vlaneseq
        %v11664 = vshrl.u32 %v11663, 7
        %v11665 = vsub.s32 2, %v11664
        %v11666 = vrot.slane %v11653, %v11665
        %v11667 = vlaneseq
        %v11668 = vshrl.u32 %v11667, 7
        %v11669 = vsub.s32 3, %v11668
        %v11670 = vrot.slane %v11653, %v11669
        %v11671 = vlaneseq
        %v11672 = vshrl.u32 %v11671, 7
        %v11673 = vsub.s32 4, %v11672
        %v11674 = vrot.slane %v11653, %v11673
        %v11675 = vlaneseq
        %v11676 = vshrl.u32 %v11675, 7
        %v11677 = vsub.s32 5, %v11676
        %v11678 = vrot.slane %v11653, %v11677
        %v11679 = vlaneseq
        %v11680 = vshrl.u32 %v11679, 7
        %v11681 = vsub.s32 6, %v11680
        %v11682 = vrot.slane %v11653, %v11681
        %v11683 = vlaneseq
        %v11684 = vshrl.u32 %v11683, 7
        %v11685 = vsub.s32 7, %v11684
        %v11686 = vrot.slane %v11653, %v11685
        %v11695 = vadd.f32 %v11525, %v11658
        %v11696 = vadd.f32 %v11526, %v11662
        %v11697 = vadd.f32 %v11527, %v11666
        %v11698 = vadd.f32 %v11528, %v11670
        %v11699 = vadd.f32 %v11529, %v11674
        %v11700 = vadd.f32 %v11530, %v11678
        %v11701 = vadd.f32 %v11531, %v11682
        %v11702 = vadd.f32 %v11532, %v11686
        %v11703 = vadd.f32 %v11533, %v11658
        %v11704 = vadd.f32 %v11534, %v11662
        %v11705 = vadd.f32 %v11535, %v11666
        %v11706 = vadd.f32 %v11536, %v11670
        %v11707 = vadd.f32 %v11537, %v11674
        %v11708 = vadd.f32 %v11538, %v11678
        %v11709 = vadd.f32 %v11539, %v11682
        %v11710 = vadd.f32 %v11540, %v11686
        %v11711 = vadd.f32 %v11541, %v11658
        %v11712 = vadd.f32 %v11542, %v11662
        %v11713 = vadd.f32 %v11543, %v11666
        %v11714 = vadd.f32 %v11544, %v11670
        %v11715 = vadd.f32 %v11545, %v11674
        %v11716 = vadd.f32 %v11546, %v11678
        %v11717 = vadd.f32 %v11547, %v11682
        %v11718 = vadd.f32 %v11548, %v11686
        %v11719 = vadd.f32 %v11549, %v11658
        %v11720 = vadd.f32 %v11550, %v11662
        %v11721 = vadd.f32 %v11551, %v11666
        %v11722 = vadd.f32 %v11552, %v11670
        %v11723 = vadd.f32 %v11553, %v11674
        %v11724 = vadd.f32 %v11554, %v11678
        %v11725 = vadd.f32 %v11555, %v11682
        %v11726 = vadd.f32 %v11556, %v11686
        %v11727 = vadd.f32 %v11557, %v11658
        %v11728 = vadd.f32 %v11558, %v11662
        %v11729 = vadd.f32 %v11559, %v11666
        %v11730 = vadd.f32 %v11560, %v11670
        %v11731 = vadd.f32 %v11561, %v11674
        %v11732 = vadd.f32 %v11562, %v11678
        %v11733 = vadd.f32 %v11563, %v11682
        %v11734 = vadd.f32 %v11564, %v11686
        %v11735 = vadd.f32 %v11565, %v11658
        %v11736 = vadd.f32 %v11566, %v11662
        %v11737 = vadd.f32 %v11567, %v11666
        %v11738 = vadd.f32 %v11568, %v11670
        %v11739 = vadd.f32 %v11569, %v11674
        %v11740 = vadd.f32 %v11570, %v11678
        %v11741 = vadd.f32 %v11571, %v11682
        %v11742 = vadd.f32 %v11572, %v11686
        %v11743 = vadd.f32 %v11573, %v11658
        %v11744 = vadd.f32 %v11574, %v11662
        %v11745 = vadd.f32 %v11575, %v11666
        %v11746 = vadd.f32 %v11576, %v11670
        %v11747 = vadd.f32 %v11577, %v11674
        %v11748 = vadd.f32 %v11578, %v11678
        %v11749 = vadd.f32 %v11579, %v11682
        %v11750 = vadd.f32 %v11580, %v11686
        %v11751 = vadd.f32 %v11581, %v11658
        %v11752 = vadd.f32 %v11582, %v11662
        %v11753 = vadd.f32 %v11583, %v11666
        %v11754 = vadd.f32 %v11584, %v11670
        %v11755 = vadd.f32 %v11585, %v11674
        %v11756 = vadd.f32 %v11586, %v11678
        %v11757 = vadd.f32 %v11587, %v11682
        %v11758 = vadd.f32 %v11588, %v11686
        %v11759 = vadd.f32 %v11589, %v11658
        %v11760 = vadd.f32 %v11590, %v11662
        %v11761 = vadd.f32 %v11591, %v11666
        %v11762 = vadd.f32 %v11592, %v11670
        %v11763 = vadd.f32 %v11593, %v11674
        %v11764 = vadd.f32 %v11594, %v11678
        %v11765 = vadd.f32 %v11595, %v11682
        %v11766 = vadd.f32 %v11596, %v11686
        %v11767 = vadd.f32 %v11597, %v11658
        %v11768 = vadd.f32 %v11598, %v11662
        %v11769 = vadd.f32 %v11599, %v11666
        %v11770 = vadd.f32 %v11600, %v11670
        %v11771 = vadd.f32 %v11601, %v11674
        %v11772 = vadd.f32 %v11602, %v11678
        %v11773 = vadd.f32 %v11603, %v11682
        %v11774 = vadd.f32 %v11604, %v11686
        %v11775 = vadd.f32 %v11605, %v11658
        %v11776 = vadd.f32 %v11606, %v11662
        %v11777 = vadd.f32 %v11607, %v11666
        %v11778 = vadd.f32 %v11608, %v11670
        %v11779 = vadd.f32 %v11609, %v11674
        %v11780 = vadd.f32 %v11610, %v11678
        %v11781 = vadd.f32 %v11611, %v11682
        %v11782 = vadd.f32 %v11612, %v11686
        %v11783 = vadd.f32 %v11613, %v11658
        %v11784 = vadd.f32 %v11614, %v11662
        %v11785 = vadd.f32 %v11615, %v11666
        %v11786 = vadd.f32 %v11616, %v11670
        %v11787 = vadd.f32 %v11617, %v11674
        %v11788 = vadd.f32 %v11618, %v11678
        %v11789 = vadd.f32 %v11619, %v11682
        %v11790 = vadd.f32 %v11620, %v11686
        %v11791 = vadd.f32 %v11621, %v11658
        %v11792 = vadd.f32 %v11622, %v11662
        %v11793 = vadd.f32 %v11623, %v11666
        %v11794 = vadd.f32 %v11624, %v11670
        %v11795 = vadd.f32 %v11625, %v11674
        %v11796 = vadd.f32 %v11626, %v11678
        %v11797 = vadd.f32 %v11627, %v11682
        %v11798 = vadd.f32 %v11628, %v11686
        %v11799 = vadd.f32 %v11629, %v11658
        %v11800 = vadd.f32 %v11630, %v11662
        %v11801 = vadd.f32 %v11631, %v11666
        %v11802 = vadd.f32 %v11632, %v11670
        %v11803 = vadd.f32 %v11633, %v11674
        %v11804 = vadd.f32 %v11634, %v11678
        %v11805 = vadd.f32 %v11635, %v11682
        %v11806 = vadd.f32 %v11636, %v11686
        %v11807 = vadd.f32 %v11637, %v11658
        %v11808 = vadd.f32 %v11638, %v11662
        %v11809 = vadd.f32 %v11639, %v11666
        %v11810 = vadd.f32 %v11640, %v11670
        %v11811 = vadd.f32 %v11641, %v11674
        %v11812 = vadd.f32 %v11642, %v11678
        %v11813 = vadd.f32 %v11643, %v11682
        %v11814 = vadd.f32 %v11644, %v11686
        %v11815 = vadd.f32 %v11645, %v11658
        %v11816 = vadd.f32 %v11646, %v11662
        %v11817 = vadd.f32 %v11647, %v11666
        %v11818 = vadd.f32 %v11648, %v11670
        %v11819 = vadd.f32 %v11649, %v11674
        %v11820 = vadd.f32 %v11650, %v11678
        %v11821 = vadd.f32 %v11651, %v11682
        %v11822 = vadd.f32 %v11652, %v11686
        %v11823 = vmax.f32 %v11695, 0.0
        %v11824 = vmax.f32 %v11696, 0.0
        %v11825 = vmax.f32 %v11697, 0.0
        %v11826 = vmax.f32 %v11698, 0.0
        %v11827 = vmax.f32 %v11699, 0.0
        %v11828 = vmax.f32 %v11700, 0.0
        %v11829 = vmax.f32 %v11701, 0.0
        %v11830 = vmax.f32 %v11702, 0.0
        %v11831 = vmax.f32 %v11703, 0.0
        %v11832 = vmax.f32 %v11704, 0.0
        %v11833 = vmax.f32 %v11705, 0.0
        %v11834 = vmax.f32 %v11706, 0.0
        %v11835 = vmax.f32 %v11707, 0.0
        %v11836 = vmax.f32 %v11708, 0.0
        %v11837 = vmax.f32 %v11709, 0.0
        %v11838 = vmax.f32 %v11710, 0.0
        %v11839 = vmax.f32 %v11711, 0.0
        %v11840 = vmax.f32 %v11712, 0.0
        %v11841 = vmax.f32 %v11713, 0.0
        %v11842 = vmax.f32 %v11714, 0.0
        %v11843 = vmax.f32 %v11715, 0.0
        %v11844 = vmax.f32 %v11716, 0.0
        %v11845 = vmax.f32 %v11717, 0.0
        %v11846 = vmax.f32 %v11718, 0.0
        %v11847 = vmax.f32 %v11719, 0.0
        %v11848 = vmax.f32 %v11720, 0.0
        %v11849 = vmax.f32 %v11721, 0.0
        %v11850 = vmax.f32 %v11722, 0.0
        %v11851 = vmax.f32 %v11723, 0.0
        %v11852 = vmax.f32 %v11724, 0.0
        %v11853 = vmax.f32 %v11725, 0.0
        %v11854 = vmax.f32 %v11726, 0.0
        %v11855 = vmax.f32 %v11727, 0.0
        %v11856 = vmax.f32 %v11728, 0.0
        %v11857 = vmax.f32 %v11729, 0.0
        %v11858 = vmax.f32 %v11730, 0.0
        %v11859 = vmax.f32 %v11731, 0.0
        %v11860 = vmax.f32 %v11732, 0.0
        %v11861 = vmax.f32 %v11733, 0.0
        %v11862 = vmax.f32 %v11734, 0.0
        %v11863 = vmax.f32 %v11735, 0.0
        %v11864 = vmax.f32 %v11736, 0.0
        %v11865 = vmax.f32 %v11737, 0.0
        %v11866 = vmax.f32 %v11738, 0.0
        %v11867 = vmax.f32 %v11739, 0.0
        %v11868 = vmax.f32 %v11740, 0.0
        %v11869 = vmax.f32 %v11741, 0.0
        %v11870 = vmax.f32 %v11742, 0.0
        %v11871 = vmax.f32 %v11743, 0.0
        %v11872 = vmax.f32 %v11744, 0.0
        %v11873 = vmax.f32 %v11745, 0.0
        %v11874 = vmax.f32 %v11746, 0.0
        %v11875 = vmax.f32 %v11747, 0.0
        %v11876 = vmax.f32 %v11748, 0.0
        %v11877 = vmax.f32 %v11749, 0.0
        %v11878 = vmax.f32 %v11750, 0.0
        %v11879 = vmax.f32 %v11751, 0.0
        %v11880 = vmax.f32 %v11752, 0.0
        %v11881 = vmax.f32 %v11753, 0.0
        %v11882 = vmax.f32 %v11754, 0.0
        %v11883 = vmax.f32 %v11755, 0.0
        %v11884 = vmax.f32 %v11756, 0.0
        %v11885 = vmax.f32 %v11757, 0.0
        %v11886 = vmax.f32 %v11758, 0.0
        %v11887 = vmax.f32 %v11759, 0.0
        %v11888 = vmax.f32 %v11760, 0.0
        %v11889 = vmax.f32 %v11761, 0.0
        %v11890 = vmax.f32 %v11762, 0.0
        %v11891 = vmax.f32 %v11763, 0.0
        %v11892 = vmax.f32 %v11764, 0.0
        %v11893 = vmax.f32 %v11765, 0.0
        %v11894 = vmax.f32 %v11766, 0.0
        %v11895 = vmax.f32 %v11767, 0.0
        %v11896 = vmax.f32 %v11768, 0.0
        %v11897 = vmax.f32 %v11769, 0.0
        %v11898 = vmax.f32 %v11770, 0.0
        %v11899 = vmax.f32 %v11771, 0.0
        %v11900 = vmax.f32 %v11772, 0.0
        %v11901 = vmax.f32 %v11773, 0.0
        %v11902 = vmax.f32 %v11774, 0.0
        %v11903 = vmax.f32 %v11775, 0.0
        %v11904 = vmax.f32 %v11776, 0.0
        %v11905 = vmax.f32 %v11777, 0.0
        %v11906 = vmax.f32 %v11778, 0.0
        %v11907 = vmax.f32 %v11779, 0.0
        %v11908 = vmax.f32 %v11780, 0.0
        %v11909 = vmax.f32 %v11781, 0.0
        %v11910 = vmax.f32 %v11782, 0.0
        %v11911 = vmax.f32 %v11783, 0.0
        %v11912 = vmax.f32 %v11784, 0.0
        %v11913 = vmax.f32 %v11785, 0.0
        %v11914 = vmax.f32 %v11786, 0.0
        %v11915 = vmax.f32 %v11787, 0.0
        %v11916 = vmax.f32 %v11788, 0.0
        %v11917 = vmax.f32 %v11789, 0.0
        %v11918 = vmax.f32 %v11790, 0.0
        %v11919 = vmax.f32 %v11791, 0.0
        %v11920 = vmax.f32 %v11792, 0.0
        %v11921 = vmax.f32 %v11793, 0.0
        %v11922 = vmax.f32 %v11794, 0.0
        %v11923 = vmax.f32 %v11795, 0.0
        %v11924 = vmax.f32 %v11796, 0.0
        %v11925 = vmax.f32 %v11797, 0.0
        %v11926 = vmax.f32 %v11798, 0.0
        %v11927 = vmax.f32 %v11799, 0.0
        %v11928 = vmax.f32 %v11800, 0.0
        %v11929 = vmax.f32 %v11801, 0.0
        %v11930 = vmax.f32 %v11802, 0.0
        %v11931 = vmax.f32 %v11803, 0.0
        %v11932 = vmax.f32 %v11804, 0.0
        %v11933 = vmax.f32 %v11805, 0.0
        %v11934 = vmax.f32 %v11806, 0.0
        %v11935 = vmax.f32 %v11807, 0.0
        %v11936 = vmax.f32 %v11808, 0.0
        %v11937 = vmax.f32 %v11809, 0.0
        %v11938 = vmax.f32 %v11810, 0.0
        %v11939 = vmax.f32 %v11811, 0.0
        %v11940 = vmax.f32 %v11812, 0.0
        %v11941 = vmax.f32 %v11813, 0.0
        %v11942 = vmax.f32 %v11814, 0.0
        %v11943 = vmax.f32 %v11815, 0.0
        %v11944 = vmax.f32 %v11816, 0.0
        %v11945 = vmax.f32 %v11817, 0.0
        %v11946 = vmax.f32 %v11818, 0.0
        %v11947 = vmax.f32 %v11819, 0.0
        %v11948 = vmax.f32 %v11820, 0.0
        %v11949 = vmax.f32 %v11821, 0.0
        %v11950 = vmax.f32 %v11822, 0.0
        %v11951 = vpack.c.bf16 %v11831, %v11823
        %v11952 = vpack.c.bf16 %v11832, %v11824
        %v11953 = vpack.c.bf16 %v11833, %v11825
        %v11954 = vpack.c.bf16 %v11834, %v11826
        %v11955 = vpack.c.bf16 %v11835, %v11827
        %v11956 = vpack.c.bf16 %v11836, %v11828
        %v11957 = vpack.c.bf16 %v11837, %v11829
        %v11958 = vpack.c.bf16 %v11838, %v11830
        %v11959 = vpack.c.bf16 %v11847, %v11839
        %v11960 = vpack.c.bf16 %v11848, %v11840
        %v11961 = vpack.c.bf16 %v11849, %v11841
        %v11962 = vpack.c.bf16 %v11850, %v11842
        %v11963 = vpack.c.bf16 %v11851, %v11843
        %v11964 = vpack.c.bf16 %v11852, %v11844
        %v11965 = vpack.c.bf16 %v11853, %v11845
        %v11966 = vpack.c.bf16 %v11854, %v11846
        %v11967 = vpack.c.bf16 %v11863, %v11855
        %v11968 = vpack.c.bf16 %v11864, %v11856
        %v11969 = vpack.c.bf16 %v11865, %v11857
        %v11970 = vpack.c.bf16 %v11866, %v11858
        %v11971 = vpack.c.bf16 %v11867, %v11859
        %v11972 = vpack.c.bf16 %v11868, %v11860
        %v11973 = vpack.c.bf16 %v11869, %v11861
        %v11974 = vpack.c.bf16 %v11870, %v11862
        %v11975 = vpack.c.bf16 %v11879, %v11871
        %v11976 = vpack.c.bf16 %v11880, %v11872
        %v11977 = vpack.c.bf16 %v11881, %v11873
        %v11978 = vpack.c.bf16 %v11882, %v11874
        %v11979 = vpack.c.bf16 %v11883, %v11875
        %v11980 = vpack.c.bf16 %v11884, %v11876
        %v11981 = vpack.c.bf16 %v11885, %v11877
        %v11982 = vpack.c.bf16 %v11886, %v11878
        %v11983 = vpack.c.bf16 %v11895, %v11887
        %v11984 = vpack.c.bf16 %v11896, %v11888
        %v11985 = vpack.c.bf16 %v11897, %v11889
        %v11986 = vpack.c.bf16 %v11898, %v11890
        %v11987 = vpack.c.bf16 %v11899, %v11891
        %v11988 = vpack.c.bf16 %v11900, %v11892
        %v11989 = vpack.c.bf16 %v11901, %v11893
        %v11990 = vpack.c.bf16 %v11902, %v11894
        %v11991 = vpack.c.bf16 %v11911, %v11903
        %v11992 = vpack.c.bf16 %v11912, %v11904
        %v11993 = vpack.c.bf16 %v11913, %v11905
        %v11994 = vpack.c.bf16 %v11914, %v11906
        %v11995 = vpack.c.bf16 %v11915, %v11907
        %v11996 = vpack.c.bf16 %v11916, %v11908
        %v11997 = vpack.c.bf16 %v11917, %v11909
        %v11998 = vpack.c.bf16 %v11918, %v11910
        %v11999 = vpack.c.bf16 %v11927, %v11919
        %v12000 = vpack.c.bf16 %v11928, %v11920
        %v12001 = vpack.c.bf16 %v11929, %v11921
        %v12002 = vpack.c.bf16 %v11930, %v11922
        %v12003 = vpack.c.bf16 %v11931, %v11923
        %v12004 = vpack.c.bf16 %v11932, %v11924
        %v12005 = vpack.c.bf16 %v11933, %v11925
        %v12006 = vpack.c.bf16 %v11934, %v11926
        %v12007 = vpack.c.bf16 %v11943, %v11935
        %v12008 = vpack.c.bf16 %v11944, %v11936
        %v12009 = vpack.c.bf16 %v11945, %v11937
        %v12010 = vpack.c.bf16 %v11946, %v11938
        %v12011 = vpack.c.bf16 %v11947, %v11939
        %v12012 = vpack.c.bf16 %v11948, %v11940
        %v12013 = vpack.c.bf16 %v11949, %v11941
        %v12014 = vpack.c.bf16 %v11950, %v11942
        %v12079 = vunpack.c.l.b16 %v11951
        %v12080 = vunpack.c.l.b16 %v11952
        %v12081 = vunpack.c.l.b16 %v11953
        %v12082 = vunpack.c.l.b16 %v11954
        %v12083 = vunpack.c.l.b16 %v11955
        %v12084 = vunpack.c.l.b16 %v11956
        %v12085 = vunpack.c.l.b16 %v11957
        %v12086 = vunpack.c.l.b16 %v11958
        %v12087 = vunpack.c.h.b16 %v11951
        %v12088 = vunpack.c.h.b16 %v11952
        %v12089 = vunpack.c.h.b16 %v11953
        %v12090 = vunpack.c.h.b16 %v11954
        %v12091 = vunpack.c.h.b16 %v11955
        %v12092 = vunpack.c.h.b16 %v11956
        %v12093 = vunpack.c.h.b16 %v11957
        %v12094 = vunpack.c.h.b16 %v11958
        %v12095 = vunpack.c.l.b16 %v11959
        %v12096 = vunpack.c.l.b16 %v11960
        %v12097 = vunpack.c.l.b16 %v11961
        %v12098 = vunpack.c.l.b16 %v11962
        %v12099 = vunpack.c.l.b16 %v11963
        %v12100 = vunpack.c.l.b16 %v11964
        %v12101 = vunpack.c.l.b16 %v11965
        %v12102 = vunpack.c.l.b16 %v11966
        %v12103 = vunpack.c.h.b16 %v11959
        %v12104 = vunpack.c.h.b16 %v11960
        %v12105 = vunpack.c.h.b16 %v11961
        %v12106 = vunpack.c.h.b16 %v11962
        %v12107 = vunpack.c.h.b16 %v11963
        %v12108 = vunpack.c.h.b16 %v11964
        %v12109 = vunpack.c.h.b16 %v11965
        %v12110 = vunpack.c.h.b16 %v11966
        %v12111 = vunpack.c.l.b16 %v11967
        %v12112 = vunpack.c.l.b16 %v11968
        %v12113 = vunpack.c.l.b16 %v11969
        %v12114 = vunpack.c.l.b16 %v11970
        %v12115 = vunpack.c.l.b16 %v11971
        %v12116 = vunpack.c.l.b16 %v11972
        %v12117 = vunpack.c.l.b16 %v11973
        %v12118 = vunpack.c.l.b16 %v11974
        %v12119 = vunpack.c.h.b16 %v11967
        %v12120 = vunpack.c.h.b16 %v11968
        %v12121 = vunpack.c.h.b16 %v11969
        %v12122 = vunpack.c.h.b16 %v11970
        %v12123 = vunpack.c.h.b16 %v11971
        %v12124 = vunpack.c.h.b16 %v11972
        %v12125 = vunpack.c.h.b16 %v11973
        %v12126 = vunpack.c.h.b16 %v11974
        %v12127 = vunpack.c.l.b16 %v11975
        %v12128 = vunpack.c.l.b16 %v11976
        %v12129 = vunpack.c.l.b16 %v11977
        %v12130 = vunpack.c.l.b16 %v11978
        %v12131 = vunpack.c.l.b16 %v11979
        %v12132 = vunpack.c.l.b16 %v11980
        %v12133 = vunpack.c.l.b16 %v11981
        %v12134 = vunpack.c.l.b16 %v11982
        %v12135 = vunpack.c.h.b16 %v11975
        %v12136 = vunpack.c.h.b16 %v11976
        %v12137 = vunpack.c.h.b16 %v11977
        %v12138 = vunpack.c.h.b16 %v11978
        %v12139 = vunpack.c.h.b16 %v11979
        %v12140 = vunpack.c.h.b16 %v11980
        %v12141 = vunpack.c.h.b16 %v11981
        %v12142 = vunpack.c.h.b16 %v11982
        %v12143 = vunpack.c.l.b16 %v11983
        %v12144 = vunpack.c.l.b16 %v11984
        %v12145 = vunpack.c.l.b16 %v11985
        %v12146 = vunpack.c.l.b16 %v11986
        %v12147 = vunpack.c.l.b16 %v11987
        %v12148 = vunpack.c.l.b16 %v11988
        %v12149 = vunpack.c.l.b16 %v11989
        %v12150 = vunpack.c.l.b16 %v11990
        %v12151 = vunpack.c.h.b16 %v11983
        %v12152 = vunpack.c.h.b16 %v11984
        %v12153 = vunpack.c.h.b16 %v11985
        %v12154 = vunpack.c.h.b16 %v11986
        %v12155 = vunpack.c.h.b16 %v11987
        %v12156 = vunpack.c.h.b16 %v11988
        %v12157 = vunpack.c.h.b16 %v11989
        %v12158 = vunpack.c.h.b16 %v11990
        %v12159 = vunpack.c.l.b16 %v11991
        %v12160 = vunpack.c.l.b16 %v11992
        %v12161 = vunpack.c.l.b16 %v11993
        %v12162 = vunpack.c.l.b16 %v11994
        %v12163 = vunpack.c.l.b16 %v11995
        %v12164 = vunpack.c.l.b16 %v11996
        %v12165 = vunpack.c.l.b16 %v11997
        %v12166 = vunpack.c.l.b16 %v11998
        %v12167 = vunpack.c.h.b16 %v11991
        %v12168 = vunpack.c.h.b16 %v11992
        %v12169 = vunpack.c.h.b16 %v11993
        %v12170 = vunpack.c.h.b16 %v11994
        %v12171 = vunpack.c.h.b16 %v11995
        %v12172 = vunpack.c.h.b16 %v11996
        %v12173 = vunpack.c.h.b16 %v11997
        %v12174 = vunpack.c.h.b16 %v11998
        %v12175 = vunpack.c.l.b16 %v11999
        %v12176 = vunpack.c.l.b16 %v12000
        %v12177 = vunpack.c.l.b16 %v12001
        %v12178 = vunpack.c.l.b16 %v12002
        %v12179 = vunpack.c.l.b16 %v12003
        %v12180 = vunpack.c.l.b16 %v12004
        %v12181 = vunpack.c.l.b16 %v12005
        %v12182 = vunpack.c.l.b16 %v12006
        %v12183 = vunpack.c.h.b16 %v11999
        %v12184 = vunpack.c.h.b16 %v12000
        %v12185 = vunpack.c.h.b16 %v12001
        %v12186 = vunpack.c.h.b16 %v12002
        %v12187 = vunpack.c.h.b16 %v12003
        %v12188 = vunpack.c.h.b16 %v12004
        %v12189 = vunpack.c.h.b16 %v12005
        %v12190 = vunpack.c.h.b16 %v12006
        %v12191 = vunpack.c.l.b16 %v12007
        %v12192 = vunpack.c.l.b16 %v12008
        %v12193 = vunpack.c.l.b16 %v12009
        %v12194 = vunpack.c.l.b16 %v12010
        %v12195 = vunpack.c.l.b16 %v12011
        %v12196 = vunpack.c.l.b16 %v12012
        %v12197 = vunpack.c.l.b16 %v12013
        %v12198 = vunpack.c.l.b16 %v12014
        %v12199 = vunpack.c.h.b16 %v12007
        %v12200 = vunpack.c.h.b16 %v12008
        %v12201 = vunpack.c.h.b16 %v12009
        %v12202 = vunpack.c.h.b16 %v12010
        %v12203 = vunpack.c.h.b16 %v12011
        %v12204 = vunpack.c.h.b16 %v12012
        %v12205 = vunpack.c.h.b16 %v12013
        %v12206 = vunpack.c.h.b16 %v12014
        %v12207 = vpack.c.b16 %v12080, %v12079
        %v12208 = vpack.c.b16 %v12082, %v12081
        %v12209 = vpack.c.b16 %v12084, %v12083
        %v12210 = vpack.c.b16 %v12086, %v12085
        %v12211 = vpack.c.b16 %v12088, %v12087
        %v12212 = vpack.c.b16 %v12090, %v12089
        %v12213 = vpack.c.b16 %v12092, %v12091
        %v12214 = vpack.c.b16 %v12094, %v12093
        %v12215 = vpack.c.b16 %v12096, %v12095
        %v12216 = vpack.c.b16 %v12098, %v12097
        %v12217 = vpack.c.b16 %v12100, %v12099
        %v12218 = vpack.c.b16 %v12102, %v12101
        %v12219 = vpack.c.b16 %v12104, %v12103
        %v12220 = vpack.c.b16 %v12106, %v12105
        %v12221 = vpack.c.b16 %v12108, %v12107
        %v12222 = vpack.c.b16 %v12110, %v12109
        %v12223 = vpack.c.b16 %v12112, %v12111
        %v12224 = vpack.c.b16 %v12114, %v12113
        %v12225 = vpack.c.b16 %v12116, %v12115
        %v12226 = vpack.c.b16 %v12118, %v12117
        %v12227 = vpack.c.b16 %v12120, %v12119
        %v12228 = vpack.c.b16 %v12122, %v12121
        %v12229 = vpack.c.b16 %v12124, %v12123
        %v12230 = vpack.c.b16 %v12126, %v12125
        %v12231 = vpack.c.b16 %v12128, %v12127
        %v12232 = vpack.c.b16 %v12130, %v12129
        %v12233 = vpack.c.b16 %v12132, %v12131
        %v12234 = vpack.c.b16 %v12134, %v12133
        %v12235 = vpack.c.b16 %v12136, %v12135
        %v12236 = vpack.c.b16 %v12138, %v12137
        %v12237 = vpack.c.b16 %v12140, %v12139
        %v12238 = vpack.c.b16 %v12142, %v12141
        %v12239 = vpack.c.b16 %v12144, %v12143
        %v12240 = vpack.c.b16 %v12146, %v12145
        %v12241 = vpack.c.b16 %v12148, %v12147
        %v12242 = vpack.c.b16 %v12150, %v12149
        %v12243 = vpack.c.b16 %v12152, %v12151
        %v12244 = vpack.c.b16 %v12154, %v12153
        %v12245 = vpack.c.b16 %v12156, %v12155
        %v12246 = vpack.c.b16 %v12158, %v12157
        %v12247 = vpack.c.b16 %v12160, %v12159
        %v12248 = vpack.c.b16 %v12162, %v12161
        %v12249 = vpack.c.b16 %v12164, %v12163
        %v12250 = vpack.c.b16 %v12166, %v12165
        %v12251 = vpack.c.b16 %v12168, %v12167
        %v12252 = vpack.c.b16 %v12170, %v12169
        %v12253 = vpack.c.b16 %v12172, %v12171
        %v12254 = vpack.c.b16 %v12174, %v12173
        %v12255 = vpack.c.b16 %v12176, %v12175
        %v12256 = vpack.c.b16 %v12178, %v12177
        %v12257 = vpack.c.b16 %v12180, %v12179
        %v12258 = vpack.c.b16 %v12182, %v12181
        %v12259 = vpack.c.b16 %v12184, %v12183
        %v12260 = vpack.c.b16 %v12186, %v12185
        %v12261 = vpack.c.b16 %v12188, %v12187
        %v12262 = vpack.c.b16 %v12190, %v12189
        %v12263 = vpack.c.b16 %v12192, %v12191
        %v12264 = vpack.c.b16 %v12194, %v12193
        %v12265 = vpack.c.b16 %v12196, %v12195
        %v12266 = vpack.c.b16 %v12198, %v12197
        %v12267 = vpack.c.b16 %v12200, %v12199
        %v12268 = vpack.c.b16 %v12202, %v12201
        %v12269 = vpack.c.b16 %v12204, %v12203
        %v12270 = vpack.c.b16 %v12206, %v12205
        %12335 = vst [vmem:[%s326] sm:$0xff] %v12207
        %12336 = vst [vmem:[%s326 + $0x8] sm:$0xff] %v12208
        %12337 = vst [vmem:[%s326 + $0x10] sm:$0xff] %v12209
        %12338 = vst [vmem:[%s326 + $0x18] sm:$0xff] %v12210
        %12339 = vst [vmem:[%s326 + $0x20] sm:$0xff] %v12211
        %12340 = vst [vmem:[%s326 + $0x28] sm:$0xff] %v12212
        %12341 = vst [vmem:[%s326 + $0x30] sm:$0xff] %v12213
        %12342 = vst [vmem:[%s326 + $0x38] sm:$0xff] %v12214
        %12343 = vst [vmem:[%s326 + $0x40] sm:$0xff] %v12215
        %12344 = vst [vmem:[%s326 + $0x48] sm:$0xff] %v12216
        %12345 = vst [vmem:[%s326 + $0x50] sm:$0xff] %v12217
        %12346 = vst [vmem:[%s326 + $0x58] sm:$0xff] %v12218
        %12347 = vst [vmem:[%s326 + $0x60] sm:$0xff] %v12219
        %12348 = vst [vmem:[%s326 + $0x68] sm:$0xff] %v12220
        %12349 = vst [vmem:[%s326 + $0x70] sm:$0xff] %v12221
        %12350 = vst [vmem:[%s326 + $0x78] sm:$0xff] %v12222
        %12351 = vst [vmem:[%s326 + $0x80] sm:$0xff] %v12223
        %12352 = vst [vmem:[%s326 + $0x88] sm:$0xff] %v12224
        %12353 = vst [vmem:[%s326 + $0x90] sm:$0xff] %v12225
        %12354 = vst [vmem:[%s326 + $0x98] sm:$0xff] %v12226
        %12355 = vst [vmem:[%s326 + $0xa0] sm:$0xff] %v12227
        %12356 = vst [vmem:[%s326 + $0xa8] sm:$0xff] %v12228
        %12357 = vst [vmem:[%s326 + $0xb0] sm:$0xff] %v12229
        %12358 = vst [vmem:[%s326 + $0xb8] sm:$0xff] %v12230
        %12359 = vst [vmem:[%s326 + $0xc0] sm:$0xff] %v12231
        %12360 = vst [vmem:[%s326 + $0xc8] sm:$0xff] %v12232
        %12361 = vst [vmem:[%s326 + $0xd0] sm:$0xff] %v12233
        %12362 = vst [vmem:[%s326 + $0xd8] sm:$0xff] %v12234
        %12363 = vst [vmem:[%s326 + $0xe0] sm:$0xff] %v12235
        %12364 = vst [vmem:[%s326 + $0xe8] sm:$0xff] %v12236
        %12365 = vst [vmem:[%s326 + $0xf0] sm:$0xff] %v12237
        %12366 = vst [vmem:[%s326 + $0xf8] sm:$0xff] %v12238
        %12367 = vst [vmem:[%s326 + $0x100] sm:$0xff] %v12239
        %12368 = vst [vmem:[%s326 + $0x108] sm:$0xff] %v12240
        %12369 = vst [vmem:[%s326 + $0x110] sm:$0xff] %v12241
        %12370 = vst [vmem:[%s326 + $0x118] sm:$0xff] %v12242
        %12371 = vst [vmem:[%s326 + $0x120] sm:$0xff] %v12243
        %12372 = vst [vmem:[%s326 + $0x128] sm:$0xff] %v12244
        %12373 = vst [vmem:[%s326 + $0x130] sm:$0xff] %v12245
        %12374 = vst [vmem:[%s326 + $0x138] sm:$0xff] %v12246
        %12375 = vst [vmem:[%s326 + $0x140] sm:$0xff] %v12247
        %12376 = vst [vmem:[%s326 + $0x148] sm:$0xff] %v12248
        %12377 = vst [vmem:[%s326 + $0x150] sm:$0xff] %v12249
        %12378 = vst [vmem:[%s326 + $0x158] sm:$0xff] %v12250
        %12379 = vst [vmem:[%s326 + $0x160] sm:$0xff] %v12251
        %12380 = vst [vmem:[%s326 + $0x168] sm:$0xff] %v12252
        %12381 = vst [vmem:[%s326 + $0x170] sm:$0xff] %v12253
        %12382 = vst [vmem:[%s326 + $0x178] sm:$0xff] %v12254
        %12383 = vst [vmem:[%s326 + $0x180] sm:$0xff] %v12255
        %12384 = vst [vmem:[%s326 + $0x188] sm:$0xff] %v12256
        %12385 = vst [vmem:[%s326 + $0x190] sm:$0xff] %v12257
        %12386 = vst [vmem:[%s326 + $0x198] sm:$0xff] %v12258
        %12387 = vst [vmem:[%s326 + $0x1a0] sm:$0xff] %v12259
        %12388 = vst [vmem:[%s326 + $0x1a8] sm:$0xff] %v12260
        %12389 = vst [vmem:[%s326 + $0x1b0] sm:$0xff] %v12261
        %12390 = vst [vmem:[%s326 + $0x1b8] sm:$0xff] %v12262
        %12391 = vst [vmem:[%s326 + $0x1c0] sm:$0xff] %v12263
        %12392 = vst [vmem:[%s326 + $0x1c8] sm:$0xff] %v12264
        %12393 = vst [vmem:[%s326 + $0x1d0] sm:$0xff] %v12265
        %12394 = vst [vmem:[%s326 + $0x1d8] sm:$0xff] %v12266
        %12395 = vst [vmem:[%s326 + $0x1e0] sm:$0xff] %v12267
        %12396 = vst [vmem:[%s326 + $0x1e8] sm:$0xff] %v12268
        %12397 = vst [vmem:[%s326 + $0x1f0] sm:$0xff] %v12269
        %12398 = vst [vmem:[%s326 + $0x1f8] sm:$0xff] %v12270
        %s12399 = sand.u32 %s151, 1
        %s12400 = scalar_lea.sflag [#allocation4], %s12399
        %s12401 = sand.u32 %s151, 1
        %s12402 = smul.addr %s12401, 512
        %s12403 = scalar_lea.vmem [#allocation10], %s12402
        // Predicated region
        $region53: #{_lambda_.1} parent=35 // pred_check
          %p12404 = pneg %p161
        $region54: #{_lambda_.1} parent=35 // pred_check_branch
          %12406 = sbr.rel (%p12404) target = $region56
        $region55: #{_lambda_.1} parent=35 // pred_region
          %s12407 = smul.u32 16, %s30
          %s12408 = smul.u32 8, %s29
          %s12410 = ssub.s32 8192, 8192
          %12411 = vsyncadd %s12400, %s12410
          %s12412 = smul.addr %s12407, 16
          %s12413 = sadd.s32 %s12408, %s12412
          %s12414 = smul.addr %s12413, 64
          %s12415 = scalar_lea.hbm %s4, %s12414
          %s12416 = sshll.u32 %s12403, 4
          %s12417 = int_to_ptr.vmem [resolvable:$true] %s12416
          %12422 = dma.vmem_to_hbm [thread:$0]  %s12417, 8192, %s12415, %s12400, 512, 1024, 32
        $region56: #{_lambda_.1} parent=35 // pred_fallthru
          _
      $region36: #{_lambda_.1} parent=5 // pred_fallthru
        _
      %p12423 = scmp.le.s32.totalorder 2, %s20
      // Predicated region
      $region57: #{_lambda_.1} parent=5 // pred_check
        %p12424 = pneg %p12423
      $region58: #{_lambda_.1} parent=5 // pred_check_branch
        %12426 = sbr.rel (%p12424) target = $region60
      $region59: #{_lambda_.1} parent=5 // pred_region
        %s12427 = ssub.s32 %s20, 2
        // Predicated region
        $region61: #{_lambda_.1} parent=59 // pred_check
          %p12428 = pneg %p167
        $region62: #{_lambda_.1} parent=59 // pred_check_branch
          %12430 = sbr.rel (%p12428) target = $region64
        $region63: #{_lambda_.1} parent=59 // pred_region
          %s12431 = sand.u32 %s152, 1
          %s12432 = scalar_lea.sflag [#allocation4], %s12431
          %s12433 = sand.u32 %s152, 1
          %s12434 = smul.addr %s12433, 512
          %s12435 = scalar_lea.vmem [#allocation10], %s12434
          %12436 = dma.done %s12432, 8192
        $region64: #{_lambda_.1} parent=59 // pred_fallthru
          _
      $region60: #{_lambda_.1} parent=5 // pred_fallthru
        _
    $region6: #{_lambda_.1} parent=1 // loop_footer
      %s24 = sadd.s32 1, %s20
    $region7: #{_lambda_.1} parent=1 // loop_footer_branch
      %19 = sbr.rel target = $region3
    $region8: #{_lambda_.1} parent=1 // loop_exit
      _
    %12437 = vsyncpa [#allocation3], 1
    %s12438 = scalar_lea.sflag [#allocation3], 1
    %12439 = vsyncpa %s12438, 1
    %12440 = vsyncpa [#allocation6], 1
    %s12441 = scalar_lea.sflag [#allocation6], 1
    %12442 = vsyncpa %s12441, 1
    %12443 = vsyncpa [#allocation9], 1
    %s12444 = scalar_lea.sflag [#allocation9], 1
    %12445 = vsyncpa %s12444, 1
    %12446 = vsyncpa [#allocation4], 1
    %s12447 = scalar_lea.sflag [#allocation4], 1
    %12448 = vsyncpa %s12447, 1

</llo_original>
